<compile_context>
chip_gen: v7x
topology: tpu7x:2x2x1
jax: 0.10.0
libtpu: 0.0.40
codegen_flags: <defaults>
</compile_context>

<pallas_src>
import math

import jax
import jax.numpy as jnp
from jax.experimental import pallas as pl
from jax.experimental.pallas import tpu as pltpu

BN_EPS = 1e-5


def d_arch(ndf=64, img_dim=3):
    arch = {}
    arch[32] = {'in_channels': [img_dim] + [ndf * i for i in [2, 4]],
                'out_channels': [ndf * i for i in [2, 4, 8]]}
    arch[64] = {'in_channels': [img_dim] + [ndf * i for i in [2, 4, 8]],
                'out_channels': [ndf * i for i in [2, 4, 8, 16]]}
    arch[128] = {'in_channels': [img_dim] + [ndf * i for i in [1, 2, 4, 8]],
                 'out_channels': [ndf * i for i in [1, 2, 4, 8, 16]]}
    return arch


# ----------------------------------------------------------------------------
# Fused Pallas kernel
# ----------------------------------------------------------------------------

def _full_spec(shape):
    nd = len(shape)
    return pl.BlockSpec(shape, lambda i, _nd=nd: (0,) * _nd)


def _encoder_fused_kernel(p1_ref, w1_ref, g1_ref, b1_ref,
                          w2_ref, g2_ref, b2_ref,
                          w3_ref, g3_ref, b3_ref,
                          wfc_ref, gfc_ref, bfc_ref,
                          wh_ref, bh_ref, eps_ref,
                          o_ref,
                          pad2_ref, pad3_ref):
    B = eps_ref.shape[0]

    def bn_relu(y, g, beta):
        # One-pass training-mode BatchNorm (biased variance over rows) + ReLU.
        m = y.shape[0]
        s1 = jnp.sum(y, axis=0, keepdims=True)
        s2 = jnp.sum(y * y, axis=0, keepdims=True)
        mean = s1 * (1.0 / m)
        var = s2 * (1.0 / m) - mean * mean
        return jnp.maximum((y - mean) * jax.lax.rsqrt(var + BN_EPS) * g + beta, 0.0)

    def conv_block(y2d, w_ref, g_ref, beta_ref, pad_ref):
        # y2d: (B*H*W, Cin), rows ordered (b, h, w).  Conv2d(k=4, s=2, p=1) as an
        # in-VMEM im2col + single matmul, then BN(train) + ReLU.
        Hp, Wp, Cin = pad_ref.shape[1], pad_ref.shape[2], pad_ref.shape[3]
        H, W = Hp - 2, Wp - 2
        Ho, Wo = H // 2, W // 2
        Hh, Wh = Hp // 2, Wp // 2

        # zero-padded activation kept in VMEM scratch
        pad_ref[...] = jnp.zeros((B, Hp, Wp, Cin), jnp.float32)
        pad_ref[:, 1:H + 1, 1:W + 1, :] = y2d.reshape(B, H, W, Cin)
        ap = pad_ref[...]                                  # (B, Hp, Wp, Cin)

        # parity planes: planes[ph][pw][b, i, j, c] = ap[b, 2i+ph, 2j+pw, c]
        wsplit = ap.reshape(B, Hp, Wh, 2, Cin)
        planes = []
        for ph in range(2):
            row = []
            for pw in range(2):
                t = wsplit[:, :, :, pw, :]                             # (B, Hp, Wh, Cin)
                t = t.reshape(B, Hh, 2, Wh, Cin)[:, :, ph, :, :]       # (B, Hh, Wh, Cin)
                row.append(t)
            planes.append(row)

        # im2col: patch column (kh, kw) = planes[kh%2][kw%2][:, kh//2:+Ho, kw//2:+Wo]
        cols = []
        for kh in range(4):
            for kw in range(4):
                t = planes[kh % 2][kw % 2]
                cols.append(t[:, kh // 2:kh // 2 + Ho, kw // 2:kw // 2 + Wo, :])
        patches = jnp.concatenate(cols, axis=-1)           # (B, Ho, Wo, 16*Cin)
        patches = patches.reshape(B * Ho * Wo, 16 * Cin)   # rows ordered (b, ho, wo)

        y = jnp.dot(patches, w_ref[...], preferred_element_type=jnp.float32)
        return bn_relu(y, g_ref[...], beta_ref[...])       # (B*Ho*Wo, Cout)

    # ---- block 1 (patches precomputed from the network input; no extra round trip)
    y1 = jnp.dot(p1_ref[...], w1_ref[...], preferred_element_type=jnp.float32)
    y1 = bn_relu(y1, g1_ref[...], b1_ref[...])             # (B*16*16, 16)

    # ---- blocks 2 and 3: entirely inside VMEM
    y2 = conv_block(y1, w2_ref, g2_ref, b2_ref, pad2_ref)  # (B*8*8, 32)
    y3 = conv_block(y2, w3_ref, g3_ref, b3_ref, pad3_ref)  # (B*4*4, 64)

    # ---- spatial sum over (H, W): rows are (b, h, w) contiguous chunks
    Cl = y3.shape[1]
    spb = y3.shape[0] // B
    hs = jnp.sum(y3.reshape(B, spb, Cl), axis=1)           # (B, 64)

    # ---- fc: Linear (bias dropped: cancelled by BN) + BatchNorm1d(train) + ReLU
    hfc = jnp.dot(hs, wfc_ref[...], preferred_element_type=jnp.float32)
    hfc = bn_relu(hfc, gfc_ref[...], bfc_ref[...])         # (B, 64)

    # ---- fused VAE head: [mu | logvar] in one matmul, then reparameterize
    ml = jnp.dot(hfc, wh_ref[...], preferred_element_type=jnp.float32) + bh_ref[...]
    D = o_ref.shape[1]
    mu = ml[:, :D]
    logvar = ml[:, D:]
    o_ref[...] = mu + eps_ref[...] * jnp.exp(0.5 * logvar)


def fused_encoder(p1, w1, g1, be1, w2, g2, be2, w3, g3, be3,
                  wfc, gfc, befc, wh, bh, eps):
    B, D = eps.shape
    s1 = int(round(math.sqrt(p1.shape[0] // B)))   # block-1 output spatial (16)
    s2 = s1 // 2                                   # block-2 output spatial (8)
    C2, C3 = w1.shape[1], w2.shape[1]              # 16, 32
    args = (p1, w1, g1, be1, w2, g2, be2, w3, g3, be3, wfc, gfc, befc, wh, bh, eps)
    return pl.pallas_call(
        _encoder_fused_kernel,
        out_shape=jax.ShapeDtypeStruct((B, D), jnp.float32),
        grid=(1,),
        in_specs=[_full_spec(a.shape) for a in args],
        out_specs=_full_spec((B, D)),
        scratch_shapes=[
            pltpu.VMEM((B, s1 + 2, s1 + 2, C2), jnp.float32),   # padded block-2 input
            pltpu.VMEM((B, s2 + 2, s2 + 2, C3), jnp.float32),   # padded block-3 input
        ],
        compiler_params=pltpu.CompilerParams(
            dimension_semantics=("arbitrary",),
            vmem_limit_bytes=32 * 1024 * 1024,   # explicit budget (v7x-safe)
        ),
    )(*args)


# ----------------------------------------------------------------------------
# XLA glue: im2col for block 1 only (input is read from HBM anyway; 98 KB)
# TODO(synk): block-1 im2col stays in XLA — with C=3 an in-kernel build costs more
#             sublane/lane shuffling than the tiny patch read it would avoid.
# ----------------------------------------------------------------------------

def extract_patches(x_nhwc):
    """x: (B, H, W, C) -> patches (B*Ho*Wo, 4*4*C), patch order (kh, kw, cin)."""
    B, H, W, C = x_nhwc.shape
    Ho, Wo = H // 2, W // 2
    xp = jnp.pad(x_nhwc, ((0, 0), (1, 1), (1, 1), (0, 0)))
    cols = []
    for di in range(4):
        for dj in range(4):
            cols.append(xp[:, di:di + 2 * Ho:2, dj:dj + 2 * Wo:2, :])  # (B,Ho,Wo,C)
    p = jnp.stack(cols, axis=3)                       # (B, Ho, Wo, 16, C)
    return p.reshape(B * Ho * Wo, 16 * C), (B, Ho, Wo)


# ----------------------------------------------------------------------------
# Parameter init (deterministic, N(0, 0.02) for conv/linear weights as 'N02')
# ----------------------------------------------------------------------------

def init_params(key, ndf=8, img_dim=3, resolution=32, output_dim=16):
    arch = d_arch(ndf=ndf, img_dim=img_dim)[resolution]
    params = {'blocks': []}
    for cin, cout in zip(arch['in_channels'], arch['out_channels']):
        key, k1, k2 = jax.random.split(key, 3)
        w = 0.02 * jax.random.normal(k1, (4 * 4 * cin, cout), jnp.float32)
        b = 0.02 * jax.random.normal(k2, (1, cout), jnp.float32)   # cancelled by BN
        g = jnp.ones((1, cout), jnp.float32)
        beta = jnp.zeros((1, cout), jnp.float32)
        params['blocks'].append((w, b, g, beta))
    last = arch['out_channels'][-1]
    key, k1, k2, k3, k4, k5, k6 = jax.random.split(key, 7)
    params['fc'] = (0.02 * jax.random.normal(k1, (last, last), jnp.float32),
                    0.02 * jax.random.normal(k2, (1, last), jnp.float32),   # cancelled by BN
                    jnp.ones((1, last), jnp.float32),
                    jnp.zeros((1, last), jnp.float32))
    params['out_mu'] = (0.02 * jax.random.normal(k3, (last, output_dim), jnp.float32),
                        0.02 * jax.random.normal(k4, (1, output_dim), jnp.float32))
    params['out_logvar'] = (0.02 * jax.random.normal(k5, (last, output_dim), jnp.float32),
                            0.02 * jax.random.normal(k6, (1, output_dim), jnp.float32))
    return params


# ----------------------------------------------------------------------------
# Forward pass (Pallas) and pure-JAX reference
# ----------------------------------------------------------------------------

@jax.jit
def encoder_forward(x_nchw, params, eps):
    x = jnp.transpose(x_nchw, (0, 2, 3, 1)).astype(jnp.float32)   # NCHW -> NHWC
    p1, _ = extract_patches(x)                                     # (B*16*16, 48)
    (w1, _, g1, be1), (w2, _, g2, be2), (w3, _, g3, be3) = params['blocks']
    wfc, _, gfc, befc = params['fc']
    wmu, bmu = params['out_mu']
    wlv, blv = params['out_logvar']
    wh = jnp.concatenate([wmu, wlv], axis=1)                       # (64, 2*out_dim)
    bh = jnp.concatenate([bmu, blv], axis=1)                       # (1, 2*out_dim)
    return fused_encoder(p1, w1, g1, be1, w2, g2, be2, w3, g3, be3,
                         wfc, gfc, befc, wh, bh, eps)


def encoder_reference(x_nchw, params, eps):
    """Pure-JAX/XLA reference (full PyTorch semantics, with the BN-cancelled biases)."""
    h = x_nchw.astype(jnp.float32)
    for (w, b, g, beta) in params['blocks']:
        cout = w.shape[1]
        cin = w.shape[0] // 16
        wk = jnp.transpose(w.reshape(4, 4, cin, cout), (3, 2, 0, 1))   # OIHW
        y = jax.lax.conv_general_dilated(h, wk, window_strides=(2, 2),
                                         padding=((1, 1), (1, 1)),
                                         precision='highest')
        y = y + b.reshape(1, -1, 1, 1)
        mean = jnp.mean(y, axis=(0, 2, 3), keepdims=True)
        var = jnp.mean((y - mean) ** 2, axis=(0, 2, 3), keepdims=True)
        y = (y - mean) * jax.lax.rsqrt(var + BN_EPS)
        h = jnp.maximum(y * g.reshape(1, -1, 1, 1) + beta.reshape(1, -1, 1, 1), 0.0)
    hs = jnp.sum(h, axis=(2, 3))
    wfc, bfc, gfc, betafc = params['fc']
    y = hs @ wfc + bfc
    mean = jnp.mean(y, axis=0, keepdims=True)
    var = jnp.mean((y - mean) ** 2, axis=0, keepdims=True)
    y = jnp.maximum((y - mean) * jax.lax.rsqrt(var + BN_EPS) * gfc + betafc, 0.0)
    wmu, bmu = params['out_mu']
    wlv, blv = params['out_logvar']
    mu = y @ wmu + bmu
    logvar = y @ wlv + blv
    return mu + eps * jnp.exp(0.5 * logvar)


if __name__ == "__main__":
    key = jax.random.PRNGKey(0)
    k_param, k_x, k_eps = jax.random.split(key, 3)

    B, IMG_DIM, RES, OUT_DIM, NDF = 2, 3, 32, 16, 8
    params = init_params(k_param, ndf=NDF, img_dim=IMG_DIM,
                         resolution=RES, output_dim=OUT_DIM)
    x = jax.random.normal(k_x, (B, IMG_DIM, RES, RES), jnp.float32)   # NCHW like PyTorch
    eps = jax.random.normal(k_eps, (B, OUT_DIM), jnp.float32)          # reparameterize noise

    out = encoder_forward(x, params, eps)
    out = jax.block_until_ready(out)

    ref = encoder_reference(x, params, eps)
    assert out.shape == (B, OUT_DIM)
    assert jnp.allclose(out, ref, rtol=2e-2, atol=2e-2), (out, ref)

    print("KERNEL_OK")
</pallas_src>

<mosaic_0001>
module attributes {stable_mosaic.version = 11 : i64} {
  func.func @_encoder_fused_kernel(%arg0: i32, %arg1: memref<512x48xf32, #tpu.memory_space<vmem>>, %arg2: memref<48x16xf32, #tpu.memory_space<vmem>>, %arg3: memref<1x16xf32, #tpu.memory_space<vmem>>, %arg4: memref<1x16xf32, #tpu.memory_space<vmem>>, %arg5: memref<256x32xf32, #tpu.memory_space<vmem>>, %arg6: memref<1x32xf32, #tpu.memory_space<vmem>>, %arg7: memref<1x32xf32, #tpu.memory_space<vmem>>, %arg8: memref<512x64xf32, #tpu.memory_space<vmem>>, %arg9: memref<1x64xf32, #tpu.memory_space<vmem>>, %arg10: memref<1x64xf32, #tpu.memory_space<vmem>>, %arg11: memref<64x64xf32, #tpu.memory_space<vmem>>, %arg12: memref<1x64xf32, #tpu.memory_space<vmem>>, %arg13: memref<1x64xf32, #tpu.memory_space<vmem>>, %arg14: memref<64x32xf32, #tpu.memory_space<vmem>>, %arg15: memref<1x32xf32, #tpu.memory_space<vmem>>, %arg16: memref<2x16xf32, #tpu.memory_space<vmem>>, %arg17: memref<2x16xf32, #tpu.memory_space<vmem>>, %arg18: memref<2x18x18x16xf32, #tpu.memory_space<vmem>>, %arg19: memref<2x10x10x32xf32, #tpu.memory_space<vmem>>) attributes {dimension_semantics = [#tpu.dimension_semantics<arbitrary>], iteration_bounds = array<i64: 1>, scalar_prefetch = 0 : i64, scratch_operands = 2 : i64, tpu.core_type = #tpu.core_type<tc>, window_params = [{pipeline_mode = #tpu.pipeline_mode<synchronous>, transform_indices = @transform_0, window_bounds = array<i64: 512, 48>}, {pipeline_mode = #tpu.pipeline_mode<synchronous>, transform_indices = @transform_1, window_bounds = array<i64: 48, 16>}, {pipeline_mode = #tpu.pipeline_mode<synchronous>, transform_indices = @transform_2, window_bounds = array<i64: 1, 16>}, {pipeline_mode = #tpu.pipeline_mode<synchronous>, transform_indices = @transform_3, window_bounds = array<i64: 1, 16>}, {pipeline_mode = #tpu.pipeline_mode<synchronous>, transform_indices = @transform_4, window_bounds = array<i64: 256, 32>}, {pipeline_mode = #tpu.pipeline_mode<synchronous>, transform_indices = @transform_5, window_bounds = array<i64: 1, 32>}, {pipeline_mode = #tpu.pipeline_mode<synchronous>, transform_indices = @transform_6, window_bounds = array<i64: 1, 32>}, {pipeline_mode = #tpu.pipeline_mode<synchronous>, transform_indices = @transform_7, window_bounds = array<i64: 512, 64>}, {pipeline_mode = #tpu.pipeline_mode<synchronous>, transform_indices = @transform_8, window_bounds = array<i64: 1, 64>}, {pipeline_mode = #tpu.pipeline_mode<synchronous>, transform_indices = @transform_9, window_bounds = array<i64: 1, 64>}, {pipeline_mode = #tpu.pipeline_mode<synchronous>, transform_indices = @transform_10, window_bounds = array<i64: 64, 64>}, {pipeline_mode = #tpu.pipeline_mode<synchronous>, transform_indices = @transform_11, window_bounds = array<i64: 1, 64>}, {pipeline_mode = #tpu.pipeline_mode<synchronous>, transform_indices = @transform_12, window_bounds = array<i64: 1, 64>}, {pipeline_mode = #tpu.pipeline_mode<synchronous>, transform_indices = @transform_13, window_bounds = array<i64: 64, 32>}, {pipeline_mode = #tpu.pipeline_mode<synchronous>, transform_indices = @transform_14, window_bounds = array<i64: 1, 32>}, {pipeline_mode = #tpu.pipeline_mode<synchronous>, transform_indices = @transform_15, window_bounds = array<i64: 2, 16>}, {pipeline_mode = #tpu.pipeline_mode<synchronous>, transform_indices = @transform_16, window_bounds = array<i64: 2, 16>}]} {
    %c0 = arith.constant 0 : index
    %c0_0 = arith.constant 0 : index
    %0 = vector.load %arg1[%c0, %c0_0] : memref<512x48xf32, #tpu.memory_space<vmem>>, vector<512x48xf32>
    %c0_1 = arith.constant 0 : index
    %c0_2 = arith.constant 0 : index
    %1 = vector.load %arg2[%c0_1, %c0_2] : memref<48x16xf32, #tpu.memory_space<vmem>>, vector<48x16xf32>
    %cst = arith.constant dense<0.000000e+00> : vector<512x16xf32>
    %2 = tpu.matmul %0, %1, %cst {dimension_numbers = #tpu.dot_dimension_numbers<[1], [0], [0], [1], [0, 0, 1, 1], [], []>} : vector<512x48xf32>, vector<48x16xf32>, vector<512x16xf32> -> vector<512x16xf32>
    %c0_3 = arith.constant 0 : index
    %c0_4 = arith.constant 0 : index
    %3 = vector.load %arg3[%c0_3, %c0_4] : memref<1x16xf32, #tpu.memory_space<vmem>>, vector<1x16xf32>
    %c0_5 = arith.constant 0 : index
    %c0_6 = arith.constant 0 : index
    %4 = vector.load %arg4[%c0_5, %c0_6] : memref<1x16xf32, #tpu.memory_space<vmem>>, vector<1x16xf32>
    %cst_7 = arith.constant dense<0.000000e+00> : vector<16xf32>
    %5 = vector.multi_reduction <add>, %2, %cst_7 [0] : vector<512x16xf32> to vector<16xf32>
    %6 = vector.shape_cast %5 : vector<16xf32> to vector<1x16xf32>
    %7 = arith.mulf %2, %2 : vector<512x16xf32>
    %cst_8 = arith.constant dense<0.000000e+00> : vector<16xf32>
    %8 = vector.multi_reduction <add>, %7, %cst_8 [0] : vector<512x16xf32> to vector<16xf32>
    %9 = vector.shape_cast %8 : vector<16xf32> to vector<1x16xf32>
    %cst_9 = arith.constant 0.001953125 : f32
    %10 = vector.broadcast %cst_9 : f32 to vector<1x16xf32>
    %11 = arith.mulf %6, %10 : vector<1x16xf32>
    %cst_10 = arith.constant 0.001953125 : f32
    %12 = vector.broadcast %cst_10 : f32 to vector<1x16xf32>
    %13 = arith.mulf %9, %12 : vector<1x16xf32>
    %14 = arith.mulf %11, %11 : vector<1x16xf32>
    %15 = arith.subf %13, %14 : vector<1x16xf32>
    %16 = vector.broadcast %11 : vector<1x16xf32> to vector<512x16xf32>
    %17 = arith.subf %2, %16 : vector<512x16xf32>
    %cst_11 = arith.constant 9.99999974E-6 : f32
    %18 = vector.broadcast %cst_11 : f32 to vector<1x16xf32>
    %19 = arith.addf %15, %18 : vector<1x16xf32>
    %20 = math.rsqrt %19 : vector<1x16xf32>
    %21 = vector.broadcast %20 : vector<1x16xf32> to vector<512x16xf32>
    %22 = arith.mulf %17, %21 : vector<512x16xf32>
    %23 = vector.broadcast %3 : vector<1x16xf32> to vector<512x16xf32>
    %24 = arith.mulf %22, %23 : vector<512x16xf32>
    %25 = vector.broadcast %4 : vector<1x16xf32> to vector<512x16xf32>
    %26 = arith.addf %24, %25 : vector<512x16xf32>
    %cst_12 = arith.constant 0.000000e+00 : f32
    %27 = vector.broadcast %cst_12 : f32 to vector<512x16xf32>
    %28 = arith.maximumf %26, %27 : vector<512x16xf32>
    %cst_13 = arith.constant 0.000000e+00 : f32
    %29 = vector.broadcast %cst_13 : f32 to vector<2x18x18x16xf32>
    %c0_14 = arith.constant 0 : index
    %c0_15 = arith.constant 0 : index
    %c0_16 = arith.constant 0 : index
    %c0_17 = arith.constant 0 : index
    %30 = vector.load %arg18[%c0_14, %c0_15, %c0_16, %c0_17] : memref<2x18x18x16xf32, #tpu.memory_space<vmem>>, vector<2x18x18x16xf32>
    tpu.vector_store %arg18[%c0_14, %c0_15, %c0_16, %c0_17], %29 {strides = array<i32>} : memref<2x18x18x16xf32, #tpu.memory_space<vmem>>, vector<2x18x18x16xf32>,
    %31 = vector.shape_cast %28 : vector<512x16xf32> to vector<2x16x16x16xf32>
    %c0_18 = arith.constant 0 : index
    %c1 = arith.constant 1 : index
    %c1_19 = arith.constant 1 : index
    %c0_20 = arith.constant 0 : index
    %32 = vector.load %arg18[%c0_18, %c1, %c1_19, %c0_20] : memref<2x18x18x16xf32, #tpu.memory_space<vmem>>, vector<2x16x16x16xf32>
    tpu.vector_store %arg18[%c0_18, %c1, %c1_19, %c0_20], %31 {strides = array<i32>} : memref<2x18x18x16xf32, #tpu.memory_space<vmem>>, vector<2x16x16x16xf32>,
    %c0_21 = arith.constant 0 : index
    %c0_22 = arith.constant 0 : index
    %c0_23 = arith.constant 0 : index
    %c0_24 = arith.constant 0 : index
    %33 = vector.load %arg18[%c0_21, %c0_22, %c0_23, %c0_24] : memref<2x18x18x16xf32, #tpu.memory_space<vmem>>, vector<2x18x18x16xf32>
    %34 = vector.shape_cast %33 : vector<2x18x18x16xf32> to vector<2x18x9x2x16xf32>
    %35 = vector.extract_strided_slice %34 {offsets = [0, 0, 0, 0, 0], sizes = [2, 18, 9, 1, 16], strides = [1, 1, 1, 1, 1]} : vector<2x18x9x2x16xf32> to vector<2x18x9x1x16xf32>
    %36 = vector.shape_cast %35 : vector<2x18x9x1x16xf32> to vector<2x18x9x16xf32>
    %37 = vector.shape_cast %36 : vector<2x18x9x16xf32> to vector<2x9x2x9x16xf32>
    %38 = vector.extract_strided_slice %37 {offsets = [0, 0, 0, 0, 0], sizes = [2, 9, 1, 9, 16], strides = [1, 1, 1, 1, 1]} : vector<2x9x2x9x16xf32> to vector<2x9x1x9x16xf32>
    %39 = vector.shape_cast %38 : vector<2x9x1x9x16xf32> to vector<2x9x9x16xf32>
    %40 = vector.extract_strided_slice %34 {offsets = [0, 0, 0, 1, 0], sizes = [2, 18, 9, 1, 16], strides = [1, 1, 1, 1, 1]} : vector<2x18x9x2x16xf32> to vector<2x18x9x1x16xf32>
    %41 = vector.shape_cast %40 : vector<2x18x9x1x16xf32> to vector<2x18x9x16xf32>
    %42 = vector.shape_cast %41 : vector<2x18x9x16xf32> to vector<2x9x2x9x16xf32>
    %43 = vector.extract_strided_slice %42 {offsets = [0, 0, 0, 0, 0], sizes = [2, 9, 1, 9, 16], strides = [1, 1, 1, 1, 1]} : vector<2x9x2x9x16xf32> to vector<2x9x1x9x16xf32>
    %44 = vector.shape_cast %43 : vector<2x9x1x9x16xf32> to vector<2x9x9x16xf32>
    %45 = vector.extract_strided_slice %34 {offsets = [0, 0, 0, 0, 0], sizes = [2, 18, 9, 1, 16], strides = [1, 1, 1, 1, 1]} : vector<2x18x9x2x16xf32> to vector<2x18x9x1x16xf32>
    %46 = vector.shape_cast %45 : vector<2x18x9x1x16xf32> to vector<2x18x9x16xf32>
    %47 = vector.shape_cast %46 : vector<2x18x9x16xf32> to vector<2x9x2x9x16xf32>
    %48 = vector.extract_strided_slice %47 {offsets = [0, 0, 1, 0, 0], sizes = [2, 9, 1, 9, 16], strides = [1, 1, 1, 1, 1]} : vector<2x9x2x9x16xf32> to vector<2x9x1x9x16xf32>
    %49 = vector.shape_cast %48 : vector<2x9x1x9x16xf32> to vector<2x9x9x16xf32>
    %50 = vector.extract_strided_slice %34 {offsets = [0, 0, 0, 1, 0], sizes = [2, 18, 9, 1, 16], strides = [1, 1, 1, 1, 1]} : vector<2x18x9x2x16xf32> to vector<2x18x9x1x16xf32>
    %51 = vector.shape_cast %50 : vector<2x18x9x1x16xf32> to vector<2x18x9x16xf32>
    %52 = vector.shape_cast %51 : vector<2x18x9x16xf32> to vector<2x9x2x9x16xf32>
    %53 = vector.extract_strided_slice %52 {offsets = [0, 0, 1, 0, 0], sizes = [2, 9, 1, 9, 16], strides = [1, 1, 1, 1, 1]} : vector<2x9x2x9x16xf32> to vector<2x9x1x9x16xf32>
    %54 = vector.shape_cast %53 : vector<2x9x1x9x16xf32> to vector<2x9x9x16xf32>
    %55 = vector.extract_strided_slice %39 {offsets = [0, 0, 0, 0], sizes = [2, 8, 8, 16], strides = [1, 1, 1, 1]} : vector<2x9x9x16xf32> to vector<2x8x8x16xf32>
    %56 = vector.extract_strided_slice %44 {offsets = [0, 0, 0, 0], sizes = [2, 8, 8, 16], strides = [1, 1, 1, 1]} : vector<2x9x9x16xf32> to vector<2x8x8x16xf32>
    %57 = vector.extract_strided_slice %39 {offsets = [0, 0, 1, 0], sizes = [2, 8, 8, 16], strides = [1, 1, 1, 1]} : vector<2x9x9x16xf32> to vector<2x8x8x16xf32>
    %58 = vector.extract_strided_slice %44 {offsets = [0, 0, 1, 0], sizes = [2, 8, 8, 16], strides = [1, 1, 1, 1]} : vector<2x9x9x16xf32> to vector<2x8x8x16xf32>
    %59 = vector.extract_strided_slice %49 {offsets = [0, 0, 0, 0], sizes = [2, 8, 8, 16], strides = [1, 1, 1, 1]} : vector<2x9x9x16xf32> to vector<2x8x8x16xf32>
    %60 = vector.extract_strided_slice %54 {offsets = [0, 0, 0, 0], sizes = [2, 8, 8, 16], strides = [1, 1, 1, 1]} : vector<2x9x9x16xf32> to vector<2x8x8x16xf32>
    %61 = vector.extract_strided_slice %49 {offsets = [0, 0, 1, 0], sizes = [2, 8, 8, 16], strides = [1, 1, 1, 1]} : vector<2x9x9x16xf32> to vector<2x8x8x16xf32>
    %62 = vector.extract_strided_slice %54 {offsets = [0, 0, 1, 0], sizes = [2, 8, 8, 16], strides = [1, 1, 1, 1]} : vector<2x9x9x16xf32> to vector<2x8x8x16xf32>
    %63 = vector.extract_strided_slice %39 {offsets = [0, 1, 0, 0], sizes = [2, 8, 8, 16], strides = [1, 1, 1, 1]} : vector<2x9x9x16xf32> to vector<2x8x8x16xf32>
    %64 = vector.extract_strided_slice %44 {offsets = [0, 1, 0, 0], sizes = [2, 8, 8, 16], strides = [1, 1, 1, 1]} : vector<2x9x9x16xf32> to vector<2x8x8x16xf32>
    %65 = vector.extract_strided_slice %39 {offsets = [0, 1, 1, 0], sizes = [2, 8, 8, 16], strides = [1, 1, 1, 1]} : vector<2x9x9x16xf32> to vector<2x8x8x16xf32>
    %66 = vector.extract_strided_slice %44 {offsets = [0, 1, 1, 0], sizes = [2, 8, 8, 16], strides = [1, 1, 1, 1]} : vector<2x9x9x16xf32> to vector<2x8x8x16xf32>
    %67 = vector.extract_strided_slice %49 {offsets = [0, 1, 0, 0], sizes = [2, 8, 8, 16], strides = [1, 1, 1, 1]} : vector<2x9x9x16xf32> to vector<2x8x8x16xf32>
    %68 = vector.extract_strided_slice %54 {offsets = [0, 1, 0, 0], sizes = [2, 8, 8, 16], strides = [1, 1, 1, 1]} : vector<2x9x9x16xf32> to vector<2x8x8x16xf32>
    %69 = vector.extract_strided_slice %49 {offsets = [0, 1, 1, 0], sizes = [2, 8, 8, 16], strides = [1, 1, 1, 1]} : vector<2x9x9x16xf32> to vector<2x8x8x16xf32>
    %70 = vector.extract_strided_slice %54 {offsets = [0, 1, 1, 0], sizes = [2, 8, 8, 16], strides = [1, 1, 1, 1]} : vector<2x9x9x16xf32> to vector<2x8x8x16xf32>
    %71 = tpu.concatenate %55, %56, %57, %58, %59, %60, %61, %62, %63, %64, %65, %66, %67, %68, %69, %70 in 3 : vector<2x8x8x16xf32>, vector<2x8x8x16xf32>, vector<2x8x8x16xf32>, vector<2x8x8x16xf32>, vector<2x8x8x16xf32>, vector<2x8x8x16xf32>, vector<2x8x8x16xf32>, vector<2x8x8x16xf32>, vector<2x8x8x16xf32>, vector<2x8x8x16xf32>, vector<2x8x8x16xf32>, vector<2x8x8x16xf32>, vector<2x8x8x16xf32>, vector<2x8x8x16xf32>, vector<2x8x8x16xf32>, vector<2x8x8x16xf32> -> vector<2x8x8x256xf32>
    %72 = vector.shape_cast %71 : vector<2x8x8x256xf32> to vector<128x256xf32>
    %c0_25 = arith.constant 0 : index
    %c0_26 = arith.constant 0 : index
    %73 = vector.load %arg5[%c0_25, %c0_26] : memref<256x32xf32, #tpu.memory_space<vmem>>, vector<256x32xf32>
    %cst_27 = arith.constant dense<0.000000e+00> : vector<128x32xf32>
    %74 = tpu.matmul %72, %73, %cst_27 {dimension_numbers = #tpu.dot_dimension_numbers<[1], [0], [0], [1], [0, 0, 1, 1], [], []>} : vector<128x256xf32>, vector<256x32xf32>, vector<128x32xf32> -> vector<128x32xf32>
    %c0_28 = arith.constant 0 : index
    %c0_29 = arith.constant 0 : index
    %75 = vector.load %arg6[%c0_28, %c0_29] : memref<1x32xf32, #tpu.memory_space<vmem>>, vector<1x32xf32>
    %c0_30 = arith.constant 0 : index
    %c0_31 = arith.constant 0 : index
    %76 = vector.load %arg7[%c0_30, %c0_31] : memref<1x32xf32, #tpu.memory_space<vmem>>, vector<1x32xf32>
    %cst_32 = arith.constant dense<0.000000e+00> : vector<32xf32>
    %77 = vector.multi_reduction <add>, %74, %cst_32 [0] : vector<128x32xf32> to vector<32xf32>
    %78 = vector.shape_cast %77 : vector<32xf32> to vector<1x32xf32>
    %79 = arith.mulf %74, %74 : vector<128x32xf32>
    %cst_33 = arith.constant dense<0.000000e+00> : vector<32xf32>
    %80 = vector.multi_reduction <add>, %79, %cst_33 [0] : vector<128x32xf32> to vector<32xf32>
    %81 = vector.shape_cast %80 : vector<32xf32> to vector<1x32xf32>
    %cst_34 = arith.constant 7.812500e-03 : f32
    %82 = vector.broadcast %cst_34 : f32 to vector<1x32xf32>
    %83 = arith.mulf %78, %82 : vector<1x32xf32>
    %cst_35 = arith.constant 7.812500e-03 : f32
    %84 = vector.broadcast %cst_35 : f32 to vector<1x32xf32>
    %85 = arith.mulf %81, %84 : vector<1x32xf32>
    %86 = arith.mulf %83, %83 : vector<1x32xf32>
    %87 = arith.subf %85, %86 : vector<1x32xf32>
    %88 = vector.broadcast %83 : vector<1x32xf32> to vector<128x32xf32>
    %89 = arith.subf %74, %88 : vector<128x32xf32>
    %cst_36 = arith.constant 9.99999974E-6 : f32
    %90 = vector.broadcast %cst_36 : f32 to vector<1x32xf32>
    %91 = arith.addf %87, %90 : vector<1x32xf32>
    %92 = math.rsqrt %91 : vector<1x32xf32>
    %93 = vector.broadcast %92 : vector<1x32xf32> to vector<128x32xf32>
    %94 = arith.mulf %89, %93 : vector<128x32xf32>
    %95 = vector.broadcast %75 : vector<1x32xf32> to vector<128x32xf32>
    %96 = arith.mulf %94, %95 : vector<128x32xf32>
    %97 = vector.broadcast %76 : vector<1x32xf32> to vector<128x32xf32>
    %98 = arith.addf %96, %97 : vector<128x32xf32>
    %cst_37 = arith.constant 0.000000e+00 : f32
    %99 = vector.broadcast %cst_37 : f32 to vector<128x32xf32>
    %100 = arith.maximumf %98, %99 : vector<128x32xf32>
    %cst_38 = arith.constant 0.000000e+00 : f32
    %101 = vector.broadcast %cst_38 : f32 to vector<2x10x10x32xf32>
    %c0_39 = arith.constant 0 : index
    %c0_40 = arith.constant 0 : index
    %c0_41 = arith.constant 0 : index
    %c0_42 = arith.constant 0 : index
    %102 = vector.load %arg19[%c0_39, %c0_40, %c0_41, %c0_42] : memref<2x10x10x32xf32, #tpu.memory_space<vmem>>, vector<2x10x10x32xf32>
    tpu.vector_store %arg19[%c0_39, %c0_40, %c0_41, %c0_42], %101 {strides = array<i32>} : memref<2x10x10x32xf32, #tpu.memory_space<vmem>>, vector<2x10x10x32xf32>,
    %103 = vector.shape_cast %100 : vector<128x32xf32> to vector<2x8x8x32xf32>
    %c0_43 = arith.constant 0 : index
    %c1_44 = arith.constant 1 : index
    %c1_45 = arith.constant 1 : index
    %c0_46 = arith.constant 0 : index
    %104 = vector.load %arg19[%c0_43, %c1_44, %c1_45, %c0_46] : memref<2x10x10x32xf32, #tpu.memory_space<vmem>>, vector<2x8x8x32xf32>
    tpu.vector_store %arg19[%c0_43, %c1_44, %c1_45, %c0_46], %103 {strides = array<i32>} : memref<2x10x10x32xf32, #tpu.memory_space<vmem>>, vector<2x8x8x32xf32>,
    %c0_47 = arith.constant 0 : index
    %c0_48 = arith.constant 0 : index
    %c0_49 = arith.constant 0 : index
    %c0_50 = arith.constant 0 : index
    %105 = vector.load %arg19[%c0_47, %c0_48, %c0_49, %c0_50] : memref<2x10x10x32xf32, #tpu.memory_space<vmem>>, vector<2x10x10x32xf32>
    %106 = vector.shape_cast %105 : vector<2x10x10x32xf32> to vector<2x10x5x2x32xf32>
    %107 = vector.extract_strided_slice %106 {offsets = [0, 0, 0, 0, 0], sizes = [2, 10, 5, 1, 32], strides = [1, 1, 1, 1, 1]} : vector<2x10x5x2x32xf32> to vector<2x10x5x1x32xf32>
    %108 = vector.shape_cast %107 : vector<2x10x5x1x32xf32> to vector<2x10x5x32xf32>
    %109 = vector.shape_cast %108 : vector<2x10x5x32xf32> to vector<2x5x2x5x32xf32>
    %110 = vector.extract_strided_slice %109 {offsets = [0, 0, 0, 0, 0], sizes = [2, 5, 1, 5, 32], strides = [1, 1, 1, 1, 1]} : vector<2x5x2x5x32xf32> to vector<2x5x1x5x32xf32>
    %111 = vector.shape_cast %110 : vector<2x5x1x5x32xf32> to vector<2x5x5x32xf32>
    %112 = vector.extract_strided_slice %106 {offsets = [0, 0, 0, 1, 0], sizes = [2, 10, 5, 1, 32], strides = [1, 1, 1, 1, 1]} : vector<2x10x5x2x32xf32> to vector<2x10x5x1x32xf32>
    %113 = vector.shape_cast %112 : vector<2x10x5x1x32xf32> to vector<2x10x5x32xf32>
    %114 = vector.shape_cast %113 : vector<2x10x5x32xf32> to vector<2x5x2x5x32xf32>
    %115 = vector.extract_strided_slice %114 {offsets = [0, 0, 0, 0, 0], sizes = [2, 5, 1, 5, 32], strides = [1, 1, 1, 1, 1]} : vector<2x5x2x5x32xf32> to vector<2x5x1x5x32xf32>
    %116 = vector.shape_cast %115 : vector<2x5x1x5x32xf32> to vector<2x5x5x32xf32>
    %117 = vector.extract_strided_slice %106 {offsets = [0, 0, 0, 0, 0], sizes = [2, 10, 5, 1, 32], strides = [1, 1, 1, 1, 1]} : vector<2x10x5x2x32xf32> to vector<2x10x5x1x32xf32>
    %118 = vector.shape_cast %117 : vector<2x10x5x1x32xf32> to vector<2x10x5x32xf32>
    %119 = vector.shape_cast %118 : vector<2x10x5x32xf32> to vector<2x5x2x5x32xf32>
    %120 = vector.extract_strided_slice %119 {offsets = [0, 0, 1, 0, 0], sizes = [2, 5, 1, 5, 32], strides = [1, 1, 1, 1, 1]} : vector<2x5x2x5x32xf32> to vector<2x5x1x5x32xf32>
    %121 = vector.shape_cast %120 : vector<2x5x1x5x32xf32> to vector<2x5x5x32xf32>
    %122 = vector.extract_strided_slice %106 {offsets = [0, 0, 0, 1, 0], sizes = [2, 10, 5, 1, 32], strides = [1, 1, 1, 1, 1]} : vector<2x10x5x2x32xf32> to vector<2x10x5x1x32xf32>
    %123 = vector.shape_cast %122 : vector<2x10x5x1x32xf32> to vector<2x10x5x32xf32>
    %124 = vector.shape_cast %123 : vector<2x10x5x32xf32> to vector<2x5x2x5x32xf32>
    %125 = vector.extract_strided_slice %124 {offsets = [0, 0, 1, 0, 0], sizes = [2, 5, 1, 5, 32], strides = [1, 1, 1, 1, 1]} : vector<2x5x2x5x32xf32> to vector<2x5x1x5x32xf32>
    %126 = vector.shape_cast %125 : vector<2x5x1x5x32xf32> to vector<2x5x5x32xf32>
    %127 = vector.extract_strided_slice %111 {offsets = [0, 0, 0, 0], sizes = [2, 4, 4, 32], strides = [1, 1, 1, 1]} : vector<2x5x5x32xf32> to vector<2x4x4x32xf32>
    %128 = vector.extract_strided_slice %116 {offsets = [0, 0, 0, 0], sizes = [2, 4, 4, 32], strides = [1, 1, 1, 1]} : vector<2x5x5x32xf32> to vector<2x4x4x32xf32>
    %129 = vector.extract_strided_slice %111 {offsets = [0, 0, 1, 0], sizes = [2, 4, 4, 32], strides = [1, 1, 1, 1]} : vector<2x5x5x32xf32> to vector<2x4x4x32xf32>
    %130 = vector.extract_strided_slice %116 {offsets = [0, 0, 1, 0], sizes = [2, 4, 4, 32], strides = [1, 1, 1, 1]} : vector<2x5x5x32xf32> to vector<2x4x4x32xf32>
    %131 = vector.extract_strided_slice %121 {offsets = [0, 0, 0, 0], sizes = [2, 4, 4, 32], strides = [1, 1, 1, 1]} : vector<2x5x5x32xf32> to vector<2x4x4x32xf32>
    %132 = vector.extract_strided_slice %126 {offsets = [0, 0, 0, 0], sizes = [2, 4, 4, 32], strides = [1, 1, 1, 1]} : vector<2x5x5x32xf32> to vector<2x4x4x32xf32>
    %133 = vector.extract_strided_slice %121 {offsets = [0, 0, 1, 0], sizes = [2, 4, 4, 32], strides = [1, 1, 1, 1]} : vector<2x5x5x32xf32> to vector<2x4x4x32xf32>
    %134 = vector.extract_strided_slice %126 {offsets = [0, 0, 1, 0], sizes = [2, 4, 4, 32], strides = [1, 1, 1, 1]} : vector<2x5x5x32xf32> to vector<2x4x4x32xf32>
    %135 = vector.extract_strided_slice %111 {offsets = [0, 1, 0, 0], sizes = [2, 4, 4, 32], strides = [1, 1, 1, 1]} : vector<2x5x5x32xf32> to vector<2x4x4x32xf32>
    %136 = vector.extract_strided_slice %116 {offsets = [0, 1, 0, 0], sizes = [2, 4, 4, 32], strides = [1, 1, 1, 1]} : vector<2x5x5x32xf32> to vector<2x4x4x32xf32>
    %137 = vector.extract_strided_slice %111 {offsets = [0, 1, 1, 0], sizes = [2, 4, 4, 32], strides = [1, 1, 1, 1]} : vector<2x5x5x32xf32> to vector<2x4x4x32xf32>
    %138 = vector.extract_strided_slice %116 {offsets = [0, 1, 1, 0], sizes = [2, 4, 4, 32], strides = [1, 1, 1, 1]} : vector<2x5x5x32xf32> to vector<2x4x4x32xf32>
    %139 = vector.extract_strided_slice %121 {offsets = [0, 1, 0, 0], sizes = [2, 4, 4, 32], strides = [1, 1, 1, 1]} : vector<2x5x5x32xf32> to vector<2x4x4x32xf32>
    %140 = vector.extract_strided_slice %126 {offsets = [0, 1, 0, 0], sizes = [2, 4, 4, 32], strides = [1, 1, 1, 1]} : vector<2x5x5x32xf32> to vector<2x4x4x32xf32>
    %141 = vector.extract_strided_slice %121 {offsets = [0, 1, 1, 0], sizes = [2, 4, 4, 32], strides = [1, 1, 1, 1]} : vector<2x5x5x32xf32> to vector<2x4x4x32xf32>
    %142 = vector.extract_strided_slice %126 {offsets = [0, 1, 1, 0], sizes = [2, 4, 4, 32], strides = [1, 1, 1, 1]} : vector<2x5x5x32xf32> to vector<2x4x4x32xf32>
    %143 = tpu.concatenate %127, %128, %129, %130, %131, %132, %133, %134, %135, %136, %137, %138, %139, %140, %141, %142 in 3 : vector<2x4x4x32xf32>, vector<2x4x4x32xf32>, vector<2x4x4x32xf32>, vector<2x4x4x32xf32>, vector<2x4x4x32xf32>, vector<2x4x4x32xf32>, vector<2x4x4x32xf32>, vector<2x4x4x32xf32>, vector<2x4x4x32xf32>, vector<2x4x4x32xf32>, vector<2x4x4x32xf32>, vector<2x4x4x32xf32>, vector<2x4x4x32xf32>, vector<2x4x4x32xf32>, vector<2x4x4x32xf32>, vector<2x4x4x32xf32> -> vector<2x4x4x512xf32>
    %144 = vector.shape_cast %143 : vector<2x4x4x512xf32> to vector<32x512xf32>
    %c0_51 = arith.constant 0 : index
    %c0_52 = arith.constant 0 : index
    %145 = vector.load %arg8[%c0_51, %c0_52] : memref<512x64xf32, #tpu.memory_space<vmem>>, vector<512x64xf32>
    %cst_53 = arith.constant dense<0.000000e+00> : vector<32x64xf32>
    %146 = tpu.matmul %144, %145, %cst_53 {dimension_numbers = #tpu.dot_dimension_numbers<[1], [0], [0], [1], [0, 0, 1, 1], [], []>} : vector<32x512xf32>, vector<512x64xf32>, vector<32x64xf32> -> vector<32x64xf32>
    %c0_54 = arith.constant 0 : index
    %c0_55 = arith.constant 0 : index
    %147 = vector.load %arg9[%c0_54, %c0_55] : memref<1x64xf32, #tpu.memory_space<vmem>>, vector<1x64xf32>
    %c0_56 = arith.constant 0 : index
    %c0_57 = arith.constant 0 : index
    %148 = vector.load %arg10[%c0_56, %c0_57] : memref<1x64xf32, #tpu.memory_space<vmem>>, vector<1x64xf32>
    %cst_58 = arith.constant dense<0.000000e+00> : vector<64xf32>
    %149 = vector.multi_reduction <add>, %146, %cst_58 [0] : vector<32x64xf32> to vector<64xf32>
    %150 = vector.shape_cast %149 : vector<64xf32> to vector<1x64xf32>
    %151 = arith.mulf %146, %146 : vector<32x64xf32>
    %cst_59 = arith.constant dense<0.000000e+00> : vector<64xf32>
    %152 = vector.multi_reduction <add>, %151, %cst_59 [0] : vector<32x64xf32> to vector<64xf32>
    %153 = vector.shape_cast %152 : vector<64xf32> to vector<1x64xf32>
    %cst_60 = arith.constant 3.125000e-02 : f32
    %154 = vector.broadcast %cst_60 : f32 to vector<1x64xf32>
    %155 = arith.mulf %150, %154 : vector<1x64xf32>
    %cst_61 = arith.constant 3.125000e-02 : f32
    %156 = vector.broadcast %cst_61 : f32 to vector<1x64xf32>
    %157 = arith.mulf %153, %156 : vector<1x64xf32>
    %158 = arith.mulf %155, %155 : vector<1x64xf32>
    %159 = arith.subf %157, %158 : vector<1x64xf32>
    %160 = vector.broadcast %155 : vector<1x64xf32> to vector<32x64xf32>
    %161 = arith.subf %146, %160 : vector<32x64xf32>
    %cst_62 = arith.constant 9.99999974E-6 : f32
    %162 = vector.broadcast %cst_62 : f32 to vector<1x64xf32>
    %163 = arith.addf %159, %162 : vector<1x64xf32>
    %164 = math.rsqrt %163 : vector<1x64xf32>
    %165 = vector.broadcast %164 : vector<1x64xf32> to vector<32x64xf32>
    %166 = arith.mulf %161, %165 : vector<32x64xf32>
    %167 = vector.broadcast %147 : vector<1x64xf32> to vector<32x64xf32>
    %168 = arith.mulf %166, %167 : vector<32x64xf32>
    %169 = vector.broadcast %148 : vector<1x64xf32> to vector<32x64xf32>
    %170 = arith.addf %168, %169 : vector<32x64xf32>
    %cst_63 = arith.constant 0.000000e+00 : f32
    %171 = vector.broadcast %cst_63 : f32 to vector<32x64xf32>
    %172 = arith.maximumf %170, %171 : vector<32x64xf32>
    %173 = vector.shape_cast %172 : vector<32x64xf32> to vector<2x16x64xf32>
    %cst_64 = arith.constant dense<0.000000e+00> : vector<2x64xf32>
    %174 = vector.multi_reduction <add>, %173, %cst_64 [1] : vector<2x16x64xf32> to vector<2x64xf32>
    %c0_65 = arith.constant 0 : index
    %c0_66 = arith.constant 0 : index
    %175 = vector.load %arg11[%c0_65, %c0_66] : memref<64x64xf32, #tpu.memory_space<vmem>>, vector<64x64xf32>
    %cst_67 = arith.constant dense<0.000000e+00> : vector<2x64xf32>
    %176 = tpu.matmul %174, %175, %cst_67 {dimension_numbers = #tpu.dot_dimension_numbers<[1], [0], [0], [1], [0, 0, 1, 1], [], []>} : vector<2x64xf32>, vector<64x64xf32>, vector<2x64xf32> -> vector<2x64xf32>
    %c0_68 = arith.constant 0 : index
    %c0_69 = arith.constant 0 : index
    %177 = vector.load %arg12[%c0_68, %c0_69] : memref<1x64xf32, #tpu.memory_space<vmem>>, vector<1x64xf32>
    %c0_70 = arith.constant 0 : index
    %c0_71 = arith.constant 0 : index
    %178 = vector.load %arg13[%c0_70, %c0_71] : memref<1x64xf32, #tpu.memory_space<vmem>>, vector<1x64xf32>
    %cst_72 = arith.constant dense<0.000000e+00> : vector<64xf32>
    %179 = vector.multi_reduction <add>, %176, %cst_72 [0] : vector<2x64xf32> to vector<64xf32>
    %180 = vector.shape_cast %179 : vector<64xf32> to vector<1x64xf32>
    %181 = arith.mulf %176, %176 : vector<2x64xf32>
    %cst_73 = arith.constant dense<0.000000e+00> : vector<64xf32>
    %182 = vector.multi_reduction <add>, %181, %cst_73 [0] : vector<2x64xf32> to vector<64xf32>
    %183 = vector.shape_cast %182 : vector<64xf32> to vector<1x64xf32>
    %cst_74 = arith.constant 5.000000e-01 : f32
    %184 = vector.broadcast %cst_74 : f32 to vector<1x64xf32>
    %185 = arith.mulf %180, %184 : vector<1x64xf32>
    %cst_75 = arith.constant 5.000000e-01 : f32
    %186 = vector.broadcast %cst_75 : f32 to vector<1x64xf32>
    %187 = arith.mulf %183, %186 : vector<1x64xf32>
    %188 = arith.mulf %185, %185 : vector<1x64xf32>
    %189 = arith.subf %187, %188 : vector<1x64xf32>
    %190 = vector.broadcast %185 : vector<1x64xf32> to vector<2x64xf32>
    %191 = arith.subf %176, %190 : vector<2x64xf32>
    %cst_76 = arith.constant 9.99999974E-6 : f32
    %192 = vector.broadcast %cst_76 : f32 to vector<1x64xf32>
    %193 = arith.addf %189, %192 : vector<1x64xf32>
    %194 = math.rsqrt %193 : vector<1x64xf32>
    %195 = vector.broadcast %194 : vector<1x64xf32> to vector<2x64xf32>
    %196 = arith.mulf %191, %195 : vector<2x64xf32>
    %197 = vector.broadcast %177 : vector<1x64xf32> to vector<2x64xf32>
    %198 = arith.mulf %196, %197 : vector<2x64xf32>
    %199 = vector.broadcast %178 : vector<1x64xf32> to vector<2x64xf32>
    %200 = arith.addf %198, %199 : vector<2x64xf32>
    %cst_77 = arith.constant 0.000000e+00 : f32
    %201 = vector.broadcast %cst_77 : f32 to vector<2x64xf32>
    %202 = arith.maximumf %200, %201 : vector<2x64xf32>
    %c0_78 = arith.constant 0 : index
    %c0_79 = arith.constant 0 : index
    %203 = vector.load %arg14[%c0_78, %c0_79] : memref<64x32xf32, #tpu.memory_space<vmem>>, vector<64x32xf32>
    %cst_80 = arith.constant dense<0.000000e+00> : vector<2x32xf32>
    %204 = tpu.matmul %202, %203, %cst_80 {dimension_numbers = #tpu.dot_dimension_numbers<[1], [0], [0], [1], [0, 0, 1, 1], [], []>} : vector<2x64xf32>, vector<64x32xf32>, vector<2x32xf32> -> vector<2x32xf32>
    %c0_81 = arith.constant 0 : index
    %c0_82 = arith.constant 0 : index
    %205 = vector.load %arg15[%c0_81, %c0_82] : memref<1x32xf32, #tpu.memory_space<vmem>>, vector<1x32xf32>
    %206 = vector.broadcast %205 : vector<1x32xf32> to vector<2x32xf32>
    %207 = arith.addf %204, %206 : vector<2x32xf32>
    %208 = vector.extract_strided_slice %207 {offsets = [0, 0], sizes = [2, 16], strides = [1, 1]} : vector<2x32xf32> to vector<2x16xf32>
    %209 = vector.extract_strided_slice %207 {offsets = [0, 16], sizes = [2, 16], strides = [1, 1]} : vector<2x32xf32> to vector<2x16xf32>
    %c0_83 = arith.constant 0 : index
    %c0_84 = arith.constant 0 : index
    %210 = vector.load %arg16[%c0_83, %c0_84] : memref<2x16xf32, #tpu.memory_space<vmem>>, vector<2x16xf32>
    %cst_85 = arith.constant 5.000000e-01 : f32
    %211 = vector.broadcast %cst_85 : f32 to vector<2x16xf32>
    %212 = arith.mulf %211, %209 : vector<2x16xf32>
    %213 = math.exp %212 : vector<2x16xf32>
    %214 = arith.mulf %210, %213 : vector<2x16xf32>
    %215 = arith.addf %208, %214 : vector<2x16xf32>
    %c0_86 = arith.constant 0 : index
    %c0_87 = arith.constant 0 : index
    %216 = vector.load %arg17[%c0_86, %c0_87] : memref<2x16xf32, #tpu.memory_space<vmem>>, vector<2x16xf32>
    tpu.vector_store %arg17[%c0_86, %c0_87], %215 {strides = array<i32>} : memref<2x16xf32, #tpu.memory_space<vmem>>, vector<2x16xf32>,
    return
  }
  func.func @transform_0(%arg0: i32) -> (i32, i32) {
    %c0_i32 = arith.constant 0 : i32
    %c0_i32_0 = arith.constant 0 : i32
    %c0_i32_1 = arith.constant 0 : i32
    return %c0_i32, %c0_i32_0 : i32, i32
  }
  func.func @transform_1(%arg0: i32) -> (i32, i32) {
    %c0_i32 = arith.constant 0 : i32
    %c0_i32_0 = arith.constant 0 : i32
    %c0_i32_1 = arith.constant 0 : i32
    return %c0_i32, %c0_i32_0 : i32, i32
  }
  func.func @transform_2(%arg0: i32) -> (i32, i32) {
    %c0_i32 = arith.constant 0 : i32
    %c0_i32_0 = arith.constant 0 : i32
    %c0_i32_1 = arith.constant 0 : i32
    return %c0_i32, %c0_i32_0 : i32, i32
  }
  func.func @transform_3(%arg0: i32) -> (i32, i32) {
    %c0_i32 = arith.constant 0 : i32
    %c0_i32_0 = arith.constant 0 : i32
    %c0_i32_1 = arith.constant 0 : i32
    return %c0_i32, %c0_i32_0 : i32, i32
  }
  func.func @transform_4(%arg0: i32) -> (i32, i32) {
    %c0_i32 = arith.constant 0 : i32
    %c0_i32_0 = arith.constant 0 : i32
    %c0_i32_1 = arith.constant 0 : i32
    return %c0_i32, %c0_i32_0 : i32, i32
  }
  func.func @transform_5(%arg0: i32) -> (i32, i32) {
    %c0_i32 = arith.constant 0 : i32
    %c0_i32_0 = arith.constant 0 : i32
    %c0_i32_1 = arith.constant 0 : i32
    return %c0_i32, %c0_i32_0 : i32, i32
  }
  func.func @transform_6(%arg0: i32) -> (i32, i32) {
    %c0_i32 = arith.constant 0 : i32
    %c0_i32_0 = arith.constant 0 : i32
    %c0_i32_1 = arith.constant 0 : i32
    return %c0_i32, %c0_i32_0 : i32, i32
  }
  func.func @transform_7(%arg0: i32) -> (i32, i32) {
    %c0_i32 = arith.constant 0 : i32
    %c0_i32_0 = arith.constant 0 : i32
    %c0_i32_1 = arith.constant 0 : i32
    return %c0_i32, %c0_i32_0 : i32, i32
  }
  func.func @transform_8(%arg0: i32) -> (i32, i32) {
    %c0_i32 = arith.constant 0 : i32
    %c0_i32_0 = arith.constant 0 : i32
    %c0_i32_1 = arith.constant 0 : i32
    return %c0_i32, %c0_i32_0 : i32, i32
  }
  func.func @transform_9(%arg0: i32) -> (i32, i32) {
    %c0_i32 = arith.constant 0 : i32
    %c0_i32_0 = arith.constant 0 : i32
    %c0_i32_1 = arith.constant 0 : i32
    return %c0_i32, %c0_i32_0 : i32, i32
  }
  func.func @transform_10(%arg0: i32) -> (i32, i32) {
    %c0_i32 = arith.constant 0 : i32
    %c0_i32_0 = arith.constant 0 : i32
    %c0_i32_1 = arith.constant 0 : i32
    return %c0_i32, %c0_i32_0 : i32, i32
  }
  func.func @transform_11(%arg0: i32) -> (i32, i32) {
    %c0_i32 = arith.constant 0 : i32
    %c0_i32_0 = arith.constant 0 : i32
    %c0_i32_1 = arith.constant 0 : i32
    return %c0_i32, %c0_i32_0 : i32, i32
  }
  func.func @transform_12(%arg0: i32) -> (i32, i32) {
    %c0_i32 = arith.constant 0 : i32
    %c0_i32_0 = arith.constant 0 : i32
    %c0_i32_1 = arith.constant 0 : i32
    return %c0_i32, %c0_i32_0 : i32, i32
  }
  func.func @transform_13(%arg0: i32) -> (i32, i32) {
    %c0_i32 = arith.constant 0 : i32
    %c0_i32_0 = arith.constant 0 : i32
    %c0_i32_1 = arith.constant 0 : i32
    return %c0_i32, %c0_i32_0 : i32, i32
  }
  func.func @transform_14(%arg0: i32) -> (i32, i32) {
    %c0_i32 = arith.constant 0 : i32
    %c0_i32_0 = arith.constant 0 : i32
    %c0_i32_1 = arith.constant 0 : i32
    return %c0_i32, %c0_i32_0 : i32, i32
  }
  func.func @transform_15(%arg0: i32) -> (i32, i32) {
    %c0_i32 = arith.constant 0 : i32
    %c0_i32_0 = arith.constant 0 : i32
    %c0_i32_1 = arith.constant 0 : i32
    return %c0_i32, %c0_i32_0 : i32, i32
  }
  func.func @transform_16(%arg0: i32) -> (i32, i32) {
    %c0_i32 = arith.constant 0 : i32
    %c0_i32_0 = arith.constant 0 : i32
    %c0_i32_1 = arith.constant 0 : i32
    return %c0_i32, %c0_i32_0 : i32, i32
  }
}

</mosaic_0001>

<llo_original>
// kernel: encoder_forward.1
$region0: #{encoder_forward.1}
  #allocation0 [shape = 'u32[]', space=smem, size = 0x4, offset = 0x4, fixed_abs, tag = 'smem constant byte address 0x4 - core index']
  #allocation1 [shape = 'u32[144,128]{1,0:T(1,128)}', space=vmem, size = 0x12000, scoped, tag = 'internal scratch']
  #allocation2 [shape = 'f32[2,18,18,16]{3,2,1,0:T(8,128)}', space=vmem, size = 0x6c000, scoped, tag = 'scratch operand']
  #allocation3 [shape = 'f32[2,10,10,32]{3,2,1,0:T(8,128)}', space=vmem, size = 0x28000, scoped, tag = 'scratch operand']
  %s0 = inlined_call_operand.vmem [shape: f32[512,48], index: 0, kind: input, shape index: {}]
  %s1 = inlined_call_operand.vmem [shape: f32[48,16], index: 1, kind: input, shape index: {}]
  %s2 = inlined_call_operand.vmem [shape: f32[1,16], index: 2, kind: input, shape index: {}]
  %s3 = inlined_call_operand.vmem [shape: f32[1,16], index: 3, kind: input, shape index: {}]
  %s4 = inlined_call_operand.vmem [shape: f32[256,32], index: 4, kind: input, shape index: {}]
  %s5 = inlined_call_operand.vmem [shape: f32[1,32], index: 5, kind: input, shape index: {}]
  %s6 = inlined_call_operand.vmem [shape: f32[1,32], index: 6, kind: input, shape index: {}]
  %s7 = inlined_call_operand.vmem [shape: f32[512,64], index: 7, kind: input, shape index: {}]
  %s8 = inlined_call_operand.vmem [shape: f32[1,64], index: 8, kind: input, shape index: {}]
  %s9 = inlined_call_operand.vmem [shape: f32[1,64], index: 9, kind: input, shape index: {}]
  %s10 = inlined_call_operand.vmem [shape: f32[64,64], index: 10, kind: input, shape index: {}]
  %s11 = inlined_call_operand.vmem [shape: f32[1,64], index: 11, kind: input, shape index: {}]
  %s12 = inlined_call_operand.vmem [shape: f32[1,64], index: 12, kind: input, shape index: {}]
  %s13 = inlined_call_operand.vmem [shape: f32[64,32], index: 13, kind: input, shape index: {}]
  %s14 = inlined_call_operand.vmem [shape: f32[1,32], index: 14, kind: input, shape index: {}]
  %s15 = inlined_call_operand.vmem [shape: f32[2,16], index: 15, kind: input, shape index: {}]
  %s16 = inlined_call_operand.hbm [shape: f32[2,16], index: 16, kind: output, shape index: {}]
  %s17 = sld [smem:[#allocation0]]
  $region74: #{encoder_forward.1} parent=0
    _
  %s19 = ssub.s32 1, %s17
  %s20 = scalar_select 0, %s19, %s17
  $region1: #{encoder_forward.1} parent=0
    #allocation4 [shape = 'u8[1024]{0}', space=vmem, size = 0x400, scoped, tag = 'output window, operand 0, single buffered']
    #allocation5 [shape = 's32[1]{0}', space=sflag, size = 0x4, scoped, tag = 'scoped memory for encoder_forward.1']
    %21 = vsyncpa [#allocation5], 0
    // Predicated region
    $region2: #{encoder_forward.1} parent=1 // pred_check
      _
    $region3: #{encoder_forward.1} parent=1 // pred_check_branch
      %23 = sbr.rel (0) target = $region5
    $region4: #{encoder_forward.1} parent=1 // pred_region
      _
    $region5: #{encoder_forward.1} parent=1 // pred_fallthru
      _
    // Predicated region
    $region6: #{encoder_forward.1} parent=1 // pred_check
      _
    $region7: #{encoder_forward.1} parent=1 // pred_check_branch
      %25 = sbr.rel (0) target = $region9
    $region8: #{encoder_forward.1} parent=1 // pred_region
      _
    $region9: #{encoder_forward.1} parent=1 // pred_fallthru
      _
    // Predicated region
    $region10: #{encoder_forward.1} parent=1 // pred_check
      _
    $region11: #{encoder_forward.1} parent=1 // pred_check_branch
      %27 = sbr.rel (0) target = $region13
    $region12: #{encoder_forward.1} parent=1 // pred_region
      _
    $region13: #{encoder_forward.1} parent=1 // pred_fallthru
      _
    // Predicated region
    $region14: #{encoder_forward.1} parent=1 // pred_check
      _
    $region15: #{encoder_forward.1} parent=1 // pred_check_branch
      %29 = sbr.rel (0) target = $region17
    $region16: #{encoder_forward.1} parent=1 // pred_region
      _
    $region17: #{encoder_forward.1} parent=1 // pred_fallthru
      _
    // Predicated region
    $region18: #{encoder_forward.1} parent=1 // pred_check
      _
    $region19: #{encoder_forward.1} parent=1 // pred_check_branch
      %31 = sbr.rel (0) target = $region21
    $region20: #{encoder_forward.1} parent=1 // pred_region
      _
    $region21: #{encoder_forward.1} parent=1 // pred_fallthru
      _
    // Predicated region
    $region22: #{encoder_forward.1} parent=1 // pred_check
      _
    $region23: #{encoder_forward.1} parent=1 // pred_check_branch
      %33 = sbr.rel (0) target = $region25
    $region24: #{encoder_forward.1} parent=1 // pred_region
      _
    $region25: #{encoder_forward.1} parent=1 // pred_fallthru
      _
    // Predicated region
    $region26: #{encoder_forward.1} parent=1 // pred_check
      _
    $region27: #{encoder_forward.1} parent=1 // pred_check_branch
      %35 = sbr.rel (0) target = $region29
    $region28: #{encoder_forward.1} parent=1 // pred_region
      _
    $region29: #{encoder_forward.1} parent=1 // pred_fallthru
      _
    // Predicated region
    $region30: #{encoder_forward.1} parent=1 // pred_check
      _
    $region31: #{encoder_forward.1} parent=1 // pred_check_branch
      %37 = sbr.rel (0) target = $region33
    $region32: #{encoder_forward.1} parent=1 // pred_region
      _
    $region33: #{encoder_forward.1} parent=1 // pred_fallthru
      _
    // Predicated region
    $region34: #{encoder_forward.1} parent=1 // pred_check
      _
    $region35: #{encoder_forward.1} parent=1 // pred_check_branch
      %39 = sbr.rel (0) target = $region37
    $region36: #{encoder_forward.1} parent=1 // pred_region
      _
    $region37: #{encoder_forward.1} parent=1 // pred_fallthru
      _
    // Predicated region
    $region38: #{encoder_forward.1} parent=1 // pred_check
      _
    $region39: #{encoder_forward.1} parent=1 // pred_check_branch
      %41 = sbr.rel (0) target = $region41
    $region40: #{encoder_forward.1} parent=1 // pred_region
      _
    $region41: #{encoder_forward.1} parent=1 // pred_fallthru
      _
    // Predicated region
    $region42: #{encoder_forward.1} parent=1 // pred_check
      _
    $region43: #{encoder_forward.1} parent=1 // pred_check_branch
      %43 = sbr.rel (0) target = $region45
    $region44: #{encoder_forward.1} parent=1 // pred_region
      _
    $region45: #{encoder_forward.1} parent=1 // pred_fallthru
      _
    // Predicated region
    $region46: #{encoder_forward.1} parent=1 // pred_check
      _
    $region47: #{encoder_forward.1} parent=1 // pred_check_branch
      %45 = sbr.rel (0) target = $region49
    $region48: #{encoder_forward.1} parent=1 // pred_region
      _
    $region49: #{encoder_forward.1} parent=1 // pred_fallthru
      _
    // Predicated region
    $region50: #{encoder_forward.1} parent=1 // pred_check
      _
    $region51: #{encoder_forward.1} parent=1 // pred_check_branch
      %47 = sbr.rel (0) target = $region53
    $region52: #{encoder_forward.1} parent=1 // pred_region
      _
    $region53: #{encoder_forward.1} parent=1 // pred_fallthru
      _
    // Predicated region
    $region54: #{encoder_forward.1} parent=1 // pred_check
      _
    $region55: #{encoder_forward.1} parent=1 // pred_check_branch
      %49 = sbr.rel (0) target = $region57
    $region56: #{encoder_forward.1} parent=1 // pred_region
      _
    $region57: #{encoder_forward.1} parent=1 // pred_fallthru
      _
    // Predicated region
    $region58: #{encoder_forward.1} parent=1 // pred_check
      _
    $region59: #{encoder_forward.1} parent=1 // pred_check_branch
      %51 = sbr.rel (0) target = $region61
    $region60: #{encoder_forward.1} parent=1 // pred_region
      _
    $region61: #{encoder_forward.1} parent=1 // pred_fallthru
      _
    // Predicated region
    $region62: #{encoder_forward.1} parent=1 // pred_check
      _
    $region63: #{encoder_forward.1} parent=1 // pred_check_branch
      %53 = sbr.rel (0) target = $region65
    $region64: #{encoder_forward.1} parent=1 // pred_region
      _
    $region65: #{encoder_forward.1} parent=1 // pred_fallthru
      _
    %v54 = vld [vmem:[%s0] sm:$0xff]
    %v55 = vld [vmem:[%s0 + $0x8] sm:$0xff]
    %v56 = vld [vmem:[%s0 + $0x10] sm:$0xff]
    %v57 = vld [vmem:[%s0 + $0x18] sm:$0xff]
    %v58 = vld [vmem:[%s0 + $0x20] sm:$0xff]
    %v59 = vld [vmem:[%s0 + $0x28] sm:$0xff]
    %v60 = vld [vmem:[%s0 + $0x30] sm:$0xff]
    %v61 = vld [vmem:[%s0 + $0x38] sm:$0xff]
    %v62 = vld [vmem:[%s0 + $0x40] sm:$0xff]
    %v63 = vld [vmem:[%s0 + $0x48] sm:$0xff]
    %v64 = vld [vmem:[%s0 + $0x50] sm:$0xff]
    %v65 = vld [vmem:[%s0 + $0x58] sm:$0xff]
    %v66 = vld [vmem:[%s0 + $0x60] sm:$0xff]
    %v67 = vld [vmem:[%s0 + $0x68] sm:$0xff]
    %v68 = vld [vmem:[%s0 + $0x70] sm:$0xff]
    %v69 = vld [vmem:[%s0 + $0x78] sm:$0xff]
    %v70 = vld [vmem:[%s0 + $0x80] sm:$0xff]
    %v71 = vld [vmem:[%s0 + $0x88] sm:$0xff]
    %v72 = vld [vmem:[%s0 + $0x90] sm:$0xff]
    %v73 = vld [vmem:[%s0 + $0x98] sm:$0xff]
    %v74 = vld [vmem:[%s0 + $0xa0] sm:$0xff]
    %v75 = vld [vmem:[%s0 + $0xa8] sm:$0xff]
    %v76 = vld [vmem:[%s0 + $0xb0] sm:$0xff]
    %v77 = vld [vmem:[%s0 + $0xb8] sm:$0xff]
    %v78 = vld [vmem:[%s0 + $0xc0] sm:$0xff]
    %v79 = vld [vmem:[%s0 + $0xc8] sm:$0xff]
    %v80 = vld [vmem:[%s0 + $0xd0] sm:$0xff]
    %v81 = vld [vmem:[%s0 + $0xd8] sm:$0xff]
    %v82 = vld [vmem:[%s0 + $0xe0] sm:$0xff]
    %v83 = vld [vmem:[%s0 + $0xe8] sm:$0xff]
    %v84 = vld [vmem:[%s0 + $0xf0] sm:$0xff]
    %v85 = vld [vmem:[%s0 + $0xf8] sm:$0xff]
    %v86 = vld [vmem:[%s0 + $0x100] sm:$0xff]
    %v87 = vld [vmem:[%s0 + $0x108] sm:$0xff]
    %v88 = vld [vmem:[%s0 + $0x110] sm:$0xff]
    %v89 = vld [vmem:[%s0 + $0x118] sm:$0xff]
    %v90 = vld [vmem:[%s0 + $0x120] sm:$0xff]
    %v91 = vld [vmem:[%s0 + $0x128] sm:$0xff]
    %v92 = vld [vmem:[%s0 + $0x130] sm:$0xff]
    %v93 = vld [vmem:[%s0 + $0x138] sm:$0xff]
    %v94 = vld [vmem:[%s0 + $0x140] sm:$0xff]
    %v95 = vld [vmem:[%s0 + $0x148] sm:$0xff]
    %v96 = vld [vmem:[%s0 + $0x150] sm:$0xff]
    %v97 = vld [vmem:[%s0 + $0x158] sm:$0xff]
    %v98 = vld [vmem:[%s0 + $0x160] sm:$0xff]
    %v99 = vld [vmem:[%s0 + $0x168] sm:$0xff]
    %v100 = vld [vmem:[%s0 + $0x170] sm:$0xff]
    %v101 = vld [vmem:[%s0 + $0x178] sm:$0xff]
    %v102 = vld [vmem:[%s0 + $0x180] sm:$0xff]
    %v103 = vld [vmem:[%s0 + $0x188] sm:$0xff]
    %v104 = vld [vmem:[%s0 + $0x190] sm:$0xff]
    %v105 = vld [vmem:[%s0 + $0x198] sm:$0xff]
    %v106 = vld [vmem:[%s0 + $0x1a0] sm:$0xff]
    %v107 = vld [vmem:[%s0 + $0x1a8] sm:$0xff]
    %v108 = vld [vmem:[%s0 + $0x1b0] sm:$0xff]
    %v109 = vld [vmem:[%s0 + $0x1b8] sm:$0xff]
    %v110 = vld [vmem:[%s0 + $0x1c0] sm:$0xff]
    %v111 = vld [vmem:[%s0 + $0x1c8] sm:$0xff]
    %v112 = vld [vmem:[%s0 + $0x1d0] sm:$0xff]
    %v113 = vld [vmem:[%s0 + $0x1d8] sm:$0xff]
    %v114 = vld [vmem:[%s0 + $0x1e0] sm:$0xff]
    %v115 = vld [vmem:[%s0 + $0x1e8] sm:$0xff]
    %v116 = vld [vmem:[%s0 + $0x1f0] sm:$0xff]
    %v117 = vld [vmem:[%s0 + $0x1f8] sm:$0xff]
    %v118 = vld [vmem:[%s1] sm:$0xff]
    %v119 = vld [vmem:[%s1 + $0x8] sm:$0xff]
    %v120 = vld [vmem:[%s1 + $0x10] sm:$0xff]
    %v121 = vld [vmem:[%s1 + $0x18] sm:$0xff]
    %v122 = vld [vmem:[%s1 + $0x20] sm:$0xff]
    %v123 = vld [vmem:[%s1 + $0x28] sm:$0xff]
    %vm124 = vcmask 392192
    %v126 = vsel %vm124, %v54, 0
    %v129 = vsel %vm124, %v55, 0
    %v132 = vsel %vm124, %v56, 0
    %v135 = vsel %vm124, %v57, 0
    %v138 = vsel %vm124, %v58, 0
    %v141 = vsel %vm124, %v59, 0
    %v144 = vsel %vm124, %v60, 0
    %v147 = vsel %vm124, %v61, 0
    %v150 = vsel %vm124, %v62, 0
    %v153 = vsel %vm124, %v63, 0
    %v156 = vsel %vm124, %v64, 0
    %v159 = vsel %vm124, %v65, 0
    %v162 = vsel %vm124, %v66, 0
    %v165 = vsel %vm124, %v67, 0
    %v168 = vsel %vm124, %v68, 0
    %v171 = vsel %vm124, %v69, 0
    %v174 = vsel %vm124, %v70, 0
    %v177 = vsel %vm124, %v71, 0
    %v180 = vsel %vm124, %v72, 0
    %v183 = vsel %vm124, %v73, 0
    %v186 = vsel %vm124, %v74, 0
    %v189 = vsel %vm124, %v75, 0
    %v192 = vsel %vm124, %v76, 0
    %v195 = vsel %vm124, %v77, 0
    %v198 = vsel %vm124, %v78, 0
    %v201 = vsel %vm124, %v79, 0
    %v204 = vsel %vm124, %v80, 0
    %v207 = vsel %vm124, %v81, 0
    %v210 = vsel %vm124, %v82, 0
    %v213 = vsel %vm124, %v83, 0
    %v216 = vsel %vm124, %v84, 0
    %v219 = vsel %vm124, %v85, 0
    %v222 = vsel %vm124, %v86, 0
    %v225 = vsel %vm124, %v87, 0
    %v228 = vsel %vm124, %v88, 0
    %v231 = vsel %vm124, %v89, 0
    %v234 = vsel %vm124, %v90, 0
    %v237 = vsel %vm124, %v91, 0
    %v240 = vsel %vm124, %v92, 0
    %v243 = vsel %vm124, %v93, 0
    %v246 = vsel %vm124, %v94, 0
    %v249 = vsel %vm124, %v95, 0
    %v252 = vsel %vm124, %v96, 0
    %v255 = vsel %vm124, %v97, 0
    %v258 = vsel %vm124, %v98, 0
    %v261 = vsel %vm124, %v99, 0
    %v264 = vsel %vm124, %v100, 0
    %v267 = vsel %vm124, %v101, 0
    %v270 = vsel %vm124, %v102, 0
    %v273 = vsel %vm124, %v103, 0
    %v276 = vsel %vm124, %v104, 0
    %v279 = vsel %vm124, %v105, 0
    %v282 = vsel %vm124, %v106, 0
    %v285 = vsel %vm124, %v107, 0
    %v288 = vsel %vm124, %v108, 0
    %v291 = vsel %vm124, %v109, 0
    %v294 = vsel %vm124, %v110, 0
    %v297 = vsel %vm124, %v111, 0
    %v300 = vsel %vm124, %v112, 0
    %v303 = vsel %vm124, %v113, 0
    %v306 = vsel %vm124, %v114, 0
    %v309 = vsel %vm124, %v115, 0
    %v312 = vsel %vm124, %v116, 0
    %v315 = vsel %vm124, %v117, 0
    %317 = vmatprep.subr.mxu0 0.0
    %318 = vmatpush1.msra.mxu0 %v118
    %319 = vmatprep.subr.mxu0 0.0
    %320 = vmatpush1.msra.mxu0 %v119
    %321 = vmatprep.subr.mxu0 0.0
    %322 = vmatpush1.msra.mxu0 %v120
    %323 = vmatprep.subr.mxu0 0.0
    %324 = vmatpush1.msra.mxu0 %v121
    %325 = vmatprep.subr.mxu0 0.0
    %326 = vmatpush1.msra.mxu0 %v122
    %327 = vmatprep.subr.mxu0 0.0
    %328 = vmatpush1.msra.mxu0 %v123
    %329 = vmatprep.subr.mxu0 0.0
    %330 = vmatpush1.msra.mxu0 0.0
    %331 = vmatprep.subr.mxu0 0.0
    %332 = vmatpush1.msra.mxu0 0.0
    %333 = vmatprep.subr.mxu0 0.0
    %334 = vmatpush1.msra.mxu0 0.0
    %335 = vmatprep.subr.mxu0 0.0
    %336 = vmatpush1.msra.mxu0 0.0
    %337 = vmatprep.subr.mxu0 0.0
    %338 = vmatpush1.msra.mxu0 0.0
    %339 = vmatprep.subr.mxu0 0.0
    %340 = vmatpush1.msra.mxu0 0.0
    %341 = vmatprep.subr.mxu0 0.0
    %342 = vmatpush1.msra.mxu0 0.0
    %343 = vmatprep.subr.mxu0 0.0
    %344 = vmatpush1.msra.mxu0 0.0
    %345 = vmatprep.subr.mxu0 0.0
    %346 = vmatpush1.msra.mxu0 0.0
    %347 = vmatprep.subr.mxu0 0.0
    %348 = vmatpush1.msra.mxu0 0.0
    %349 = vmatprep.subr.mxu0 0.0
    %350 = vmatpush1.msra.mxu0 0.0
    %351 = vmatprep.subr.mxu0 0.0
    %352 = vmatpush1.msra.mxu0 0.0
    %353 = vmatprep.subr.mxu0 0.0
    %354 = vmatpush1.msra.mxu0 0.0
    %355 = vmatprep.subr.mxu0 0.0
    %356 = vmatpush1.msra.mxu0 0.0
    %357 = vmatprep.subr.mxu0 0.0
    %358 = vmatpush1.msra.mxu0 0.0
    %359 = vmatprep.subr.mxu0 0.0
    %360 = vmatpush1.msra.mxu0 0.0
    %361 = vmatprep.subr.mxu0 0.0
    %362 = vmatpush1.msra.mxu0 0.0
    %363 = vmatprep.subr.mxu0 0.0
    %364 = vmatpush1.msra.mxu0 0.0
    %365 = vmatprep.subr.mxu0 0.0
    %366 = vmatpush1.msra.mxu0 0.0
    %367 = vmatprep.subr.mxu0 0.0
    %368 = vmatpush1.msra.mxu0 0.0
    %369 = vmatprep.subr.mxu0 0.0
    %370 = vmatpush1.msra.mxu0 0.0
    %371 = vmatprep.subr.mxu0 0.0
    %372 = vmatpush1.msra.mxu0 0.0
    %373 = vmatprep.subr.mxu0 0.0
    %374 = vmatpush1.msra.mxu0 0.0
    %375 = vmatprep.subr.mxu0 0.0
    %376 = vmatpush1.msra.mxu0 0.0
    %377 = vmatprep.subr.mxu0 0.0
    %378 = vmatpush1.msra.mxu0 0.0
    %379 = vmatprep.subr.mxu0 0.0
    %380 = vmatpush1.msra.mxu0 0.0
    %381 = vmatprep.mubr.f32.mxu0 0.0
    %382 = vmatmul.mubr.f32.gmra.mrb[0].mxu0 %v126
    %v383 = vpop.f32.mrb[0].mxu0
    %v384 = vadd.f32 0.0, %v383
    %v385 = vpop.f32.mrb[0].mxu0
    %386 = vmatprep.mubr.f32.mxu0 0.0
    %387 = vmatmul.mubr.f32.gmra.mrb[0].mxu0 %v129
    %v388 = vpop.f32.mrb[0].mxu0
    %v389 = vadd.f32 0.0, %v388
    %v390 = vpop.f32.mrb[0].mxu0
    %391 = vmatprep.mubr.f32.mxu0 0.0
    %392 = vmatmul.mubr.f32.gmra.mrb[0].mxu0 %v132
    %v393 = vpop.f32.mrb[0].mxu0
    %v394 = vadd.f32 0.0, %v393
    %v395 = vpop.f32.mrb[0].mxu0
    %396 = vmatprep.mubr.f32.mxu0 0.0
    %397 = vmatmul.mubr.f32.gmra.mrb[0].mxu0 %v135
    %v398 = vpop.f32.mrb[0].mxu0
    %v399 = vadd.f32 0.0, %v398
    %v400 = vpop.f32.mrb[0].mxu0
    %401 = vmatprep.mubr.f32.mxu0 0.0
    %402 = vmatmul.mubr.f32.gmra.mrb[0].mxu0 %v138
    %v403 = vpop.f32.mrb[0].mxu0
    %v404 = vadd.f32 0.0, %v403
    %v405 = vpop.f32.mrb[0].mxu0
    %406 = vmatprep.mubr.f32.mxu0 0.0
    %407 = vmatmul.mubr.f32.gmra.mrb[0].mxu0 %v141
    %v408 = vpop.f32.mrb[0].mxu0
    %v409 = vadd.f32 0.0, %v408
    %v410 = vpop.f32.mrb[0].mxu0
    %411 = vmatprep.mubr.f32.mxu0 0.0
    %412 = vmatmul.mubr.f32.gmra.mrb[0].mxu0 %v144
    %v413 = vpop.f32.mrb[0].mxu0
    %v414 = vadd.f32 0.0, %v413
    %v415 = vpop.f32.mrb[0].mxu0
    %416 = vmatprep.mubr.f32.mxu0 0.0
    %417 = vmatmul.mubr.f32.gmra.mrb[0].mxu0 %v147
    %v418 = vpop.f32.mrb[0].mxu0
    %v419 = vadd.f32 0.0, %v418
    %v420 = vpop.f32.mrb[0].mxu0
    %421 = vmatprep.mubr.f32.mxu0 0.0
    %422 = vmatmul.mubr.f32.gmra.mrb[0].mxu0 %v150
    %v423 = vpop.f32.mrb[0].mxu0
    %v424 = vadd.f32 0.0, %v423
    %v425 = vpop.f32.mrb[0].mxu0
    %426 = vmatprep.mubr.f32.mxu0 0.0
    %427 = vmatmul.mubr.f32.gmra.mrb[0].mxu0 %v153
    %v428 = vpop.f32.mrb[0].mxu0
    %v429 = vadd.f32 0.0, %v428
    %v430 = vpop.f32.mrb[0].mxu0
    %431 = vmatprep.mubr.f32.mxu0 0.0
    %432 = vmatmul.mubr.f32.gmra.mrb[0].mxu0 %v156
    %v433 = vpop.f32.mrb[0].mxu0
    %v434 = vadd.f32 0.0, %v433
    %v435 = vpop.f32.mrb[0].mxu0
    %436 = vmatprep.mubr.f32.mxu0 0.0
    %437 = vmatmul.mubr.f32.gmra.mrb[0].mxu0 %v159
    %v438 = vpop.f32.mrb[0].mxu0
    %v439 = vadd.f32 0.0, %v438
    %v440 = vpop.f32.mrb[0].mxu0
    %441 = vmatprep.mubr.f32.mxu0 0.0
    %442 = vmatmul.mubr.f32.gmra.mrb[0].mxu0 %v162
    %v443 = vpop.f32.mrb[0].mxu0
    %v444 = vadd.f32 0.0, %v443
    %v445 = vpop.f32.mrb[0].mxu0
    %446 = vmatprep.mubr.f32.mxu0 0.0
    %447 = vmatmul.mubr.f32.gmra.mrb[0].mxu0 %v165
    %v448 = vpop.f32.mrb[0].mxu0
    %v449 = vadd.f32 0.0, %v448
    %v450 = vpop.f32.mrb[0].mxu0
    %451 = vmatprep.mubr.f32.mxu0 0.0
    %452 = vmatmul.mubr.f32.gmra.mrb[0].mxu0 %v168
    %v453 = vpop.f32.mrb[0].mxu0
    %v454 = vadd.f32 0.0, %v453
    %v455 = vpop.f32.mrb[0].mxu0
    %456 = vmatprep.mubr.f32.mxu0 0.0
    %457 = vmatmul.mubr.f32.gmra.mrb[0].mxu0 %v171
    %v458 = vpop.f32.mrb[0].mxu0
    %v459 = vadd.f32 0.0, %v458
    %v460 = vpop.f32.mrb[0].mxu0
    %461 = vmatprep.mubr.f32.mxu0 0.0
    %462 = vmatmul.mubr.f32.gmra.mrb[0].mxu0 %v174
    %v463 = vpop.f32.mrb[0].mxu0
    %v464 = vadd.f32 0.0, %v463
    %v465 = vpop.f32.mrb[0].mxu0
    %466 = vmatprep.mubr.f32.mxu0 0.0
    %467 = vmatmul.mubr.f32.gmra.mrb[0].mxu0 %v177
    %v468 = vpop.f32.mrb[0].mxu0
    %v469 = vadd.f32 0.0, %v468
    %v470 = vpop.f32.mrb[0].mxu0
    %471 = vmatprep.mubr.f32.mxu0 0.0
    %472 = vmatmul.mubr.f32.gmra.mrb[0].mxu0 %v180
    %v473 = vpop.f32.mrb[0].mxu0
    %v474 = vadd.f32 0.0, %v473
    %v475 = vpop.f32.mrb[0].mxu0
    %476 = vmatprep.mubr.f32.mxu0 0.0
    %477 = vmatmul.mubr.f32.gmra.mrb[0].mxu0 %v183
    %v478 = vpop.f32.mrb[0].mxu0
    %v479 = vadd.f32 0.0, %v478
    %v480 = vpop.f32.mrb[0].mxu0
    %481 = vmatprep.mubr.f32.mxu0 0.0
    %482 = vmatmul.mubr.f32.gmra.mrb[0].mxu0 %v186
    %v483 = vpop.f32.mrb[0].mxu0
    %v484 = vadd.f32 0.0, %v483
    %v485 = vpop.f32.mrb[0].mxu0
    %486 = vmatprep.mubr.f32.mxu0 0.0
    %487 = vmatmul.mubr.f32.gmra.mrb[0].mxu0 %v189
    %v488 = vpop.f32.mrb[0].mxu0
    %v489 = vadd.f32 0.0, %v488
    %v490 = vpop.f32.mrb[0].mxu0
    %491 = vmatprep.mubr.f32.mxu0 0.0
    %492 = vmatmul.mubr.f32.gmra.mrb[0].mxu0 %v192
    %v493 = vpop.f32.mrb[0].mxu0
    %v494 = vadd.f32 0.0, %v493
    %v495 = vpop.f32.mrb[0].mxu0
    %496 = vmatprep.mubr.f32.mxu0 0.0
    %497 = vmatmul.mubr.f32.gmra.mrb[0].mxu0 %v195
    %v498 = vpop.f32.mrb[0].mxu0
    %v499 = vadd.f32 0.0, %v498
    %v500 = vpop.f32.mrb[0].mxu0
    %501 = vmatprep.mubr.f32.mxu0 0.0
    %502 = vmatmul.mubr.f32.gmra.mrb[0].mxu0 %v198
    %v503 = vpop.f32.mrb[0].mxu0
    %v504 = vadd.f32 0.0, %v503
    %v505 = vpop.f32.mrb[0].mxu0
    %506 = vmatprep.mubr.f32.mxu0 0.0
    %507 = vmatmul.mubr.f32.gmra.mrb[0].mxu0 %v201
    %v508 = vpop.f32.mrb[0].mxu0
    %v509 = vadd.f32 0.0, %v508
    %v510 = vpop.f32.mrb[0].mxu0
    %511 = vmatprep.mubr.f32.mxu0 0.0
    %512 = vmatmul.mubr.f32.gmra.mrb[0].mxu0 %v204
    %v513 = vpop.f32.mrb[0].mxu0
    %v514 = vadd.f32 0.0, %v513
    %v515 = vpop.f32.mrb[0].mxu0
    %516 = vmatprep.mubr.f32.mxu0 0.0
    %517 = vmatmul.mubr.f32.gmra.mrb[0].mxu0 %v207
    %v518 = vpop.f32.mrb[0].mxu0
    %v519 = vadd.f32 0.0, %v518
    %v520 = vpop.f32.mrb[0].mxu0
    %521 = vmatprep.mubr.f32.mxu0 0.0
    %522 = vmatmul.mubr.f32.gmra.mrb[0].mxu0 %v210
    %v523 = vpop.f32.mrb[0].mxu0
    %v524 = vadd.f32 0.0, %v523
    %v525 = vpop.f32.mrb[0].mxu0
    %526 = vmatprep.mubr.f32.mxu0 0.0
    %527 = vmatmul.mubr.f32.gmra.mrb[0].mxu0 %v213
    %v528 = vpop.f32.mrb[0].mxu0
    %v529 = vadd.f32 0.0, %v528
    %v530 = vpop.f32.mrb[0].mxu0
    %531 = vmatprep.mubr.f32.mxu0 0.0
    %532 = vmatmul.mubr.f32.gmra.mrb[0].mxu0 %v216
    %v533 = vpop.f32.mrb[0].mxu0
    %v534 = vadd.f32 0.0, %v533
    %v535 = vpop.f32.mrb[0].mxu0
    %536 = vmatprep.mubr.f32.mxu0 0.0
    %537 = vmatmul.mubr.f32.gmra.mrb[0].mxu0 %v219
    %v538 = vpop.f32.mrb[0].mxu0
    %v539 = vadd.f32 0.0, %v538
    %v540 = vpop.f32.mrb[0].mxu0
    %541 = vmatprep.mubr.f32.mxu0 0.0
    %542 = vmatmul.mubr.f32.gmra.mrb[0].mxu0 %v222
    %v543 = vpop.f32.mrb[0].mxu0
    %v544 = vadd.f32 0.0, %v543
    %v545 = vpop.f32.mrb[0].mxu0
    %546 = vmatprep.mubr.f32.mxu0 0.0
    %547 = vmatmul.mubr.f32.gmra.mrb[0].mxu0 %v225
    %v548 = vpop.f32.mrb[0].mxu0
    %v549 = vadd.f32 0.0, %v548
    %v550 = vpop.f32.mrb[0].mxu0
    %551 = vmatprep.mubr.f32.mxu0 0.0
    %552 = vmatmul.mubr.f32.gmra.mrb[0].mxu0 %v228
    %v553 = vpop.f32.mrb[0].mxu0
    %v554 = vadd.f32 0.0, %v553
    %v555 = vpop.f32.mrb[0].mxu0
    %556 = vmatprep.mubr.f32.mxu0 0.0
    %557 = vmatmul.mubr.f32.gmra.mrb[0].mxu0 %v231
    %v558 = vpop.f32.mrb[0].mxu0
    %v559 = vadd.f32 0.0, %v558
    %v560 = vpop.f32.mrb[0].mxu0
    %561 = vmatprep.mubr.f32.mxu0 0.0
    %562 = vmatmul.mubr.f32.gmra.mrb[0].mxu0 %v234
    %v563 = vpop.f32.mrb[0].mxu0
    %v564 = vadd.f32 0.0, %v563
    %v565 = vpop.f32.mrb[0].mxu0
    %566 = vmatprep.mubr.f32.mxu0 0.0
    %567 = vmatmul.mubr.f32.gmra.mrb[0].mxu0 %v237
    %v568 = vpop.f32.mrb[0].mxu0
    %v569 = vadd.f32 0.0, %v568
    %v570 = vpop.f32.mrb[0].mxu0
    %571 = vmatprep.mubr.f32.mxu0 0.0
    %572 = vmatmul.mubr.f32.gmra.mrb[0].mxu0 %v240
    %v573 = vpop.f32.mrb[0].mxu0
    %v574 = vadd.f32 0.0, %v573
    %v575 = vpop.f32.mrb[0].mxu0
    %576 = vmatprep.mubr.f32.mxu0 0.0
    %577 = vmatmul.mubr.f32.gmra.mrb[0].mxu0 %v243
    %v578 = vpop.f32.mrb[0].mxu0
    %v579 = vadd.f32 0.0, %v578
    %v580 = vpop.f32.mrb[0].mxu0
    %581 = vmatprep.mubr.f32.mxu0 0.0
    %582 = vmatmul.mubr.f32.gmra.mrb[0].mxu0 %v246
    %v583 = vpop.f32.mrb[0].mxu0
    %v584 = vadd.f32 0.0, %v583
    %v585 = vpop.f32.mrb[0].mxu0
    %586 = vmatprep.mubr.f32.mxu0 0.0
    %587 = vmatmul.mubr.f32.gmra.mrb[0].mxu0 %v249
    %v588 = vpop.f32.mrb[0].mxu0
    %v589 = vadd.f32 0.0, %v588
    %v590 = vpop.f32.mrb[0].mxu0
    %591 = vmatprep.mubr.f32.mxu0 0.0
    %592 = vmatmul.mubr.f32.gmra.mrb[0].mxu0 %v252
    %v593 = vpop.f32.mrb[0].mxu0
    %v594 = vadd.f32 0.0, %v593
    %v595 = vpop.f32.mrb[0].mxu0
    %596 = vmatprep.mubr.f32.mxu0 0.0
    %597 = vmatmul.mubr.f32.gmra.mrb[0].mxu0 %v255
    %v598 = vpop.f32.mrb[0].mxu0
    %v599 = vadd.f32 0.0, %v598
    %v600 = vpop.f32.mrb[0].mxu0
    %601 = vmatprep.mubr.f32.mxu0 0.0
    %602 = vmatmul.mubr.f32.gmra.mrb[0].mxu0 %v258
    %v603 = vpop.f32.mrb[0].mxu0
    %v604 = vadd.f32 0.0, %v603
    %v605 = vpop.f32.mrb[0].mxu0
    %606 = vmatprep.mubr.f32.mxu0 0.0
    %607 = vmatmul.mubr.f32.gmra.mrb[0].mxu0 %v261
    %v608 = vpop.f32.mrb[0].mxu0
    %v609 = vadd.f32 0.0, %v608
    %v610 = vpop.f32.mrb[0].mxu0
    %611 = vmatprep.mubr.f32.mxu0 0.0
    %612 = vmatmul.mubr.f32.gmra.mrb[0].mxu0 %v264
    %v613 = vpop.f32.mrb[0].mxu0
    %v614 = vadd.f32 0.0, %v613
    %v615 = vpop.f32.mrb[0].mxu0
    %616 = vmatprep.mubr.f32.mxu0 0.0
    %617 = vmatmul.mubr.f32.gmra.mrb[0].mxu0 %v267
    %v618 = vpop.f32.mrb[0].mxu0
    %v619 = vadd.f32 0.0, %v618
    %v620 = vpop.f32.mrb[0].mxu0
    %621 = vmatprep.mubr.f32.mxu0 0.0
    %622 = vmatmul.mubr.f32.gmra.mrb[0].mxu0 %v270
    %v623 = vpop.f32.mrb[0].mxu0
    %v624 = vadd.f32 0.0, %v623
    %v625 = vpop.f32.mrb[0].mxu0
    %626 = vmatprep.mubr.f32.mxu0 0.0
    %627 = vmatmul.mubr.f32.gmra.mrb[0].mxu0 %v273
    %v628 = vpop.f32.mrb[0].mxu0
    %v629 = vadd.f32 0.0, %v628
    %v630 = vpop.f32.mrb[0].mxu0
    %631 = vmatprep.mubr.f32.mxu0 0.0
    %632 = vmatmul.mubr.f32.gmra.mrb[0].mxu0 %v276
    %v633 = vpop.f32.mrb[0].mxu0
    %v634 = vadd.f32 0.0, %v633
    %v635 = vpop.f32.mrb[0].mxu0
    %636 = vmatprep.mubr.f32.mxu0 0.0
    %637 = vmatmul.mubr.f32.gmra.mrb[0].mxu0 %v279
    %v638 = vpop.f32.mrb[0].mxu0
    %v639 = vadd.f32 0.0, %v638
    %v640 = vpop.f32.mrb[0].mxu0
    %641 = vmatprep.mubr.f32.mxu0 0.0
    %642 = vmatmul.mubr.f32.gmra.mrb[0].mxu0 %v282
    %v643 = vpop.f32.mrb[0].mxu0
    %v644 = vadd.f32 0.0, %v643
    %v645 = vpop.f32.mrb[0].mxu0
    %646 = vmatprep.mubr.f32.mxu0 0.0
    %647 = vmatmul.mubr.f32.gmra.mrb[0].mxu0 %v285
    %v648 = vpop.f32.mrb[0].mxu0
    %v649 = vadd.f32 0.0, %v648
    %v650 = vpop.f32.mrb[0].mxu0
    %651 = vmatprep.mubr.f32.mxu0 0.0
    %652 = vmatmul.mubr.f32.gmra.mrb[0].mxu0 %v288
    %v653 = vpop.f32.mrb[0].mxu0
    %v654 = vadd.f32 0.0, %v653
    %v655 = vpop.f32.mrb[0].mxu0
    %656 = vmatprep.mubr.f32.mxu0 0.0
    %657 = vmatmul.mubr.f32.gmra.mrb[0].mxu0 %v291
    %v658 = vpop.f32.mrb[0].mxu0
    %v659 = vadd.f32 0.0, %v658
    %v660 = vpop.f32.mrb[0].mxu0
    %661 = vmatprep.mubr.f32.mxu0 0.0
    %662 = vmatmul.mubr.f32.gmra.mrb[0].mxu0 %v294
    %v663 = vpop.f32.mrb[0].mxu0
    %v664 = vadd.f32 0.0, %v663
    %v665 = vpop.f32.mrb[0].mxu0
    %666 = vmatprep.mubr.f32.mxu0 0.0
    %667 = vmatmul.mubr.f32.gmra.mrb[0].mxu0 %v297
    %v668 = vpop.f32.mrb[0].mxu0
    %v669 = vadd.f32 0.0, %v668
    %v670 = vpop.f32.mrb[0].mxu0
    %671 = vmatprep.mubr.f32.mxu0 0.0
    %672 = vmatmul.mubr.f32.gmra.mrb[0].mxu0 %v300
    %v673 = vpop.f32.mrb[0].mxu0
    %v674 = vadd.f32 0.0, %v673
    %v675 = vpop.f32.mrb[0].mxu0
    %676 = vmatprep.mubr.f32.mxu0 0.0
    %677 = vmatmul.mubr.f32.gmra.mrb[0].mxu0 %v303
    %v678 = vpop.f32.mrb[0].mxu0
    %v679 = vadd.f32 0.0, %v678
    %v680 = vpop.f32.mrb[0].mxu0
    %681 = vmatprep.mubr.f32.mxu0 0.0
    %682 = vmatmul.mubr.f32.gmra.mrb[0].mxu0 %v306
    %v683 = vpop.f32.mrb[0].mxu0
    %v684 = vadd.f32 0.0, %v683
    %v685 = vpop.f32.mrb[0].mxu0
    %686 = vmatprep.mubr.f32.mxu0 0.0
    %687 = vmatmul.mubr.f32.gmra.mrb[0].mxu0 %v309
    %v688 = vpop.f32.mrb[0].mxu0
    %v689 = vadd.f32 0.0, %v688
    %v690 = vpop.f32.mrb[0].mxu0
    %691 = vmatprep.mubr.f32.mxu0 0.0
    %692 = vmatmul.mubr.f32.gmra.mrb[0].mxu0 %v312
    %v693 = vpop.f32.mrb[0].mxu0
    %v694 = vadd.f32 0.0, %v693
    %v695 = vpop.f32.mrb[0].mxu0
    %696 = vmatprep.mubr.f32.mxu0 0.0
    %697 = vmatmul.mubr.f32.gmra.mrb[0].mxu0 %v315
    %v698 = vpop.f32.mrb[0].mxu0
    %v699 = vadd.f32 0.0, %v698
    %v700 = vpop.f32.mrb[0].mxu0
    %701 = vdwg.mxu0
    %v702 = vld [vmem:[%s2] sm:$0x1]
    %v703 = vld [vmem:[%s3] sm:$0x1]
    %vm704 = vcmask 130048
    %v705 = vsel %vm704, %v384, 0.0
    %v706 = vsel %vm704, %v389, 0.0
    %v707 = vadd.f32 %v705, %v706
    %v708 = vsel %vm704, %v394, 0.0
    %v709 = vadd.f32 %v707, %v708
    %v710 = vsel %vm704, %v399, 0.0
    %v711 = vadd.f32 %v709, %v710
    %v712 = vsel %vm704, %v404, 0.0
    %v713 = vadd.f32 %v711, %v712
    %v714 = vsel %vm704, %v409, 0.0
    %v715 = vadd.f32 %v713, %v714
    %v716 = vsel %vm704, %v414, 0.0
    %v717 = vadd.f32 %v715, %v716
    %v718 = vsel %vm704, %v419, 0.0
    %v719 = vadd.f32 %v717, %v718
    %v720 = vsel %vm704, %v424, 0.0
    %v721 = vadd.f32 %v719, %v720
    %v722 = vsel %vm704, %v429, 0.0
    %v723 = vadd.f32 %v721, %v722
    %v724 = vsel %vm704, %v434, 0.0
    %v725 = vadd.f32 %v723, %v724
    %v726 = vsel %vm704, %v439, 0.0
    %v727 = vadd.f32 %v725, %v726
    %v728 = vsel %vm704, %v444, 0.0
    %v729 = vadd.f32 %v727, %v728
    %v730 = vsel %vm704, %v449, 0.0
    %v731 = vadd.f32 %v729, %v730
    %v732 = vsel %vm704, %v454, 0.0
    %v733 = vadd.f32 %v731, %v732
    %v734 = vsel %vm704, %v459, 0.0
    %v735 = vadd.f32 %v733, %v734
    %v736 = vsel %vm704, %v464, 0.0
    %v737 = vadd.f32 %v735, %v736
    %v738 = vsel %vm704, %v469, 0.0
    %v739 = vadd.f32 %v737, %v738
    %v740 = vsel %vm704, %v474, 0.0
    %v741 = vadd.f32 %v739, %v740
    %v742 = vsel %vm704, %v479, 0.0
    %v743 = vadd.f32 %v741, %v742
    %v744 = vsel %vm704, %v484, 0.0
    %v745 = vadd.f32 %v743, %v744
    %v746 = vsel %vm704, %v489, 0.0
    %v747 = vadd.f32 %v745, %v746
    %v748 = vsel %vm704, %v494, 0.0
    %v749 = vadd.f32 %v747, %v748
    %v750 = vsel %vm704, %v499, 0.0
    %v751 = vadd.f32 %v749, %v750
    %v752 = vsel %vm704, %v504, 0.0
    %v753 = vadd.f32 %v751, %v752
    %v754 = vsel %vm704, %v509, 0.0
    %v755 = vadd.f32 %v753, %v754
    %v756 = vsel %vm704, %v514, 0.0
    %v757 = vadd.f32 %v755, %v756
    %v758 = vsel %vm704, %v519, 0.0
    %v759 = vadd.f32 %v757, %v758
    %v760 = vsel %vm704, %v524, 0.0
    %v761 = vadd.f32 %v759, %v760
    %v762 = vsel %vm704, %v529, 0.0
    %v763 = vadd.f32 %v761, %v762
    %v764 = vsel %vm704, %v534, 0.0
    %v765 = vadd.f32 %v763, %v764
    %v766 = vsel %vm704, %v539, 0.0
    %v767 = vadd.f32 %v765, %v766
    %v768 = vsel %vm704, %v544, 0.0
    %v769 = vadd.f32 %v767, %v768
    %v770 = vsel %vm704, %v549, 0.0
    %v771 = vadd.f32 %v769, %v770
    %v772 = vsel %vm704, %v554, 0.0
    %v773 = vadd.f32 %v771, %v772
    %v774 = vsel %vm704, %v559, 0.0
    %v775 = vadd.f32 %v773, %v774
    %v776 = vsel %vm704, %v564, 0.0
    %v777 = vadd.f32 %v775, %v776
    %v778 = vsel %vm704, %v569, 0.0
    %v779 = vadd.f32 %v777, %v778
    %v780 = vsel %vm704, %v574, 0.0
    %v781 = vadd.f32 %v779, %v780
    %v782 = vsel %vm704, %v579, 0.0
    %v783 = vadd.f32 %v781, %v782
    %v784 = vsel %vm704, %v584, 0.0
    %v785 = vadd.f32 %v783, %v784
    %v786 = vsel %vm704, %v589, 0.0
    %v787 = vadd.f32 %v785, %v786
    %v788 = vsel %vm704, %v594, 0.0
    %v789 = vadd.f32 %v787, %v788
    %v790 = vsel %vm704, %v599, 0.0
    %v791 = vadd.f32 %v789, %v790
    %v792 = vsel %vm704, %v604, 0.0
    %v793 = vadd.f32 %v791, %v792
    %v794 = vsel %vm704, %v609, 0.0
    %v795 = vadd.f32 %v793, %v794
    %v796 = vsel %vm704, %v614, 0.0
    %v797 = vadd.f32 %v795, %v796
    %v798 = vsel %vm704, %v619, 0.0
    %v799 = vadd.f32 %v797, %v798
    %v800 = vsel %vm704, %v624, 0.0
    %v801 = vadd.f32 %v799, %v800
    %v802 = vsel %vm704, %v629, 0.0
    %v803 = vadd.f32 %v801, %v802
    %v804 = vsel %vm704, %v634, 0.0
    %v805 = vadd.f32 %v803, %v804
    %v806 = vsel %vm704, %v639, 0.0
    %v807 = vadd.f32 %v805, %v806
    %v808 = vsel %vm704, %v644, 0.0
    %v809 = vadd.f32 %v807, %v808
    %v810 = vsel %vm704, %v649, 0.0
    %v811 = vadd.f32 %v809, %v810
    %v812 = vsel %vm704, %v654, 0.0
    %v813 = vadd.f32 %v811, %v812
    %v814 = vsel %vm704, %v659, 0.0
    %v815 = vadd.f32 %v813, %v814
    %v816 = vsel %vm704, %v664, 0.0
    %v817 = vadd.f32 %v815, %v816
    %v818 = vsel %vm704, %v669, 0.0
    %v819 = vadd.f32 %v817, %v818
    %v820 = vsel %vm704, %v674, 0.0
    %v821 = vadd.f32 %v819, %v820
    %v822 = vsel %vm704, %v679, 0.0
    %v823 = vadd.f32 %v821, %v822
    %v824 = vsel %vm704, %v684, 0.0
    %v825 = vadd.f32 %v823, %v824
    %v826 = vsel %vm704, %v689, 0.0
    %v827 = vadd.f32 %v825, %v826
    %v828 = vsel %vm704, %v694, 0.0
    %v829 = vadd.f32 %v827, %v828
    %v830 = vsel %vm704, %v699, 0.0
    %v831 = vadd.f32 %v829, %v830
    %v832 = vrot.slane %v831, 4
    %v833 = vadd.f32 %v831, %v832
    %v834 = vrot.slane %v833, 2
    %v835 = vadd.f32 %v833, %v834
    %v836 = vrot.slane %v835, 1
    %v837 = vadd.f32 %v835, %v836
    %v838 = vmul.f32 %v384, %v384
    %v839 = vmul.f32 %v389, %v389
    %v840 = vmul.f32 %v394, %v394
    %v841 = vmul.f32 %v399, %v399
    %v842 = vmul.f32 %v404, %v404
    %v843 = vmul.f32 %v409, %v409
    %v844 = vmul.f32 %v414, %v414
    %v845 = vmul.f32 %v419, %v419
    %v846 = vmul.f32 %v424, %v424
    %v847 = vmul.f32 %v429, %v429
    %v848 = vmul.f32 %v434, %v434
    %v849 = vmul.f32 %v439, %v439
    %v850 = vmul.f32 %v444, %v444
    %v851 = vmul.f32 %v449, %v449
    %v852 = vmul.f32 %v454, %v454
    %v853 = vmul.f32 %v459, %v459
    %v854 = vmul.f32 %v464, %v464
    %v855 = vmul.f32 %v469, %v469
    %v856 = vmul.f32 %v474, %v474
    %v857 = vmul.f32 %v479, %v479
    %v858 = vmul.f32 %v484, %v484
    %v859 = vmul.f32 %v489, %v489
    %v860 = vmul.f32 %v494, %v494
    %v861 = vmul.f32 %v499, %v499
    %v862 = vmul.f32 %v504, %v504
    %v863 = vmul.f32 %v509, %v509
    %v864 = vmul.f32 %v514, %v514
    %v865 = vmul.f32 %v519, %v519
    %v866 = vmul.f32 %v524, %v524
    %v867 = vmul.f32 %v529, %v529
    %v868 = vmul.f32 %v534, %v534
    %v869 = vmul.f32 %v539, %v539
    %v870 = vmul.f32 %v544, %v544
    %v871 = vmul.f32 %v549, %v549
    %v872 = vmul.f32 %v554, %v554
    %v873 = vmul.f32 %v559, %v559
    %v874 = vmul.f32 %v564, %v564
    %v875 = vmul.f32 %v569, %v569
    %v876 = vmul.f32 %v574, %v574
    %v877 = vmul.f32 %v579, %v579
    %v878 = vmul.f32 %v584, %v584
    %v879 = vmul.f32 %v589, %v589
    %v880 = vmul.f32 %v594, %v594
    %v881 = vmul.f32 %v599, %v599
    %v882 = vmul.f32 %v604, %v604
    %v883 = vmul.f32 %v609, %v609
    %v884 = vmul.f32 %v614, %v614
    %v885 = vmul.f32 %v619, %v619
    %v886 = vmul.f32 %v624, %v624
    %v887 = vmul.f32 %v629, %v629
    %v888 = vmul.f32 %v634, %v634
    %v889 = vmul.f32 %v639, %v639
    %v890 = vmul.f32 %v644, %v644
    %v891 = vmul.f32 %v649, %v649
    %v892 = vmul.f32 %v654, %v654
    %v893 = vmul.f32 %v659, %v659
    %v894 = vmul.f32 %v664, %v664
    %v895 = vmul.f32 %v669, %v669
    %v896 = vmul.f32 %v674, %v674
    %v897 = vmul.f32 %v679, %v679
    %v898 = vmul.f32 %v684, %v684
    %v899 = vmul.f32 %v689, %v689
    %v900 = vmul.f32 %v694, %v694
    %v901 = vmul.f32 %v699, %v699
    %v902 = vsel %vm704, %v838, 0.0
    %v903 = vsel %vm704, %v839, 0.0
    %v904 = vadd.f32 %v902, %v903
    %v905 = vsel %vm704, %v840, 0.0
    %v906 = vadd.f32 %v904, %v905
    %v907 = vsel %vm704, %v841, 0.0
    %v908 = vadd.f32 %v906, %v907
    %v909 = vsel %vm704, %v842, 0.0
    %v910 = vadd.f32 %v908, %v909
    %v911 = vsel %vm704, %v843, 0.0
    %v912 = vadd.f32 %v910, %v911
    %v913 = vsel %vm704, %v844, 0.0
    %v914 = vadd.f32 %v912, %v913
    %v915 = vsel %vm704, %v845, 0.0
    %v916 = vadd.f32 %v914, %v915
    %v917 = vsel %vm704, %v846, 0.0
    %v918 = vadd.f32 %v916, %v917
    %v919 = vsel %vm704, %v847, 0.0
    %v920 = vadd.f32 %v918, %v919
    %v921 = vsel %vm704, %v848, 0.0
    %v922 = vadd.f32 %v920, %v921
    %v923 = vsel %vm704, %v849, 0.0
    %v924 = vadd.f32 %v922, %v923
    %v925 = vsel %vm704, %v850, 0.0
    %v926 = vadd.f32 %v924, %v925
    %v927 = vsel %vm704, %v851, 0.0
    %v928 = vadd.f32 %v926, %v927
    %v929 = vsel %vm704, %v852, 0.0
    %v930 = vadd.f32 %v928, %v929
    %v931 = vsel %vm704, %v853, 0.0
    %v932 = vadd.f32 %v930, %v931
    %v933 = vsel %vm704, %v854, 0.0
    %v934 = vadd.f32 %v932, %v933
    %v935 = vsel %vm704, %v855, 0.0
    %v936 = vadd.f32 %v934, %v935
    %v937 = vsel %vm704, %v856, 0.0
    %v938 = vadd.f32 %v936, %v937
    %v939 = vsel %vm704, %v857, 0.0
    %v940 = vadd.f32 %v938, %v939
    %v941 = vsel %vm704, %v858, 0.0
    %v942 = vadd.f32 %v940, %v941
    %v943 = vsel %vm704, %v859, 0.0
    %v944 = vadd.f32 %v942, %v943
    %v945 = vsel %vm704, %v860, 0.0
    %v946 = vadd.f32 %v944, %v945
    %v947 = vsel %vm704, %v861, 0.0
    %v948 = vadd.f32 %v946, %v947
    %v949 = vsel %vm704, %v862, 0.0
    %v950 = vadd.f32 %v948, %v949
    %v951 = vsel %vm704, %v863, 0.0
    %v952 = vadd.f32 %v950, %v951
    %v953 = vsel %vm704, %v864, 0.0
    %v954 = vadd.f32 %v952, %v953
    %v955 = vsel %vm704, %v865, 0.0
    %v956 = vadd.f32 %v954, %v955
    %v957 = vsel %vm704, %v866, 0.0
    %v958 = vadd.f32 %v956, %v957
    %v959 = vsel %vm704, %v867, 0.0
    %v960 = vadd.f32 %v958, %v959
    %v961 = vsel %vm704, %v868, 0.0
    %v962 = vadd.f32 %v960, %v961
    %v963 = vsel %vm704, %v869, 0.0
    %v964 = vadd.f32 %v962, %v963
    %v965 = vsel %vm704, %v870, 0.0
    %v966 = vadd.f32 %v964, %v965
    %v967 = vsel %vm704, %v871, 0.0
    %v968 = vadd.f32 %v966, %v967
    %v969 = vsel %vm704, %v872, 0.0
    %v970 = vadd.f32 %v968, %v969
    %v971 = vsel %vm704, %v873, 0.0
    %v972 = vadd.f32 %v970, %v971
    %v973 = vsel %vm704, %v874, 0.0
    %v974 = vadd.f32 %v972, %v973
    %v975 = vsel %vm704, %v875, 0.0
    %v976 = vadd.f32 %v974, %v975
    %v977 = vsel %vm704, %v876, 0.0
    %v978 = vadd.f32 %v976, %v977
    %v979 = vsel %vm704, %v877, 0.0
    %v980 = vadd.f32 %v978, %v979
    %v981 = vsel %vm704, %v878, 0.0
    %v982 = vadd.f32 %v980, %v981
    %v983 = vsel %vm704, %v879, 0.0
    %v984 = vadd.f32 %v982, %v983
    %v985 = vsel %vm704, %v880, 0.0
    %v986 = vadd.f32 %v984, %v985
    %v987 = vsel %vm704, %v881, 0.0
    %v988 = vadd.f32 %v986, %v987
    %v989 = vsel %vm704, %v882, 0.0
    %v990 = vadd.f32 %v988, %v989
    %v991 = vsel %vm704, %v883, 0.0
    %v992 = vadd.f32 %v990, %v991
    %v993 = vsel %vm704, %v884, 0.0
    %v994 = vadd.f32 %v992, %v993
    %v995 = vsel %vm704, %v885, 0.0
    %v996 = vadd.f32 %v994, %v995
    %v997 = vsel %vm704, %v886, 0.0
    %v998 = vadd.f32 %v996, %v997
    %v999 = vsel %vm704, %v887, 0.0
    %v1000 = vadd.f32 %v998, %v999
    %v1001 = vsel %vm704, %v888, 0.0
    %v1002 = vadd.f32 %v1000, %v1001
    %v1003 = vsel %vm704, %v889, 0.0
    %v1004 = vadd.f32 %v1002, %v1003
    %v1005 = vsel %vm704, %v890, 0.0
    %v1006 = vadd.f32 %v1004, %v1005
    %v1007 = vsel %vm704, %v891, 0.0
    %v1008 = vadd.f32 %v1006, %v1007
    %v1009 = vsel %vm704, %v892, 0.0
    %v1010 = vadd.f32 %v1008, %v1009
    %v1011 = vsel %vm704, %v893, 0.0
    %v1012 = vadd.f32 %v1010, %v1011
    %v1013 = vsel %vm704, %v894, 0.0
    %v1014 = vadd.f32 %v1012, %v1013
    %v1015 = vsel %vm704, %v895, 0.0
    %v1016 = vadd.f32 %v1014, %v1015
    %v1017 = vsel %vm704, %v896, 0.0
    %v1018 = vadd.f32 %v1016, %v1017
    %v1019 = vsel %vm704, %v897, 0.0
    %v1020 = vadd.f32 %v1018, %v1019
    %v1021 = vsel %vm704, %v898, 0.0
    %v1022 = vadd.f32 %v1020, %v1021
    %v1023 = vsel %vm704, %v899, 0.0
    %v1024 = vadd.f32 %v1022, %v1023
    %v1025 = vsel %vm704, %v900, 0.0
    %v1026 = vadd.f32 %v1024, %v1025
    %v1027 = vsel %vm704, %v901, 0.0
    %v1028 = vadd.f32 %v1026, %v1027
    %v1029 = vrot.slane %v1028, 4
    %v1030 = vadd.f32 %v1028, %v1029
    %v1031 = vrot.slane %v1030, 2
    %v1032 = vadd.f32 %v1030, %v1031
    %v1033 = vrot.slane %v1032, 1
    %v1034 = vadd.f32 %v1032, %v1033
    %v1035 = vmul.f32 %v837, 0.001953125
    %v1036 = vmul.f32 %v1034, 0.001953125
    %v1037 = vmul.f32 %v1035, %v1035
    %v1038 = vsub.f32 %v1036, %v1037
    %v1039 = vsub.f32 %v384, %v1035
    %v1040 = vsub.f32 %v389, %v1035
    %v1041 = vsub.f32 %v394, %v1035
    %v1042 = vsub.f32 %v399, %v1035
    %v1043 = vsub.f32 %v404, %v1035
    %v1044 = vsub.f32 %v409, %v1035
    %v1045 = vsub.f32 %v414, %v1035
    %v1046 = vsub.f32 %v419, %v1035
    %v1047 = vsub.f32 %v424, %v1035
    %v1048 = vsub.f32 %v429, %v1035
    %v1049 = vsub.f32 %v434, %v1035
    %v1050 = vsub.f32 %v439, %v1035
    %v1051 = vsub.f32 %v444, %v1035
    %v1052 = vsub.f32 %v449, %v1035
    %v1053 = vsub.f32 %v454, %v1035
    %v1054 = vsub.f32 %v459, %v1035
    %v1055 = vsub.f32 %v464, %v1035
    %v1056 = vsub.f32 %v469, %v1035
    %v1057 = vsub.f32 %v474, %v1035
    %v1058 = vsub.f32 %v479, %v1035
    %v1059 = vsub.f32 %v484, %v1035
    %v1060 = vsub.f32 %v489, %v1035
    %v1061 = vsub.f32 %v494, %v1035
    %v1062 = vsub.f32 %v499, %v1035
    %v1063 = vsub.f32 %v504, %v1035
    %v1064 = vsub.f32 %v509, %v1035
    %v1065 = vsub.f32 %v514, %v1035
    %v1066 = vsub.f32 %v519, %v1035
    %v1067 = vsub.f32 %v524, %v1035
    %v1068 = vsub.f32 %v529, %v1035
    %v1069 = vsub.f32 %v534, %v1035
    %v1070 = vsub.f32 %v539, %v1035
    %v1071 = vsub.f32 %v544, %v1035
    %v1072 = vsub.f32 %v549, %v1035
    %v1073 = vsub.f32 %v554, %v1035
    %v1074 = vsub.f32 %v559, %v1035
    %v1075 = vsub.f32 %v564, %v1035
    %v1076 = vsub.f32 %v569, %v1035
    %v1077 = vsub.f32 %v574, %v1035
    %v1078 = vsub.f32 %v579, %v1035
    %v1079 = vsub.f32 %v584, %v1035
    %v1080 = vsub.f32 %v589, %v1035
    %v1081 = vsub.f32 %v594, %v1035
    %v1082 = vsub.f32 %v599, %v1035
    %v1083 = vsub.f32 %v604, %v1035
    %v1084 = vsub.f32 %v609, %v1035
    %v1085 = vsub.f32 %v614, %v1035
    %v1086 = vsub.f32 %v619, %v1035
    %v1087 = vsub.f32 %v624, %v1035
    %v1088 = vsub.f32 %v629, %v1035
    %v1089 = vsub.f32 %v634, %v1035
    %v1090 = vsub.f32 %v639, %v1035
    %v1091 = vsub.f32 %v644, %v1035
    %v1092 = vsub.f32 %v649, %v1035
    %v1093 = vsub.f32 %v654, %v1035
    %v1094 = vsub.f32 %v659, %v1035
    %v1095 = vsub.f32 %v664, %v1035
    %v1096 = vsub.f32 %v669, %v1035
    %v1097 = vsub.f32 %v674, %v1035
    %v1098 = vsub.f32 %v679, %v1035
    %v1099 = vsub.f32 %v684, %v1035
    %v1100 = vsub.f32 %v689, %v1035
    %v1101 = vsub.f32 %v694, %v1035
    %v1102 = vsub.f32 %v699, %v1035
    %v1103 = vadd.f32 %v1038, 1e-05
    %v1104 = vrsqrt.pop %v1103
    %v1105 = vmul.f32 %v1039, %v1104
    %v1106 = vmul.f32 %v1040, %v1104
    %v1107 = vmul.f32 %v1041, %v1104
    %v1108 = vmul.f32 %v1042, %v1104
    %v1109 = vmul.f32 %v1043, %v1104
    %v1110 = vmul.f32 %v1044, %v1104
    %v1111 = vmul.f32 %v1045, %v1104
    %v1112 = vmul.f32 %v1046, %v1104
    %v1113 = vmul.f32 %v1047, %v1104
    %v1114 = vmul.f32 %v1048, %v1104
    %v1115 = vmul.f32 %v1049, %v1104
    %v1116 = vmul.f32 %v1050, %v1104
    %v1117 = vmul.f32 %v1051, %v1104
    %v1118 = vmul.f32 %v1052, %v1104
    %v1119 = vmul.f32 %v1053, %v1104
    %v1120 = vmul.f32 %v1054, %v1104
    %v1121 = vmul.f32 %v1055, %v1104
    %v1122 = vmul.f32 %v1056, %v1104
    %v1123 = vmul.f32 %v1057, %v1104
    %v1124 = vmul.f32 %v1058, %v1104
    %v1125 = vmul.f32 %v1059, %v1104
    %v1126 = vmul.f32 %v1060, %v1104
    %v1127 = vmul.f32 %v1061, %v1104
    %v1128 = vmul.f32 %v1062, %v1104
    %v1129 = vmul.f32 %v1063, %v1104
    %v1130 = vmul.f32 %v1064, %v1104
    %v1131 = vmul.f32 %v1065, %v1104
    %v1132 = vmul.f32 %v1066, %v1104
    %v1133 = vmul.f32 %v1067, %v1104
    %v1134 = vmul.f32 %v1068, %v1104
    %v1135 = vmul.f32 %v1069, %v1104
    %v1136 = vmul.f32 %v1070, %v1104
    %v1137 = vmul.f32 %v1071, %v1104
    %v1138 = vmul.f32 %v1072, %v1104
    %v1139 = vmul.f32 %v1073, %v1104
    %v1140 = vmul.f32 %v1074, %v1104
    %v1141 = vmul.f32 %v1075, %v1104
    %v1142 = vmul.f32 %v1076, %v1104
    %v1143 = vmul.f32 %v1077, %v1104
    %v1144 = vmul.f32 %v1078, %v1104
    %v1145 = vmul.f32 %v1079, %v1104
    %v1146 = vmul.f32 %v1080, %v1104
    %v1147 = vmul.f32 %v1081, %v1104
    %v1148 = vmul.f32 %v1082, %v1104
    %v1149 = vmul.f32 %v1083, %v1104
    %v1150 = vmul.f32 %v1084, %v1104
    %v1151 = vmul.f32 %v1085, %v1104
    %v1152 = vmul.f32 %v1086, %v1104
    %v1153 = vmul.f32 %v1087, %v1104
    %v1154 = vmul.f32 %v1088, %v1104
    %v1155 = vmul.f32 %v1089, %v1104
    %v1156 = vmul.f32 %v1090, %v1104
    %v1157 = vmul.f32 %v1091, %v1104
    %v1158 = vmul.f32 %v1092, %v1104
    %v1159 = vmul.f32 %v1093, %v1104
    %v1160 = vmul.f32 %v1094, %v1104
    %v1161 = vmul.f32 %v1095, %v1104
    %v1162 = vmul.f32 %v1096, %v1104
    %v1163 = vmul.f32 %v1097, %v1104
    %v1164 = vmul.f32 %v1098, %v1104
    %v1165 = vmul.f32 %v1099, %v1104
    %v1166 = vmul.f32 %v1100, %v1104
    %v1167 = vmul.f32 %v1101, %v1104
    %v1168 = vmul.f32 %v1102, %v1104
    %v1170 = vlaneseq
    %v1171 = vshrl.u32 %v1170, 7
    %v1172 = vsub.s32 0, %v1171
    %v1173 = vrot.slane %v702, %v1172
    %v1175 = vmul.f32 %v1105, %v1173
    %v1176 = vmul.f32 %v1106, %v1173
    %v1177 = vmul.f32 %v1107, %v1173
    %v1178 = vmul.f32 %v1108, %v1173
    %v1179 = vmul.f32 %v1109, %v1173
    %v1180 = vmul.f32 %v1110, %v1173
    %v1181 = vmul.f32 %v1111, %v1173
    %v1182 = vmul.f32 %v1112, %v1173
    %v1183 = vmul.f32 %v1113, %v1173
    %v1184 = vmul.f32 %v1114, %v1173
    %v1185 = vmul.f32 %v1115, %v1173
    %v1186 = vmul.f32 %v1116, %v1173
    %v1187 = vmul.f32 %v1117, %v1173
    %v1188 = vmul.f32 %v1118, %v1173
    %v1189 = vmul.f32 %v1119, %v1173
    %v1190 = vmul.f32 %v1120, %v1173
    %v1191 = vmul.f32 %v1121, %v1173
    %v1192 = vmul.f32 %v1122, %v1173
    %v1193 = vmul.f32 %v1123, %v1173
    %v1194 = vmul.f32 %v1124, %v1173
    %v1195 = vmul.f32 %v1125, %v1173
    %v1196 = vmul.f32 %v1126, %v1173
    %v1197 = vmul.f32 %v1127, %v1173
    %v1198 = vmul.f32 %v1128, %v1173
    %v1199 = vmul.f32 %v1129, %v1173
    %v1200 = vmul.f32 %v1130, %v1173
    %v1201 = vmul.f32 %v1131, %v1173
    %v1202 = vmul.f32 %v1132, %v1173
    %v1203 = vmul.f32 %v1133, %v1173
    %v1204 = vmul.f32 %v1134, %v1173
    %v1205 = vmul.f32 %v1135, %v1173
    %v1206 = vmul.f32 %v1136, %v1173
    %v1207 = vmul.f32 %v1137, %v1173
    %v1208 = vmul.f32 %v1138, %v1173
    %v1209 = vmul.f32 %v1139, %v1173
    %v1210 = vmul.f32 %v1140, %v1173
    %v1211 = vmul.f32 %v1141, %v1173
    %v1212 = vmul.f32 %v1142, %v1173
    %v1213 = vmul.f32 %v1143, %v1173
    %v1214 = vmul.f32 %v1144, %v1173
    %v1215 = vmul.f32 %v1145, %v1173
    %v1216 = vmul.f32 %v1146, %v1173
    %v1217 = vmul.f32 %v1147, %v1173
    %v1218 = vmul.f32 %v1148, %v1173
    %v1219 = vmul.f32 %v1149, %v1173
    %v1220 = vmul.f32 %v1150, %v1173
    %v1221 = vmul.f32 %v1151, %v1173
    %v1222 = vmul.f32 %v1152, %v1173
    %v1223 = vmul.f32 %v1153, %v1173
    %v1224 = vmul.f32 %v1154, %v1173
    %v1225 = vmul.f32 %v1155, %v1173
    %v1226 = vmul.f32 %v1156, %v1173
    %v1227 = vmul.f32 %v1157, %v1173
    %v1228 = vmul.f32 %v1158, %v1173
    %v1229 = vmul.f32 %v1159, %v1173
    %v1230 = vmul.f32 %v1160, %v1173
    %v1231 = vmul.f32 %v1161, %v1173
    %v1232 = vmul.f32 %v1162, %v1173
    %v1233 = vmul.f32 %v1163, %v1173
    %v1234 = vmul.f32 %v1164, %v1173
    %v1235 = vmul.f32 %v1165, %v1173
    %v1236 = vmul.f32 %v1166, %v1173
    %v1237 = vmul.f32 %v1167, %v1173
    %v1238 = vmul.f32 %v1168, %v1173
    %v1240 = vlaneseq
    %v1241 = vshrl.u32 %v1240, 7
    %v1242 = vsub.s32 0, %v1241
    %v1243 = vrot.slane %v703, %v1242
    %v1245 = vadd.f32 %v1175, %v1243
    %v1246 = vadd.f32 %v1176, %v1243
    %v1247 = vadd.f32 %v1177, %v1243
    %v1248 = vadd.f32 %v1178, %v1243
    %v1249 = vadd.f32 %v1179, %v1243
    %v1250 = vadd.f32 %v1180, %v1243
    %v1251 = vadd.f32 %v1181, %v1243
    %v1252 = vadd.f32 %v1182, %v1243
    %v1253 = vadd.f32 %v1183, %v1243
    %v1254 = vadd.f32 %v1184, %v1243
    %v1255 = vadd.f32 %v1185, %v1243
    %v1256 = vadd.f32 %v1186, %v1243
    %v1257 = vadd.f32 %v1187, %v1243
    %v1258 = vadd.f32 %v1188, %v1243
    %v1259 = vadd.f32 %v1189, %v1243
    %v1260 = vadd.f32 %v1190, %v1243
    %v1261 = vadd.f32 %v1191, %v1243
    %v1262 = vadd.f32 %v1192, %v1243
    %v1263 = vadd.f32 %v1193, %v1243
    %v1264 = vadd.f32 %v1194, %v1243
    %v1265 = vadd.f32 %v1195, %v1243
    %v1266 = vadd.f32 %v1196, %v1243
    %v1267 = vadd.f32 %v1197, %v1243
    %v1268 = vadd.f32 %v1198, %v1243
    %v1269 = vadd.f32 %v1199, %v1243
    %v1270 = vadd.f32 %v1200, %v1243
    %v1271 = vadd.f32 %v1201, %v1243
    %v1272 = vadd.f32 %v1202, %v1243
    %v1273 = vadd.f32 %v1203, %v1243
    %v1274 = vadd.f32 %v1204, %v1243
    %v1275 = vadd.f32 %v1205, %v1243
    %v1276 = vadd.f32 %v1206, %v1243
    %v1277 = vadd.f32 %v1207, %v1243
    %v1278 = vadd.f32 %v1208, %v1243
    %v1279 = vadd.f32 %v1209, %v1243
    %v1280 = vadd.f32 %v1210, %v1243
    %v1281 = vadd.f32 %v1211, %v1243
    %v1282 = vadd.f32 %v1212, %v1243
    %v1283 = vadd.f32 %v1213, %v1243
    %v1284 = vadd.f32 %v1214, %v1243
    %v1285 = vadd.f32 %v1215, %v1243
    %v1286 = vadd.f32 %v1216, %v1243
    %v1287 = vadd.f32 %v1217, %v1243
    %v1288 = vadd.f32 %v1218, %v1243
    %v1289 = vadd.f32 %v1219, %v1243
    %v1290 = vadd.f32 %v1220, %v1243
    %v1291 = vadd.f32 %v1221, %v1243
    %v1292 = vadd.f32 %v1222, %v1243
    %v1293 = vadd.f32 %v1223, %v1243
    %v1294 = vadd.f32 %v1224, %v1243
    %v1295 = vadd.f32 %v1225, %v1243
    %v1296 = vadd.f32 %v1226, %v1243
    %v1297 = vadd.f32 %v1227, %v1243
    %v1298 = vadd.f32 %v1228, %v1243
    %v1299 = vadd.f32 %v1229, %v1243
    %v1300 = vadd.f32 %v1230, %v1243
    %v1301 = vadd.f32 %v1231, %v1243
    %v1302 = vadd.f32 %v1232, %v1243
    %v1303 = vadd.f32 %v1233, %v1243
    %v1304 = vadd.f32 %v1234, %v1243
    %v1305 = vadd.f32 %v1235, %v1243
    %v1306 = vadd.f32 %v1236, %v1243
    %v1307 = vadd.f32 %v1237, %v1243
    %v1308 = vadd.f32 %v1238, %v1243
    %v1309 = vmax.f32 %v1245, 0.0
    %v1310 = vmax.f32 %v1246, 0.0
    %v1311 = vmax.f32 %v1247, 0.0
    %v1312 = vmax.f32 %v1248, 0.0
    %v1313 = vmax.f32 %v1249, 0.0
    %v1314 = vmax.f32 %v1250, 0.0
    %v1315 = vmax.f32 %v1251, 0.0
    %v1316 = vmax.f32 %v1252, 0.0
    %v1317 = vmax.f32 %v1253, 0.0
    %v1318 = vmax.f32 %v1254, 0.0
    %v1319 = vmax.f32 %v1255, 0.0
    %v1320 = vmax.f32 %v1256, 0.0
    %v1321 = vmax.f32 %v1257, 0.0
    %v1322 = vmax.f32 %v1258, 0.0
    %v1323 = vmax.f32 %v1259, 0.0
    %v1324 = vmax.f32 %v1260, 0.0
    %v1325 = vmax.f32 %v1261, 0.0
    %v1326 = vmax.f32 %v1262, 0.0
    %v1327 = vmax.f32 %v1263, 0.0
    %v1328 = vmax.f32 %v1264, 0.0
    %v1329 = vmax.f32 %v1265, 0.0
    %v1330 = vmax.f32 %v1266, 0.0
    %v1331 = vmax.f32 %v1267, 0.0
    %v1332 = vmax.f32 %v1268, 0.0
    %v1333 = vmax.f32 %v1269, 0.0
    %v1334 = vmax.f32 %v1270, 0.0
    %v1335 = vmax.f32 %v1271, 0.0
    %v1336 = vmax.f32 %v1272, 0.0
    %v1337 = vmax.f32 %v1273, 0.0
    %v1338 = vmax.f32 %v1274, 0.0
    %v1339 = vmax.f32 %v1275, 0.0
    %v1340 = vmax.f32 %v1276, 0.0
    %v1341 = vmax.f32 %v1277, 0.0
    %v1342 = vmax.f32 %v1278, 0.0
    %v1343 = vmax.f32 %v1279, 0.0
    %v1344 = vmax.f32 %v1280, 0.0
    %v1345 = vmax.f32 %v1281, 0.0
    %v1346 = vmax.f32 %v1282, 0.0
    %v1347 = vmax.f32 %v1283, 0.0
    %v1348 = vmax.f32 %v1284, 0.0
    %v1349 = vmax.f32 %v1285, 0.0
    %v1350 = vmax.f32 %v1286, 0.0
    %v1351 = vmax.f32 %v1287, 0.0
    %v1352 = vmax.f32 %v1288, 0.0
    %v1353 = vmax.f32 %v1289, 0.0
    %v1354 = vmax.f32 %v1290, 0.0
    %v1355 = vmax.f32 %v1291, 0.0
    %v1356 = vmax.f32 %v1292, 0.0
    %v1357 = vmax.f32 %v1293, 0.0
    %v1358 = vmax.f32 %v1294, 0.0
    %v1359 = vmax.f32 %v1295, 0.0
    %v1360 = vmax.f32 %v1296, 0.0
    %v1361 = vmax.f32 %v1297, 0.0
    %v1362 = vmax.f32 %v1298, 0.0
    %v1363 = vmax.f32 %v1299, 0.0
    %v1364 = vmax.f32 %v1300, 0.0
    %v1365 = vmax.f32 %v1301, 0.0
    %v1366 = vmax.f32 %v1302, 0.0
    %v1367 = vmax.f32 %v1303, 0.0
    %v1368 = vmax.f32 %v1304, 0.0
    %v1369 = vmax.f32 %v1305, 0.0
    %v1370 = vmax.f32 %v1306, 0.0
    %v1371 = vmax.f32 %v1307, 0.0
    %v1372 = vmax.f32 %v1308, 0.0
    %1373 = vst.msk [vmem:[#allocation2] sm:$0xff] %vm704, 0.0
    %1374 = vst.msk [vmem:[#allocation2 + $0x8] sm:$0xff] %vm704, 0.0
    %vm1375 = vcmask 123904
    %1376 = vst.msk [vmem:[#allocation2 + $0x10] sm:$0x3] %vm1375, 0.0
    %1377 = vst.msk [vmem:[#allocation2 + $0x18] sm:$0xff] %vm704, 0.0
    %1378 = vst.msk [vmem:[#allocation2 + $0x20] sm:$0xff] %vm704, 0.0
    %1379 = vst.msk [vmem:[#allocation2 + $0x28] sm:$0x3] %vm1375, 0.0
    %1380 = vst.msk [vmem:[#allocation2 + $0x30] sm:$0xff] %vm704, 0.0
    %1381 = vst.msk [vmem:[#allocation2 + $0x38] sm:$0xff] %vm704, 0.0
    %1382 = vst.msk [vmem:[#allocation2 + $0x40] sm:$0x3] %vm1375, 0.0
    %1383 = vst.msk [vmem:[#allocation2 + $0x48] sm:$0xff] %vm704, 0.0
    %1384 = vst.msk [vmem:[#allocation2 + $0x50] sm:$0xff] %vm704, 0.0
    %1385 = vst.msk [vmem:[#allocation2 + $0x58] sm:$0x3] %vm1375, 0.0
    %1386 = vst.msk [vmem:[#allocation2 + $0x60] sm:$0xff] %vm704, 0.0
    %1387 = vst.msk [vmem:[#allocation2 + $0x68] sm:$0xff] %vm704, 0.0
    %1388 = vst.msk [vmem:[#allocation2 + $0x70] sm:$0x3] %vm1375, 0.0
    %1389 = vst.msk [vmem:[#allocation2 + $0x78] sm:$0xff] %vm704, 0.0
    %1390 = vst.msk [vmem:[#allocation2 + $0x80] sm:$0xff] %vm704, 0.0
    %1391 = vst.msk [vmem:[#allocation2 + $0x88] sm:$0x3] %vm1375, 0.0
    %1392 = vst.msk [vmem:[#allocation2 + $0x90] sm:$0xff] %vm704, 0.0
    %1393 = vst.msk [vmem:[#allocation2 + $0x98] sm:$0xff] %vm704, 0.0
    %1394 = vst.msk [vmem:[#allocation2 + $0xa0] sm:$0x3] %vm1375, 0.0
    %1395 = vst.msk [vmem:[#allocation2 + $0xa8] sm:$0xff] %vm704, 0.0
    %1396 = vst.msk [vmem:[#allocation2 + $0xb0] sm:$0xff] %vm704, 0.0
    %1397 = vst.msk [vmem:[#allocation2 + $0xb8] sm:$0x3] %vm1375, 0.0
    %1398 = vst.msk [vmem:[#allocation2 + $0xc0] sm:$0xff] %vm704, 0.0
    %1399 = vst.msk [vmem:[#allocation2 + $0xc8] sm:$0xff] %vm704, 0.0
    %1400 = vst.msk [vmem:[#allocation2 + $0xd0] sm:$0x3] %vm1375, 0.0
    %1401 = vst.msk [vmem:[#allocation2 + $0xd8] sm:$0xff] %vm704, 0.0
    %1402 = vst.msk [vmem:[#allocation2 + $0xe0] sm:$0xff] %vm704, 0.0
    %1403 = vst.msk [vmem:[#allocation2 + $0xe8] sm:$0x3] %vm1375, 0.0
    %1404 = vst.msk [vmem:[#allocation2 + $0xf0] sm:$0xff] %vm704, 0.0
    %1405 = vst.msk [vmem:[#allocation2 + $0xf8] sm:$0xff] %vm704, 0.0
    %1406 = vst.msk [vmem:[#allocation2 + $0x100] sm:$0x3] %vm1375, 0.0
    %1407 = vst.msk [vmem:[#allocation2 + $0x108] sm:$0xff] %vm704, 0.0
    %1408 = vst.msk [vmem:[#allocation2 + $0x110] sm:$0xff] %vm704, 0.0
    %1409 = vst.msk [vmem:[#allocation2 + $0x118] sm:$0x3] %vm1375, 0.0
    %1410 = vst.msk [vmem:[#allocation2 + $0x120] sm:$0xff] %vm704, 0.0
    %1411 = vst.msk [vmem:[#allocation2 + $0x128] sm:$0xff] %vm704, 0.0
    %1412 = vst.msk [vmem:[#allocation2 + $0x130] sm:$0x3] %vm1375, 0.0
    %1413 = vst.msk [vmem:[#allocation2 + $0x138] sm:$0xff] %vm704, 0.0
    %1414 = vst.msk [vmem:[#allocation2 + $0x140] sm:$0xff] %vm704, 0.0
    %1415 = vst.msk [vmem:[#allocation2 + $0x148] sm:$0x3] %vm1375, 0.0
    %1416 = vst.msk [vmem:[#allocation2 + $0x150] sm:$0xff] %vm704, 0.0
    %1417 = vst.msk [vmem:[#allocation2 + $0x158] sm:$0xff] %vm704, 0.0
    %1418 = vst.msk [vmem:[#allocation2 + $0x160] sm:$0x3] %vm1375, 0.0
    %1419 = vst.msk [vmem:[#allocation2 + $0x168] sm:$0xff] %vm704, 0.0
    %1420 = vst.msk [vmem:[#allocation2 + $0x170] sm:$0xff] %vm704, 0.0
    %1421 = vst.msk [vmem:[#allocation2 + $0x178] sm:$0x3] %vm1375, 0.0
    %1422 = vst.msk [vmem:[#allocation2 + $0x180] sm:$0xff] %vm704, 0.0
    %1423 = vst.msk [vmem:[#allocation2 + $0x188] sm:$0xff] %vm704, 0.0
    %1424 = vst.msk [vmem:[#allocation2 + $0x190] sm:$0x3] %vm1375, 0.0
    %1425 = vst.msk [vmem:[#allocation2 + $0x198] sm:$0xff] %vm704, 0.0
    %1426 = vst.msk [vmem:[#allocation2 + $0x1a0] sm:$0xff] %vm704, 0.0
    %1427 = vst.msk [vmem:[#allocation2 + $0x1a8] sm:$0x3] %vm1375, 0.0
    %1428 = vst.msk [vmem:[#allocation2 + $0x1b0] sm:$0xff] %vm704, 0.0
    %1429 = vst.msk [vmem:[#allocation2 + $0x1b8] sm:$0xff] %vm704, 0.0
    %1430 = vst.msk [vmem:[#allocation2 + $0x1c0] sm:$0x3] %vm1375, 0.0
    %1431 = vst.msk [vmem:[#allocation2 + $0x1c8] sm:$0xff] %vm704, 0.0
    %1432 = vst.msk [vmem:[#allocation2 + $0x1d0] sm:$0xff] %vm704, 0.0
    %1433 = vst.msk [vmem:[#allocation2 + $0x1d8] sm:$0x3] %vm1375, 0.0
    %1434 = vst.msk [vmem:[#allocation2 + $0x1e0] sm:$0xff] %vm704, 0.0
    %1435 = vst.msk [vmem:[#allocation2 + $0x1e8] sm:$0xff] %vm704, 0.0
    %1436 = vst.msk [vmem:[#allocation2 + $0x1f0] sm:$0x3] %vm1375, 0.0
    %1437 = vst.msk [vmem:[#allocation2 + $0x1f8] sm:$0xff] %vm704, 0.0
    %1438 = vst.msk [vmem:[#allocation2 + $0x200] sm:$0xff] %vm704, 0.0
    %1439 = vst.msk [vmem:[#allocation2 + $0x208] sm:$0x3] %vm1375, 0.0
    %1440 = vst.msk [vmem:[#allocation2 + $0x210] sm:$0xff] %vm704, 0.0
    %1441 = vst.msk [vmem:[#allocation2 + $0x218] sm:$0xff] %vm704, 0.0
    %1442 = vst.msk [vmem:[#allocation2 + $0x220] sm:$0x3] %vm1375, 0.0
    %1443 = vst.msk [vmem:[#allocation2 + $0x228] sm:$0xff] %vm704, 0.0
    %1444 = vst.msk [vmem:[#allocation2 + $0x230] sm:$0xff] %vm704, 0.0
    %1445 = vst.msk [vmem:[#allocation2 + $0x238] sm:$0x3] %vm1375, 0.0
    %1446 = vst.msk [vmem:[#allocation2 + $0x240] sm:$0xff] %vm704, 0.0
    %1447 = vst.msk [vmem:[#allocation2 + $0x248] sm:$0xff] %vm704, 0.0
    %1448 = vst.msk [vmem:[#allocation2 + $0x250] sm:$0x3] %vm1375, 0.0
    %1449 = vst.msk [vmem:[#allocation2 + $0x258] sm:$0xff] %vm704, 0.0
    %1450 = vst.msk [vmem:[#allocation2 + $0x260] sm:$0xff] %vm704, 0.0
    %1451 = vst.msk [vmem:[#allocation2 + $0x268] sm:$0x3] %vm1375, 0.0
    %1452 = vst.msk [vmem:[#allocation2 + $0x270] sm:$0xff] %vm704, 0.0
    %1453 = vst.msk [vmem:[#allocation2 + $0x278] sm:$0xff] %vm704, 0.0
    %1454 = vst.msk [vmem:[#allocation2 + $0x280] sm:$0x3] %vm1375, 0.0
    %1455 = vst.msk [vmem:[#allocation2 + $0x288] sm:$0xff] %vm704, 0.0
    %1456 = vst.msk [vmem:[#allocation2 + $0x290] sm:$0xff] %vm704, 0.0
    %1457 = vst.msk [vmem:[#allocation2 + $0x298] sm:$0x3] %vm1375, 0.0
    %1458 = vst.msk [vmem:[#allocation2 + $0x2a0] sm:$0xff] %vm704, 0.0
    %1459 = vst.msk [vmem:[#allocation2 + $0x2a8] sm:$0xff] %vm704, 0.0
    %1460 = vst.msk [vmem:[#allocation2 + $0x2b0] sm:$0x3] %vm1375, 0.0
    %1461 = vst.msk [vmem:[#allocation2 + $0x2b8] sm:$0xff] %vm704, 0.0
    %1462 = vst.msk [vmem:[#allocation2 + $0x2c0] sm:$0xff] %vm704, 0.0
    %1463 = vst.msk [vmem:[#allocation2 + $0x2c8] sm:$0x3] %vm1375, 0.0
    %1464 = vst.msk [vmem:[#allocation2 + $0x2d0] sm:$0xff] %vm704, 0.0
    %1465 = vst.msk [vmem:[#allocation2 + $0x2d8] sm:$0xff] %vm704, 0.0
    %1466 = vst.msk [vmem:[#allocation2 + $0x2e0] sm:$0x3] %vm1375, 0.0
    %1467 = vst.msk [vmem:[#allocation2 + $0x2e8] sm:$0xff] %vm704, 0.0
    %1468 = vst.msk [vmem:[#allocation2 + $0x2f0] sm:$0xff] %vm704, 0.0
    %1469 = vst.msk [vmem:[#allocation2 + $0x2f8] sm:$0x3] %vm1375, 0.0
    %1470 = vst.msk [vmem:[#allocation2 + $0x300] sm:$0xff] %vm704, 0.0
    %1471 = vst.msk [vmem:[#allocation2 + $0x308] sm:$0xff] %vm704, 0.0
    %1472 = vst.msk [vmem:[#allocation2 + $0x310] sm:$0x3] %vm1375, 0.0
    %1473 = vst.msk [vmem:[#allocation2 + $0x318] sm:$0xff] %vm704, 0.0
    %1474 = vst.msk [vmem:[#allocation2 + $0x320] sm:$0xff] %vm704, 0.0
    %1475 = vst.msk [vmem:[#allocation2 + $0x328] sm:$0x3] %vm1375, 0.0
    %1476 = vst.msk [vmem:[#allocation2 + $0x330] sm:$0xff] %vm704, 0.0
    %1477 = vst.msk [vmem:[#allocation2 + $0x338] sm:$0xff] %vm704, 0.0
    %1478 = vst.msk [vmem:[#allocation2 + $0x340] sm:$0x3] %vm1375, 0.0
    %1479 = vst.msk [vmem:[#allocation2 + $0x348] sm:$0xff] %vm704, 0.0
    %1480 = vst.msk [vmem:[#allocation2 + $0x350] sm:$0xff] %vm704, 0.0
    %1481 = vst.msk [vmem:[#allocation2 + $0x358] sm:$0x3] %vm1375, 0.0
    %s1482 = scalar_lea.vmem [#allocation2], 24
    %1483 = vst.msk [vmem:[%s1482 + $0x1] sm:$0xff] %vm704, %v1309
    %1484 = vst.msk [vmem:[%s1482 + $0x9] sm:$0xff] %vm704, %v1310
    %1485 = vst.msk [vmem:[%s1482 + $0x19] sm:$0xff] %vm704, %v1311
    %1486 = vst.msk [vmem:[%s1482 + $0x21] sm:$0xff] %vm704, %v1312
    %1487 = vst.msk [vmem:[%s1482 + $0x31] sm:$0xff] %vm704, %v1313
    %1488 = vst.msk [vmem:[%s1482 + $0x39] sm:$0xff] %vm704, %v1314
    %1489 = vst.msk [vmem:[%s1482 + $0x49] sm:$0xff] %vm704, %v1315
    %1490 = vst.msk [vmem:[%s1482 + $0x51] sm:$0xff] %vm704, %v1316
    %1491 = vst.msk [vmem:[%s1482 + $0x61] sm:$0xff] %vm704, %v1317
    %1492 = vst.msk [vmem:[%s1482 + $0x69] sm:$0xff] %vm704, %v1318
    %1493 = vst.msk [vmem:[%s1482 + $0x79] sm:$0xff] %vm704, %v1319
    %1494 = vst.msk [vmem:[%s1482 + $0x81] sm:$0xff] %vm704, %v1320
    %1495 = vst.msk [vmem:[%s1482 + $0x91] sm:$0xff] %vm704, %v1321
    %1496 = vst.msk [vmem:[%s1482 + $0x99] sm:$0xff] %vm704, %v1322
    %1497 = vst.msk [vmem:[%s1482 + $0xa9] sm:$0xff] %vm704, %v1323
    %1498 = vst.msk [vmem:[%s1482 + $0xb1] sm:$0xff] %vm704, %v1324
    %1499 = vst.msk [vmem:[%s1482 + $0xc1] sm:$0xff] %vm704, %v1325
    %1500 = vst.msk [vmem:[%s1482 + $0xc9] sm:$0xff] %vm704, %v1326
    %1501 = vst.msk [vmem:[%s1482 + $0xd9] sm:$0xff] %vm704, %v1327
    %1502 = vst.msk [vmem:[%s1482 + $0xe1] sm:$0xff] %vm704, %v1328
    %1503 = vst.msk [vmem:[%s1482 + $0xf1] sm:$0xff] %vm704, %v1329
    %1504 = vst.msk [vmem:[%s1482 + $0xf9] sm:$0xff] %vm704, %v1330
    %1505 = vst.msk [vmem:[%s1482 + $0x109] sm:$0xff] %vm704, %v1331
    %1506 = vst.msk [vmem:[%s1482 + $0x111] sm:$0xff] %vm704, %v1332
    %1507 = vst.msk [vmem:[%s1482 + $0x121] sm:$0xff] %vm704, %v1333
    %1508 = vst.msk [vmem:[%s1482 + $0x129] sm:$0xff] %vm704, %v1334
    %1509 = vst.msk [vmem:[%s1482 + $0x139] sm:$0xff] %vm704, %v1335
    %1510 = vst.msk [vmem:[%s1482 + $0x141] sm:$0xff] %vm704, %v1336
    %1511 = vst.msk [vmem:[%s1482 + $0x151] sm:$0xff] %vm704, %v1337
    %1512 = vst.msk [vmem:[%s1482 + $0x159] sm:$0xff] %vm704, %v1338
    %1513 = vst.msk [vmem:[%s1482 + $0x169] sm:$0xff] %vm704, %v1339
    %1514 = vst.msk [vmem:[%s1482 + $0x171] sm:$0xff] %vm704, %v1340
    %1515 = vst.msk [vmem:[%s1482 + $0x1b1] sm:$0xff] %vm704, %v1341
    %1516 = vst.msk [vmem:[%s1482 + $0x1b9] sm:$0xff] %vm704, %v1342
    %1517 = vst.msk [vmem:[%s1482 + $0x1c9] sm:$0xff] %vm704, %v1343
    %1518 = vst.msk [vmem:[%s1482 + $0x1d1] sm:$0xff] %vm704, %v1344
    %1519 = vst.msk [vmem:[%s1482 + $0x1e1] sm:$0xff] %vm704, %v1345
    %1520 = vst.msk [vmem:[%s1482 + $0x1e9] sm:$0xff] %vm704, %v1346
    %1521 = vst.msk [vmem:[%s1482 + $0x1f9] sm:$0xff] %vm704, %v1347
    %1522 = vst.msk [vmem:[%s1482 + $0x201] sm:$0xff] %vm704, %v1348
    %1523 = vst.msk [vmem:[%s1482 + $0x211] sm:$0xff] %vm704, %v1349
    %1524 = vst.msk [vmem:[%s1482 + $0x219] sm:$0xff] %vm704, %v1350
    %1525 = vst.msk [vmem:[%s1482 + $0x229] sm:$0xff] %vm704, %v1351
    %1526 = vst.msk [vmem:[%s1482 + $0x231] sm:$0xff] %vm704, %v1352
    %1527 = vst.msk [vmem:[%s1482 + $0x241] sm:$0xff] %vm704, %v1353
    %1528 = vst.msk [vmem:[%s1482 + $0x249] sm:$0xff] %vm704, %v1354
    %1529 = vst.msk [vmem:[%s1482 + $0x259] sm:$0xff] %vm704, %v1355
    %1530 = vst.msk [vmem:[%s1482 + $0x261] sm:$0xff] %vm704, %v1356
    %1531 = vst.msk [vmem:[%s1482 + $0x271] sm:$0xff] %vm704, %v1357
    %1532 = vst.msk [vmem:[%s1482 + $0x279] sm:$0xff] %vm704, %v1358
    %1533 = vst.msk [vmem:[%s1482 + $0x289] sm:$0xff] %vm704, %v1359
    %1534 = vst.msk [vmem:[%s1482 + $0x291] sm:$0xff] %vm704, %v1360
    %1535 = vst.msk [vmem:[%s1482 + $0x2a1] sm:$0xff] %vm704, %v1361
    %1536 = vst.msk [vmem:[%s1482 + $0x2a9] sm:$0xff] %vm704, %v1362
    %1537 = vst.msk [vmem:[%s1482 + $0x2b9] sm:$0xff] %vm704, %v1363
    %1538 = vst.msk [vmem:[%s1482 + $0x2c1] sm:$0xff] %vm704, %v1364
    %1539 = vst.msk [vmem:[%s1482 + $0x2d1] sm:$0xff] %vm704, %v1365
    %1540 = vst.msk [vmem:[%s1482 + $0x2d9] sm:$0xff] %vm704, %v1366
    %1541 = vst.msk [vmem:[%s1482 + $0x2e9] sm:$0xff] %vm704, %v1367
    %1542 = vst.msk [vmem:[%s1482 + $0x2f1] sm:$0xff] %vm704, %v1368
    %1543 = vst.msk [vmem:[%s1482 + $0x301] sm:$0xff] %vm704, %v1369
    %1544 = vst.msk [vmem:[%s1482 + $0x309] sm:$0xff] %vm704, %v1370
    %1545 = vst.msk [vmem:[%s1482 + $0x319] sm:$0xff] %vm704, %v1371
    %1546 = vst.msk [vmem:[%s1482 + $0x321] sm:$0xff] %vm704, %v1372
    %v1547 = vld [vmem:[#allocation2] sm:$0xff]
    %v1548 = vld [vmem:[#allocation2 + $0x8] sm:$0xff]
    %v1549 = vld [vmem:[#allocation2 + $0x10] sm:$0x3]
    %v1550 = vld [vmem:[#allocation2 + $0x18] sm:$0xff]
    %v1551 = vld [vmem:[#allocation2 + $0x20] sm:$0xff]
    %v1552 = vld [vmem:[#allocation2 + $0x28] sm:$0x3]
    %v1553 = vld [vmem:[#allocation2 + $0x30] sm:$0xff]
    %v1554 = vld [vmem:[#allocation2 + $0x38] sm:$0xff]
    %v1555 = vld [vmem:[#allocation2 + $0x40] sm:$0x3]
    %v1556 = vld [vmem:[#allocation2 + $0x48] sm:$0xff]
    %v1557 = vld [vmem:[#allocation2 + $0x50] sm:$0xff]
    %v1558 = vld [vmem:[#allocation2 + $0x58] sm:$0x3]
    %v1559 = vld [vmem:[#allocation2 + $0x60] sm:$0xff]
    %v1560 = vld [vmem:[#allocation2 + $0x68] sm:$0xff]
    %v1561 = vld [vmem:[#allocation2 + $0x70] sm:$0x3]
    %v1562 = vld [vmem:[#allocation2 + $0x78] sm:$0xff]
    %v1563 = vld [vmem:[#allocation2 + $0x80] sm:$0xff]
    %v1564 = vld [vmem:[#allocation2 + $0x88] sm:$0x3]
    %v1565 = vld [vmem:[#allocation2 + $0x90] sm:$0xff]
    %v1566 = vld [vmem:[#allocation2 + $0x98] sm:$0xff]
    %v1567 = vld [vmem:[#allocation2 + $0xa0] sm:$0x3]
    %v1568 = vld [vmem:[#allocation2 + $0xa8] sm:$0xff]
    %v1569 = vld [vmem:[#allocation2 + $0xb0] sm:$0xff]
    %v1570 = vld [vmem:[#allocation2 + $0xb8] sm:$0x3]
    %v1571 = vld [vmem:[#allocation2 + $0xc0] sm:$0xff]
    %v1572 = vld [vmem:[#allocation2 + $0xc8] sm:$0xff]
    %v1573 = vld [vmem:[#allocation2 + $0xd0] sm:$0x3]
    %v1574 = vld [vmem:[#allocation2 + $0xd8] sm:$0xff]
    %v1575 = vld [vmem:[#allocation2 + $0xe0] sm:$0xff]
    %v1576 = vld [vmem:[#allocation2 + $0xe8] sm:$0x3]
    %v1577 = vld [vmem:[#allocation2 + $0xf0] sm:$0xff]
    %v1578 = vld [vmem:[#allocation2 + $0xf8] sm:$0xff]
    %v1579 = vld [vmem:[#allocation2 + $0x100] sm:$0x3]
    %v1580 = vld [vmem:[#allocation2 + $0x108] sm:$0xff]
    %v1581 = vld [vmem:[#allocation2 + $0x110] sm:$0xff]
    %v1582 = vld [vmem:[#allocation2 + $0x118] sm:$0x3]
    %v1583 = vld [vmem:[#allocation2 + $0x120] sm:$0xff]
    %v1584 = vld [vmem:[#allocation2 + $0x128] sm:$0xff]
    %v1585 = vld [vmem:[#allocation2 + $0x130] sm:$0x3]
    %v1586 = vld [vmem:[#allocation2 + $0x138] sm:$0xff]
    %v1587 = vld [vmem:[#allocation2 + $0x140] sm:$0xff]
    %v1588 = vld [vmem:[#allocation2 + $0x148] sm:$0x3]
    %v1589 = vld [vmem:[#allocation2 + $0x150] sm:$0xff]
    %v1590 = vld [vmem:[#allocation2 + $0x158] sm:$0xff]
    %v1591 = vld [vmem:[#allocation2 + $0x160] sm:$0x3]
    %v1592 = vld [vmem:[#allocation2 + $0x168] sm:$0xff]
    %v1593 = vld [vmem:[#allocation2 + $0x170] sm:$0xff]
    %v1594 = vld [vmem:[#allocation2 + $0x178] sm:$0x3]
    %v1595 = vld [vmem:[#allocation2 + $0x180] sm:$0xff]
    %v1596 = vld [vmem:[#allocation2 + $0x188] sm:$0xff]
    %v1597 = vld [vmem:[#allocation2 + $0x190] sm:$0x3]
    %v1598 = vld [vmem:[#allocation2 + $0x198] sm:$0xff]
    %v1599 = vld [vmem:[#allocation2 + $0x1a0] sm:$0xff]
    %v1600 = vld [vmem:[#allocation2 + $0x1a8] sm:$0x3]
    %v1601 = vld [vmem:[#allocation2 + $0x1b0] sm:$0xff]
    %v1602 = vld [vmem:[#allocation2 + $0x1b8] sm:$0xff]
    %v1603 = vld [vmem:[#allocation2 + $0x1c0] sm:$0x3]
    %v1604 = vld [vmem:[#allocation2 + $0x1c8] sm:$0xff]
    %v1605 = vld [vmem:[#allocation2 + $0x1d0] sm:$0xff]
    %v1606 = vld [vmem:[#allocation2 + $0x1d8] sm:$0x3]
    %v1607 = vld [vmem:[#allocation2 + $0x1e0] sm:$0xff]
    %v1608 = vld [vmem:[#allocation2 + $0x1e8] sm:$0xff]
    %v1609 = vld [vmem:[#allocation2 + $0x1f0] sm:$0x3]
    %v1610 = vld [vmem:[#allocation2 + $0x1f8] sm:$0xff]
    %v1611 = vld [vmem:[#allocation2 + $0x200] sm:$0xff]
    %v1612 = vld [vmem:[#allocation2 + $0x208] sm:$0x3]
    %v1613 = vld [vmem:[#allocation2 + $0x210] sm:$0xff]
    %v1614 = vld [vmem:[#allocation2 + $0x218] sm:$0xff]
    %v1615 = vld [vmem:[#allocation2 + $0x220] sm:$0x3]
    %v1616 = vld [vmem:[#allocation2 + $0x228] sm:$0xff]
    %v1617 = vld [vmem:[#allocation2 + $0x230] sm:$0xff]
    %v1618 = vld [vmem:[#allocation2 + $0x238] sm:$0x3]
    %v1619 = vld [vmem:[#allocation2 + $0x240] sm:$0xff]
    %v1620 = vld [vmem:[#allocation2 + $0x248] sm:$0xff]
    %v1621 = vld [vmem:[#allocation2 + $0x250] sm:$0x3]
    %v1622 = vld [vmem:[#allocation2 + $0x258] sm:$0xff]
    %v1623 = vld [vmem:[#allocation2 + $0x260] sm:$0xff]
    %v1624 = vld [vmem:[#allocation2 + $0x268] sm:$0x3]
    %v1625 = vld [vmem:[#allocation2 + $0x270] sm:$0xff]
    %v1626 = vld [vmem:[#allocation2 + $0x278] sm:$0xff]
    %v1627 = vld [vmem:[#allocation2 + $0x280] sm:$0x3]
    %v1628 = vld [vmem:[#allocation2 + $0x288] sm:$0xff]
    %v1629 = vld [vmem:[#allocation2 + $0x290] sm:$0xff]
    %v1630 = vld [vmem:[#allocation2 + $0x298] sm:$0x3]
    %v1631 = vld [vmem:[#allocation2 + $0x2a0] sm:$0xff]
    %v1632 = vld [vmem:[#allocation2 + $0x2a8] sm:$0xff]
    %v1633 = vld [vmem:[#allocation2 + $0x2b0] sm:$0x3]
    %v1634 = vld [vmem:[#allocation2 + $0x2b8] sm:$0xff]
    %v1635 = vld [vmem:[#allocation2 + $0x2c0] sm:$0xff]
    %v1636 = vld [vmem:[#allocation2 + $0x2c8] sm:$0x3]
    %v1637 = vld [vmem:[#allocation2 + $0x2d0] sm:$0xff]
    %v1638 = vld [vmem:[#allocation2 + $0x2d8] sm:$0xff]
    %v1639 = vld [vmem:[#allocation2 + $0x2e0] sm:$0x3]
    %v1640 = vld [vmem:[#allocation2 + $0x2e8] sm:$0xff]
    %v1641 = vld [vmem:[#allocation2 + $0x2f0] sm:$0xff]
    %v1642 = vld [vmem:[#allocation2 + $0x2f8] sm:$0x3]
    %v1643 = vld [vmem:[#allocation2 + $0x300] sm:$0xff]
    %v1644 = vld [vmem:[#allocation2 + $0x308] sm:$0xff]
    %v1645 = vld [vmem:[#allocation2 + $0x310] sm:$0x3]
    %v1646 = vld [vmem:[#allocation2 + $0x318] sm:$0xff]
    %v1647 = vld [vmem:[#allocation2 + $0x320] sm:$0xff]
    %v1648 = vld [vmem:[#allocation2 + $0x328] sm:$0x3]
    %v1649 = vld [vmem:[#allocation2 + $0x330] sm:$0xff]
    %v1650 = vld [vmem:[#allocation2 + $0x338] sm:$0xff]
    %v1651 = vld [vmem:[#allocation2 + $0x340] sm:$0x3]
    %v1652 = vld [vmem:[#allocation2 + $0x348] sm:$0xff]
    %v1653 = vld [vmem:[#allocation2 + $0x350] sm:$0xff]
    %v1654 = vld [vmem:[#allocation2 + $0x358] sm:$0x3]
    %v1763 = vcombine.high %v1547, %v1547
    %v1765 = vunpack.c.l.s4 1983009808
    %v1766 = vunpack.c.0.s8 %v1765
    %v1767 = vlaneseq
    %v1768 = vshrl.u32 %v1767, 7
    %v1769 = vsub.s32 %v1766, %v1768
    %v1770 = vrot.slane %v1547, %v1769
    %v1772 = vunpack.c.l.s4 1983009808
    %v1773 = vunpack.c.0.s8 %v1772
    %v1774 = vlaneseq
    %v1775 = vshrl.u32 %v1774, 7
    %v1776 = vsub.s32 %v1773, %v1775
    %v1777 = vrot.slane %v1763, %v1776
    %v1778 = vcombine.high %v1770, %v1770
    %v1779 = vcombine.high %v1777, %v1777
    %v1780 = vcombine.high %v1548, %v1548
    %v1782 = vunpack.c.l.s4 1983009808
    %v1783 = vunpack.c.0.s8 %v1782
    %v1784 = vlaneseq
    %v1785 = vshrl.u32 %v1784, 7
    %v1786 = vsub.s32 %v1783, %v1785
    %v1787 = vrot.slane %v1548, %v1786
    %v1789 = vunpack.c.l.s4 1983009808
    %v1790 = vunpack.c.0.s8 %v1789
    %v1791 = vlaneseq
    %v1792 = vshrl.u32 %v1791, 7
    %v1793 = vsub.s32 %v1790, %v1792
    %v1794 = vrot.slane %v1780, %v1793
    %v1795 = vcombine.high %v1787, %v1787
    %v1796 = vcombine.high %v1794, %v1794
    %v1798 = vunpack.c.l.s4 1983009808
    %v1799 = vunpack.c.0.s8 %v1798
    %v1800 = vlaneseq
    %v1801 = vshrl.u32 %v1800, 7
    %v1802 = vsub.s32 %v1799, %v1801
    %v1803 = vrot.slane %v1549, %v1802
    %v1804 = vcombine.high %v1550, %v1550
    %v1806 = vunpack.c.l.s4 1983009808
    %v1807 = vunpack.c.0.s8 %v1806
    %v1808 = vlaneseq
    %v1809 = vshrl.u32 %v1808, 7
    %v1810 = vsub.s32 %v1807, %v1809
    %v1811 = vrot.slane %v1550, %v1810
    %v1813 = vunpack.c.l.s4 1983009808
    %v1814 = vunpack.c.0.s8 %v1813
    %v1815 = vlaneseq
    %v1816 = vshrl.u32 %v1815, 7
    %v1817 = vsub.s32 %v1814, %v1816
    %v1818 = vrot.slane %v1804, %v1817
    %v1819 = vcombine.high %v1811, %v1811
    %v1820 = vcombine.high %v1818, %v1818
    %v1821 = vcombine.high %v1551, %v1551
    %v1823 = vunpack.c.l.s4 1983009808
    %v1824 = vunpack.c.0.s8 %v1823
    %v1825 = vlaneseq
    %v1826 = vshrl.u32 %v1825, 7
    %v1827 = vsub.s32 %v1824, %v1826
    %v1828 = vrot.slane %v1551, %v1827
    %v1830 = vunpack.c.l.s4 1983009808
    %v1831 = vunpack.c.0.s8 %v1830
    %v1832 = vlaneseq
    %v1833 = vshrl.u32 %v1832, 7
    %v1834 = vsub.s32 %v1831, %v1833
    %v1835 = vrot.slane %v1821, %v1834
    %v1836 = vcombine.high %v1828, %v1828
    %v1837 = vcombine.high %v1835, %v1835
    %v1839 = vunpack.c.l.s4 1983009808
    %v1840 = vunpack.c.0.s8 %v1839
    %v1841 = vlaneseq
    %v1842 = vshrl.u32 %v1841, 7
    %v1843 = vsub.s32 %v1840, %v1842
    %v1844 = vrot.slane %v1552, %v1843
    %v1845 = vcombine.high %v1553, %v1553
    %v1847 = vunpack.c.l.s4 1983009808
    %v1848 = vunpack.c.0.s8 %v1847
    %v1849 = vlaneseq
    %v1850 = vshrl.u32 %v1849, 7
    %v1851 = vsub.s32 %v1848, %v1850
    %v1852 = vrot.slane %v1553, %v1851
    %v1854 = vunpack.c.l.s4 1983009808
    %v1855 = vunpack.c.0.s8 %v1854
    %v1856 = vlaneseq
    %v1857 = vshrl.u32 %v1856, 7
    %v1858 = vsub.s32 %v1855, %v1857
    %v1859 = vrot.slane %v1845, %v1858
    %v1860 = vcombine.high %v1852, %v1852
    %v1861 = vcombine.high %v1859, %v1859
    %v1862 = vcombine.high %v1554, %v1554
    %v1864 = vunpack.c.l.s4 1983009808
    %v1865 = vunpack.c.0.s8 %v1864
    %v1866 = vlaneseq
    %v1867 = vshrl.u32 %v1866, 7
    %v1868 = vsub.s32 %v1865, %v1867
    %v1869 = vrot.slane %v1554, %v1868
    %v1871 = vunpack.c.l.s4 1983009808
    %v1872 = vunpack.c.0.s8 %v1871
    %v1873 = vlaneseq
    %v1874 = vshrl.u32 %v1873, 7
    %v1875 = vsub.s32 %v1872, %v1874
    %v1876 = vrot.slane %v1862, %v1875
    %v1877 = vcombine.high %v1869, %v1869
    %v1878 = vcombine.high %v1876, %v1876
    %v1880 = vunpack.c.l.s4 1983009808
    %v1881 = vunpack.c.0.s8 %v1880
    %v1882 = vlaneseq
    %v1883 = vshrl.u32 %v1882, 7
    %v1884 = vsub.s32 %v1881, %v1883
    %v1885 = vrot.slane %v1555, %v1884
    %v1886 = vcombine.high %v1556, %v1556
    %v1888 = vunpack.c.l.s4 1983009808
    %v1889 = vunpack.c.0.s8 %v1888
    %v1890 = vlaneseq
    %v1891 = vshrl.u32 %v1890, 7
    %v1892 = vsub.s32 %v1889, %v1891
    %v1893 = vrot.slane %v1556, %v1892
    %v1895 = vunpack.c.l.s4 1983009808
    %v1896 = vunpack.c.0.s8 %v1895
    %v1897 = vlaneseq
    %v1898 = vshrl.u32 %v1897, 7
    %v1899 = vsub.s32 %v1896, %v1898
    %v1900 = vrot.slane %v1886, %v1899
    %v1901 = vcombine.high %v1893, %v1893
    %v1902 = vcombine.high %v1900, %v1900
    %v1903 = vcombine.high %v1557, %v1557
    %v1905 = vunpack.c.l.s4 1983009808
    %v1906 = vunpack.c.0.s8 %v1905
    %v1907 = vlaneseq
    %v1908 = vshrl.u32 %v1907, 7
    %v1909 = vsub.s32 %v1906, %v1908
    %v1910 = vrot.slane %v1557, %v1909
    %v1912 = vunpack.c.l.s4 1983009808
    %v1913 = vunpack.c.0.s8 %v1912
    %v1914 = vlaneseq
    %v1915 = vshrl.u32 %v1914, 7
    %v1916 = vsub.s32 %v1913, %v1915
    %v1917 = vrot.slane %v1903, %v1916
    %v1918 = vcombine.high %v1910, %v1910
    %v1919 = vcombine.high %v1917, %v1917
    %v1921 = vunpack.c.l.s4 1983009808
    %v1922 = vunpack.c.0.s8 %v1921
    %v1923 = vlaneseq
    %v1924 = vshrl.u32 %v1923, 7
    %v1925 = vsub.s32 %v1922, %v1924
    %v1926 = vrot.slane %v1558, %v1925
    %v1927 = vcombine.high %v1559, %v1559
    %v1929 = vunpack.c.l.s4 1983009808
    %v1930 = vunpack.c.0.s8 %v1929
    %v1931 = vlaneseq
    %v1932 = vshrl.u32 %v1931, 7
    %v1933 = vsub.s32 %v1930, %v1932
    %v1934 = vrot.slane %v1559, %v1933
    %v1936 = vunpack.c.l.s4 1983009808
    %v1937 = vunpack.c.0.s8 %v1936
    %v1938 = vlaneseq
    %v1939 = vshrl.u32 %v1938, 7
    %v1940 = vsub.s32 %v1937, %v1939
    %v1941 = vrot.slane %v1927, %v1940
    %v1942 = vcombine.high %v1934, %v1934
    %v1943 = vcombine.high %v1941, %v1941
    %v1944 = vcombine.high %v1560, %v1560
    %v1946 = vunpack.c.l.s4 1983009808
    %v1947 = vunpack.c.0.s8 %v1946
    %v1948 = vlaneseq
    %v1949 = vshrl.u32 %v1948, 7
    %v1950 = vsub.s32 %v1947, %v1949
    %v1951 = vrot.slane %v1560, %v1950
    %v1953 = vunpack.c.l.s4 1983009808
    %v1954 = vunpack.c.0.s8 %v1953
    %v1955 = vlaneseq
    %v1956 = vshrl.u32 %v1955, 7
    %v1957 = vsub.s32 %v1954, %v1956
    %v1958 = vrot.slane %v1944, %v1957
    %v1959 = vcombine.high %v1951, %v1951
    %v1960 = vcombine.high %v1958, %v1958
    %v1962 = vunpack.c.l.s4 1983009808
    %v1963 = vunpack.c.0.s8 %v1962
    %v1964 = vlaneseq
    %v1965 = vshrl.u32 %v1964, 7
    %v1966 = vsub.s32 %v1963, %v1965
    %v1967 = vrot.slane %v1561, %v1966
    %v1968 = vcombine.high %v1562, %v1562
    %v1970 = vunpack.c.l.s4 1983009808
    %v1971 = vunpack.c.0.s8 %v1970
    %v1972 = vlaneseq
    %v1973 = vshrl.u32 %v1972, 7
    %v1974 = vsub.s32 %v1971, %v1973
    %v1975 = vrot.slane %v1562, %v1974
    %v1977 = vunpack.c.l.s4 1983009808
    %v1978 = vunpack.c.0.s8 %v1977
    %v1979 = vlaneseq
    %v1980 = vshrl.u32 %v1979, 7
    %v1981 = vsub.s32 %v1978, %v1980
    %v1982 = vrot.slane %v1968, %v1981
    %v1983 = vcombine.high %v1975, %v1975
    %v1984 = vcombine.high %v1982, %v1982
    %v1985 = vcombine.high %v1563, %v1563
    %v1987 = vunpack.c.l.s4 1983009808
    %v1988 = vunpack.c.0.s8 %v1987
    %v1989 = vlaneseq
    %v1990 = vshrl.u32 %v1989, 7
    %v1991 = vsub.s32 %v1988, %v1990
    %v1992 = vrot.slane %v1563, %v1991
    %v1994 = vunpack.c.l.s4 1983009808
    %v1995 = vunpack.c.0.s8 %v1994
    %v1996 = vlaneseq
    %v1997 = vshrl.u32 %v1996, 7
    %v1998 = vsub.s32 %v1995, %v1997
    %v1999 = vrot.slane %v1985, %v1998
    %v2000 = vcombine.high %v1992, %v1992
    %v2001 = vcombine.high %v1999, %v1999
    %v2003 = vunpack.c.l.s4 1983009808
    %v2004 = vunpack.c.0.s8 %v2003
    %v2005 = vlaneseq
    %v2006 = vshrl.u32 %v2005, 7
    %v2007 = vsub.s32 %v2004, %v2006
    %v2008 = vrot.slane %v1564, %v2007
    %v2009 = vcombine.high %v1565, %v1565
    %v2011 = vunpack.c.l.s4 1983009808
    %v2012 = vunpack.c.0.s8 %v2011
    %v2013 = vlaneseq
    %v2014 = vshrl.u32 %v2013, 7
    %v2015 = vsub.s32 %v2012, %v2014
    %v2016 = vrot.slane %v1565, %v2015
    %v2018 = vunpack.c.l.s4 1983009808
    %v2019 = vunpack.c.0.s8 %v2018
    %v2020 = vlaneseq
    %v2021 = vshrl.u32 %v2020, 7
    %v2022 = vsub.s32 %v2019, %v2021
    %v2023 = vrot.slane %v2009, %v2022
    %v2024 = vcombine.high %v2016, %v2016
    %v2025 = vcombine.high %v2023, %v2023
    %v2026 = vcombine.high %v1566, %v1566
    %v2028 = vunpack.c.l.s4 1983009808
    %v2029 = vunpack.c.0.s8 %v2028
    %v2030 = vlaneseq
    %v2031 = vshrl.u32 %v2030, 7
    %v2032 = vsub.s32 %v2029, %v2031
    %v2033 = vrot.slane %v1566, %v2032
    %v2035 = vunpack.c.l.s4 1983009808
    %v2036 = vunpack.c.0.s8 %v2035
    %v2037 = vlaneseq
    %v2038 = vshrl.u32 %v2037, 7
    %v2039 = vsub.s32 %v2036, %v2038
    %v2040 = vrot.slane %v2026, %v2039
    %v2041 = vcombine.high %v2033, %v2033
    %v2042 = vcombine.high %v2040, %v2040
    %v2044 = vunpack.c.l.s4 1983009808
    %v2045 = vunpack.c.0.s8 %v2044
    %v2046 = vlaneseq
    %v2047 = vshrl.u32 %v2046, 7
    %v2048 = vsub.s32 %v2045, %v2047
    %v2049 = vrot.slane %v1567, %v2048
    %v2050 = vcombine.high %v1568, %v1568
    %v2052 = vunpack.c.l.s4 1983009808
    %v2053 = vunpack.c.0.s8 %v2052
    %v2054 = vlaneseq
    %v2055 = vshrl.u32 %v2054, 7
    %v2056 = vsub.s32 %v2053, %v2055
    %v2057 = vrot.slane %v1568, %v2056
    %v2059 = vunpack.c.l.s4 1983009808
    %v2060 = vunpack.c.0.s8 %v2059
    %v2061 = vlaneseq
    %v2062 = vshrl.u32 %v2061, 7
    %v2063 = vsub.s32 %v2060, %v2062
    %v2064 = vrot.slane %v2050, %v2063
    %v2065 = vcombine.high %v2057, %v2057
    %v2066 = vcombine.high %v2064, %v2064
    %v2067 = vcombine.high %v1569, %v1569
    %v2069 = vunpack.c.l.s4 1983009808
    %v2070 = vunpack.c.0.s8 %v2069
    %v2071 = vlaneseq
    %v2072 = vshrl.u32 %v2071, 7
    %v2073 = vsub.s32 %v2070, %v2072
    %v2074 = vrot.slane %v1569, %v2073
    %v2076 = vunpack.c.l.s4 1983009808
    %v2077 = vunpack.c.0.s8 %v2076
    %v2078 = vlaneseq
    %v2079 = vshrl.u32 %v2078, 7
    %v2080 = vsub.s32 %v2077, %v2079
    %v2081 = vrot.slane %v2067, %v2080
    %v2082 = vcombine.high %v2074, %v2074
    %v2083 = vcombine.high %v2081, %v2081
    %v2085 = vunpack.c.l.s4 1983009808
    %v2086 = vunpack.c.0.s8 %v2085
    %v2087 = vlaneseq
    %v2088 = vshrl.u32 %v2087, 7
    %v2089 = vsub.s32 %v2086, %v2088
    %v2090 = vrot.slane %v1570, %v2089
    %v2091 = vcombine.high %v1571, %v1571
    %v2093 = vunpack.c.l.s4 1983009808
    %v2094 = vunpack.c.0.s8 %v2093
    %v2095 = vlaneseq
    %v2096 = vshrl.u32 %v2095, 7
    %v2097 = vsub.s32 %v2094, %v2096
    %v2098 = vrot.slane %v1571, %v2097
    %v2100 = vunpack.c.l.s4 1983009808
    %v2101 = vunpack.c.0.s8 %v2100
    %v2102 = vlaneseq
    %v2103 = vshrl.u32 %v2102, 7
    %v2104 = vsub.s32 %v2101, %v2103
    %v2105 = vrot.slane %v2091, %v2104
    %v2106 = vcombine.high %v2098, %v2098
    %v2107 = vcombine.high %v2105, %v2105
    %v2108 = vcombine.high %v1572, %v1572
    %v2110 = vunpack.c.l.s4 1983009808
    %v2111 = vunpack.c.0.s8 %v2110
    %v2112 = vlaneseq
    %v2113 = vshrl.u32 %v2112, 7
    %v2114 = vsub.s32 %v2111, %v2113
    %v2115 = vrot.slane %v1572, %v2114
    %v2117 = vunpack.c.l.s4 1983009808
    %v2118 = vunpack.c.0.s8 %v2117
    %v2119 = vlaneseq
    %v2120 = vshrl.u32 %v2119, 7
    %v2121 = vsub.s32 %v2118, %v2120
    %v2122 = vrot.slane %v2108, %v2121
    %v2123 = vcombine.high %v2115, %v2115
    %v2124 = vcombine.high %v2122, %v2122
    %v2126 = vunpack.c.l.s4 1983009808
    %v2127 = vunpack.c.0.s8 %v2126
    %v2128 = vlaneseq
    %v2129 = vshrl.u32 %v2128, 7
    %v2130 = vsub.s32 %v2127, %v2129
    %v2131 = vrot.slane %v1573, %v2130
    %v2132 = vcombine.high %v1574, %v1574
    %v2134 = vunpack.c.l.s4 1983009808
    %v2135 = vunpack.c.0.s8 %v2134
    %v2136 = vlaneseq
    %v2137 = vshrl.u32 %v2136, 7
    %v2138 = vsub.s32 %v2135, %v2137
    %v2139 = vrot.slane %v1574, %v2138
    %v2141 = vunpack.c.l.s4 1983009808
    %v2142 = vunpack.c.0.s8 %v2141
    %v2143 = vlaneseq
    %v2144 = vshrl.u32 %v2143, 7
    %v2145 = vsub.s32 %v2142, %v2144
    %v2146 = vrot.slane %v2132, %v2145
    %v2147 = vcombine.high %v2139, %v2139
    %v2148 = vcombine.high %v2146, %v2146
    %v2149 = vcombine.high %v1575, %v1575
    %v2151 = vunpack.c.l.s4 1983009808
    %v2152 = vunpack.c.0.s8 %v2151
    %v2153 = vlaneseq
    %v2154 = vshrl.u32 %v2153, 7
    %v2155 = vsub.s32 %v2152, %v2154
    %v2156 = vrot.slane %v1575, %v2155
    %v2158 = vunpack.c.l.s4 1983009808
    %v2159 = vunpack.c.0.s8 %v2158
    %v2160 = vlaneseq
    %v2161 = vshrl.u32 %v2160, 7
    %v2162 = vsub.s32 %v2159, %v2161
    %v2163 = vrot.slane %v2149, %v2162
    %v2164 = vcombine.high %v2156, %v2156
    %v2165 = vcombine.high %v2163, %v2163
    %v2167 = vunpack.c.l.s4 1983009808
    %v2168 = vunpack.c.0.s8 %v2167
    %v2169 = vlaneseq
    %v2170 = vshrl.u32 %v2169, 7
    %v2171 = vsub.s32 %v2168, %v2170
    %v2172 = vrot.slane %v1576, %v2171
    %v2173 = vcombine.high %v1577, %v1577
    %v2175 = vunpack.c.l.s4 1983009808
    %v2176 = vunpack.c.0.s8 %v2175
    %v2177 = vlaneseq
    %v2178 = vshrl.u32 %v2177, 7
    %v2179 = vsub.s32 %v2176, %v2178
    %v2180 = vrot.slane %v1577, %v2179
    %v2182 = vunpack.c.l.s4 1983009808
    %v2183 = vunpack.c.0.s8 %v2182
    %v2184 = vlaneseq
    %v2185 = vshrl.u32 %v2184, 7
    %v2186 = vsub.s32 %v2183, %v2185
    %v2187 = vrot.slane %v2173, %v2186
    %v2188 = vcombine.high %v2180, %v2180
    %v2189 = vcombine.high %v2187, %v2187
    %v2190 = vcombine.high %v1578, %v1578
    %v2192 = vunpack.c.l.s4 1983009808
    %v2193 = vunpack.c.0.s8 %v2192
    %v2194 = vlaneseq
    %v2195 = vshrl.u32 %v2194, 7
    %v2196 = vsub.s32 %v2193, %v2195
    %v2197 = vrot.slane %v1578, %v2196
    %v2199 = vunpack.c.l.s4 1983009808
    %v2200 = vunpack.c.0.s8 %v2199
    %v2201 = vlaneseq
    %v2202 = vshrl.u32 %v2201, 7
    %v2203 = vsub.s32 %v2200, %v2202
    %v2204 = vrot.slane %v2190, %v2203
    %v2205 = vcombine.high %v2197, %v2197
    %v2206 = vcombine.high %v2204, %v2204
    %v2208 = vunpack.c.l.s4 1983009808
    %v2209 = vunpack.c.0.s8 %v2208
    %v2210 = vlaneseq
    %v2211 = vshrl.u32 %v2210, 7
    %v2212 = vsub.s32 %v2209, %v2211
    %v2213 = vrot.slane %v1579, %v2212
    %v2214 = vcombine.high %v1580, %v1580
    %v2216 = vunpack.c.l.s4 1983009808
    %v2217 = vunpack.c.0.s8 %v2216
    %v2218 = vlaneseq
    %v2219 = vshrl.u32 %v2218, 7
    %v2220 = vsub.s32 %v2217, %v2219
    %v2221 = vrot.slane %v1580, %v2220
    %v2223 = vunpack.c.l.s4 1983009808
    %v2224 = vunpack.c.0.s8 %v2223
    %v2225 = vlaneseq
    %v2226 = vshrl.u32 %v2225, 7
    %v2227 = vsub.s32 %v2224, %v2226
    %v2228 = vrot.slane %v2214, %v2227
    %v2229 = vcombine.high %v2221, %v2221
    %v2230 = vcombine.high %v2228, %v2228
    %v2231 = vcombine.high %v1581, %v1581
    %v2233 = vunpack.c.l.s4 1983009808
    %v2234 = vunpack.c.0.s8 %v2233
    %v2235 = vlaneseq
    %v2236 = vshrl.u32 %v2235, 7
    %v2237 = vsub.s32 %v2234, %v2236
    %v2238 = vrot.slane %v1581, %v2237
    %v2240 = vunpack.c.l.s4 1983009808
    %v2241 = vunpack.c.0.s8 %v2240
    %v2242 = vlaneseq
    %v2243 = vshrl.u32 %v2242, 7
    %v2244 = vsub.s32 %v2241, %v2243
    %v2245 = vrot.slane %v2231, %v2244
    %v2246 = vcombine.high %v2238, %v2238
    %v2247 = vcombine.high %v2245, %v2245
    %v2249 = vunpack.c.l.s4 1983009808
    %v2250 = vunpack.c.0.s8 %v2249
    %v2251 = vlaneseq
    %v2252 = vshrl.u32 %v2251, 7
    %v2253 = vsub.s32 %v2250, %v2252
    %v2254 = vrot.slane %v1582, %v2253
    %v2255 = vcombine.high %v1583, %v1583
    %v2257 = vunpack.c.l.s4 1983009808
    %v2258 = vunpack.c.0.s8 %v2257
    %v2259 = vlaneseq
    %v2260 = vshrl.u32 %v2259, 7
    %v2261 = vsub.s32 %v2258, %v2260
    %v2262 = vrot.slane %v1583, %v2261
    %v2264 = vunpack.c.l.s4 1983009808
    %v2265 = vunpack.c.0.s8 %v2264
    %v2266 = vlaneseq
    %v2267 = vshrl.u32 %v2266, 7
    %v2268 = vsub.s32 %v2265, %v2267
    %v2269 = vrot.slane %v2255, %v2268
    %v2270 = vcombine.high %v2262, %v2262
    %v2271 = vcombine.high %v2269, %v2269
    %v2272 = vcombine.high %v1584, %v1584
    %v2274 = vunpack.c.l.s4 1983009808
    %v2275 = vunpack.c.0.s8 %v2274
    %v2276 = vlaneseq
    %v2277 = vshrl.u32 %v2276, 7
    %v2278 = vsub.s32 %v2275, %v2277
    %v2279 = vrot.slane %v1584, %v2278
    %v2281 = vunpack.c.l.s4 1983009808
    %v2282 = vunpack.c.0.s8 %v2281
    %v2283 = vlaneseq
    %v2284 = vshrl.u32 %v2283, 7
    %v2285 = vsub.s32 %v2282, %v2284
    %v2286 = vrot.slane %v2272, %v2285
    %v2287 = vcombine.high %v2279, %v2279
    %v2288 = vcombine.high %v2286, %v2286
    %v2290 = vunpack.c.l.s4 1983009808
    %v2291 = vunpack.c.0.s8 %v2290
    %v2292 = vlaneseq
    %v2293 = vshrl.u32 %v2292, 7
    %v2294 = vsub.s32 %v2291, %v2293
    %v2295 = vrot.slane %v1585, %v2294
    %v2296 = vcombine.high %v1586, %v1586
    %v2298 = vunpack.c.l.s4 1983009808
    %v2299 = vunpack.c.0.s8 %v2298
    %v2300 = vlaneseq
    %v2301 = vshrl.u32 %v2300, 7
    %v2302 = vsub.s32 %v2299, %v2301
    %v2303 = vrot.slane %v1586, %v2302
    %v2305 = vunpack.c.l.s4 1983009808
    %v2306 = vunpack.c.0.s8 %v2305
    %v2307 = vlaneseq
    %v2308 = vshrl.u32 %v2307, 7
    %v2309 = vsub.s32 %v2306, %v2308
    %v2310 = vrot.slane %v2296, %v2309
    %v2311 = vcombine.high %v2303, %v2303
    %v2312 = vcombine.high %v2310, %v2310
    %v2313 = vcombine.high %v1587, %v1587
    %v2315 = vunpack.c.l.s4 1983009808
    %v2316 = vunpack.c.0.s8 %v2315
    %v2317 = vlaneseq
    %v2318 = vshrl.u32 %v2317, 7
    %v2319 = vsub.s32 %v2316, %v2318
    %v2320 = vrot.slane %v1587, %v2319
    %v2322 = vunpack.c.l.s4 1983009808
    %v2323 = vunpack.c.0.s8 %v2322
    %v2324 = vlaneseq
    %v2325 = vshrl.u32 %v2324, 7
    %v2326 = vsub.s32 %v2323, %v2325
    %v2327 = vrot.slane %v2313, %v2326
    %v2328 = vcombine.high %v2320, %v2320
    %v2329 = vcombine.high %v2327, %v2327
    %v2331 = vunpack.c.l.s4 1983009808
    %v2332 = vunpack.c.0.s8 %v2331
    %v2333 = vlaneseq
    %v2334 = vshrl.u32 %v2333, 7
    %v2335 = vsub.s32 %v2332, %v2334
    %v2336 = vrot.slane %v1588, %v2335
    %v2337 = vcombine.high %v1589, %v1589
    %v2339 = vunpack.c.l.s4 1983009808
    %v2340 = vunpack.c.0.s8 %v2339
    %v2341 = vlaneseq
    %v2342 = vshrl.u32 %v2341, 7
    %v2343 = vsub.s32 %v2340, %v2342
    %v2344 = vrot.slane %v1589, %v2343
    %v2346 = vunpack.c.l.s4 1983009808
    %v2347 = vunpack.c.0.s8 %v2346
    %v2348 = vlaneseq
    %v2349 = vshrl.u32 %v2348, 7
    %v2350 = vsub.s32 %v2347, %v2349
    %v2351 = vrot.slane %v2337, %v2350
    %v2352 = vcombine.high %v2344, %v2344
    %v2353 = vcombine.high %v2351, %v2351
    %v2354 = vcombine.high %v1590, %v1590
    %v2356 = vunpack.c.l.s4 1983009808
    %v2357 = vunpack.c.0.s8 %v2356
    %v2358 = vlaneseq
    %v2359 = vshrl.u32 %v2358, 7
    %v2360 = vsub.s32 %v2357, %v2359
    %v2361 = vrot.slane %v1590, %v2360
    %v2363 = vunpack.c.l.s4 1983009808
    %v2364 = vunpack.c.0.s8 %v2363
    %v2365 = vlaneseq
    %v2366 = vshrl.u32 %v2365, 7
    %v2367 = vsub.s32 %v2364, %v2366
    %v2368 = vrot.slane %v2354, %v2367
    %v2369 = vcombine.high %v2361, %v2361
    %v2370 = vcombine.high %v2368, %v2368
    %v2372 = vunpack.c.l.s4 1983009808
    %v2373 = vunpack.c.0.s8 %v2372
    %v2374 = vlaneseq
    %v2375 = vshrl.u32 %v2374, 7
    %v2376 = vsub.s32 %v2373, %v2375
    %v2377 = vrot.slane %v1591, %v2376
    %v2378 = vcombine.high %v1592, %v1592
    %v2380 = vunpack.c.l.s4 1983009808
    %v2381 = vunpack.c.0.s8 %v2380
    %v2382 = vlaneseq
    %v2383 = vshrl.u32 %v2382, 7
    %v2384 = vsub.s32 %v2381, %v2383
    %v2385 = vrot.slane %v1592, %v2384
    %v2387 = vunpack.c.l.s4 1983009808
    %v2388 = vunpack.c.0.s8 %v2387
    %v2389 = vlaneseq
    %v2390 = vshrl.u32 %v2389, 7
    %v2391 = vsub.s32 %v2388, %v2390
    %v2392 = vrot.slane %v2378, %v2391
    %v2393 = vcombine.high %v2385, %v2385
    %v2394 = vcombine.high %v2392, %v2392
    %v2395 = vcombine.high %v1593, %v1593
    %v2397 = vunpack.c.l.s4 1983009808
    %v2398 = vunpack.c.0.s8 %v2397
    %v2399 = vlaneseq
    %v2400 = vshrl.u32 %v2399, 7
    %v2401 = vsub.s32 %v2398, %v2400
    %v2402 = vrot.slane %v1593, %v2401
    %v2404 = vunpack.c.l.s4 1983009808
    %v2405 = vunpack.c.0.s8 %v2404
    %v2406 = vlaneseq
    %v2407 = vshrl.u32 %v2406, 7
    %v2408 = vsub.s32 %v2405, %v2407
    %v2409 = vrot.slane %v2395, %v2408
    %v2410 = vcombine.high %v2402, %v2402
    %v2411 = vcombine.high %v2409, %v2409
    %v2413 = vunpack.c.l.s4 1983009808
    %v2414 = vunpack.c.0.s8 %v2413
    %v2415 = vlaneseq
    %v2416 = vshrl.u32 %v2415, 7
    %v2417 = vsub.s32 %v2414, %v2416
    %v2418 = vrot.slane %v1594, %v2417
    %v2419 = vcombine.high %v1595, %v1595
    %v2421 = vunpack.c.l.s4 1983009808
    %v2422 = vunpack.c.0.s8 %v2421
    %v2423 = vlaneseq
    %v2424 = vshrl.u32 %v2423, 7
    %v2425 = vsub.s32 %v2422, %v2424
    %v2426 = vrot.slane %v1595, %v2425
    %v2428 = vunpack.c.l.s4 1983009808
    %v2429 = vunpack.c.0.s8 %v2428
    %v2430 = vlaneseq
    %v2431 = vshrl.u32 %v2430, 7
    %v2432 = vsub.s32 %v2429, %v2431
    %v2433 = vrot.slane %v2419, %v2432
    %v2434 = vcombine.high %v2426, %v2426
    %v2435 = vcombine.high %v2433, %v2433
    %v2436 = vcombine.high %v1596, %v1596
    %v2438 = vunpack.c.l.s4 1983009808
    %v2439 = vunpack.c.0.s8 %v2438
    %v2440 = vlaneseq
    %v2441 = vshrl.u32 %v2440, 7
    %v2442 = vsub.s32 %v2439, %v2441
    %v2443 = vrot.slane %v1596, %v2442
    %v2445 = vunpack.c.l.s4 1983009808
    %v2446 = vunpack.c.0.s8 %v2445
    %v2447 = vlaneseq
    %v2448 = vshrl.u32 %v2447, 7
    %v2449 = vsub.s32 %v2446, %v2448
    %v2450 = vrot.slane %v2436, %v2449
    %v2451 = vcombine.high %v2443, %v2443
    %v2452 = vcombine.high %v2450, %v2450
    %v2454 = vunpack.c.l.s4 1983009808
    %v2455 = vunpack.c.0.s8 %v2454
    %v2456 = vlaneseq
    %v2457 = vshrl.u32 %v2456, 7
    %v2458 = vsub.s32 %v2455, %v2457
    %v2459 = vrot.slane %v1597, %v2458
    %v2460 = vcombine.high %v1598, %v1598
    %v2462 = vunpack.c.l.s4 1983009808
    %v2463 = vunpack.c.0.s8 %v2462
    %v2464 = vlaneseq
    %v2465 = vshrl.u32 %v2464, 7
    %v2466 = vsub.s32 %v2463, %v2465
    %v2467 = vrot.slane %v1598, %v2466
    %v2469 = vunpack.c.l.s4 1983009808
    %v2470 = vunpack.c.0.s8 %v2469
    %v2471 = vlaneseq
    %v2472 = vshrl.u32 %v2471, 7
    %v2473 = vsub.s32 %v2470, %v2472
    %v2474 = vrot.slane %v2460, %v2473
    %v2475 = vcombine.high %v2467, %v2467
    %v2476 = vcombine.high %v2474, %v2474
    %v2477 = vcombine.high %v1599, %v1599
    %v2479 = vunpack.c.l.s4 1983009808
    %v2480 = vunpack.c.0.s8 %v2479
    %v2481 = vlaneseq
    %v2482 = vshrl.u32 %v2481, 7
    %v2483 = vsub.s32 %v2480, %v2482
    %v2484 = vrot.slane %v1599, %v2483
    %v2486 = vunpack.c.l.s4 1983009808
    %v2487 = vunpack.c.0.s8 %v2486
    %v2488 = vlaneseq
    %v2489 = vshrl.u32 %v2488, 7
    %v2490 = vsub.s32 %v2487, %v2489
    %v2491 = vrot.slane %v2477, %v2490
    %v2492 = vcombine.high %v2484, %v2484
    %v2493 = vcombine.high %v2491, %v2491
    %v2495 = vunpack.c.l.s4 1983009808
    %v2496 = vunpack.c.0.s8 %v2495
    %v2497 = vlaneseq
    %v2498 = vshrl.u32 %v2497, 7
    %v2499 = vsub.s32 %v2496, %v2498
    %v2500 = vrot.slane %v1600, %v2499
    %v2501 = vcombine.high %v1601, %v1601
    %v2503 = vunpack.c.l.s4 1983009808
    %v2504 = vunpack.c.0.s8 %v2503
    %v2505 = vlaneseq
    %v2506 = vshrl.u32 %v2505, 7
    %v2507 = vsub.s32 %v2504, %v2506
    %v2508 = vrot.slane %v1601, %v2507
    %v2510 = vunpack.c.l.s4 1983009808
    %v2511 = vunpack.c.0.s8 %v2510
    %v2512 = vlaneseq
    %v2513 = vshrl.u32 %v2512, 7
    %v2514 = vsub.s32 %v2511, %v2513
    %v2515 = vrot.slane %v2501, %v2514
    %v2516 = vcombine.high %v2508, %v2508
    %v2517 = vcombine.high %v2515, %v2515
    %v2518 = vcombine.high %v1602, %v1602
    %v2520 = vunpack.c.l.s4 1983009808
    %v2521 = vunpack.c.0.s8 %v2520
    %v2522 = vlaneseq
    %v2523 = vshrl.u32 %v2522, 7
    %v2524 = vsub.s32 %v2521, %v2523
    %v2525 = vrot.slane %v1602, %v2524
    %v2527 = vunpack.c.l.s4 1983009808
    %v2528 = vunpack.c.0.s8 %v2527
    %v2529 = vlaneseq
    %v2530 = vshrl.u32 %v2529, 7
    %v2531 = vsub.s32 %v2528, %v2530
    %v2532 = vrot.slane %v2518, %v2531
    %v2533 = vcombine.high %v2525, %v2525
    %v2534 = vcombine.high %v2532, %v2532
    %v2536 = vunpack.c.l.s4 1983009808
    %v2537 = vunpack.c.0.s8 %v2536
    %v2538 = vlaneseq
    %v2539 = vshrl.u32 %v2538, 7
    %v2540 = vsub.s32 %v2537, %v2539
    %v2541 = vrot.slane %v1603, %v2540
    %v2542 = vcombine.high %v1604, %v1604
    %v2544 = vunpack.c.l.s4 1983009808
    %v2545 = vunpack.c.0.s8 %v2544
    %v2546 = vlaneseq
    %v2547 = vshrl.u32 %v2546, 7
    %v2548 = vsub.s32 %v2545, %v2547
    %v2549 = vrot.slane %v1604, %v2548
    %v2551 = vunpack.c.l.s4 1983009808
    %v2552 = vunpack.c.0.s8 %v2551
    %v2553 = vlaneseq
    %v2554 = vshrl.u32 %v2553, 7
    %v2555 = vsub.s32 %v2552, %v2554
    %v2556 = vrot.slane %v2542, %v2555
    %v2557 = vcombine.high %v2549, %v2549
    %v2558 = vcombine.high %v2556, %v2556
    %v2559 = vcombine.high %v1605, %v1605
    %v2561 = vunpack.c.l.s4 1983009808
    %v2562 = vunpack.c.0.s8 %v2561
    %v2563 = vlaneseq
    %v2564 = vshrl.u32 %v2563, 7
    %v2565 = vsub.s32 %v2562, %v2564
    %v2566 = vrot.slane %v1605, %v2565
    %v2568 = vunpack.c.l.s4 1983009808
    %v2569 = vunpack.c.0.s8 %v2568
    %v2570 = vlaneseq
    %v2571 = vshrl.u32 %v2570, 7
    %v2572 = vsub.s32 %v2569, %v2571
    %v2573 = vrot.slane %v2559, %v2572
    %v2574 = vcombine.high %v2566, %v2566
    %v2575 = vcombine.high %v2573, %v2573
    %v2577 = vunpack.c.l.s4 1983009808
    %v2578 = vunpack.c.0.s8 %v2577
    %v2579 = vlaneseq
    %v2580 = vshrl.u32 %v2579, 7
    %v2581 = vsub.s32 %v2578, %v2580
    %v2582 = vrot.slane %v1606, %v2581
    %v2583 = vcombine.high %v1607, %v1607
    %v2585 = vunpack.c.l.s4 1983009808
    %v2586 = vunpack.c.0.s8 %v2585
    %v2587 = vlaneseq
    %v2588 = vshrl.u32 %v2587, 7
    %v2589 = vsub.s32 %v2586, %v2588
    %v2590 = vrot.slane %v1607, %v2589
    %v2592 = vunpack.c.l.s4 1983009808
    %v2593 = vunpack.c.0.s8 %v2592
    %v2594 = vlaneseq
    %v2595 = vshrl.u32 %v2594, 7
    %v2596 = vsub.s32 %v2593, %v2595
    %v2597 = vrot.slane %v2583, %v2596
    %v2598 = vcombine.high %v2590, %v2590
    %v2599 = vcombine.high %v2597, %v2597
    %v2600 = vcombine.high %v1608, %v1608
    %v2602 = vunpack.c.l.s4 1983009808
    %v2603 = vunpack.c.0.s8 %v2602
    %v2604 = vlaneseq
    %v2605 = vshrl.u32 %v2604, 7
    %v2606 = vsub.s32 %v2603, %v2605
    %v2607 = vrot.slane %v1608, %v2606
    %v2609 = vunpack.c.l.s4 1983009808
    %v2610 = vunpack.c.0.s8 %v2609
    %v2611 = vlaneseq
    %v2612 = vshrl.u32 %v2611, 7
    %v2613 = vsub.s32 %v2610, %v2612
    %v2614 = vrot.slane %v2600, %v2613
    %v2615 = vcombine.high %v2607, %v2607
    %v2616 = vcombine.high %v2614, %v2614
    %v2618 = vunpack.c.l.s4 1983009808
    %v2619 = vunpack.c.0.s8 %v2618
    %v2620 = vlaneseq
    %v2621 = vshrl.u32 %v2620, 7
    %v2622 = vsub.s32 %v2619, %v2621
    %v2623 = vrot.slane %v1609, %v2622
    %v2624 = vcombine.high %v1610, %v1610
    %v2626 = vunpack.c.l.s4 1983009808
    %v2627 = vunpack.c.0.s8 %v2626
    %v2628 = vlaneseq
    %v2629 = vshrl.u32 %v2628, 7
    %v2630 = vsub.s32 %v2627, %v2629
    %v2631 = vrot.slane %v1610, %v2630
    %v2633 = vunpack.c.l.s4 1983009808
    %v2634 = vunpack.c.0.s8 %v2633
    %v2635 = vlaneseq
    %v2636 = vshrl.u32 %v2635, 7
    %v2637 = vsub.s32 %v2634, %v2636
    %v2638 = vrot.slane %v2624, %v2637
    %v2639 = vcombine.high %v2631, %v2631
    %v2640 = vcombine.high %v2638, %v2638
    %v2641 = vcombine.high %v1611, %v1611
    %v2643 = vunpack.c.l.s4 1983009808
    %v2644 = vunpack.c.0.s8 %v2643
    %v2645 = vlaneseq
    %v2646 = vshrl.u32 %v2645, 7
    %v2647 = vsub.s32 %v2644, %v2646
    %v2648 = vrot.slane %v1611, %v2647
    %v2650 = vunpack.c.l.s4 1983009808
    %v2651 = vunpack.c.0.s8 %v2650
    %v2652 = vlaneseq
    %v2653 = vshrl.u32 %v2652, 7
    %v2654 = vsub.s32 %v2651, %v2653
    %v2655 = vrot.slane %v2641, %v2654
    %v2656 = vcombine.high %v2648, %v2648
    %v2657 = vcombine.high %v2655, %v2655
    %v2659 = vunpack.c.l.s4 1983009808
    %v2660 = vunpack.c.0.s8 %v2659
    %v2661 = vlaneseq
    %v2662 = vshrl.u32 %v2661, 7
    %v2663 = vsub.s32 %v2660, %v2662
    %v2664 = vrot.slane %v1612, %v2663
    %v2665 = vcombine.high %v1613, %v1613
    %v2667 = vunpack.c.l.s4 1983009808
    %v2668 = vunpack.c.0.s8 %v2667
    %v2669 = vlaneseq
    %v2670 = vshrl.u32 %v2669, 7
    %v2671 = vsub.s32 %v2668, %v2670
    %v2672 = vrot.slane %v1613, %v2671
    %v2674 = vunpack.c.l.s4 1983009808
    %v2675 = vunpack.c.0.s8 %v2674
    %v2676 = vlaneseq
    %v2677 = vshrl.u32 %v2676, 7
    %v2678 = vsub.s32 %v2675, %v2677
    %v2679 = vrot.slane %v2665, %v2678
    %v2680 = vcombine.high %v2672, %v2672
    %v2681 = vcombine.high %v2679, %v2679
    %v2682 = vcombine.high %v1614, %v1614
    %v2684 = vunpack.c.l.s4 1983009808
    %v2685 = vunpack.c.0.s8 %v2684
    %v2686 = vlaneseq
    %v2687 = vshrl.u32 %v2686, 7
    %v2688 = vsub.s32 %v2685, %v2687
    %v2689 = vrot.slane %v1614, %v2688
    %v2691 = vunpack.c.l.s4 1983009808
    %v2692 = vunpack.c.0.s8 %v2691
    %v2693 = vlaneseq
    %v2694 = vshrl.u32 %v2693, 7
    %v2695 = vsub.s32 %v2692, %v2694
    %v2696 = vrot.slane %v2682, %v2695
    %v2697 = vcombine.high %v2689, %v2689
    %v2698 = vcombine.high %v2696, %v2696
    %v2700 = vunpack.c.l.s4 1983009808
    %v2701 = vunpack.c.0.s8 %v2700
    %v2702 = vlaneseq
    %v2703 = vshrl.u32 %v2702, 7
    %v2704 = vsub.s32 %v2701, %v2703
    %v2705 = vrot.slane %v1615, %v2704
    %v2706 = vcombine.high %v1616, %v1616
    %v2708 = vunpack.c.l.s4 1983009808
    %v2709 = vunpack.c.0.s8 %v2708
    %v2710 = vlaneseq
    %v2711 = vshrl.u32 %v2710, 7
    %v2712 = vsub.s32 %v2709, %v2711
    %v2713 = vrot.slane %v1616, %v2712
    %v2715 = vunpack.c.l.s4 1983009808
    %v2716 = vunpack.c.0.s8 %v2715
    %v2717 = vlaneseq
    %v2718 = vshrl.u32 %v2717, 7
    %v2719 = vsub.s32 %v2716, %v2718
    %v2720 = vrot.slane %v2706, %v2719
    %v2721 = vcombine.high %v2713, %v2713
    %v2722 = vcombine.high %v2720, %v2720
    %v2723 = vcombine.high %v1617, %v1617
    %v2725 = vunpack.c.l.s4 1983009808
    %v2726 = vunpack.c.0.s8 %v2725
    %v2727 = vlaneseq
    %v2728 = vshrl.u32 %v2727, 7
    %v2729 = vsub.s32 %v2726, %v2728
    %v2730 = vrot.slane %v1617, %v2729
    %v2732 = vunpack.c.l.s4 1983009808
    %v2733 = vunpack.c.0.s8 %v2732
    %v2734 = vlaneseq
    %v2735 = vshrl.u32 %v2734, 7
    %v2736 = vsub.s32 %v2733, %v2735
    %v2737 = vrot.slane %v2723, %v2736
    %v2738 = vcombine.high %v2730, %v2730
    %v2739 = vcombine.high %v2737, %v2737
    %v2741 = vunpack.c.l.s4 1983009808
    %v2742 = vunpack.c.0.s8 %v2741
    %v2743 = vlaneseq
    %v2744 = vshrl.u32 %v2743, 7
    %v2745 = vsub.s32 %v2742, %v2744
    %v2746 = vrot.slane %v1618, %v2745
    %v2747 = vcombine.high %v1619, %v1619
    %v2749 = vunpack.c.l.s4 1983009808
    %v2750 = vunpack.c.0.s8 %v2749
    %v2751 = vlaneseq
    %v2752 = vshrl.u32 %v2751, 7
    %v2753 = vsub.s32 %v2750, %v2752
    %v2754 = vrot.slane %v1619, %v2753
    %v2756 = vunpack.c.l.s4 1983009808
    %v2757 = vunpack.c.0.s8 %v2756
    %v2758 = vlaneseq
    %v2759 = vshrl.u32 %v2758, 7
    %v2760 = vsub.s32 %v2757, %v2759
    %v2761 = vrot.slane %v2747, %v2760
    %v2762 = vcombine.high %v2754, %v2754
    %v2763 = vcombine.high %v2761, %v2761
    %v2764 = vcombine.high %v1620, %v1620
    %v2766 = vunpack.c.l.s4 1983009808
    %v2767 = vunpack.c.0.s8 %v2766
    %v2768 = vlaneseq
    %v2769 = vshrl.u32 %v2768, 7
    %v2770 = vsub.s32 %v2767, %v2769
    %v2771 = vrot.slane %v1620, %v2770
    %v2773 = vunpack.c.l.s4 1983009808
    %v2774 = vunpack.c.0.s8 %v2773
    %v2775 = vlaneseq
    %v2776 = vshrl.u32 %v2775, 7
    %v2777 = vsub.s32 %v2774, %v2776
    %v2778 = vrot.slane %v2764, %v2777
    %v2779 = vcombine.high %v2771, %v2771
    %v2780 = vcombine.high %v2778, %v2778
    %v2782 = vunpack.c.l.s4 1983009808
    %v2783 = vunpack.c.0.s8 %v2782
    %v2784 = vlaneseq
    %v2785 = vshrl.u32 %v2784, 7
    %v2786 = vsub.s32 %v2783, %v2785
    %v2787 = vrot.slane %v1621, %v2786
    %v2788 = vcombine.high %v1622, %v1622
    %v2790 = vunpack.c.l.s4 1983009808
    %v2791 = vunpack.c.0.s8 %v2790
    %v2792 = vlaneseq
    %v2793 = vshrl.u32 %v2792, 7
    %v2794 = vsub.s32 %v2791, %v2793
    %v2795 = vrot.slane %v1622, %v2794
    %v2797 = vunpack.c.l.s4 1983009808
    %v2798 = vunpack.c.0.s8 %v2797
    %v2799 = vlaneseq
    %v2800 = vshrl.u32 %v2799, 7
    %v2801 = vsub.s32 %v2798, %v2800
    %v2802 = vrot.slane %v2788, %v2801
    %v2803 = vcombine.high %v2795, %v2795
    %v2804 = vcombine.high %v2802, %v2802
    %v2805 = vcombine.high %v1623, %v1623
    %v2807 = vunpack.c.l.s4 1983009808
    %v2808 = vunpack.c.0.s8 %v2807
    %v2809 = vlaneseq
    %v2810 = vshrl.u32 %v2809, 7
    %v2811 = vsub.s32 %v2808, %v2810
    %v2812 = vrot.slane %v1623, %v2811
    %v2814 = vunpack.c.l.s4 1983009808
    %v2815 = vunpack.c.0.s8 %v2814
    %v2816 = vlaneseq
    %v2817 = vshrl.u32 %v2816, 7
    %v2818 = vsub.s32 %v2815, %v2817
    %v2819 = vrot.slane %v2805, %v2818
    %v2820 = vcombine.high %v2812, %v2812
    %v2821 = vcombine.high %v2819, %v2819
    %v2823 = vunpack.c.l.s4 1983009808
    %v2824 = vunpack.c.0.s8 %v2823
    %v2825 = vlaneseq
    %v2826 = vshrl.u32 %v2825, 7
    %v2827 = vsub.s32 %v2824, %v2826
    %v2828 = vrot.slane %v1624, %v2827
    %v2829 = vcombine.high %v1625, %v1625
    %v2831 = vunpack.c.l.s4 1983009808
    %v2832 = vunpack.c.0.s8 %v2831
    %v2833 = vlaneseq
    %v2834 = vshrl.u32 %v2833, 7
    %v2835 = vsub.s32 %v2832, %v2834
    %v2836 = vrot.slane %v1625, %v2835
    %v2838 = vunpack.c.l.s4 1983009808
    %v2839 = vunpack.c.0.s8 %v2838
    %v2840 = vlaneseq
    %v2841 = vshrl.u32 %v2840, 7
    %v2842 = vsub.s32 %v2839, %v2841
    %v2843 = vrot.slane %v2829, %v2842
    %v2844 = vcombine.high %v2836, %v2836
    %v2845 = vcombine.high %v2843, %v2843
    %v2846 = vcombine.high %v1626, %v1626
    %v2848 = vunpack.c.l.s4 1983009808
    %v2849 = vunpack.c.0.s8 %v2848
    %v2850 = vlaneseq
    %v2851 = vshrl.u32 %v2850, 7
    %v2852 = vsub.s32 %v2849, %v2851
    %v2853 = vrot.slane %v1626, %v2852
    %v2855 = vunpack.c.l.s4 1983009808
    %v2856 = vunpack.c.0.s8 %v2855
    %v2857 = vlaneseq
    %v2858 = vshrl.u32 %v2857, 7
    %v2859 = vsub.s32 %v2856, %v2858
    %v2860 = vrot.slane %v2846, %v2859
    %v2861 = vcombine.high %v2853, %v2853
    %v2862 = vcombine.high %v2860, %v2860
    %v2864 = vunpack.c.l.s4 1983009808
    %v2865 = vunpack.c.0.s8 %v2864
    %v2866 = vlaneseq
    %v2867 = vshrl.u32 %v2866, 7
    %v2868 = vsub.s32 %v2865, %v2867
    %v2869 = vrot.slane %v1627, %v2868
    %v2870 = vcombine.high %v1628, %v1628
    %v2872 = vunpack.c.l.s4 1983009808
    %v2873 = vunpack.c.0.s8 %v2872
    %v2874 = vlaneseq
    %v2875 = vshrl.u32 %v2874, 7
    %v2876 = vsub.s32 %v2873, %v2875
    %v2877 = vrot.slane %v1628, %v2876
    %v2879 = vunpack.c.l.s4 1983009808
    %v2880 = vunpack.c.0.s8 %v2879
    %v2881 = vlaneseq
    %v2882 = vshrl.u32 %v2881, 7
    %v2883 = vsub.s32 %v2880, %v2882
    %v2884 = vrot.slane %v2870, %v2883
    %v2885 = vcombine.high %v2877, %v2877
    %v2886 = vcombine.high %v2884, %v2884
    %v2887 = vcombine.high %v1629, %v1629
    %v2889 = vunpack.c.l.s4 1983009808
    %v2890 = vunpack.c.0.s8 %v2889
    %v2891 = vlaneseq
    %v2892 = vshrl.u32 %v2891, 7
    %v2893 = vsub.s32 %v2890, %v2892
    %v2894 = vrot.slane %v1629, %v2893
    %v2896 = vunpack.c.l.s4 1983009808
    %v2897 = vunpack.c.0.s8 %v2896
    %v2898 = vlaneseq
    %v2899 = vshrl.u32 %v2898, 7
    %v2900 = vsub.s32 %v2897, %v2899
    %v2901 = vrot.slane %v2887, %v2900
    %v2902 = vcombine.high %v2894, %v2894
    %v2903 = vcombine.high %v2901, %v2901
    %v2905 = vunpack.c.l.s4 1983009808
    %v2906 = vunpack.c.0.s8 %v2905
    %v2907 = vlaneseq
    %v2908 = vshrl.u32 %v2907, 7
    %v2909 = vsub.s32 %v2906, %v2908
    %v2910 = vrot.slane %v1630, %v2909
    %v2911 = vcombine.high %v1631, %v1631
    %v2913 = vunpack.c.l.s4 1983009808
    %v2914 = vunpack.c.0.s8 %v2913
    %v2915 = vlaneseq
    %v2916 = vshrl.u32 %v2915, 7
    %v2917 = vsub.s32 %v2914, %v2916
    %v2918 = vrot.slane %v1631, %v2917
    %v2920 = vunpack.c.l.s4 1983009808
    %v2921 = vunpack.c.0.s8 %v2920
    %v2922 = vlaneseq
    %v2923 = vshrl.u32 %v2922, 7
    %v2924 = vsub.s32 %v2921, %v2923
    %v2925 = vrot.slane %v2911, %v2924
    %v2926 = vcombine.high %v2918, %v2918
    %v2927 = vcombine.high %v2925, %v2925
    %v2928 = vcombine.high %v1632, %v1632
    %v2930 = vunpack.c.l.s4 1983009808
    %v2931 = vunpack.c.0.s8 %v2930
    %v2932 = vlaneseq
    %v2933 = vshrl.u32 %v2932, 7
    %v2934 = vsub.s32 %v2931, %v2933
    %v2935 = vrot.slane %v1632, %v2934
    %v2937 = vunpack.c.l.s4 1983009808
    %v2938 = vunpack.c.0.s8 %v2937
    %v2939 = vlaneseq
    %v2940 = vshrl.u32 %v2939, 7
    %v2941 = vsub.s32 %v2938, %v2940
    %v2942 = vrot.slane %v2928, %v2941
    %v2943 = vcombine.high %v2935, %v2935
    %v2944 = vcombine.high %v2942, %v2942
    %v2946 = vunpack.c.l.s4 1983009808
    %v2947 = vunpack.c.0.s8 %v2946
    %v2948 = vlaneseq
    %v2949 = vshrl.u32 %v2948, 7
    %v2950 = vsub.s32 %v2947, %v2949
    %v2951 = vrot.slane %v1633, %v2950
    %v2952 = vcombine.high %v1634, %v1634
    %v2954 = vunpack.c.l.s4 1983009808
    %v2955 = vunpack.c.0.s8 %v2954
    %v2956 = vlaneseq
    %v2957 = vshrl.u32 %v2956, 7
    %v2958 = vsub.s32 %v2955, %v2957
    %v2959 = vrot.slane %v1634, %v2958
    %v2961 = vunpack.c.l.s4 1983009808
    %v2962 = vunpack.c.0.s8 %v2961
    %v2963 = vlaneseq
    %v2964 = vshrl.u32 %v2963, 7
    %v2965 = vsub.s32 %v2962, %v2964
    %v2966 = vrot.slane %v2952, %v2965
    %v2967 = vcombine.high %v2959, %v2959
    %v2968 = vcombine.high %v2966, %v2966
    %v2969 = vcombine.high %v1635, %v1635
    %v2971 = vunpack.c.l.s4 1983009808
    %v2972 = vunpack.c.0.s8 %v2971
    %v2973 = vlaneseq
    %v2974 = vshrl.u32 %v2973, 7
    %v2975 = vsub.s32 %v2972, %v2974
    %v2976 = vrot.slane %v1635, %v2975
    %v2978 = vunpack.c.l.s4 1983009808
    %v2979 = vunpack.c.0.s8 %v2978
    %v2980 = vlaneseq
    %v2981 = vshrl.u32 %v2980, 7
    %v2982 = vsub.s32 %v2979, %v2981
    %v2983 = vrot.slane %v2969, %v2982
    %v2984 = vcombine.high %v2976, %v2976
    %v2985 = vcombine.high %v2983, %v2983
    %v2987 = vunpack.c.l.s4 1983009808
    %v2988 = vunpack.c.0.s8 %v2987
    %v2989 = vlaneseq
    %v2990 = vshrl.u32 %v2989, 7
    %v2991 = vsub.s32 %v2988, %v2990
    %v2992 = vrot.slane %v1636, %v2991
    %v2993 = vcombine.high %v1637, %v1637
    %v2995 = vunpack.c.l.s4 1983009808
    %v2996 = vunpack.c.0.s8 %v2995
    %v2997 = vlaneseq
    %v2998 = vshrl.u32 %v2997, 7
    %v2999 = vsub.s32 %v2996, %v2998
    %v3000 = vrot.slane %v1637, %v2999
    %v3002 = vunpack.c.l.s4 1983009808
    %v3003 = vunpack.c.0.s8 %v3002
    %v3004 = vlaneseq
    %v3005 = vshrl.u32 %v3004, 7
    %v3006 = vsub.s32 %v3003, %v3005
    %v3007 = vrot.slane %v2993, %v3006
    %v3008 = vcombine.high %v3000, %v3000
    %v3009 = vcombine.high %v3007, %v3007
    %v3010 = vcombine.high %v1638, %v1638
    %v3012 = vunpack.c.l.s4 1983009808
    %v3013 = vunpack.c.0.s8 %v3012
    %v3014 = vlaneseq
    %v3015 = vshrl.u32 %v3014, 7
    %v3016 = vsub.s32 %v3013, %v3015
    %v3017 = vrot.slane %v1638, %v3016
    %v3019 = vunpack.c.l.s4 1983009808
    %v3020 = vunpack.c.0.s8 %v3019
    %v3021 = vlaneseq
    %v3022 = vshrl.u32 %v3021, 7
    %v3023 = vsub.s32 %v3020, %v3022
    %v3024 = vrot.slane %v3010, %v3023
    %v3025 = vcombine.high %v3017, %v3017
    %v3026 = vcombine.high %v3024, %v3024
    %v3028 = vunpack.c.l.s4 1983009808
    %v3029 = vunpack.c.0.s8 %v3028
    %v3030 = vlaneseq
    %v3031 = vshrl.u32 %v3030, 7
    %v3032 = vsub.s32 %v3029, %v3031
    %v3033 = vrot.slane %v1639, %v3032
    %v3034 = vcombine.high %v1640, %v1640
    %v3036 = vunpack.c.l.s4 1983009808
    %v3037 = vunpack.c.0.s8 %v3036
    %v3038 = vlaneseq
    %v3039 = vshrl.u32 %v3038, 7
    %v3040 = vsub.s32 %v3037, %v3039
    %v3041 = vrot.slane %v1640, %v3040
    %v3043 = vunpack.c.l.s4 1983009808
    %v3044 = vunpack.c.0.s8 %v3043
    %v3045 = vlaneseq
    %v3046 = vshrl.u32 %v3045, 7
    %v3047 = vsub.s32 %v3044, %v3046
    %v3048 = vrot.slane %v3034, %v3047
    %v3049 = vcombine.high %v3041, %v3041
    %v3050 = vcombine.high %v3048, %v3048
    %v3051 = vcombine.high %v1641, %v1641
    %v3053 = vunpack.c.l.s4 1983009808
    %v3054 = vunpack.c.0.s8 %v3053
    %v3055 = vlaneseq
    %v3056 = vshrl.u32 %v3055, 7
    %v3057 = vsub.s32 %v3054, %v3056
    %v3058 = vrot.slane %v1641, %v3057
    %v3060 = vunpack.c.l.s4 1983009808
    %v3061 = vunpack.c.0.s8 %v3060
    %v3062 = vlaneseq
    %v3063 = vshrl.u32 %v3062, 7
    %v3064 = vsub.s32 %v3061, %v3063
    %v3065 = vrot.slane %v3051, %v3064
    %v3066 = vcombine.high %v3058, %v3058
    %v3067 = vcombine.high %v3065, %v3065
    %v3069 = vunpack.c.l.s4 1983009808
    %v3070 = vunpack.c.0.s8 %v3069
    %v3071 = vlaneseq
    %v3072 = vshrl.u32 %v3071, 7
    %v3073 = vsub.s32 %v3070, %v3072
    %v3074 = vrot.slane %v1642, %v3073
    %v3075 = vcombine.high %v1643, %v1643
    %v3077 = vunpack.c.l.s4 1983009808
    %v3078 = vunpack.c.0.s8 %v3077
    %v3079 = vlaneseq
    %v3080 = vshrl.u32 %v3079, 7
    %v3081 = vsub.s32 %v3078, %v3080
    %v3082 = vrot.slane %v1643, %v3081
    %v3084 = vunpack.c.l.s4 1983009808
    %v3085 = vunpack.c.0.s8 %v3084
    %v3086 = vlaneseq
    %v3087 = vshrl.u32 %v3086, 7
    %v3088 = vsub.s32 %v3085, %v3087
    %v3089 = vrot.slane %v3075, %v3088
    %v3090 = vcombine.high %v3082, %v3082
    %v3091 = vcombine.high %v3089, %v3089
    %v3092 = vcombine.high %v1644, %v1644
    %v3094 = vunpack.c.l.s4 1983009808
    %v3095 = vunpack.c.0.s8 %v3094
    %v3096 = vlaneseq
    %v3097 = vshrl.u32 %v3096, 7
    %v3098 = vsub.s32 %v3095, %v3097
    %v3099 = vrot.slane %v1644, %v3098
    %v3101 = vunpack.c.l.s4 1983009808
    %v3102 = vunpack.c.0.s8 %v3101
    %v3103 = vlaneseq
    %v3104 = vshrl.u32 %v3103, 7
    %v3105 = vsub.s32 %v3102, %v3104
    %v3106 = vrot.slane %v3092, %v3105
    %v3107 = vcombine.high %v3099, %v3099
    %v3108 = vcombine.high %v3106, %v3106
    %v3110 = vunpack.c.l.s4 1983009808
    %v3111 = vunpack.c.0.s8 %v3110
    %v3112 = vlaneseq
    %v3113 = vshrl.u32 %v3112, 7
    %v3114 = vsub.s32 %v3111, %v3113
    %v3115 = vrot.slane %v1645, %v3114
    %v3116 = vcombine.high %v1646, %v1646
    %v3118 = vunpack.c.l.s4 1983009808
    %v3119 = vunpack.c.0.s8 %v3118
    %v3120 = vlaneseq
    %v3121 = vshrl.u32 %v3120, 7
    %v3122 = vsub.s32 %v3119, %v3121
    %v3123 = vrot.slane %v1646, %v3122
    %v3125 = vunpack.c.l.s4 1983009808
    %v3126 = vunpack.c.0.s8 %v3125
    %v3127 = vlaneseq
    %v3128 = vshrl.u32 %v3127, 7
    %v3129 = vsub.s32 %v3126, %v3128
    %v3130 = vrot.slane %v3116, %v3129
    %v3131 = vcombine.high %v3123, %v3123
    %v3132 = vcombine.high %v3130, %v3130
    %v3133 = vcombine.high %v1647, %v1647
    %v3135 = vunpack.c.l.s4 1983009808
    %v3136 = vunpack.c.0.s8 %v3135
    %v3137 = vlaneseq
    %v3138 = vshrl.u32 %v3137, 7
    %v3139 = vsub.s32 %v3136, %v3138
    %v3140 = vrot.slane %v1647, %v3139
    %v3142 = vunpack.c.l.s4 1983009808
    %v3143 = vunpack.c.0.s8 %v3142
    %v3144 = vlaneseq
    %v3145 = vshrl.u32 %v3144, 7
    %v3146 = vsub.s32 %v3143, %v3145
    %v3147 = vrot.slane %v3133, %v3146
    %v3148 = vcombine.high %v3140, %v3140
    %v3149 = vcombine.high %v3147, %v3147
    %v3151 = vunpack.c.l.s4 1983009808
    %v3152 = vunpack.c.0.s8 %v3151
    %v3153 = vlaneseq
    %v3154 = vshrl.u32 %v3153, 7
    %v3155 = vsub.s32 %v3152, %v3154
    %v3156 = vrot.slane %v1648, %v3155
    %v3157 = vcombine.high %v1649, %v1649
    %v3159 = vunpack.c.l.s4 1983009808
    %v3160 = vunpack.c.0.s8 %v3159
    %v3161 = vlaneseq
    %v3162 = vshrl.u32 %v3161, 7
    %v3163 = vsub.s32 %v3160, %v3162
    %v3164 = vrot.slane %v1649, %v3163
    %v3166 = vunpack.c.l.s4 1983009808
    %v3167 = vunpack.c.0.s8 %v3166
    %v3168 = vlaneseq
    %v3169 = vshrl.u32 %v3168, 7
    %v3170 = vsub.s32 %v3167, %v3169
    %v3171 = vrot.slane %v3157, %v3170
    %v3172 = vcombine.high %v3164, %v3164
    %v3173 = vcombine.high %v3171, %v3171
    %v3174 = vcombine.high %v1650, %v1650
    %v3176 = vunpack.c.l.s4 1983009808
    %v3177 = vunpack.c.0.s8 %v3176
    %v3178 = vlaneseq
    %v3179 = vshrl.u32 %v3178, 7
    %v3180 = vsub.s32 %v3177, %v3179
    %v3181 = vrot.slane %v1650, %v3180
    %v3183 = vunpack.c.l.s4 1983009808
    %v3184 = vunpack.c.0.s8 %v3183
    %v3185 = vlaneseq
    %v3186 = vshrl.u32 %v3185, 7
    %v3187 = vsub.s32 %v3184, %v3186
    %v3188 = vrot.slane %v3174, %v3187
    %v3189 = vcombine.high %v3181, %v3181
    %v3190 = vcombine.high %v3188, %v3188
    %v3192 = vunpack.c.l.s4 1983009808
    %v3193 = vunpack.c.0.s8 %v3192
    %v3194 = vlaneseq
    %v3195 = vshrl.u32 %v3194, 7
    %v3196 = vsub.s32 %v3193, %v3195
    %v3197 = vrot.slane %v1651, %v3196
    %v3198 = vcombine.high %v1652, %v1652
    %v3200 = vunpack.c.l.s4 1983009808
    %v3201 = vunpack.c.0.s8 %v3200
    %v3202 = vlaneseq
    %v3203 = vshrl.u32 %v3202, 7
    %v3204 = vsub.s32 %v3201, %v3203
    %v3205 = vrot.slane %v1652, %v3204
    %v3207 = vunpack.c.l.s4 1983009808
    %v3208 = vunpack.c.0.s8 %v3207
    %v3209 = vlaneseq
    %v3210 = vshrl.u32 %v3209, 7
    %v3211 = vsub.s32 %v3208, %v3210
    %v3212 = vrot.slane %v3198, %v3211
    %v3213 = vcombine.high %v3205, %v3205
    %v3214 = vcombine.high %v3212, %v3212
    %v3215 = vcombine.high %v1653, %v1653
    %v3217 = vunpack.c.l.s4 1983009808
    %v3218 = vunpack.c.0.s8 %v3217
    %v3219 = vlaneseq
    %v3220 = vshrl.u32 %v3219, 7
    %v3221 = vsub.s32 %v3218, %v3220
    %v3222 = vrot.slane %v1653, %v3221
    %v3224 = vunpack.c.l.s4 1983009808
    %v3225 = vunpack.c.0.s8 %v3224
    %v3226 = vlaneseq
    %v3227 = vshrl.u32 %v3226, 7
    %v3228 = vsub.s32 %v3225, %v3227
    %v3229 = vrot.slane %v3215, %v3228
    %v3230 = vcombine.high %v3222, %v3222
    %v3231 = vcombine.high %v3229, %v3229
    %v3233 = vunpack.c.l.s4 1983009808
    %v3234 = vunpack.c.0.s8 %v3233
    %v3235 = vlaneseq
    %v3236 = vshrl.u32 %v3235, 7
    %v3237 = vsub.s32 %v3234, %v3236
    %v3238 = vrot.slane %v1654, %v3237
    %v3239 = vlaneseq
    %v3240 = vshrl.u32 %v3239, 7
    %v3241 = vsub.s32 0, %v3240
    %v3242 = vrot.slane %v1770, %v3241
    %v3243 = vlaneseq
    %v3244 = vshrl.u32 %v3243, 7
    %v3245 = vsub.s32 0, %v3244
    %v3246 = vrot.slane %v1778, %v3245
    %v3247 = vlaneseq
    %v3248 = vshrl.u32 %v3247, 7
    %v3249 = vsub.s32 0, %v3248
    %v3250 = vrot.slane %v1777, %v3249
    %v3251 = vlaneseq
    %v3252 = vshrl.u32 %v3251, 7
    %v3253 = vsub.s32 0, %v3252
    %v3254 = vrot.slane %v1779, %v3253
    %v3255 = vlaneseq
    %v3256 = vshrl.u32 %v3255, 7
    %v3257 = vsub.s32 0, %v3256
    %v3258 = vrot.slane %v1787, %v3257
    %v3259 = vlaneseq
    %v3260 = vshrl.u32 %v3259, 7
    %v3261 = vsub.s32 0, %v3260
    %v3262 = vrot.slane %v1795, %v3261
    %v3263 = vlaneseq
    %v3264 = vshrl.u32 %v3263, 7
    %v3265 = vsub.s32 0, %v3264
    %v3266 = vrot.slane %v1794, %v3265
    %v3267 = vlaneseq
    %v3268 = vshrl.u32 %v3267, 7
    %v3269 = vsub.s32 0, %v3268
    %v3270 = vrot.slane %v1796, %v3269
    %v3271 = vlaneseq
    %v3272 = vshrl.u32 %v3271, 7
    %v3273 = vsub.s32 0, %v3272
    %v3274 = vrot.slane %v1852, %v3273
    %v3275 = vlaneseq
    %v3276 = vshrl.u32 %v3275, 7
    %v3277 = vsub.s32 0, %v3276
    %v3278 = vrot.slane %v1860, %v3277
    %v3279 = vlaneseq
    %v3280 = vshrl.u32 %v3279, 7
    %v3281 = vsub.s32 0, %v3280
    %v3282 = vrot.slane %v1859, %v3281
    %v3283 = vlaneseq
    %v3284 = vshrl.u32 %v3283, 7
    %v3285 = vsub.s32 0, %v3284
    %v3286 = vrot.slane %v1861, %v3285
    %v3287 = vlaneseq
    %v3288 = vshrl.u32 %v3287, 7
    %v3289 = vsub.s32 0, %v3288
    %v3290 = vrot.slane %v1869, %v3289
    %v3291 = vlaneseq
    %v3292 = vshrl.u32 %v3291, 7
    %v3293 = vsub.s32 0, %v3292
    %v3294 = vrot.slane %v1877, %v3293
    %v3295 = vlaneseq
    %v3296 = vshrl.u32 %v3295, 7
    %v3297 = vsub.s32 0, %v3296
    %v3298 = vrot.slane %v1876, %v3297
    %v3299 = vlaneseq
    %v3300 = vshrl.u32 %v3299, 7
    %v3301 = vsub.s32 0, %v3300
    %v3302 = vrot.slane %v1878, %v3301
    %v3303 = vlaneseq
    %v3304 = vshrl.u32 %v3303, 7
    %v3305 = vsub.s32 0, %v3304
    %v3306 = vrot.slane %v1934, %v3305
    %v3307 = vlaneseq
    %v3308 = vshrl.u32 %v3307, 7
    %v3309 = vsub.s32 0, %v3308
    %v3310 = vrot.slane %v1942, %v3309
    %v3311 = vlaneseq
    %v3312 = vshrl.u32 %v3311, 7
    %v3313 = vsub.s32 0, %v3312
    %v3314 = vrot.slane %v1941, %v3313
    %v3315 = vlaneseq
    %v3316 = vshrl.u32 %v3315, 7
    %v3317 = vsub.s32 0, %v3316
    %v3318 = vrot.slane %v1943, %v3317
    %v3319 = vlaneseq
    %v3320 = vshrl.u32 %v3319, 7
    %v3321 = vsub.s32 0, %v3320
    %v3322 = vrot.slane %v1951, %v3321
    %v3323 = vlaneseq
    %v3324 = vshrl.u32 %v3323, 7
    %v3325 = vsub.s32 0, %v3324
    %v3326 = vrot.slane %v1959, %v3325
    %v3327 = vlaneseq
    %v3328 = vshrl.u32 %v3327, 7
    %v3329 = vsub.s32 0, %v3328
    %v3330 = vrot.slane %v1958, %v3329
    %v3331 = vlaneseq
    %v3332 = vshrl.u32 %v3331, 7
    %v3333 = vsub.s32 0, %v3332
    %v3334 = vrot.slane %v1960, %v3333
    %v3335 = vlaneseq
    %v3336 = vshrl.u32 %v3335, 7
    %v3337 = vsub.s32 0, %v3336
    %v3338 = vrot.slane %v2016, %v3337
    %v3339 = vlaneseq
    %v3340 = vshrl.u32 %v3339, 7
    %v3341 = vsub.s32 0, %v3340
    %v3342 = vrot.slane %v2024, %v3341
    %v3343 = vlaneseq
    %v3344 = vshrl.u32 %v3343, 7
    %v3345 = vsub.s32 0, %v3344
    %v3346 = vrot.slane %v2023, %v3345
    %v3347 = vlaneseq
    %v3348 = vshrl.u32 %v3347, 7
    %v3349 = vsub.s32 0, %v3348
    %v3350 = vrot.slane %v2025, %v3349
    %v3351 = vlaneseq
    %v3352 = vshrl.u32 %v3351, 7
    %v3353 = vsub.s32 0, %v3352
    %v3354 = vrot.slane %v2033, %v3353
    %v3355 = vlaneseq
    %v3356 = vshrl.u32 %v3355, 7
    %v3357 = vsub.s32 0, %v3356
    %v3358 = vrot.slane %v2041, %v3357
    %v3359 = vlaneseq
    %v3360 = vshrl.u32 %v3359, 7
    %v3361 = vsub.s32 0, %v3360
    %v3362 = vrot.slane %v2040, %v3361
    %v3363 = vlaneseq
    %v3364 = vshrl.u32 %v3363, 7
    %v3365 = vsub.s32 0, %v3364
    %v3366 = vrot.slane %v2042, %v3365
    %v3367 = vlaneseq
    %v3368 = vshrl.u32 %v3367, 7
    %v3369 = vsub.s32 0, %v3368
    %v3370 = vrot.slane %v2098, %v3369
    %v3371 = vlaneseq
    %v3372 = vshrl.u32 %v3371, 7
    %v3373 = vsub.s32 0, %v3372
    %v3374 = vrot.slane %v2106, %v3373
    %v3375 = vlaneseq
    %v3376 = vshrl.u32 %v3375, 7
    %v3377 = vsub.s32 0, %v3376
    %v3378 = vrot.slane %v2105, %v3377
    %v3379 = vlaneseq
    %v3380 = vshrl.u32 %v3379, 7
    %v3381 = vsub.s32 0, %v3380
    %v3382 = vrot.slane %v2107, %v3381
    %v3383 = vlaneseq
    %v3384 = vshrl.u32 %v3383, 7
    %v3385 = vsub.s32 0, %v3384
    %v3386 = vrot.slane %v2115, %v3385
    %v3387 = vlaneseq
    %v3388 = vshrl.u32 %v3387, 7
    %v3389 = vsub.s32 0, %v3388
    %v3390 = vrot.slane %v2123, %v3389
    %v3391 = vlaneseq
    %v3392 = vshrl.u32 %v3391, 7
    %v3393 = vsub.s32 0, %v3392
    %v3394 = vrot.slane %v2122, %v3393
    %v3395 = vlaneseq
    %v3396 = vshrl.u32 %v3395, 7
    %v3397 = vsub.s32 0, %v3396
    %v3398 = vrot.slane %v2124, %v3397
    %v3399 = vlaneseq
    %v3400 = vshrl.u32 %v3399, 7
    %v3401 = vsub.s32 0, %v3400
    %v3402 = vrot.slane %v2180, %v3401
    %v3403 = vlaneseq
    %v3404 = vshrl.u32 %v3403, 7
    %v3405 = vsub.s32 0, %v3404
    %v3406 = vrot.slane %v2188, %v3405
    %v3407 = vlaneseq
    %v3408 = vshrl.u32 %v3407, 7
    %v3409 = vsub.s32 0, %v3408
    %v3410 = vrot.slane %v2187, %v3409
    %v3411 = vlaneseq
    %v3412 = vshrl.u32 %v3411, 7
    %v3413 = vsub.s32 0, %v3412
    %v3414 = vrot.slane %v2189, %v3413
    %v3415 = vlaneseq
    %v3416 = vshrl.u32 %v3415, 7
    %v3417 = vsub.s32 0, %v3416
    %v3418 = vrot.slane %v2197, %v3417
    %v3419 = vlaneseq
    %v3420 = vshrl.u32 %v3419, 7
    %v3421 = vsub.s32 0, %v3420
    %v3422 = vrot.slane %v2205, %v3421
    %v3423 = vlaneseq
    %v3424 = vshrl.u32 %v3423, 7
    %v3425 = vsub.s32 0, %v3424
    %v3426 = vrot.slane %v2204, %v3425
    %v3427 = vlaneseq
    %v3428 = vshrl.u32 %v3427, 7
    %v3429 = vsub.s32 0, %v3428
    %v3430 = vrot.slane %v2206, %v3429
    %v3431 = vlaneseq
    %v3432 = vshrl.u32 %v3431, 7
    %v3433 = vsub.s32 0, %v3432
    %v3434 = vrot.slane %v2262, %v3433
    %v3435 = vlaneseq
    %v3436 = vshrl.u32 %v3435, 7
    %v3437 = vsub.s32 0, %v3436
    %v3438 = vrot.slane %v2270, %v3437
    %v3439 = vlaneseq
    %v3440 = vshrl.u32 %v3439, 7
    %v3441 = vsub.s32 0, %v3440
    %v3442 = vrot.slane %v2269, %v3441
    %v3443 = vlaneseq
    %v3444 = vshrl.u32 %v3443, 7
    %v3445 = vsub.s32 0, %v3444
    %v3446 = vrot.slane %v2271, %v3445
    %v3447 = vlaneseq
    %v3448 = vshrl.u32 %v3447, 7
    %v3449 = vsub.s32 0, %v3448
    %v3450 = vrot.slane %v2279, %v3449
    %v3451 = vlaneseq
    %v3452 = vshrl.u32 %v3451, 7
    %v3453 = vsub.s32 0, %v3452
    %v3454 = vrot.slane %v2287, %v3453
    %v3455 = vlaneseq
    %v3456 = vshrl.u32 %v3455, 7
    %v3457 = vsub.s32 0, %v3456
    %v3458 = vrot.slane %v2286, %v3457
    %v3459 = vlaneseq
    %v3460 = vshrl.u32 %v3459, 7
    %v3461 = vsub.s32 0, %v3460
    %v3462 = vrot.slane %v2288, %v3461
    %v3463 = vlaneseq
    %v3464 = vshrl.u32 %v3463, 7
    %v3465 = vsub.s32 0, %v3464
    %v3466 = vrot.slane %v2344, %v3465
    %v3467 = vlaneseq
    %v3468 = vshrl.u32 %v3467, 7
    %v3469 = vsub.s32 0, %v3468
    %v3470 = vrot.slane %v2352, %v3469
    %v3471 = vlaneseq
    %v3472 = vshrl.u32 %v3471, 7
    %v3473 = vsub.s32 0, %v3472
    %v3474 = vrot.slane %v2351, %v3473
    %v3475 = vlaneseq
    %v3476 = vshrl.u32 %v3475, 7
    %v3477 = vsub.s32 0, %v3476
    %v3478 = vrot.slane %v2353, %v3477
    %v3479 = vlaneseq
    %v3480 = vshrl.u32 %v3479, 7
    %v3481 = vsub.s32 0, %v3480
    %v3482 = vrot.slane %v2361, %v3481
    %v3483 = vlaneseq
    %v3484 = vshrl.u32 %v3483, 7
    %v3485 = vsub.s32 0, %v3484
    %v3486 = vrot.slane %v2369, %v3485
    %v3487 = vlaneseq
    %v3488 = vshrl.u32 %v3487, 7
    %v3489 = vsub.s32 0, %v3488
    %v3490 = vrot.slane %v2368, %v3489
    %v3491 = vlaneseq
    %v3492 = vshrl.u32 %v3491, 7
    %v3493 = vsub.s32 0, %v3492
    %v3494 = vrot.slane %v2370, %v3493
    %v3495 = vlaneseq
    %v3496 = vshrl.u32 %v3495, 7
    %v3497 = vsub.s32 0, %v3496
    %v3498 = vrot.slane %v2508, %v3497
    %v3499 = vlaneseq
    %v3500 = vshrl.u32 %v3499, 7
    %v3501 = vsub.s32 0, %v3500
    %v3502 = vrot.slane %v2516, %v3501
    %v3503 = vlaneseq
    %v3504 = vshrl.u32 %v3503, 7
    %v3505 = vsub.s32 0, %v3504
    %v3506 = vrot.slane %v2515, %v3505
    %v3507 = vlaneseq
    %v3508 = vshrl.u32 %v3507, 7
    %v3509 = vsub.s32 0, %v3508
    %v3510 = vrot.slane %v2517, %v3509
    %v3511 = vlaneseq
    %v3512 = vshrl.u32 %v3511, 7
    %v3513 = vsub.s32 0, %v3512
    %v3514 = vrot.slane %v2525, %v3513
    %v3515 = vlaneseq
    %v3516 = vshrl.u32 %v3515, 7
    %v3517 = vsub.s32 0, %v3516
    %v3518 = vrot.slane %v2533, %v3517
    %v3519 = vlaneseq
    %v3520 = vshrl.u32 %v3519, 7
    %v3521 = vsub.s32 0, %v3520
    %v3522 = vrot.slane %v2532, %v3521
    %v3523 = vlaneseq
    %v3524 = vshrl.u32 %v3523, 7
    %v3525 = vsub.s32 0, %v3524
    %v3526 = vrot.slane %v2534, %v3525
    %v3527 = vlaneseq
    %v3528 = vshrl.u32 %v3527, 7
    %v3529 = vsub.s32 0, %v3528
    %v3530 = vrot.slane %v2590, %v3529
    %v3531 = vlaneseq
    %v3532 = vshrl.u32 %v3531, 7
    %v3533 = vsub.s32 0, %v3532
    %v3534 = vrot.slane %v2598, %v3533
    %v3535 = vlaneseq
    %v3536 = vshrl.u32 %v3535, 7
    %v3537 = vsub.s32 0, %v3536
    %v3538 = vrot.slane %v2597, %v3537
    %v3539 = vlaneseq
    %v3540 = vshrl.u32 %v3539, 7
    %v3541 = vsub.s32 0, %v3540
    %v3542 = vrot.slane %v2599, %v3541
    %v3543 = vlaneseq
    %v3544 = vshrl.u32 %v3543, 7
    %v3545 = vsub.s32 0, %v3544
    %v3546 = vrot.slane %v2607, %v3545
    %v3547 = vlaneseq
    %v3548 = vshrl.u32 %v3547, 7
    %v3549 = vsub.s32 0, %v3548
    %v3550 = vrot.slane %v2615, %v3549
    %v3551 = vlaneseq
    %v3552 = vshrl.u32 %v3551, 7
    %v3553 = vsub.s32 0, %v3552
    %v3554 = vrot.slane %v2614, %v3553
    %v3555 = vlaneseq
    %v3556 = vshrl.u32 %v3555, 7
    %v3557 = vsub.s32 0, %v3556
    %v3558 = vrot.slane %v2616, %v3557
    %v3559 = vlaneseq
    %v3560 = vshrl.u32 %v3559, 7
    %v3561 = vsub.s32 0, %v3560
    %v3562 = vrot.slane %v2672, %v3561
    %v3563 = vlaneseq
    %v3564 = vshrl.u32 %v3563, 7
    %v3565 = vsub.s32 0, %v3564
    %v3566 = vrot.slane %v2680, %v3565
    %v3567 = vlaneseq
    %v3568 = vshrl.u32 %v3567, 7
    %v3569 = vsub.s32 0, %v3568
    %v3570 = vrot.slane %v2679, %v3569
    %v3571 = vlaneseq
    %v3572 = vshrl.u32 %v3571, 7
    %v3573 = vsub.s32 0, %v3572
    %v3574 = vrot.slane %v2681, %v3573
    %v3575 = vlaneseq
    %v3576 = vshrl.u32 %v3575, 7
    %v3577 = vsub.s32 0, %v3576
    %v3578 = vrot.slane %v2689, %v3577
    %v3579 = vlaneseq
    %v3580 = vshrl.u32 %v3579, 7
    %v3581 = vsub.s32 0, %v3580
    %v3582 = vrot.slane %v2697, %v3581
    %v3583 = vlaneseq
    %v3584 = vshrl.u32 %v3583, 7
    %v3585 = vsub.s32 0, %v3584
    %v3586 = vrot.slane %v2696, %v3585
    %v3587 = vlaneseq
    %v3588 = vshrl.u32 %v3587, 7
    %v3589 = vsub.s32 0, %v3588
    %v3590 = vrot.slane %v2698, %v3589
    %v3591 = vlaneseq
    %v3592 = vshrl.u32 %v3591, 7
    %v3593 = vsub.s32 0, %v3592
    %v3594 = vrot.slane %v2754, %v3593
    %v3595 = vlaneseq
    %v3596 = vshrl.u32 %v3595, 7
    %v3597 = vsub.s32 0, %v3596
    %v3598 = vrot.slane %v2762, %v3597
    %v3599 = vlaneseq
    %v3600 = vshrl.u32 %v3599, 7
    %v3601 = vsub.s32 0, %v3600
    %v3602 = vrot.slane %v2761, %v3601
    %v3603 = vlaneseq
    %v3604 = vshrl.u32 %v3603, 7
    %v3605 = vsub.s32 0, %v3604
    %v3606 = vrot.slane %v2763, %v3605
    %v3607 = vlaneseq
    %v3608 = vshrl.u32 %v3607, 7
    %v3609 = vsub.s32 0, %v3608
    %v3610 = vrot.slane %v2771, %v3609
    %v3611 = vlaneseq
    %v3612 = vshrl.u32 %v3611, 7
    %v3613 = vsub.s32 0, %v3612
    %v3614 = vrot.slane %v2779, %v3613
    %v3615 = vlaneseq
    %v3616 = vshrl.u32 %v3615, 7
    %v3617 = vsub.s32 0, %v3616
    %v3618 = vrot.slane %v2778, %v3617
    %v3619 = vlaneseq
    %v3620 = vshrl.u32 %v3619, 7
    %v3621 = vsub.s32 0, %v3620
    %v3622 = vrot.slane %v2780, %v3621
    %v3623 = vlaneseq
    %v3624 = vshrl.u32 %v3623, 7
    %v3625 = vsub.s32 0, %v3624
    %v3626 = vrot.slane %v2836, %v3625
    %v3627 = vlaneseq
    %v3628 = vshrl.u32 %v3627, 7
    %v3629 = vsub.s32 0, %v3628
    %v3630 = vrot.slane %v2844, %v3629
    %v3631 = vlaneseq
    %v3632 = vshrl.u32 %v3631, 7
    %v3633 = vsub.s32 0, %v3632
    %v3634 = vrot.slane %v2843, %v3633
    %v3635 = vlaneseq
    %v3636 = vshrl.u32 %v3635, 7
    %v3637 = vsub.s32 0, %v3636
    %v3638 = vrot.slane %v2845, %v3637
    %v3639 = vlaneseq
    %v3640 = vshrl.u32 %v3639, 7
    %v3641 = vsub.s32 0, %v3640
    %v3642 = vrot.slane %v2853, %v3641
    %v3643 = vlaneseq
    %v3644 = vshrl.u32 %v3643, 7
    %v3645 = vsub.s32 0, %v3644
    %v3646 = vrot.slane %v2861, %v3645
    %v3647 = vlaneseq
    %v3648 = vshrl.u32 %v3647, 7
    %v3649 = vsub.s32 0, %v3648
    %v3650 = vrot.slane %v2860, %v3649
    %v3651 = vlaneseq
    %v3652 = vshrl.u32 %v3651, 7
    %v3653 = vsub.s32 0, %v3652
    %v3654 = vrot.slane %v2862, %v3653
    %v3655 = vlaneseq
    %v3656 = vshrl.u32 %v3655, 7
    %v3657 = vsub.s32 0, %v3656
    %v3658 = vrot.slane %v2918, %v3657
    %v3659 = vlaneseq
    %v3660 = vshrl.u32 %v3659, 7
    %v3661 = vsub.s32 0, %v3660
    %v3662 = vrot.slane %v2926, %v3661
    %v3663 = vlaneseq
    %v3664 = vshrl.u32 %v3663, 7
    %v3665 = vsub.s32 0, %v3664
    %v3666 = vrot.slane %v2925, %v3665
    %v3667 = vlaneseq
    %v3668 = vshrl.u32 %v3667, 7
    %v3669 = vsub.s32 0, %v3668
    %v3670 = vrot.slane %v2927, %v3669
    %v3671 = vlaneseq
    %v3672 = vshrl.u32 %v3671, 7
    %v3673 = vsub.s32 0, %v3672
    %v3674 = vrot.slane %v2935, %v3673
    %v3675 = vlaneseq
    %v3676 = vshrl.u32 %v3675, 7
    %v3677 = vsub.s32 0, %v3676
    %v3678 = vrot.slane %v2943, %v3677
    %v3679 = vlaneseq
    %v3680 = vshrl.u32 %v3679, 7
    %v3681 = vsub.s32 0, %v3680
    %v3682 = vrot.slane %v2942, %v3681
    %v3683 = vlaneseq
    %v3684 = vshrl.u32 %v3683, 7
    %v3685 = vsub.s32 0, %v3684
    %v3686 = vrot.slane %v2944, %v3685
    %v3687 = vlaneseq
    %v3688 = vshrl.u32 %v3687, 7
    %v3689 = vsub.s32 0, %v3688
    %v3690 = vrot.slane %v3000, %v3689
    %v3691 = vlaneseq
    %v3692 = vshrl.u32 %v3691, 7
    %v3693 = vsub.s32 0, %v3692
    %v3694 = vrot.slane %v3008, %v3693
    %v3695 = vlaneseq
    %v3696 = vshrl.u32 %v3695, 7
    %v3697 = vsub.s32 0, %v3696
    %v3698 = vrot.slane %v3007, %v3697
    %v3699 = vlaneseq
    %v3700 = vshrl.u32 %v3699, 7
    %v3701 = vsub.s32 0, %v3700
    %v3702 = vrot.slane %v3009, %v3701
    %v3703 = vlaneseq
    %v3704 = vshrl.u32 %v3703, 7
    %v3705 = vsub.s32 0, %v3704
    %v3706 = vrot.slane %v3017, %v3705
    %v3707 = vlaneseq
    %v3708 = vshrl.u32 %v3707, 7
    %v3709 = vsub.s32 0, %v3708
    %v3710 = vrot.slane %v3025, %v3709
    %v3711 = vlaneseq
    %v3712 = vshrl.u32 %v3711, 7
    %v3713 = vsub.s32 0, %v3712
    %v3714 = vrot.slane %v3024, %v3713
    %v3715 = vlaneseq
    %v3716 = vshrl.u32 %v3715, 7
    %v3717 = vsub.s32 0, %v3716
    %v3718 = vrot.slane %v3026, %v3717
    %v3719 = vlaneseq
    %v3720 = vshrl.u32 %v3719, 7
    %v3721 = vsub.s32 0, %v3720
    %v3722 = vrot.slane %v3082, %v3721
    %v3723 = vlaneseq
    %v3724 = vshrl.u32 %v3723, 7
    %v3725 = vsub.s32 0, %v3724
    %v3726 = vrot.slane %v3090, %v3725
    %v3727 = vlaneseq
    %v3728 = vshrl.u32 %v3727, 7
    %v3729 = vsub.s32 0, %v3728
    %v3730 = vrot.slane %v3089, %v3729
    %v3731 = vlaneseq
    %v3732 = vshrl.u32 %v3731, 7
    %v3733 = vsub.s32 0, %v3732
    %v3734 = vrot.slane %v3091, %v3733
    %v3735 = vlaneseq
    %v3736 = vshrl.u32 %v3735, 7
    %v3737 = vsub.s32 0, %v3736
    %v3738 = vrot.slane %v3099, %v3737
    %v3739 = vlaneseq
    %v3740 = vshrl.u32 %v3739, 7
    %v3741 = vsub.s32 0, %v3740
    %v3742 = vrot.slane %v3107, %v3741
    %v3743 = vlaneseq
    %v3744 = vshrl.u32 %v3743, 7
    %v3745 = vsub.s32 0, %v3744
    %v3746 = vrot.slane %v3106, %v3745
    %v3747 = vlaneseq
    %v3748 = vshrl.u32 %v3747, 7
    %v3749 = vsub.s32 0, %v3748
    %v3750 = vrot.slane %v3108, %v3749
    %vm3751 = vcmask 1041409
    %v3752 = vsel %vm3751, %v3246, %v3242
    %vm3753 = vcmask 1042434
    %v3754 = vsel %vm3753, %v3250, %v3752
    %vm3755 = vcmask 1043459
    %v3756 = vsel %vm3755, %v3254, %v3754
    %vm3757 = vcmask 1044484
    %v3758 = vsel %vm3757, %v3258, %v3756
    %vm3759 = vcmask 1045509
    %v3760 = vsel %vm3759, %v3262, %v3758
    %vm3761 = vcmask 1046534
    %v3762 = vsel %vm3761, %v3266, %v3760
    %vm3763 = vcmask 1047559
    %v3764 = vsel %vm3763, %v3270, %v3762
    %v3765 = vsel %vm3751, %v3278, %v3274
    %v3766 = vsel %vm3753, %v3282, %v3765
    %v3767 = vsel %vm3755, %v3286, %v3766
    %v3768 = vsel %vm3757, %v3290, %v3767
    %v3769 = vsel %vm3759, %v3294, %v3768
    %v3770 = vsel %vm3761, %v3298, %v3769
    %v3771 = vsel %vm3763, %v3302, %v3770
    %v3772 = vsel %vm3751, %v3310, %v3306
    %v3773 = vsel %vm3753, %v3314, %v3772
    %v3774 = vsel %vm3755, %v3318, %v3773
    %v3775 = vsel %vm3757, %v3322, %v3774
    %v3776 = vsel %vm3759, %v3326, %v3775
    %v3777 = vsel %vm3761, %v3330, %v3776
    %v3778 = vsel %vm3763, %v3334, %v3777
    %v3779 = vsel %vm3751, %v3342, %v3338
    %v3780 = vsel %vm3753, %v3346, %v3779
    %v3781 = vsel %vm3755, %v3350, %v3780
    %v3782 = vsel %vm3757, %v3354, %v3781
    %v3783 = vsel %vm3759, %v3358, %v3782
    %v3784 = vsel %vm3761, %v3362, %v3783
    %v3785 = vsel %vm3763, %v3366, %v3784
    %v3786 = vsel %vm3751, %v3374, %v3370
    %v3787 = vsel %vm3753, %v3378, %v3786
    %v3788 = vsel %vm3755, %v3382, %v3787
    %v3789 = vsel %vm3757, %v3386, %v3788
    %v3790 = vsel %vm3759, %v3390, %v3789
    %v3791 = vsel %vm3761, %v3394, %v3790
    %v3792 = vsel %vm3763, %v3398, %v3791
    %v3793 = vsel %vm3751, %v3406, %v3402
    %v3794 = vsel %vm3753, %v3410, %v3793
    %v3795 = vsel %vm3755, %v3414, %v3794
    %v3796 = vsel %vm3757, %v3418, %v3795
    %v3797 = vsel %vm3759, %v3422, %v3796
    %v3798 = vsel %vm3761, %v3426, %v3797
    %v3799 = vsel %vm3763, %v3430, %v3798
    %v3800 = vsel %vm3751, %v3438, %v3434
    %v3801 = vsel %vm3753, %v3442, %v3800
    %v3802 = vsel %vm3755, %v3446, %v3801
    %v3803 = vsel %vm3757, %v3450, %v3802
    %v3804 = vsel %vm3759, %v3454, %v3803
    %v3805 = vsel %vm3761, %v3458, %v3804
    %v3806 = vsel %vm3763, %v3462, %v3805
    %v3807 = vsel %vm3751, %v3470, %v3466
    %v3808 = vsel %vm3753, %v3474, %v3807
    %v3809 = vsel %vm3755, %v3478, %v3808
    %v3810 = vsel %vm3757, %v3482, %v3809
    %v3811 = vsel %vm3759, %v3486, %v3810
    %v3812 = vsel %vm3761, %v3490, %v3811
    %v3813 = vsel %vm3763, %v3494, %v3812
    %v3814 = vsel %vm3751, %v3502, %v3498
    %v3815 = vsel %vm3753, %v3506, %v3814
    %v3816 = vsel %vm3755, %v3510, %v3815
    %v3817 = vsel %vm3757, %v3514, %v3816
    %v3818 = vsel %vm3759, %v3518, %v3817
    %v3819 = vsel %vm3761, %v3522, %v3818
    %v3820 = vsel %vm3763, %v3526, %v3819
    %v3821 = vsel %vm3751, %v3534, %v3530
    %v3822 = vsel %vm3753, %v3538, %v3821
    %v3823 = vsel %vm3755, %v3542, %v3822
    %v3824 = vsel %vm3757, %v3546, %v3823
    %v3825 = vsel %vm3759, %v3550, %v3824
    %v3826 = vsel %vm3761, %v3554, %v3825
    %v3827 = vsel %vm3763, %v3558, %v3826
    %v3828 = vsel %vm3751, %v3566, %v3562
    %v3829 = vsel %vm3753, %v3570, %v3828
    %v3830 = vsel %vm3755, %v3574, %v3829
    %v3831 = vsel %vm3757, %v3578, %v3830
    %v3832 = vsel %vm3759, %v3582, %v3831
    %v3833 = vsel %vm3761, %v3586, %v3832
    %v3834 = vsel %vm3763, %v3590, %v3833
    %v3835 = vsel %vm3751, %v3598, %v3594
    %v3836 = vsel %vm3753, %v3602, %v3835
    %v3837 = vsel %vm3755, %v3606, %v3836
    %v3838 = vsel %vm3757, %v3610, %v3837
    %v3839 = vsel %vm3759, %v3614, %v3838
    %v3840 = vsel %vm3761, %v3618, %v3839
    %v3841 = vsel %vm3763, %v3622, %v3840
    %v3842 = vsel %vm3751, %v3630, %v3626
    %v3843 = vsel %vm3753, %v3634, %v3842
    %v3844 = vsel %vm3755, %v3638, %v3843
    %v3845 = vsel %vm3757, %v3642, %v3844
    %v3846 = vsel %vm3759, %v3646, %v3845
    %v3847 = vsel %vm3761, %v3650, %v3846
    %v3848 = vsel %vm3763, %v3654, %v3847
    %v3849 = vsel %vm3751, %v3662, %v3658
    %v3850 = vsel %vm3753, %v3666, %v3849
    %v3851 = vsel %vm3755, %v3670, %v3850
    %v3852 = vsel %vm3757, %v3674, %v3851
    %v3853 = vsel %vm3759, %v3678, %v3852
    %v3854 = vsel %vm3761, %v3682, %v3853
    %v3855 = vsel %vm3763, %v3686, %v3854
    %v3856 = vsel %vm3751, %v3694, %v3690
    %v3857 = vsel %vm3753, %v3698, %v3856
    %v3858 = vsel %vm3755, %v3702, %v3857
    %v3859 = vsel %vm3757, %v3706, %v3858
    %v3860 = vsel %vm3759, %v3710, %v3859
    %v3861 = vsel %vm3761, %v3714, %v3860
    %v3862 = vsel %vm3763, %v3718, %v3861
    %v3863 = vsel %vm3751, %v3726, %v3722
    %v3864 = vsel %vm3753, %v3730, %v3863
    %v3865 = vsel %vm3755, %v3734, %v3864
    %v3866 = vsel %vm3757, %v3738, %v3865
    %v3867 = vsel %vm3759, %v3742, %v3866
    %v3868 = vsel %vm3761, %v3746, %v3867
    %v3869 = vsel %vm3763, %v3750, %v3868
    %v3886 = vlaneseq
    %v3887 = vshrl.u32 %v3886, 7
    %v3888 = vsub.s32 1, %v3887
    %v3889 = vrot.slane %v1770, %v3888
    %v3890 = vlaneseq
    %v3891 = vshrl.u32 %v3890, 7
    %v3892 = vsub.s32 1, %v3891
    %v3893 = vrot.slane %v1778, %v3892
    %v3894 = vlaneseq
    %v3895 = vshrl.u32 %v3894, 7
    %v3896 = vsub.s32 1, %v3895
    %v3897 = vrot.slane %v1777, %v3896
    %v3898 = vlaneseq
    %v3899 = vshrl.u32 %v3898, 7
    %v3900 = vsub.s32 1, %v3899
    %v3901 = vrot.slane %v1779, %v3900
    %v3902 = vlaneseq
    %v3903 = vshrl.u32 %v3902, 7
    %v3904 = vsub.s32 1, %v3903
    %v3905 = vrot.slane %v1787, %v3904
    %v3906 = vlaneseq
    %v3907 = vshrl.u32 %v3906, 7
    %v3908 = vsub.s32 1, %v3907
    %v3909 = vrot.slane %v1795, %v3908
    %v3910 = vlaneseq
    %v3911 = vshrl.u32 %v3910, 7
    %v3912 = vsub.s32 1, %v3911
    %v3913 = vrot.slane %v1794, %v3912
    %v3914 = vlaneseq
    %v3915 = vshrl.u32 %v3914, 7
    %v3916 = vsub.s32 1, %v3915
    %v3917 = vrot.slane %v1796, %v3916
    %v3918 = vlaneseq
    %v3919 = vshrl.u32 %v3918, 7
    %v3920 = vsub.s32 1, %v3919
    %v3921 = vrot.slane %v1852, %v3920
    %v3922 = vlaneseq
    %v3923 = vshrl.u32 %v3922, 7
    %v3924 = vsub.s32 1, %v3923
    %v3925 = vrot.slane %v1860, %v3924
    %v3926 = vlaneseq
    %v3927 = vshrl.u32 %v3926, 7
    %v3928 = vsub.s32 1, %v3927
    %v3929 = vrot.slane %v1859, %v3928
    %v3930 = vlaneseq
    %v3931 = vshrl.u32 %v3930, 7
    %v3932 = vsub.s32 1, %v3931
    %v3933 = vrot.slane %v1861, %v3932
    %v3934 = vlaneseq
    %v3935 = vshrl.u32 %v3934, 7
    %v3936 = vsub.s32 1, %v3935
    %v3937 = vrot.slane %v1869, %v3936
    %v3938 = vlaneseq
    %v3939 = vshrl.u32 %v3938, 7
    %v3940 = vsub.s32 1, %v3939
    %v3941 = vrot.slane %v1877, %v3940
    %v3942 = vlaneseq
    %v3943 = vshrl.u32 %v3942, 7
    %v3944 = vsub.s32 1, %v3943
    %v3945 = vrot.slane %v1876, %v3944
    %v3946 = vlaneseq
    %v3947 = vshrl.u32 %v3946, 7
    %v3948 = vsub.s32 1, %v3947
    %v3949 = vrot.slane %v1878, %v3948
    %v3950 = vlaneseq
    %v3951 = vshrl.u32 %v3950, 7
    %v3952 = vsub.s32 1, %v3951
    %v3953 = vrot.slane %v1934, %v3952
    %v3954 = vlaneseq
    %v3955 = vshrl.u32 %v3954, 7
    %v3956 = vsub.s32 1, %v3955
    %v3957 = vrot.slane %v1942, %v3956
    %v3958 = vlaneseq
    %v3959 = vshrl.u32 %v3958, 7
    %v3960 = vsub.s32 1, %v3959
    %v3961 = vrot.slane %v1941, %v3960
    %v3962 = vlaneseq
    %v3963 = vshrl.u32 %v3962, 7
    %v3964 = vsub.s32 1, %v3963
    %v3965 = vrot.slane %v1943, %v3964
    %v3966 = vlaneseq
    %v3967 = vshrl.u32 %v3966, 7
    %v3968 = vsub.s32 1, %v3967
    %v3969 = vrot.slane %v1951, %v3968
    %v3970 = vlaneseq
    %v3971 = vshrl.u32 %v3970, 7
    %v3972 = vsub.s32 1, %v3971
    %v3973 = vrot.slane %v1959, %v3972
    %v3974 = vlaneseq
    %v3975 = vshrl.u32 %v3974, 7
    %v3976 = vsub.s32 1, %v3975
    %v3977 = vrot.slane %v1958, %v3976
    %v3978 = vlaneseq
    %v3979 = vshrl.u32 %v3978, 7
    %v3980 = vsub.s32 1, %v3979
    %v3981 = vrot.slane %v1960, %v3980
    %v3982 = vlaneseq
    %v3983 = vshrl.u32 %v3982, 7
    %v3984 = vsub.s32 1, %v3983
    %v3985 = vrot.slane %v2016, %v3984
    %v3986 = vlaneseq
    %v3987 = vshrl.u32 %v3986, 7
    %v3988 = vsub.s32 1, %v3987
    %v3989 = vrot.slane %v2024, %v3988
    %v3990 = vlaneseq
    %v3991 = vshrl.u32 %v3990, 7
    %v3992 = vsub.s32 1, %v3991
    %v3993 = vrot.slane %v2023, %v3992
    %v3994 = vlaneseq
    %v3995 = vshrl.u32 %v3994, 7
    %v3996 = vsub.s32 1, %v3995
    %v3997 = vrot.slane %v2025, %v3996
    %v3998 = vlaneseq
    %v3999 = vshrl.u32 %v3998, 7
    %v4000 = vsub.s32 1, %v3999
    %v4001 = vrot.slane %v2033, %v4000
    %v4002 = vlaneseq
    %v4003 = vshrl.u32 %v4002, 7
    %v4004 = vsub.s32 1, %v4003
    %v4005 = vrot.slane %v2041, %v4004
    %v4006 = vlaneseq
    %v4007 = vshrl.u32 %v4006, 7
    %v4008 = vsub.s32 1, %v4007
    %v4009 = vrot.slane %v2040, %v4008
    %v4010 = vlaneseq
    %v4011 = vshrl.u32 %v4010, 7
    %v4012 = vsub.s32 1, %v4011
    %v4013 = vrot.slane %v2042, %v4012
    %v4014 = vlaneseq
    %v4015 = vshrl.u32 %v4014, 7
    %v4016 = vsub.s32 1, %v4015
    %v4017 = vrot.slane %v2098, %v4016
    %v4018 = vlaneseq
    %v4019 = vshrl.u32 %v4018, 7
    %v4020 = vsub.s32 1, %v4019
    %v4021 = vrot.slane %v2106, %v4020
    %v4022 = vlaneseq
    %v4023 = vshrl.u32 %v4022, 7
    %v4024 = vsub.s32 1, %v4023
    %v4025 = vrot.slane %v2105, %v4024
    %v4026 = vlaneseq
    %v4027 = vshrl.u32 %v4026, 7
    %v4028 = vsub.s32 1, %v4027
    %v4029 = vrot.slane %v2107, %v4028
    %v4030 = vlaneseq
    %v4031 = vshrl.u32 %v4030, 7
    %v4032 = vsub.s32 1, %v4031
    %v4033 = vrot.slane %v2115, %v4032
    %v4034 = vlaneseq
    %v4035 = vshrl.u32 %v4034, 7
    %v4036 = vsub.s32 1, %v4035
    %v4037 = vrot.slane %v2123, %v4036
    %v4038 = vlaneseq
    %v4039 = vshrl.u32 %v4038, 7
    %v4040 = vsub.s32 1, %v4039
    %v4041 = vrot.slane %v2122, %v4040
    %v4042 = vlaneseq
    %v4043 = vshrl.u32 %v4042, 7
    %v4044 = vsub.s32 1, %v4043
    %v4045 = vrot.slane %v2124, %v4044
    %v4046 = vlaneseq
    %v4047 = vshrl.u32 %v4046, 7
    %v4048 = vsub.s32 1, %v4047
    %v4049 = vrot.slane %v2180, %v4048
    %v4050 = vlaneseq
    %v4051 = vshrl.u32 %v4050, 7
    %v4052 = vsub.s32 1, %v4051
    %v4053 = vrot.slane %v2188, %v4052
    %v4054 = vlaneseq
    %v4055 = vshrl.u32 %v4054, 7
    %v4056 = vsub.s32 1, %v4055
    %v4057 = vrot.slane %v2187, %v4056
    %v4058 = vlaneseq
    %v4059 = vshrl.u32 %v4058, 7
    %v4060 = vsub.s32 1, %v4059
    %v4061 = vrot.slane %v2189, %v4060
    %v4062 = vlaneseq
    %v4063 = vshrl.u32 %v4062, 7
    %v4064 = vsub.s32 1, %v4063
    %v4065 = vrot.slane %v2197, %v4064
    %v4066 = vlaneseq
    %v4067 = vshrl.u32 %v4066, 7
    %v4068 = vsub.s32 1, %v4067
    %v4069 = vrot.slane %v2205, %v4068
    %v4070 = vlaneseq
    %v4071 = vshrl.u32 %v4070, 7
    %v4072 = vsub.s32 1, %v4071
    %v4073 = vrot.slane %v2204, %v4072
    %v4074 = vlaneseq
    %v4075 = vshrl.u32 %v4074, 7
    %v4076 = vsub.s32 1, %v4075
    %v4077 = vrot.slane %v2206, %v4076
    %v4078 = vlaneseq
    %v4079 = vshrl.u32 %v4078, 7
    %v4080 = vsub.s32 1, %v4079
    %v4081 = vrot.slane %v2262, %v4080
    %v4082 = vlaneseq
    %v4083 = vshrl.u32 %v4082, 7
    %v4084 = vsub.s32 1, %v4083
    %v4085 = vrot.slane %v2270, %v4084
    %v4086 = vlaneseq
    %v4087 = vshrl.u32 %v4086, 7
    %v4088 = vsub.s32 1, %v4087
    %v4089 = vrot.slane %v2269, %v4088
    %v4090 = vlaneseq
    %v4091 = vshrl.u32 %v4090, 7
    %v4092 = vsub.s32 1, %v4091
    %v4093 = vrot.slane %v2271, %v4092
    %v4094 = vlaneseq
    %v4095 = vshrl.u32 %v4094, 7
    %v4096 = vsub.s32 1, %v4095
    %v4097 = vrot.slane %v2279, %v4096
    %v4098 = vlaneseq
    %v4099 = vshrl.u32 %v4098, 7
    %v4100 = vsub.s32 1, %v4099
    %v4101 = vrot.slane %v2287, %v4100
    %v4102 = vlaneseq
    %v4103 = vshrl.u32 %v4102, 7
    %v4104 = vsub.s32 1, %v4103
    %v4105 = vrot.slane %v2286, %v4104
    %v4106 = vlaneseq
    %v4107 = vshrl.u32 %v4106, 7
    %v4108 = vsub.s32 1, %v4107
    %v4109 = vrot.slane %v2288, %v4108
    %v4110 = vlaneseq
    %v4111 = vshrl.u32 %v4110, 7
    %v4112 = vsub.s32 1, %v4111
    %v4113 = vrot.slane %v2344, %v4112
    %v4114 = vlaneseq
    %v4115 = vshrl.u32 %v4114, 7
    %v4116 = vsub.s32 1, %v4115
    %v4117 = vrot.slane %v2352, %v4116
    %v4118 = vlaneseq
    %v4119 = vshrl.u32 %v4118, 7
    %v4120 = vsub.s32 1, %v4119
    %v4121 = vrot.slane %v2351, %v4120
    %v4122 = vlaneseq
    %v4123 = vshrl.u32 %v4122, 7
    %v4124 = vsub.s32 1, %v4123
    %v4125 = vrot.slane %v2353, %v4124
    %v4126 = vlaneseq
    %v4127 = vshrl.u32 %v4126, 7
    %v4128 = vsub.s32 1, %v4127
    %v4129 = vrot.slane %v2361, %v4128
    %v4130 = vlaneseq
    %v4131 = vshrl.u32 %v4130, 7
    %v4132 = vsub.s32 1, %v4131
    %v4133 = vrot.slane %v2369, %v4132
    %v4134 = vlaneseq
    %v4135 = vshrl.u32 %v4134, 7
    %v4136 = vsub.s32 1, %v4135
    %v4137 = vrot.slane %v2368, %v4136
    %v4138 = vlaneseq
    %v4139 = vshrl.u32 %v4138, 7
    %v4140 = vsub.s32 1, %v4139
    %v4141 = vrot.slane %v2370, %v4140
    %v4142 = vlaneseq
    %v4143 = vshrl.u32 %v4142, 7
    %v4144 = vsub.s32 1, %v4143
    %v4145 = vrot.slane %v2508, %v4144
    %v4146 = vlaneseq
    %v4147 = vshrl.u32 %v4146, 7
    %v4148 = vsub.s32 1, %v4147
    %v4149 = vrot.slane %v2516, %v4148
    %v4150 = vlaneseq
    %v4151 = vshrl.u32 %v4150, 7
    %v4152 = vsub.s32 1, %v4151
    %v4153 = vrot.slane %v2515, %v4152
    %v4154 = vlaneseq
    %v4155 = vshrl.u32 %v4154, 7
    %v4156 = vsub.s32 1, %v4155
    %v4157 = vrot.slane %v2517, %v4156
    %v4158 = vlaneseq
    %v4159 = vshrl.u32 %v4158, 7
    %v4160 = vsub.s32 1, %v4159
    %v4161 = vrot.slane %v2525, %v4160
    %v4162 = vlaneseq
    %v4163 = vshrl.u32 %v4162, 7
    %v4164 = vsub.s32 1, %v4163
    %v4165 = vrot.slane %v2533, %v4164
    %v4166 = vlaneseq
    %v4167 = vshrl.u32 %v4166, 7
    %v4168 = vsub.s32 1, %v4167
    %v4169 = vrot.slane %v2532, %v4168
    %v4170 = vlaneseq
    %v4171 = vshrl.u32 %v4170, 7
    %v4172 = vsub.s32 1, %v4171
    %v4173 = vrot.slane %v2534, %v4172
    %v4174 = vlaneseq
    %v4175 = vshrl.u32 %v4174, 7
    %v4176 = vsub.s32 1, %v4175
    %v4177 = vrot.slane %v2590, %v4176
    %v4178 = vlaneseq
    %v4179 = vshrl.u32 %v4178, 7
    %v4180 = vsub.s32 1, %v4179
    %v4181 = vrot.slane %v2598, %v4180
    %v4182 = vlaneseq
    %v4183 = vshrl.u32 %v4182, 7
    %v4184 = vsub.s32 1, %v4183
    %v4185 = vrot.slane %v2597, %v4184
    %v4186 = vlaneseq
    %v4187 = vshrl.u32 %v4186, 7
    %v4188 = vsub.s32 1, %v4187
    %v4189 = vrot.slane %v2599, %v4188
    %v4190 = vlaneseq
    %v4191 = vshrl.u32 %v4190, 7
    %v4192 = vsub.s32 1, %v4191
    %v4193 = vrot.slane %v2607, %v4192
    %v4194 = vlaneseq
    %v4195 = vshrl.u32 %v4194, 7
    %v4196 = vsub.s32 1, %v4195
    %v4197 = vrot.slane %v2615, %v4196
    %v4198 = vlaneseq
    %v4199 = vshrl.u32 %v4198, 7
    %v4200 = vsub.s32 1, %v4199
    %v4201 = vrot.slane %v2614, %v4200
    %v4202 = vlaneseq
    %v4203 = vshrl.u32 %v4202, 7
    %v4204 = vsub.s32 1, %v4203
    %v4205 = vrot.slane %v2616, %v4204
    %v4206 = vlaneseq
    %v4207 = vshrl.u32 %v4206, 7
    %v4208 = vsub.s32 1, %v4207
    %v4209 = vrot.slane %v2672, %v4208
    %v4210 = vlaneseq
    %v4211 = vshrl.u32 %v4210, 7
    %v4212 = vsub.s32 1, %v4211
    %v4213 = vrot.slane %v2680, %v4212
    %v4214 = vlaneseq
    %v4215 = vshrl.u32 %v4214, 7
    %v4216 = vsub.s32 1, %v4215
    %v4217 = vrot.slane %v2679, %v4216
    %v4218 = vlaneseq
    %v4219 = vshrl.u32 %v4218, 7
    %v4220 = vsub.s32 1, %v4219
    %v4221 = vrot.slane %v2681, %v4220
    %v4222 = vlaneseq
    %v4223 = vshrl.u32 %v4222, 7
    %v4224 = vsub.s32 1, %v4223
    %v4225 = vrot.slane %v2689, %v4224
    %v4226 = vlaneseq
    %v4227 = vshrl.u32 %v4226, 7
    %v4228 = vsub.s32 1, %v4227
    %v4229 = vrot.slane %v2697, %v4228
    %v4230 = vlaneseq
    %v4231 = vshrl.u32 %v4230, 7
    %v4232 = vsub.s32 1, %v4231
    %v4233 = vrot.slane %v2696, %v4232
    %v4234 = vlaneseq
    %v4235 = vshrl.u32 %v4234, 7
    %v4236 = vsub.s32 1, %v4235
    %v4237 = vrot.slane %v2698, %v4236
    %v4238 = vlaneseq
    %v4239 = vshrl.u32 %v4238, 7
    %v4240 = vsub.s32 1, %v4239
    %v4241 = vrot.slane %v2754, %v4240
    %v4242 = vlaneseq
    %v4243 = vshrl.u32 %v4242, 7
    %v4244 = vsub.s32 1, %v4243
    %v4245 = vrot.slane %v2762, %v4244
    %v4246 = vlaneseq
    %v4247 = vshrl.u32 %v4246, 7
    %v4248 = vsub.s32 1, %v4247
    %v4249 = vrot.slane %v2761, %v4248
    %v4250 = vlaneseq
    %v4251 = vshrl.u32 %v4250, 7
    %v4252 = vsub.s32 1, %v4251
    %v4253 = vrot.slane %v2763, %v4252
    %v4254 = vlaneseq
    %v4255 = vshrl.u32 %v4254, 7
    %v4256 = vsub.s32 1, %v4255
    %v4257 = vrot.slane %v2771, %v4256
    %v4258 = vlaneseq
    %v4259 = vshrl.u32 %v4258, 7
    %v4260 = vsub.s32 1, %v4259
    %v4261 = vrot.slane %v2779, %v4260
    %v4262 = vlaneseq
    %v4263 = vshrl.u32 %v4262, 7
    %v4264 = vsub.s32 1, %v4263
    %v4265 = vrot.slane %v2778, %v4264
    %v4266 = vlaneseq
    %v4267 = vshrl.u32 %v4266, 7
    %v4268 = vsub.s32 1, %v4267
    %v4269 = vrot.slane %v2780, %v4268
    %v4270 = vlaneseq
    %v4271 = vshrl.u32 %v4270, 7
    %v4272 = vsub.s32 1, %v4271
    %v4273 = vrot.slane %v2836, %v4272
    %v4274 = vlaneseq
    %v4275 = vshrl.u32 %v4274, 7
    %v4276 = vsub.s32 1, %v4275
    %v4277 = vrot.slane %v2844, %v4276
    %v4278 = vlaneseq
    %v4279 = vshrl.u32 %v4278, 7
    %v4280 = vsub.s32 1, %v4279
    %v4281 = vrot.slane %v2843, %v4280
    %v4282 = vlaneseq
    %v4283 = vshrl.u32 %v4282, 7
    %v4284 = vsub.s32 1, %v4283
    %v4285 = vrot.slane %v2845, %v4284
    %v4286 = vlaneseq
    %v4287 = vshrl.u32 %v4286, 7
    %v4288 = vsub.s32 1, %v4287
    %v4289 = vrot.slane %v2853, %v4288
    %v4290 = vlaneseq
    %v4291 = vshrl.u32 %v4290, 7
    %v4292 = vsub.s32 1, %v4291
    %v4293 = vrot.slane %v2861, %v4292
    %v4294 = vlaneseq
    %v4295 = vshrl.u32 %v4294, 7
    %v4296 = vsub.s32 1, %v4295
    %v4297 = vrot.slane %v2860, %v4296
    %v4298 = vlaneseq
    %v4299 = vshrl.u32 %v4298, 7
    %v4300 = vsub.s32 1, %v4299
    %v4301 = vrot.slane %v2862, %v4300
    %v4302 = vlaneseq
    %v4303 = vshrl.u32 %v4302, 7
    %v4304 = vsub.s32 1, %v4303
    %v4305 = vrot.slane %v2918, %v4304
    %v4306 = vlaneseq
    %v4307 = vshrl.u32 %v4306, 7
    %v4308 = vsub.s32 1, %v4307
    %v4309 = vrot.slane %v2926, %v4308
    %v4310 = vlaneseq
    %v4311 = vshrl.u32 %v4310, 7
    %v4312 = vsub.s32 1, %v4311
    %v4313 = vrot.slane %v2925, %v4312
    %v4314 = vlaneseq
    %v4315 = vshrl.u32 %v4314, 7
    %v4316 = vsub.s32 1, %v4315
    %v4317 = vrot.slane %v2927, %v4316
    %v4318 = vlaneseq
    %v4319 = vshrl.u32 %v4318, 7
    %v4320 = vsub.s32 1, %v4319
    %v4321 = vrot.slane %v2935, %v4320
    %v4322 = vlaneseq
    %v4323 = vshrl.u32 %v4322, 7
    %v4324 = vsub.s32 1, %v4323
    %v4325 = vrot.slane %v2943, %v4324
    %v4326 = vlaneseq
    %v4327 = vshrl.u32 %v4326, 7
    %v4328 = vsub.s32 1, %v4327
    %v4329 = vrot.slane %v2942, %v4328
    %v4330 = vlaneseq
    %v4331 = vshrl.u32 %v4330, 7
    %v4332 = vsub.s32 1, %v4331
    %v4333 = vrot.slane %v2944, %v4332
    %v4334 = vlaneseq
    %v4335 = vshrl.u32 %v4334, 7
    %v4336 = vsub.s32 1, %v4335
    %v4337 = vrot.slane %v3000, %v4336
    %v4338 = vlaneseq
    %v4339 = vshrl.u32 %v4338, 7
    %v4340 = vsub.s32 1, %v4339
    %v4341 = vrot.slane %v3008, %v4340
    %v4342 = vlaneseq
    %v4343 = vshrl.u32 %v4342, 7
    %v4344 = vsub.s32 1, %v4343
    %v4345 = vrot.slane %v3007, %v4344
    %v4346 = vlaneseq
    %v4347 = vshrl.u32 %v4346, 7
    %v4348 = vsub.s32 1, %v4347
    %v4349 = vrot.slane %v3009, %v4348
    %v4350 = vlaneseq
    %v4351 = vshrl.u32 %v4350, 7
    %v4352 = vsub.s32 1, %v4351
    %v4353 = vrot.slane %v3017, %v4352
    %v4354 = vlaneseq
    %v4355 = vshrl.u32 %v4354, 7
    %v4356 = vsub.s32 1, %v4355
    %v4357 = vrot.slane %v3025, %v4356
    %v4358 = vlaneseq
    %v4359 = vshrl.u32 %v4358, 7
    %v4360 = vsub.s32 1, %v4359
    %v4361 = vrot.slane %v3024, %v4360
    %v4362 = vlaneseq
    %v4363 = vshrl.u32 %v4362, 7
    %v4364 = vsub.s32 1, %v4363
    %v4365 = vrot.slane %v3026, %v4364
    %v4366 = vlaneseq
    %v4367 = vshrl.u32 %v4366, 7
    %v4368 = vsub.s32 1, %v4367
    %v4369 = vrot.slane %v3082, %v4368
    %v4370 = vlaneseq
    %v4371 = vshrl.u32 %v4370, 7
    %v4372 = vsub.s32 1, %v4371
    %v4373 = vrot.slane %v3090, %v4372
    %v4374 = vlaneseq
    %v4375 = vshrl.u32 %v4374, 7
    %v4376 = vsub.s32 1, %v4375
    %v4377 = vrot.slane %v3089, %v4376
    %v4378 = vlaneseq
    %v4379 = vshrl.u32 %v4378, 7
    %v4380 = vsub.s32 1, %v4379
    %v4381 = vrot.slane %v3091, %v4380
    %v4382 = vlaneseq
    %v4383 = vshrl.u32 %v4382, 7
    %v4384 = vsub.s32 1, %v4383
    %v4385 = vrot.slane %v3099, %v4384
    %v4386 = vlaneseq
    %v4387 = vshrl.u32 %v4386, 7
    %v4388 = vsub.s32 1, %v4387
    %v4389 = vrot.slane %v3107, %v4388
    %v4390 = vlaneseq
    %v4391 = vshrl.u32 %v4390, 7
    %v4392 = vsub.s32 1, %v4391
    %v4393 = vrot.slane %v3106, %v4392
    %v4394 = vlaneseq
    %v4395 = vshrl.u32 %v4394, 7
    %v4396 = vsub.s32 1, %v4395
    %v4397 = vrot.slane %v3108, %v4396
    %v4398 = vsel %vm3751, %v3893, %v3889
    %v4399 = vsel %vm3753, %v3897, %v4398
    %v4400 = vsel %vm3755, %v3901, %v4399
    %v4401 = vsel %vm3757, %v3905, %v4400
    %v4402 = vsel %vm3759, %v3909, %v4401
    %v4403 = vsel %vm3761, %v3913, %v4402
    %v4404 = vsel %vm3763, %v3917, %v4403
    %v4405 = vsel %vm3751, %v3925, %v3921
    %v4406 = vsel %vm3753, %v3929, %v4405
    %v4407 = vsel %vm3755, %v3933, %v4406
    %v4408 = vsel %vm3757, %v3937, %v4407
    %v4409 = vsel %vm3759, %v3941, %v4408
    %v4410 = vsel %vm3761, %v3945, %v4409
    %v4411 = vsel %vm3763, %v3949, %v4410
    %v4412 = vsel %vm3751, %v3957, %v3953
    %v4413 = vsel %vm3753, %v3961, %v4412
    %v4414 = vsel %vm3755, %v3965, %v4413
    %v4415 = vsel %vm3757, %v3969, %v4414
    %v4416 = vsel %vm3759, %v3973, %v4415
    %v4417 = vsel %vm3761, %v3977, %v4416
    %v4418 = vsel %vm3763, %v3981, %v4417
    %v4419 = vsel %vm3751, %v3989, %v3985
    %v4420 = vsel %vm3753, %v3993, %v4419
    %v4421 = vsel %vm3755, %v3997, %v4420
    %v4422 = vsel %vm3757, %v4001, %v4421
    %v4423 = vsel %vm3759, %v4005, %v4422
    %v4424 = vsel %vm3761, %v4009, %v4423
    %v4425 = vsel %vm3763, %v4013, %v4424
    %v4426 = vsel %vm3751, %v4021, %v4017
    %v4427 = vsel %vm3753, %v4025, %v4426
    %v4428 = vsel %vm3755, %v4029, %v4427
    %v4429 = vsel %vm3757, %v4033, %v4428
    %v4430 = vsel %vm3759, %v4037, %v4429
    %v4431 = vsel %vm3761, %v4041, %v4430
    %v4432 = vsel %vm3763, %v4045, %v4431
    %v4433 = vsel %vm3751, %v4053, %v4049
    %v4434 = vsel %vm3753, %v4057, %v4433
    %v4435 = vsel %vm3755, %v4061, %v4434
    %v4436 = vsel %vm3757, %v4065, %v4435
    %v4437 = vsel %vm3759, %v4069, %v4436
    %v4438 = vsel %vm3761, %v4073, %v4437
    %v4439 = vsel %vm3763, %v4077, %v4438
    %v4440 = vsel %vm3751, %v4085, %v4081
    %v4441 = vsel %vm3753, %v4089, %v4440
    %v4442 = vsel %vm3755, %v4093, %v4441
    %v4443 = vsel %vm3757, %v4097, %v4442
    %v4444 = vsel %vm3759, %v4101, %v4443
    %v4445 = vsel %vm3761, %v4105, %v4444
    %v4446 = vsel %vm3763, %v4109, %v4445
    %v4447 = vsel %vm3751, %v4117, %v4113
    %v4448 = vsel %vm3753, %v4121, %v4447
    %v4449 = vsel %vm3755, %v4125, %v4448
    %v4450 = vsel %vm3757, %v4129, %v4449
    %v4451 = vsel %vm3759, %v4133, %v4450
    %v4452 = vsel %vm3761, %v4137, %v4451
    %v4453 = vsel %vm3763, %v4141, %v4452
    %v4454 = vsel %vm3751, %v4149, %v4145
    %v4455 = vsel %vm3753, %v4153, %v4454
    %v4456 = vsel %vm3755, %v4157, %v4455
    %v4457 = vsel %vm3757, %v4161, %v4456
    %v4458 = vsel %vm3759, %v4165, %v4457
    %v4459 = vsel %vm3761, %v4169, %v4458
    %v4460 = vsel %vm3763, %v4173, %v4459
    %v4461 = vsel %vm3751, %v4181, %v4177
    %v4462 = vsel %vm3753, %v4185, %v4461
    %v4463 = vsel %vm3755, %v4189, %v4462
    %v4464 = vsel %vm3757, %v4193, %v4463
    %v4465 = vsel %vm3759, %v4197, %v4464
    %v4466 = vsel %vm3761, %v4201, %v4465
    %v4467 = vsel %vm3763, %v4205, %v4466
    %v4468 = vsel %vm3751, %v4213, %v4209
    %v4469 = vsel %vm3753, %v4217, %v4468
    %v4470 = vsel %vm3755, %v4221, %v4469
    %v4471 = vsel %vm3757, %v4225, %v4470
    %v4472 = vsel %vm3759, %v4229, %v4471
    %v4473 = vsel %vm3761, %v4233, %v4472
    %v4474 = vsel %vm3763, %v4237, %v4473
    %v4475 = vsel %vm3751, %v4245, %v4241
    %v4476 = vsel %vm3753, %v4249, %v4475
    %v4477 = vsel %vm3755, %v4253, %v4476
    %v4478 = vsel %vm3757, %v4257, %v4477
    %v4479 = vsel %vm3759, %v4261, %v4478
    %v4480 = vsel %vm3761, %v4265, %v4479
    %v4481 = vsel %vm3763, %v4269, %v4480
    %v4482 = vsel %vm3751, %v4277, %v4273
    %v4483 = vsel %vm3753, %v4281, %v4482
    %v4484 = vsel %vm3755, %v4285, %v4483
    %v4485 = vsel %vm3757, %v4289, %v4484
    %v4486 = vsel %vm3759, %v4293, %v4485
    %v4487 = vsel %vm3761, %v4297, %v4486
    %v4488 = vsel %vm3763, %v4301, %v4487
    %v4489 = vsel %vm3751, %v4309, %v4305
    %v4490 = vsel %vm3753, %v4313, %v4489
    %v4491 = vsel %vm3755, %v4317, %v4490
    %v4492 = vsel %vm3757, %v4321, %v4491
    %v4493 = vsel %vm3759, %v4325, %v4492
    %v4494 = vsel %vm3761, %v4329, %v4493
    %v4495 = vsel %vm3763, %v4333, %v4494
    %v4496 = vsel %vm3751, %v4341, %v4337
    %v4497 = vsel %vm3753, %v4345, %v4496
    %v4498 = vsel %vm3755, %v4349, %v4497
    %v4499 = vsel %vm3757, %v4353, %v4498
    %v4500 = vsel %vm3759, %v4357, %v4499
    %v4501 = vsel %vm3761, %v4361, %v4500
    %v4502 = vsel %vm3763, %v4365, %v4501
    %v4503 = vsel %vm3751, %v4373, %v4369
    %v4504 = vsel %vm3753, %v4377, %v4503
    %v4505 = vsel %vm3755, %v4381, %v4504
    %v4506 = vsel %vm3757, %v4385, %v4505
    %v4507 = vsel %vm3759, %v4389, %v4506
    %v4508 = vsel %vm3761, %v4393, %v4507
    %v4509 = vsel %vm3763, %v4397, %v4508
    %4510 = vrot.lane.b32.xlu0 %v4404, 16
    %v4511 = vpop.permute.xlu0 %4510
    %4512 = vrot.lane.b32.xlu0 %v4411, 16
    %v4513 = vpop.permute.xlu0 %4512
    %4514 = vrot.lane.b32.xlu0 %v4418, 16
    %v4515 = vpop.permute.xlu0 %4514
    %4516 = vrot.lane.b32.xlu0 %v4425, 16
    %v4517 = vpop.permute.xlu0 %4516
    %4518 = vrot.lane.b32.xlu0 %v4432, 16
    %v4519 = vpop.permute.xlu0 %4518
    %4520 = vrot.lane.b32.xlu0 %v4439, 16
    %v4521 = vpop.permute.xlu0 %4520
    %4522 = vrot.lane.b32.xlu0 %v4446, 16
    %v4523 = vpop.permute.xlu0 %4522
    %4524 = vrot.lane.b32.xlu0 %v4453, 16
    %v4525 = vpop.permute.xlu0 %4524
    %4526 = vrot.lane.b32.xlu0 %v4460, 16
    %v4527 = vpop.permute.xlu0 %4526
    %4528 = vrot.lane.b32.xlu0 %v4467, 16
    %v4529 = vpop.permute.xlu0 %4528
    %4530 = vrot.lane.b32.xlu0 %v4474, 16
    %v4531 = vpop.permute.xlu0 %4530
    %4532 = vrot.lane.b32.xlu0 %v4481, 16
    %v4533 = vpop.permute.xlu0 %4532
    %4534 = vrot.lane.b32.xlu0 %v4488, 16
    %v4535 = vpop.permute.xlu0 %4534
    %4536 = vrot.lane.b32.xlu0 %v4495, 16
    %v4537 = vpop.permute.xlu0 %4536
    %4538 = vrot.lane.b32.xlu0 %v4502, 16
    %v4539 = vpop.permute.xlu0 %4538
    %4540 = vrot.lane.b32.xlu0 %v4509, 16
    %v4541 = vpop.permute.xlu0 %4540
    %v4558 = vlaneseq
    %v4559 = vshrl.u32 %v4558, 7
    %v4560 = vsub.s32 0, %v4559
    %v4561 = vrot.slane %v1803, %v4560
    %v4562 = vlaneseq
    %v4563 = vshrl.u32 %v4562, 7
    %v4564 = vsub.s32 0, %v4563
    %v4565 = vrot.slane %v1885, %v4564
    %v4566 = vlaneseq
    %v4567 = vshrl.u32 %v4566, 7
    %v4568 = vsub.s32 0, %v4567
    %v4569 = vrot.slane %v1967, %v4568
    %v4570 = vlaneseq
    %v4571 = vshrl.u32 %v4570, 7
    %v4572 = vsub.s32 0, %v4571
    %v4573 = vrot.slane %v2049, %v4572
    %v4574 = vlaneseq
    %v4575 = vshrl.u32 %v4574, 7
    %v4576 = vsub.s32 0, %v4575
    %v4577 = vrot.slane %v2131, %v4576
    %v4578 = vlaneseq
    %v4579 = vshrl.u32 %v4578, 7
    %v4580 = vsub.s32 0, %v4579
    %v4581 = vrot.slane %v2213, %v4580
    %v4582 = vlaneseq
    %v4583 = vshrl.u32 %v4582, 7
    %v4584 = vsub.s32 0, %v4583
    %v4585 = vrot.slane %v2295, %v4584
    %v4586 = vlaneseq
    %v4587 = vshrl.u32 %v4586, 7
    %v4588 = vsub.s32 0, %v4587
    %v4589 = vrot.slane %v2377, %v4588
    %v4590 = vlaneseq
    %v4591 = vshrl.u32 %v4590, 7
    %v4592 = vsub.s32 0, %v4591
    %v4593 = vrot.slane %v2541, %v4592
    %v4594 = vlaneseq
    %v4595 = vshrl.u32 %v4594, 7
    %v4596 = vsub.s32 0, %v4595
    %v4597 = vrot.slane %v2623, %v4596
    %v4598 = vlaneseq
    %v4599 = vshrl.u32 %v4598, 7
    %v4600 = vsub.s32 0, %v4599
    %v4601 = vrot.slane %v2705, %v4600
    %v4602 = vlaneseq
    %v4603 = vshrl.u32 %v4602, 7
    %v4604 = vsub.s32 0, %v4603
    %v4605 = vrot.slane %v2787, %v4604
    %v4606 = vlaneseq
    %v4607 = vshrl.u32 %v4606, 7
    %v4608 = vsub.s32 0, %v4607
    %v4609 = vrot.slane %v2869, %v4608
    %v4610 = vlaneseq
    %v4611 = vshrl.u32 %v4610, 7
    %v4612 = vsub.s32 0, %v4611
    %v4613 = vrot.slane %v2951, %v4612
    %v4614 = vlaneseq
    %v4615 = vshrl.u32 %v4614, 7
    %v4616 = vsub.s32 0, %v4615
    %v4617 = vrot.slane %v3033, %v4616
    %v4618 = vlaneseq
    %v4619 = vshrl.u32 %v4618, 7
    %v4620 = vsub.s32 0, %v4619
    %v4621 = vrot.slane %v3115, %v4620
    %v4622 = vsel %vm3751, %v3250, %v3246
    %v4623 = vsel %vm3753, %v3254, %v4622
    %v4624 = vsel %vm3755, %v3258, %v4623
    %v4625 = vsel %vm3757, %v3262, %v4624
    %v4626 = vsel %vm3759, %v3266, %v4625
    %v4627 = vsel %vm3761, %v3270, %v4626
    %v4628 = vsel %vm3763, %v4561, %v4627
    %v4629 = vsel %vm3751, %v3282, %v3278
    %v4630 = vsel %vm3753, %v3286, %v4629
    %v4631 = vsel %vm3755, %v3290, %v4630
    %v4632 = vsel %vm3757, %v3294, %v4631
    %v4633 = vsel %vm3759, %v3298, %v4632
    %v4634 = vsel %vm3761, %v3302, %v4633
    %v4635 = vsel %vm3763, %v4565, %v4634
    %v4636 = vsel %vm3751, %v3314, %v3310
    %v4637 = vsel %vm3753, %v3318, %v4636
    %v4638 = vsel %vm3755, %v3322, %v4637
    %v4639 = vsel %vm3757, %v3326, %v4638
    %v4640 = vsel %vm3759, %v3330, %v4639
    %v4641 = vsel %vm3761, %v3334, %v4640
    %v4642 = vsel %vm3763, %v4569, %v4641
    %v4643 = vsel %vm3751, %v3346, %v3342
    %v4644 = vsel %vm3753, %v3350, %v4643
    %v4645 = vsel %vm3755, %v3354, %v4644
    %v4646 = vsel %vm3757, %v3358, %v4645
    %v4647 = vsel %vm3759, %v3362, %v4646
    %v4648 = vsel %vm3761, %v3366, %v4647
    %v4649 = vsel %vm3763, %v4573, %v4648
    %v4650 = vsel %vm3751, %v3378, %v3374
    %v4651 = vsel %vm3753, %v3382, %v4650
    %v4652 = vsel %vm3755, %v3386, %v4651
    %v4653 = vsel %vm3757, %v3390, %v4652
    %v4654 = vsel %vm3759, %v3394, %v4653
    %v4655 = vsel %vm3761, %v3398, %v4654
    %v4656 = vsel %vm3763, %v4577, %v4655
    %v4657 = vsel %vm3751, %v3410, %v3406
    %v4658 = vsel %vm3753, %v3414, %v4657
    %v4659 = vsel %vm3755, %v3418, %v4658
    %v4660 = vsel %vm3757, %v3422, %v4659
    %v4661 = vsel %vm3759, %v3426, %v4660
    %v4662 = vsel %vm3761, %v3430, %v4661
    %v4663 = vsel %vm3763, %v4581, %v4662
    %v4664 = vsel %vm3751, %v3442, %v3438
    %v4665 = vsel %vm3753, %v3446, %v4664
    %v4666 = vsel %vm3755, %v3450, %v4665
    %v4667 = vsel %vm3757, %v3454, %v4666
    %v4668 = vsel %vm3759, %v3458, %v4667
    %v4669 = vsel %vm3761, %v3462, %v4668
    %v4670 = vsel %vm3763, %v4585, %v4669
    %v4671 = vsel %vm3751, %v3474, %v3470
    %v4672 = vsel %vm3753, %v3478, %v4671
    %v4673 = vsel %vm3755, %v3482, %v4672
    %v4674 = vsel %vm3757, %v3486, %v4673
    %v4675 = vsel %vm3759, %v3490, %v4674
    %v4676 = vsel %vm3761, %v3494, %v4675
    %v4677 = vsel %vm3763, %v4589, %v4676
    %v4678 = vsel %vm3751, %v3506, %v3502
    %v4679 = vsel %vm3753, %v3510, %v4678
    %v4680 = vsel %vm3755, %v3514, %v4679
    %v4681 = vsel %vm3757, %v3518, %v4680
    %v4682 = vsel %vm3759, %v3522, %v4681
    %v4683 = vsel %vm3761, %v3526, %v4682
    %v4684 = vsel %vm3763, %v4593, %v4683
    %v4685 = vsel %vm3751, %v3538, %v3534
    %v4686 = vsel %vm3753, %v3542, %v4685
    %v4687 = vsel %vm3755, %v3546, %v4686
    %v4688 = vsel %vm3757, %v3550, %v4687
    %v4689 = vsel %vm3759, %v3554, %v4688
    %v4690 = vsel %vm3761, %v3558, %v4689
    %v4691 = vsel %vm3763, %v4597, %v4690
    %v4692 = vsel %vm3751, %v3570, %v3566
    %v4693 = vsel %vm3753, %v3574, %v4692
    %v4694 = vsel %vm3755, %v3578, %v4693
    %v4695 = vsel %vm3757, %v3582, %v4694
    %v4696 = vsel %vm3759, %v3586, %v4695
    %v4697 = vsel %vm3761, %v3590, %v4696
    %v4698 = vsel %vm3763, %v4601, %v4697
    %v4699 = vsel %vm3751, %v3602, %v3598
    %v4700 = vsel %vm3753, %v3606, %v4699
    %v4701 = vsel %vm3755, %v3610, %v4700
    %v4702 = vsel %vm3757, %v3614, %v4701
    %v4703 = vsel %vm3759, %v3618, %v4702
    %v4704 = vsel %vm3761, %v3622, %v4703
    %v4705 = vsel %vm3763, %v4605, %v4704
    %v4706 = vsel %vm3751, %v3634, %v3630
    %v4707 = vsel %vm3753, %v3638, %v4706
    %v4708 = vsel %vm3755, %v3642, %v4707
    %v4709 = vsel %vm3757, %v3646, %v4708
    %v4710 = vsel %vm3759, %v3650, %v4709
    %v4711 = vsel %vm3761, %v3654, %v4710
    %v4712 = vsel %vm3763, %v4609, %v4711
    %v4713 = vsel %vm3751, %v3666, %v3662
    %v4714 = vsel %vm3753, %v3670, %v4713
    %v4715 = vsel %vm3755, %v3674, %v4714
    %v4716 = vsel %vm3757, %v3678, %v4715
    %v4717 = vsel %vm3759, %v3682, %v4716
    %v4718 = vsel %vm3761, %v3686, %v4717
    %v4719 = vsel %vm3763, %v4613, %v4718
    %v4720 = vsel %vm3751, %v3698, %v3694
    %v4721 = vsel %vm3753, %v3702, %v4720
    %v4722 = vsel %vm3755, %v3706, %v4721
    %v4723 = vsel %vm3757, %v3710, %v4722
    %v4724 = vsel %vm3759, %v3714, %v4723
    %v4725 = vsel %vm3761, %v3718, %v4724
    %v4726 = vsel %vm3763, %v4617, %v4725
    %v4727 = vsel %vm3751, %v3730, %v3726
    %v4728 = vsel %vm3753, %v3734, %v4727
    %v4729 = vsel %vm3755, %v3738, %v4728
    %v4730 = vsel %vm3757, %v3742, %v4729
    %v4731 = vsel %vm3759, %v3746, %v4730
    %v4732 = vsel %vm3761, %v3750, %v4731
    %v4733 = vsel %vm3763, %v4621, %v4732
    %4734 = vrot.lane.b32.xlu0 %v4628, 32
    %v4735 = vpop.permute.xlu0 %4734
    %4736 = vrot.lane.b32.xlu0 %v4635, 32
    %v4737 = vpop.permute.xlu0 %4736
    %4738 = vrot.lane.b32.xlu0 %v4642, 32
    %v4739 = vpop.permute.xlu0 %4738
    %4740 = vrot.lane.b32.xlu0 %v4649, 32
    %v4741 = vpop.permute.xlu0 %4740
    %4742 = vrot.lane.b32.xlu0 %v4656, 32
    %v4743 = vpop.permute.xlu0 %4742
    %4744 = vrot.lane.b32.xlu0 %v4663, 32
    %v4745 = vpop.permute.xlu0 %4744
    %4746 = vrot.lane.b32.xlu0 %v4670, 32
    %v4747 = vpop.permute.xlu0 %4746
    %4748 = vrot.lane.b32.xlu0 %v4677, 32
    %v4749 = vpop.permute.xlu0 %4748
    %4750 = vrot.lane.b32.xlu0 %v4684, 32
    %v4751 = vpop.permute.xlu0 %4750
    %4752 = vrot.lane.b32.xlu0 %v4691, 32
    %v4753 = vpop.permute.xlu0 %4752
    %4754 = vrot.lane.b32.xlu0 %v4698, 32
    %v4755 = vpop.permute.xlu0 %4754
    %4756 = vrot.lane.b32.xlu0 %v4705, 32
    %v4757 = vpop.permute.xlu0 %4756
    %4758 = vrot.lane.b32.xlu0 %v4712, 32
    %v4759 = vpop.permute.xlu0 %4758
    %4760 = vrot.lane.b32.xlu0 %v4719, 32
    %v4761 = vpop.permute.xlu0 %4760
    %4762 = vrot.lane.b32.xlu0 %v4726, 32
    %v4763 = vpop.permute.xlu0 %4762
    %4764 = vrot.lane.b32.xlu0 %v4733, 32
    %v4765 = vpop.permute.xlu0 %4764
    %v4782 = vlaneseq
    %v4783 = vshrl.u32 %v4782, 7
    %v4784 = vsub.s32 1, %v4783
    %v4785 = vrot.slane %v1803, %v4784
    %v4786 = vlaneseq
    %v4787 = vshrl.u32 %v4786, 7
    %v4788 = vsub.s32 1, %v4787
    %v4789 = vrot.slane %v1885, %v4788
    %v4790 = vlaneseq
    %v4791 = vshrl.u32 %v4790, 7
    %v4792 = vsub.s32 1, %v4791
    %v4793 = vrot.slane %v1967, %v4792
    %v4794 = vlaneseq
    %v4795 = vshrl.u32 %v4794, 7
    %v4796 = vsub.s32 1, %v4795
    %v4797 = vrot.slane %v2049, %v4796
    %v4798 = vlaneseq
    %v4799 = vshrl.u32 %v4798, 7
    %v4800 = vsub.s32 1, %v4799
    %v4801 = vrot.slane %v2131, %v4800
    %v4802 = vlaneseq
    %v4803 = vshrl.u32 %v4802, 7
    %v4804 = vsub.s32 1, %v4803
    %v4805 = vrot.slane %v2213, %v4804
    %v4806 = vlaneseq
    %v4807 = vshrl.u32 %v4806, 7
    %v4808 = vsub.s32 1, %v4807
    %v4809 = vrot.slane %v2295, %v4808
    %v4810 = vlaneseq
    %v4811 = vshrl.u32 %v4810, 7
    %v4812 = vsub.s32 1, %v4811
    %v4813 = vrot.slane %v2377, %v4812
    %v4814 = vlaneseq
    %v4815 = vshrl.u32 %v4814, 7
    %v4816 = vsub.s32 1, %v4815
    %v4817 = vrot.slane %v2541, %v4816
    %v4818 = vlaneseq
    %v4819 = vshrl.u32 %v4818, 7
    %v4820 = vsub.s32 1, %v4819
    %v4821 = vrot.slane %v2623, %v4820
    %v4822 = vlaneseq
    %v4823 = vshrl.u32 %v4822, 7
    %v4824 = vsub.s32 1, %v4823
    %v4825 = vrot.slane %v2705, %v4824
    %v4826 = vlaneseq
    %v4827 = vshrl.u32 %v4826, 7
    %v4828 = vsub.s32 1, %v4827
    %v4829 = vrot.slane %v2787, %v4828
    %v4830 = vlaneseq
    %v4831 = vshrl.u32 %v4830, 7
    %v4832 = vsub.s32 1, %v4831
    %v4833 = vrot.slane %v2869, %v4832
    %v4834 = vlaneseq
    %v4835 = vshrl.u32 %v4834, 7
    %v4836 = vsub.s32 1, %v4835
    %v4837 = vrot.slane %v2951, %v4836
    %v4838 = vlaneseq
    %v4839 = vshrl.u32 %v4838, 7
    %v4840 = vsub.s32 1, %v4839
    %v4841 = vrot.slane %v3033, %v4840
    %v4842 = vlaneseq
    %v4843 = vshrl.u32 %v4842, 7
    %v4844 = vsub.s32 1, %v4843
    %v4845 = vrot.slane %v3115, %v4844
    %v4846 = vsel %vm3751, %v3897, %v3893
    %v4847 = vsel %vm3753, %v3901, %v4846
    %v4848 = vsel %vm3755, %v3905, %v4847
    %v4849 = vsel %vm3757, %v3909, %v4848
    %v4850 = vsel %vm3759, %v3913, %v4849
    %v4851 = vsel %vm3761, %v3917, %v4850
    %v4852 = vsel %vm3763, %v4785, %v4851
    %v4853 = vsel %vm3751, %v3929, %v3925
    %v4854 = vsel %vm3753, %v3933, %v4853
    %v4855 = vsel %vm3755, %v3937, %v4854
    %v4856 = vsel %vm3757, %v3941, %v4855
    %v4857 = vsel %vm3759, %v3945, %v4856
    %v4858 = vsel %vm3761, %v3949, %v4857
    %v4859 = vsel %vm3763, %v4789, %v4858
    %v4860 = vsel %vm3751, %v3961, %v3957
    %v4861 = vsel %vm3753, %v3965, %v4860
    %v4862 = vsel %vm3755, %v3969, %v4861
    %v4863 = vsel %vm3757, %v3973, %v4862
    %v4864 = vsel %vm3759, %v3977, %v4863
    %v4865 = vsel %vm3761, %v3981, %v4864
    %v4866 = vsel %vm3763, %v4793, %v4865
    %v4867 = vsel %vm3751, %v3993, %v3989
    %v4868 = vsel %vm3753, %v3997, %v4867
    %v4869 = vsel %vm3755, %v4001, %v4868
    %v4870 = vsel %vm3757, %v4005, %v4869
    %v4871 = vsel %vm3759, %v4009, %v4870
    %v4872 = vsel %vm3761, %v4013, %v4871
    %v4873 = vsel %vm3763, %v4797, %v4872
    %v4874 = vsel %vm3751, %v4025, %v4021
    %v4875 = vsel %vm3753, %v4029, %v4874
    %v4876 = vsel %vm3755, %v4033, %v4875
    %v4877 = vsel %vm3757, %v4037, %v4876
    %v4878 = vsel %vm3759, %v4041, %v4877
    %v4879 = vsel %vm3761, %v4045, %v4878
    %v4880 = vsel %vm3763, %v4801, %v4879
    %v4881 = vsel %vm3751, %v4057, %v4053
    %v4882 = vsel %vm3753, %v4061, %v4881
    %v4883 = vsel %vm3755, %v4065, %v4882
    %v4884 = vsel %vm3757, %v4069, %v4883
    %v4885 = vsel %vm3759, %v4073, %v4884
    %v4886 = vsel %vm3761, %v4077, %v4885
    %v4887 = vsel %vm3763, %v4805, %v4886
    %v4888 = vsel %vm3751, %v4089, %v4085
    %v4889 = vsel %vm3753, %v4093, %v4888
    %v4890 = vsel %vm3755, %v4097, %v4889
    %v4891 = vsel %vm3757, %v4101, %v4890
    %v4892 = vsel %vm3759, %v4105, %v4891
    %v4893 = vsel %vm3761, %v4109, %v4892
    %v4894 = vsel %vm3763, %v4809, %v4893
    %v4895 = vsel %vm3751, %v4121, %v4117
    %v4896 = vsel %vm3753, %v4125, %v4895
    %v4897 = vsel %vm3755, %v4129, %v4896
    %v4898 = vsel %vm3757, %v4133, %v4897
    %v4899 = vsel %vm3759, %v4137, %v4898
    %v4900 = vsel %vm3761, %v4141, %v4899
    %v4901 = vsel %vm3763, %v4813, %v4900
    %v4902 = vsel %vm3751, %v4153, %v4149
    %v4903 = vsel %vm3753, %v4157, %v4902
    %v4904 = vsel %vm3755, %v4161, %v4903
    %v4905 = vsel %vm3757, %v4165, %v4904
    %v4906 = vsel %vm3759, %v4169, %v4905
    %v4907 = vsel %vm3761, %v4173, %v4906
    %v4908 = vsel %vm3763, %v4817, %v4907
    %v4909 = vsel %vm3751, %v4185, %v4181
    %v4910 = vsel %vm3753, %v4189, %v4909
    %v4911 = vsel %vm3755, %v4193, %v4910
    %v4912 = vsel %vm3757, %v4197, %v4911
    %v4913 = vsel %vm3759, %v4201, %v4912
    %v4914 = vsel %vm3761, %v4205, %v4913
    %v4915 = vsel %vm3763, %v4821, %v4914
    %v4916 = vsel %vm3751, %v4217, %v4213
    %v4917 = vsel %vm3753, %v4221, %v4916
    %v4918 = vsel %vm3755, %v4225, %v4917
    %v4919 = vsel %vm3757, %v4229, %v4918
    %v4920 = vsel %vm3759, %v4233, %v4919
    %v4921 = vsel %vm3761, %v4237, %v4920
    %v4922 = vsel %vm3763, %v4825, %v4921
    %v4923 = vsel %vm3751, %v4249, %v4245
    %v4924 = vsel %vm3753, %v4253, %v4923
    %v4925 = vsel %vm3755, %v4257, %v4924
    %v4926 = vsel %vm3757, %v4261, %v4925
    %v4927 = vsel %vm3759, %v4265, %v4926
    %v4928 = vsel %vm3761, %v4269, %v4927
    %v4929 = vsel %vm3763, %v4829, %v4928
    %v4930 = vsel %vm3751, %v4281, %v4277
    %v4931 = vsel %vm3753, %v4285, %v4930
    %v4932 = vsel %vm3755, %v4289, %v4931
    %v4933 = vsel %vm3757, %v4293, %v4932
    %v4934 = vsel %vm3759, %v4297, %v4933
    %v4935 = vsel %vm3761, %v4301, %v4934
    %v4936 = vsel %vm3763, %v4833, %v4935
    %v4937 = vsel %vm3751, %v4313, %v4309
    %v4938 = vsel %vm3753, %v4317, %v4937
    %v4939 = vsel %vm3755, %v4321, %v4938
    %v4940 = vsel %vm3757, %v4325, %v4939
    %v4941 = vsel %vm3759, %v4329, %v4940
    %v4942 = vsel %vm3761, %v4333, %v4941
    %v4943 = vsel %vm3763, %v4837, %v4942
    %v4944 = vsel %vm3751, %v4345, %v4341
    %v4945 = vsel %vm3753, %v4349, %v4944
    %v4946 = vsel %vm3755, %v4353, %v4945
    %v4947 = vsel %vm3757, %v4357, %v4946
    %v4948 = vsel %vm3759, %v4361, %v4947
    %v4949 = vsel %vm3761, %v4365, %v4948
    %v4950 = vsel %vm3763, %v4841, %v4949
    %v4951 = vsel %vm3751, %v4377, %v4373
    %v4952 = vsel %vm3753, %v4381, %v4951
    %v4953 = vsel %vm3755, %v4385, %v4952
    %v4954 = vsel %vm3757, %v4389, %v4953
    %v4955 = vsel %vm3759, %v4393, %v4954
    %v4956 = vsel %vm3761, %v4397, %v4955
    %v4957 = vsel %vm3763, %v4845, %v4956
    %4958 = vrot.lane.b32.xlu0 %v4852, 48
    %v4959 = vpop.permute.xlu0 %4958
    %4960 = vrot.lane.b32.xlu0 %v4859, 48
    %v4961 = vpop.permute.xlu0 %4960
    %4962 = vrot.lane.b32.xlu0 %v4866, 48
    %v4963 = vpop.permute.xlu0 %4962
    %4964 = vrot.lane.b32.xlu0 %v4873, 48
    %v4965 = vpop.permute.xlu0 %4964
    %4966 = vrot.lane.b32.xlu0 %v4880, 48
    %v4967 = vpop.permute.xlu0 %4966
    %4968 = vrot.lane.b32.xlu0 %v4887, 48
    %v4969 = vpop.permute.xlu0 %4968
    %4970 = vrot.lane.b32.xlu0 %v4894, 48
    %v4971 = vpop.permute.xlu0 %4970
    %4972 = vrot.lane.b32.xlu0 %v4901, 48
    %v4973 = vpop.permute.xlu0 %4972
    %4974 = vrot.lane.b32.xlu0 %v4908, 48
    %v4975 = vpop.permute.xlu0 %4974
    %4976 = vrot.lane.b32.xlu0 %v4915, 48
    %v4977 = vpop.permute.xlu0 %4976
    %4978 = vrot.lane.b32.xlu0 %v4922, 48
    %v4979 = vpop.permute.xlu0 %4978
    %4980 = vrot.lane.b32.xlu0 %v4929, 48
    %v4981 = vpop.permute.xlu0 %4980
    %4982 = vrot.lane.b32.xlu0 %v4936, 48
    %v4983 = vpop.permute.xlu0 %4982
    %4984 = vrot.lane.b32.xlu0 %v4943, 48
    %v4985 = vpop.permute.xlu0 %4984
    %4986 = vrot.lane.b32.xlu0 %v4950, 48
    %v4987 = vpop.permute.xlu0 %4986
    %4988 = vrot.lane.b32.xlu0 %v4957, 48
    %v4989 = vpop.permute.xlu0 %4988
    %v5006 = vlaneseq
    %v5007 = vshrl.u32 %v5006, 7
    %v5008 = vsub.s32 0, %v5007
    %v5009 = vrot.slane %v1811, %v5008
    %v5010 = vlaneseq
    %v5011 = vshrl.u32 %v5010, 7
    %v5012 = vsub.s32 0, %v5011
    %v5013 = vrot.slane %v1819, %v5012
    %v5014 = vlaneseq
    %v5015 = vshrl.u32 %v5014, 7
    %v5016 = vsub.s32 0, %v5015
    %v5017 = vrot.slane %v1818, %v5016
    %v5018 = vlaneseq
    %v5019 = vshrl.u32 %v5018, 7
    %v5020 = vsub.s32 0, %v5019
    %v5021 = vrot.slane %v1820, %v5020
    %v5022 = vlaneseq
    %v5023 = vshrl.u32 %v5022, 7
    %v5024 = vsub.s32 0, %v5023
    %v5025 = vrot.slane %v1828, %v5024
    %v5026 = vlaneseq
    %v5027 = vshrl.u32 %v5026, 7
    %v5028 = vsub.s32 0, %v5027
    %v5029 = vrot.slane %v1836, %v5028
    %v5030 = vlaneseq
    %v5031 = vshrl.u32 %v5030, 7
    %v5032 = vsub.s32 0, %v5031
    %v5033 = vrot.slane %v1835, %v5032
    %v5034 = vlaneseq
    %v5035 = vshrl.u32 %v5034, 7
    %v5036 = vsub.s32 0, %v5035
    %v5037 = vrot.slane %v1837, %v5036
    %v5038 = vlaneseq
    %v5039 = vshrl.u32 %v5038, 7
    %v5040 = vsub.s32 0, %v5039
    %v5041 = vrot.slane %v1893, %v5040
    %v5042 = vlaneseq
    %v5043 = vshrl.u32 %v5042, 7
    %v5044 = vsub.s32 0, %v5043
    %v5045 = vrot.slane %v1901, %v5044
    %v5046 = vlaneseq
    %v5047 = vshrl.u32 %v5046, 7
    %v5048 = vsub.s32 0, %v5047
    %v5049 = vrot.slane %v1900, %v5048
    %v5050 = vlaneseq
    %v5051 = vshrl.u32 %v5050, 7
    %v5052 = vsub.s32 0, %v5051
    %v5053 = vrot.slane %v1902, %v5052
    %v5054 = vlaneseq
    %v5055 = vshrl.u32 %v5054, 7
    %v5056 = vsub.s32 0, %v5055
    %v5057 = vrot.slane %v1910, %v5056
    %v5058 = vlaneseq
    %v5059 = vshrl.u32 %v5058, 7
    %v5060 = vsub.s32 0, %v5059
    %v5061 = vrot.slane %v1918, %v5060
    %v5062 = vlaneseq
    %v5063 = vshrl.u32 %v5062, 7
    %v5064 = vsub.s32 0, %v5063
    %v5065 = vrot.slane %v1917, %v5064
    %v5066 = vlaneseq
    %v5067 = vshrl.u32 %v5066, 7
    %v5068 = vsub.s32 0, %v5067
    %v5069 = vrot.slane %v1919, %v5068
    %v5070 = vlaneseq
    %v5071 = vshrl.u32 %v5070, 7
    %v5072 = vsub.s32 0, %v5071
    %v5073 = vrot.slane %v1975, %v5072
    %v5074 = vlaneseq
    %v5075 = vshrl.u32 %v5074, 7
    %v5076 = vsub.s32 0, %v5075
    %v5077 = vrot.slane %v1983, %v5076
    %v5078 = vlaneseq
    %v5079 = vshrl.u32 %v5078, 7
    %v5080 = vsub.s32 0, %v5079
    %v5081 = vrot.slane %v1982, %v5080
    %v5082 = vlaneseq
    %v5083 = vshrl.u32 %v5082, 7
    %v5084 = vsub.s32 0, %v5083
    %v5085 = vrot.slane %v1984, %v5084
    %v5086 = vlaneseq
    %v5087 = vshrl.u32 %v5086, 7
    %v5088 = vsub.s32 0, %v5087
    %v5089 = vrot.slane %v1992, %v5088
    %v5090 = vlaneseq
    %v5091 = vshrl.u32 %v5090, 7
    %v5092 = vsub.s32 0, %v5091
    %v5093 = vrot.slane %v2000, %v5092
    %v5094 = vlaneseq
    %v5095 = vshrl.u32 %v5094, 7
    %v5096 = vsub.s32 0, %v5095
    %v5097 = vrot.slane %v1999, %v5096
    %v5098 = vlaneseq
    %v5099 = vshrl.u32 %v5098, 7
    %v5100 = vsub.s32 0, %v5099
    %v5101 = vrot.slane %v2001, %v5100
    %v5102 = vlaneseq
    %v5103 = vshrl.u32 %v5102, 7
    %v5104 = vsub.s32 0, %v5103
    %v5105 = vrot.slane %v2057, %v5104
    %v5106 = vlaneseq
    %v5107 = vshrl.u32 %v5106, 7
    %v5108 = vsub.s32 0, %v5107
    %v5109 = vrot.slane %v2065, %v5108
    %v5110 = vlaneseq
    %v5111 = vshrl.u32 %v5110, 7
    %v5112 = vsub.s32 0, %v5111
    %v5113 = vrot.slane %v2064, %v5112
    %v5114 = vlaneseq
    %v5115 = vshrl.u32 %v5114, 7
    %v5116 = vsub.s32 0, %v5115
    %v5117 = vrot.slane %v2066, %v5116
    %v5118 = vlaneseq
    %v5119 = vshrl.u32 %v5118, 7
    %v5120 = vsub.s32 0, %v5119
    %v5121 = vrot.slane %v2074, %v5120
    %v5122 = vlaneseq
    %v5123 = vshrl.u32 %v5122, 7
    %v5124 = vsub.s32 0, %v5123
    %v5125 = vrot.slane %v2082, %v5124
    %v5126 = vlaneseq
    %v5127 = vshrl.u32 %v5126, 7
    %v5128 = vsub.s32 0, %v5127
    %v5129 = vrot.slane %v2081, %v5128
    %v5130 = vlaneseq
    %v5131 = vshrl.u32 %v5130, 7
    %v5132 = vsub.s32 0, %v5131
    %v5133 = vrot.slane %v2083, %v5132
    %v5134 = vlaneseq
    %v5135 = vshrl.u32 %v5134, 7
    %v5136 = vsub.s32 0, %v5135
    %v5137 = vrot.slane %v2139, %v5136
    %v5138 = vlaneseq
    %v5139 = vshrl.u32 %v5138, 7
    %v5140 = vsub.s32 0, %v5139
    %v5141 = vrot.slane %v2147, %v5140
    %v5142 = vlaneseq
    %v5143 = vshrl.u32 %v5142, 7
    %v5144 = vsub.s32 0, %v5143
    %v5145 = vrot.slane %v2146, %v5144
    %v5146 = vlaneseq
    %v5147 = vshrl.u32 %v5146, 7
    %v5148 = vsub.s32 0, %v5147
    %v5149 = vrot.slane %v2148, %v5148
    %v5150 = vlaneseq
    %v5151 = vshrl.u32 %v5150, 7
    %v5152 = vsub.s32 0, %v5151
    %v5153 = vrot.slane %v2156, %v5152
    %v5154 = vlaneseq
    %v5155 = vshrl.u32 %v5154, 7
    %v5156 = vsub.s32 0, %v5155
    %v5157 = vrot.slane %v2164, %v5156
    %v5158 = vlaneseq
    %v5159 = vshrl.u32 %v5158, 7
    %v5160 = vsub.s32 0, %v5159
    %v5161 = vrot.slane %v2163, %v5160
    %v5162 = vlaneseq
    %v5163 = vshrl.u32 %v5162, 7
    %v5164 = vsub.s32 0, %v5163
    %v5165 = vrot.slane %v2165, %v5164
    %v5166 = vlaneseq
    %v5167 = vshrl.u32 %v5166, 7
    %v5168 = vsub.s32 0, %v5167
    %v5169 = vrot.slane %v2221, %v5168
    %v5170 = vlaneseq
    %v5171 = vshrl.u32 %v5170, 7
    %v5172 = vsub.s32 0, %v5171
    %v5173 = vrot.slane %v2229, %v5172
    %v5174 = vlaneseq
    %v5175 = vshrl.u32 %v5174, 7
    %v5176 = vsub.s32 0, %v5175
    %v5177 = vrot.slane %v2228, %v5176
    %v5178 = vlaneseq
    %v5179 = vshrl.u32 %v5178, 7
    %v5180 = vsub.s32 0, %v5179
    %v5181 = vrot.slane %v2230, %v5180
    %v5182 = vlaneseq
    %v5183 = vshrl.u32 %v5182, 7
    %v5184 = vsub.s32 0, %v5183
    %v5185 = vrot.slane %v2238, %v5184
    %v5186 = vlaneseq
    %v5187 = vshrl.u32 %v5186, 7
    %v5188 = vsub.s32 0, %v5187
    %v5189 = vrot.slane %v2246, %v5188
    %v5190 = vlaneseq
    %v5191 = vshrl.u32 %v5190, 7
    %v5192 = vsub.s32 0, %v5191
    %v5193 = vrot.slane %v2245, %v5192
    %v5194 = vlaneseq
    %v5195 = vshrl.u32 %v5194, 7
    %v5196 = vsub.s32 0, %v5195
    %v5197 = vrot.slane %v2247, %v5196
    %v5198 = vlaneseq
    %v5199 = vshrl.u32 %v5198, 7
    %v5200 = vsub.s32 0, %v5199
    %v5201 = vrot.slane %v2303, %v5200
    %v5202 = vlaneseq
    %v5203 = vshrl.u32 %v5202, 7
    %v5204 = vsub.s32 0, %v5203
    %v5205 = vrot.slane %v2311, %v5204
    %v5206 = vlaneseq
    %v5207 = vshrl.u32 %v5206, 7
    %v5208 = vsub.s32 0, %v5207
    %v5209 = vrot.slane %v2310, %v5208
    %v5210 = vlaneseq
    %v5211 = vshrl.u32 %v5210, 7
    %v5212 = vsub.s32 0, %v5211
    %v5213 = vrot.slane %v2312, %v5212
    %v5214 = vlaneseq
    %v5215 = vshrl.u32 %v5214, 7
    %v5216 = vsub.s32 0, %v5215
    %v5217 = vrot.slane %v2320, %v5216
    %v5218 = vlaneseq
    %v5219 = vshrl.u32 %v5218, 7
    %v5220 = vsub.s32 0, %v5219
    %v5221 = vrot.slane %v2328, %v5220
    %v5222 = vlaneseq
    %v5223 = vshrl.u32 %v5222, 7
    %v5224 = vsub.s32 0, %v5223
    %v5225 = vrot.slane %v2327, %v5224
    %v5226 = vlaneseq
    %v5227 = vshrl.u32 %v5226, 7
    %v5228 = vsub.s32 0, %v5227
    %v5229 = vrot.slane %v2329, %v5228
    %v5230 = vlaneseq
    %v5231 = vshrl.u32 %v5230, 7
    %v5232 = vsub.s32 0, %v5231
    %v5233 = vrot.slane %v2385, %v5232
    %v5234 = vlaneseq
    %v5235 = vshrl.u32 %v5234, 7
    %v5236 = vsub.s32 0, %v5235
    %v5237 = vrot.slane %v2393, %v5236
    %v5238 = vlaneseq
    %v5239 = vshrl.u32 %v5238, 7
    %v5240 = vsub.s32 0, %v5239
    %v5241 = vrot.slane %v2392, %v5240
    %v5242 = vlaneseq
    %v5243 = vshrl.u32 %v5242, 7
    %v5244 = vsub.s32 0, %v5243
    %v5245 = vrot.slane %v2394, %v5244
    %v5246 = vlaneseq
    %v5247 = vshrl.u32 %v5246, 7
    %v5248 = vsub.s32 0, %v5247
    %v5249 = vrot.slane %v2402, %v5248
    %v5250 = vlaneseq
    %v5251 = vshrl.u32 %v5250, 7
    %v5252 = vsub.s32 0, %v5251
    %v5253 = vrot.slane %v2410, %v5252
    %v5254 = vlaneseq
    %v5255 = vshrl.u32 %v5254, 7
    %v5256 = vsub.s32 0, %v5255
    %v5257 = vrot.slane %v2409, %v5256
    %v5258 = vlaneseq
    %v5259 = vshrl.u32 %v5258, 7
    %v5260 = vsub.s32 0, %v5259
    %v5261 = vrot.slane %v2411, %v5260
    %v5262 = vlaneseq
    %v5263 = vshrl.u32 %v5262, 7
    %v5264 = vsub.s32 0, %v5263
    %v5265 = vrot.slane %v2549, %v5264
    %v5266 = vlaneseq
    %v5267 = vshrl.u32 %v5266, 7
    %v5268 = vsub.s32 0, %v5267
    %v5269 = vrot.slane %v2557, %v5268
    %v5270 = vlaneseq
    %v5271 = vshrl.u32 %v5270, 7
    %v5272 = vsub.s32 0, %v5271
    %v5273 = vrot.slane %v2556, %v5272
    %v5274 = vlaneseq
    %v5275 = vshrl.u32 %v5274, 7
    %v5276 = vsub.s32 0, %v5275
    %v5277 = vrot.slane %v2558, %v5276
    %v5278 = vlaneseq
    %v5279 = vshrl.u32 %v5278, 7
    %v5280 = vsub.s32 0, %v5279
    %v5281 = vrot.slane %v2566, %v5280
    %v5282 = vlaneseq
    %v5283 = vshrl.u32 %v5282, 7
    %v5284 = vsub.s32 0, %v5283
    %v5285 = vrot.slane %v2574, %v5284
    %v5286 = vlaneseq
    %v5287 = vshrl.u32 %v5286, 7
    %v5288 = vsub.s32 0, %v5287
    %v5289 = vrot.slane %v2573, %v5288
    %v5290 = vlaneseq
    %v5291 = vshrl.u32 %v5290, 7
    %v5292 = vsub.s32 0, %v5291
    %v5293 = vrot.slane %v2575, %v5292
    %v5294 = vlaneseq
    %v5295 = vshrl.u32 %v5294, 7
    %v5296 = vsub.s32 0, %v5295
    %v5297 = vrot.slane %v2631, %v5296
    %v5298 = vlaneseq
    %v5299 = vshrl.u32 %v5298, 7
    %v5300 = vsub.s32 0, %v5299
    %v5301 = vrot.slane %v2639, %v5300
    %v5302 = vlaneseq
    %v5303 = vshrl.u32 %v5302, 7
    %v5304 = vsub.s32 0, %v5303
    %v5305 = vrot.slane %v2638, %v5304
    %v5306 = vlaneseq
    %v5307 = vshrl.u32 %v5306, 7
    %v5308 = vsub.s32 0, %v5307
    %v5309 = vrot.slane %v2640, %v5308
    %v5310 = vlaneseq
    %v5311 = vshrl.u32 %v5310, 7
    %v5312 = vsub.s32 0, %v5311
    %v5313 = vrot.slane %v2648, %v5312
    %v5314 = vlaneseq
    %v5315 = vshrl.u32 %v5314, 7
    %v5316 = vsub.s32 0, %v5315
    %v5317 = vrot.slane %v2656, %v5316
    %v5318 = vlaneseq
    %v5319 = vshrl.u32 %v5318, 7
    %v5320 = vsub.s32 0, %v5319
    %v5321 = vrot.slane %v2655, %v5320
    %v5322 = vlaneseq
    %v5323 = vshrl.u32 %v5322, 7
    %v5324 = vsub.s32 0, %v5323
    %v5325 = vrot.slane %v2657, %v5324
    %v5326 = vlaneseq
    %v5327 = vshrl.u32 %v5326, 7
    %v5328 = vsub.s32 0, %v5327
    %v5329 = vrot.slane %v2713, %v5328
    %v5330 = vlaneseq
    %v5331 = vshrl.u32 %v5330, 7
    %v5332 = vsub.s32 0, %v5331
    %v5333 = vrot.slane %v2721, %v5332
    %v5334 = vlaneseq
    %v5335 = vshrl.u32 %v5334, 7
    %v5336 = vsub.s32 0, %v5335
    %v5337 = vrot.slane %v2720, %v5336
    %v5338 = vlaneseq
    %v5339 = vshrl.u32 %v5338, 7
    %v5340 = vsub.s32 0, %v5339
    %v5341 = vrot.slane %v2722, %v5340
    %v5342 = vlaneseq
    %v5343 = vshrl.u32 %v5342, 7
    %v5344 = vsub.s32 0, %v5343
    %v5345 = vrot.slane %v2730, %v5344
    %v5346 = vlaneseq
    %v5347 = vshrl.u32 %v5346, 7
    %v5348 = vsub.s32 0, %v5347
    %v5349 = vrot.slane %v2738, %v5348
    %v5350 = vlaneseq
    %v5351 = vshrl.u32 %v5350, 7
    %v5352 = vsub.s32 0, %v5351
    %v5353 = vrot.slane %v2737, %v5352
    %v5354 = vlaneseq
    %v5355 = vshrl.u32 %v5354, 7
    %v5356 = vsub.s32 0, %v5355
    %v5357 = vrot.slane %v2739, %v5356
    %v5358 = vlaneseq
    %v5359 = vshrl.u32 %v5358, 7
    %v5360 = vsub.s32 0, %v5359
    %v5361 = vrot.slane %v2795, %v5360
    %v5362 = vlaneseq
    %v5363 = vshrl.u32 %v5362, 7
    %v5364 = vsub.s32 0, %v5363
    %v5365 = vrot.slane %v2803, %v5364
    %v5366 = vlaneseq
    %v5367 = vshrl.u32 %v5366, 7
    %v5368 = vsub.s32 0, %v5367
    %v5369 = vrot.slane %v2802, %v5368
    %v5370 = vlaneseq
    %v5371 = vshrl.u32 %v5370, 7
    %v5372 = vsub.s32 0, %v5371
    %v5373 = vrot.slane %v2804, %v5372
    %v5374 = vlaneseq
    %v5375 = vshrl.u32 %v5374, 7
    %v5376 = vsub.s32 0, %v5375
    %v5377 = vrot.slane %v2812, %v5376
    %v5378 = vlaneseq
    %v5379 = vshrl.u32 %v5378, 7
    %v5380 = vsub.s32 0, %v5379
    %v5381 = vrot.slane %v2820, %v5380
    %v5382 = vlaneseq
    %v5383 = vshrl.u32 %v5382, 7
    %v5384 = vsub.s32 0, %v5383
    %v5385 = vrot.slane %v2819, %v5384
    %v5386 = vlaneseq
    %v5387 = vshrl.u32 %v5386, 7
    %v5388 = vsub.s32 0, %v5387
    %v5389 = vrot.slane %v2821, %v5388
    %v5390 = vlaneseq
    %v5391 = vshrl.u32 %v5390, 7
    %v5392 = vsub.s32 0, %v5391
    %v5393 = vrot.slane %v2877, %v5392
    %v5394 = vlaneseq
    %v5395 = vshrl.u32 %v5394, 7
    %v5396 = vsub.s32 0, %v5395
    %v5397 = vrot.slane %v2885, %v5396
    %v5398 = vlaneseq
    %v5399 = vshrl.u32 %v5398, 7
    %v5400 = vsub.s32 0, %v5399
    %v5401 = vrot.slane %v2884, %v5400
    %v5402 = vlaneseq
    %v5403 = vshrl.u32 %v5402, 7
    %v5404 = vsub.s32 0, %v5403
    %v5405 = vrot.slane %v2886, %v5404
    %v5406 = vlaneseq
    %v5407 = vshrl.u32 %v5406, 7
    %v5408 = vsub.s32 0, %v5407
    %v5409 = vrot.slane %v2894, %v5408
    %v5410 = vlaneseq
    %v5411 = vshrl.u32 %v5410, 7
    %v5412 = vsub.s32 0, %v5411
    %v5413 = vrot.slane %v2902, %v5412
    %v5414 = vlaneseq
    %v5415 = vshrl.u32 %v5414, 7
    %v5416 = vsub.s32 0, %v5415
    %v5417 = vrot.slane %v2901, %v5416
    %v5418 = vlaneseq
    %v5419 = vshrl.u32 %v5418, 7
    %v5420 = vsub.s32 0, %v5419
    %v5421 = vrot.slane %v2903, %v5420
    %v5422 = vlaneseq
    %v5423 = vshrl.u32 %v5422, 7
    %v5424 = vsub.s32 0, %v5423
    %v5425 = vrot.slane %v2959, %v5424
    %v5426 = vlaneseq
    %v5427 = vshrl.u32 %v5426, 7
    %v5428 = vsub.s32 0, %v5427
    %v5429 = vrot.slane %v2967, %v5428
    %v5430 = vlaneseq
    %v5431 = vshrl.u32 %v5430, 7
    %v5432 = vsub.s32 0, %v5431
    %v5433 = vrot.slane %v2966, %v5432
    %v5434 = vlaneseq
    %v5435 = vshrl.u32 %v5434, 7
    %v5436 = vsub.s32 0, %v5435
    %v5437 = vrot.slane %v2968, %v5436
    %v5438 = vlaneseq
    %v5439 = vshrl.u32 %v5438, 7
    %v5440 = vsub.s32 0, %v5439
    %v5441 = vrot.slane %v2976, %v5440
    %v5442 = vlaneseq
    %v5443 = vshrl.u32 %v5442, 7
    %v5444 = vsub.s32 0, %v5443
    %v5445 = vrot.slane %v2984, %v5444
    %v5446 = vlaneseq
    %v5447 = vshrl.u32 %v5446, 7
    %v5448 = vsub.s32 0, %v5447
    %v5449 = vrot.slane %v2983, %v5448
    %v5450 = vlaneseq
    %v5451 = vshrl.u32 %v5450, 7
    %v5452 = vsub.s32 0, %v5451
    %v5453 = vrot.slane %v2985, %v5452
    %v5454 = vlaneseq
    %v5455 = vshrl.u32 %v5454, 7
    %v5456 = vsub.s32 0, %v5455
    %v5457 = vrot.slane %v3041, %v5456
    %v5458 = vlaneseq
    %v5459 = vshrl.u32 %v5458, 7
    %v5460 = vsub.s32 0, %v5459
    %v5461 = vrot.slane %v3049, %v5460
    %v5462 = vlaneseq
    %v5463 = vshrl.u32 %v5462, 7
    %v5464 = vsub.s32 0, %v5463
    %v5465 = vrot.slane %v3048, %v5464
    %v5466 = vlaneseq
    %v5467 = vshrl.u32 %v5466, 7
    %v5468 = vsub.s32 0, %v5467
    %v5469 = vrot.slane %v3050, %v5468
    %v5470 = vlaneseq
    %v5471 = vshrl.u32 %v5470, 7
    %v5472 = vsub.s32 0, %v5471
    %v5473 = vrot.slane %v3058, %v5472
    %v5474 = vlaneseq
    %v5475 = vshrl.u32 %v5474, 7
    %v5476 = vsub.s32 0, %v5475
    %v5477 = vrot.slane %v3066, %v5476
    %v5478 = vlaneseq
    %v5479 = vshrl.u32 %v5478, 7
    %v5480 = vsub.s32 0, %v5479
    %v5481 = vrot.slane %v3065, %v5480
    %v5482 = vlaneseq
    %v5483 = vshrl.u32 %v5482, 7
    %v5484 = vsub.s32 0, %v5483
    %v5485 = vrot.slane %v3067, %v5484
    %v5486 = vlaneseq
    %v5487 = vshrl.u32 %v5486, 7
    %v5488 = vsub.s32 0, %v5487
    %v5489 = vrot.slane %v3123, %v5488
    %v5490 = vlaneseq
    %v5491 = vshrl.u32 %v5490, 7
    %v5492 = vsub.s32 0, %v5491
    %v5493 = vrot.slane %v3131, %v5492
    %v5494 = vlaneseq
    %v5495 = vshrl.u32 %v5494, 7
    %v5496 = vsub.s32 0, %v5495
    %v5497 = vrot.slane %v3130, %v5496
    %v5498 = vlaneseq
    %v5499 = vshrl.u32 %v5498, 7
    %v5500 = vsub.s32 0, %v5499
    %v5501 = vrot.slane %v3132, %v5500
    %v5502 = vlaneseq
    %v5503 = vshrl.u32 %v5502, 7
    %v5504 = vsub.s32 0, %v5503
    %v5505 = vrot.slane %v3140, %v5504
    %v5506 = vlaneseq
    %v5507 = vshrl.u32 %v5506, 7
    %v5508 = vsub.s32 0, %v5507
    %v5509 = vrot.slane %v3148, %v5508
    %v5510 = vlaneseq
    %v5511 = vshrl.u32 %v5510, 7
    %v5512 = vsub.s32 0, %v5511
    %v5513 = vrot.slane %v3147, %v5512
    %v5514 = vlaneseq
    %v5515 = vshrl.u32 %v5514, 7
    %v5516 = vsub.s32 0, %v5515
    %v5517 = vrot.slane %v3149, %v5516
    %v5518 = vsel %vm3751, %v5013, %v5009
    %v5519 = vsel %vm3753, %v5017, %v5518
    %v5520 = vsel %vm3755, %v5021, %v5519
    %v5521 = vsel %vm3757, %v5025, %v5520
    %v5522 = vsel %vm3759, %v5029, %v5521
    %v5523 = vsel %vm3761, %v5033, %v5522
    %v5524 = vsel %vm3763, %v5037, %v5523
    %v5525 = vsel %vm3751, %v5045, %v5041
    %v5526 = vsel %vm3753, %v5049, %v5525
    %v5527 = vsel %vm3755, %v5053, %v5526
    %v5528 = vsel %vm3757, %v5057, %v5527
    %v5529 = vsel %vm3759, %v5061, %v5528
    %v5530 = vsel %vm3761, %v5065, %v5529
    %v5531 = vsel %vm3763, %v5069, %v5530
    %v5532 = vsel %vm3751, %v5077, %v5073
    %v5533 = vsel %vm3753, %v5081, %v5532
    %v5534 = vsel %vm3755, %v5085, %v5533
    %v5535 = vsel %vm3757, %v5089, %v5534
    %v5536 = vsel %vm3759, %v5093, %v5535
    %v5537 = vsel %vm3761, %v5097, %v5536
    %v5538 = vsel %vm3763, %v5101, %v5537
    %v5539 = vsel %vm3751, %v5109, %v5105
    %v5540 = vsel %vm3753, %v5113, %v5539
    %v5541 = vsel %vm3755, %v5117, %v5540
    %v5542 = vsel %vm3757, %v5121, %v5541
    %v5543 = vsel %vm3759, %v5125, %v5542
    %v5544 = vsel %vm3761, %v5129, %v5543
    %v5545 = vsel %vm3763, %v5133, %v5544
    %v5546 = vsel %vm3751, %v5141, %v5137
    %v5547 = vsel %vm3753, %v5145, %v5546
    %v5548 = vsel %vm3755, %v5149, %v5547
    %v5549 = vsel %vm3757, %v5153, %v5548
    %v5550 = vsel %vm3759, %v5157, %v5549
    %v5551 = vsel %vm3761, %v5161, %v5550
    %v5552 = vsel %vm3763, %v5165, %v5551
    %v5553 = vsel %vm3751, %v5173, %v5169
    %v5554 = vsel %vm3753, %v5177, %v5553
    %v5555 = vsel %vm3755, %v5181, %v5554
    %v5556 = vsel %vm3757, %v5185, %v5555
    %v5557 = vsel %vm3759, %v5189, %v5556
    %v5558 = vsel %vm3761, %v5193, %v5557
    %v5559 = vsel %vm3763, %v5197, %v5558
    %v5560 = vsel %vm3751, %v5205, %v5201
    %v5561 = vsel %vm3753, %v5209, %v5560
    %v5562 = vsel %vm3755, %v5213, %v5561
    %v5563 = vsel %vm3757, %v5217, %v5562
    %v5564 = vsel %vm3759, %v5221, %v5563
    %v5565 = vsel %vm3761, %v5225, %v5564
    %v5566 = vsel %vm3763, %v5229, %v5565
    %v5567 = vsel %vm3751, %v5237, %v5233
    %v5568 = vsel %vm3753, %v5241, %v5567
    %v5569 = vsel %vm3755, %v5245, %v5568
    %v5570 = vsel %vm3757, %v5249, %v5569
    %v5571 = vsel %vm3759, %v5253, %v5570
    %v5572 = vsel %vm3761, %v5257, %v5571
    %v5573 = vsel %vm3763, %v5261, %v5572
    %v5574 = vsel %vm3751, %v5269, %v5265
    %v5575 = vsel %vm3753, %v5273, %v5574
    %v5576 = vsel %vm3755, %v5277, %v5575
    %v5577 = vsel %vm3757, %v5281, %v5576
    %v5578 = vsel %vm3759, %v5285, %v5577
    %v5579 = vsel %vm3761, %v5289, %v5578
    %v5580 = vsel %vm3763, %v5293, %v5579
    %v5581 = vsel %vm3751, %v5301, %v5297
    %v5582 = vsel %vm3753, %v5305, %v5581
    %v5583 = vsel %vm3755, %v5309, %v5582
    %v5584 = vsel %vm3757, %v5313, %v5583
    %v5585 = vsel %vm3759, %v5317, %v5584
    %v5586 = vsel %vm3761, %v5321, %v5585
    %v5587 = vsel %vm3763, %v5325, %v5586
    %v5588 = vsel %vm3751, %v5333, %v5329
    %v5589 = vsel %vm3753, %v5337, %v5588
    %v5590 = vsel %vm3755, %v5341, %v5589
    %v5591 = vsel %vm3757, %v5345, %v5590
    %v5592 = vsel %vm3759, %v5349, %v5591
    %v5593 = vsel %vm3761, %v5353, %v5592
    %v5594 = vsel %vm3763, %v5357, %v5593
    %v5595 = vsel %vm3751, %v5365, %v5361
    %v5596 = vsel %vm3753, %v5369, %v5595
    %v5597 = vsel %vm3755, %v5373, %v5596
    %v5598 = vsel %vm3757, %v5377, %v5597
    %v5599 = vsel %vm3759, %v5381, %v5598
    %v5600 = vsel %vm3761, %v5385, %v5599
    %v5601 = vsel %vm3763, %v5389, %v5600
    %v5602 = vsel %vm3751, %v5397, %v5393
    %v5603 = vsel %vm3753, %v5401, %v5602
    %v5604 = vsel %vm3755, %v5405, %v5603
    %v5605 = vsel %vm3757, %v5409, %v5604
    %v5606 = vsel %vm3759, %v5413, %v5605
    %v5607 = vsel %vm3761, %v5417, %v5606
    %v5608 = vsel %vm3763, %v5421, %v5607
    %v5609 = vsel %vm3751, %v5429, %v5425
    %v5610 = vsel %vm3753, %v5433, %v5609
    %v5611 = vsel %vm3755, %v5437, %v5610
    %v5612 = vsel %vm3757, %v5441, %v5611
    %v5613 = vsel %vm3759, %v5445, %v5612
    %v5614 = vsel %vm3761, %v5449, %v5613
    %v5615 = vsel %vm3763, %v5453, %v5614
    %v5616 = vsel %vm3751, %v5461, %v5457
    %v5617 = vsel %vm3753, %v5465, %v5616
    %v5618 = vsel %vm3755, %v5469, %v5617
    %v5619 = vsel %vm3757, %v5473, %v5618
    %v5620 = vsel %vm3759, %v5477, %v5619
    %v5621 = vsel %vm3761, %v5481, %v5620
    %v5622 = vsel %vm3763, %v5485, %v5621
    %v5623 = vsel %vm3751, %v5493, %v5489
    %v5624 = vsel %vm3753, %v5497, %v5623
    %v5625 = vsel %vm3755, %v5501, %v5624
    %v5626 = vsel %vm3757, %v5505, %v5625
    %v5627 = vsel %vm3759, %v5509, %v5626
    %v5628 = vsel %vm3761, %v5513, %v5627
    %v5629 = vsel %vm3763, %v5517, %v5628
    %5630 = vrot.lane.b32.xlu0 %v5524, 64
    %v5631 = vpop.permute.xlu0 %5630
    %5632 = vrot.lane.b32.xlu0 %v5531, 64
    %v5633 = vpop.permute.xlu0 %5632
    %5634 = vrot.lane.b32.xlu0 %v5538, 64
    %v5635 = vpop.permute.xlu0 %5634
    %5636 = vrot.lane.b32.xlu0 %v5545, 64
    %v5637 = vpop.permute.xlu0 %5636
    %5638 = vrot.lane.b32.xlu0 %v5552, 64
    %v5639 = vpop.permute.xlu0 %5638
    %5640 = vrot.lane.b32.xlu0 %v5559, 64
    %v5641 = vpop.permute.xlu0 %5640
    %5642 = vrot.lane.b32.xlu0 %v5566, 64
    %v5643 = vpop.permute.xlu0 %5642
    %5644 = vrot.lane.b32.xlu0 %v5573, 64
    %v5645 = vpop.permute.xlu0 %5644
    %5646 = vrot.lane.b32.xlu0 %v5580, 64
    %v5647 = vpop.permute.xlu0 %5646
    %5648 = vrot.lane.b32.xlu0 %v5587, 64
    %v5649 = vpop.permute.xlu0 %5648
    %5650 = vrot.lane.b32.xlu0 %v5594, 64
    %v5651 = vpop.permute.xlu0 %5650
    %5652 = vrot.lane.b32.xlu0 %v5601, 64
    %v5653 = vpop.permute.xlu0 %5652
    %5654 = vrot.lane.b32.xlu0 %v5608, 64
    %v5655 = vpop.permute.xlu0 %5654
    %5656 = vrot.lane.b32.xlu0 %v5615, 64
    %v5657 = vpop.permute.xlu0 %5656
    %5658 = vrot.lane.b32.xlu0 %v5622, 64
    %v5659 = vpop.permute.xlu0 %5658
    %5660 = vrot.lane.b32.xlu0 %v5629, 64
    %v5661 = vpop.permute.xlu0 %5660
    %v5678 = vlaneseq
    %v5679 = vshrl.u32 %v5678, 7
    %v5680 = vsub.s32 1, %v5679
    %v5681 = vrot.slane %v1811, %v5680
    %v5682 = vlaneseq
    %v5683 = vshrl.u32 %v5682, 7
    %v5684 = vsub.s32 1, %v5683
    %v5685 = vrot.slane %v1819, %v5684
    %v5686 = vlaneseq
    %v5687 = vshrl.u32 %v5686, 7
    %v5688 = vsub.s32 1, %v5687
    %v5689 = vrot.slane %v1818, %v5688
    %v5690 = vlaneseq
    %v5691 = vshrl.u32 %v5690, 7
    %v5692 = vsub.s32 1, %v5691
    %v5693 = vrot.slane %v1820, %v5692
    %v5694 = vlaneseq
    %v5695 = vshrl.u32 %v5694, 7
    %v5696 = vsub.s32 1, %v5695
    %v5697 = vrot.slane %v1828, %v5696
    %v5698 = vlaneseq
    %v5699 = vshrl.u32 %v5698, 7
    %v5700 = vsub.s32 1, %v5699
    %v5701 = vrot.slane %v1836, %v5700
    %v5702 = vlaneseq
    %v5703 = vshrl.u32 %v5702, 7
    %v5704 = vsub.s32 1, %v5703
    %v5705 = vrot.slane %v1835, %v5704
    %v5706 = vlaneseq
    %v5707 = vshrl.u32 %v5706, 7
    %v5708 = vsub.s32 1, %v5707
    %v5709 = vrot.slane %v1837, %v5708
    %v5710 = vlaneseq
    %v5711 = vshrl.u32 %v5710, 7
    %v5712 = vsub.s32 1, %v5711
    %v5713 = vrot.slane %v1893, %v5712
    %v5714 = vlaneseq
    %v5715 = vshrl.u32 %v5714, 7
    %v5716 = vsub.s32 1, %v5715
    %v5717 = vrot.slane %v1901, %v5716
    %v5718 = vlaneseq
    %v5719 = vshrl.u32 %v5718, 7
    %v5720 = vsub.s32 1, %v5719
    %v5721 = vrot.slane %v1900, %v5720
    %v5722 = vlaneseq
    %v5723 = vshrl.u32 %v5722, 7
    %v5724 = vsub.s32 1, %v5723
    %v5725 = vrot.slane %v1902, %v5724
    %v5726 = vlaneseq
    %v5727 = vshrl.u32 %v5726, 7
    %v5728 = vsub.s32 1, %v5727
    %v5729 = vrot.slane %v1910, %v5728
    %v5730 = vlaneseq
    %v5731 = vshrl.u32 %v5730, 7
    %v5732 = vsub.s32 1, %v5731
    %v5733 = vrot.slane %v1918, %v5732
    %v5734 = vlaneseq
    %v5735 = vshrl.u32 %v5734, 7
    %v5736 = vsub.s32 1, %v5735
    %v5737 = vrot.slane %v1917, %v5736
    %v5738 = vlaneseq
    %v5739 = vshrl.u32 %v5738, 7
    %v5740 = vsub.s32 1, %v5739
    %v5741 = vrot.slane %v1919, %v5740
    %v5742 = vlaneseq
    %v5743 = vshrl.u32 %v5742, 7
    %v5744 = vsub.s32 1, %v5743
    %v5745 = vrot.slane %v1975, %v5744
    %v5746 = vlaneseq
    %v5747 = vshrl.u32 %v5746, 7
    %v5748 = vsub.s32 1, %v5747
    %v5749 = vrot.slane %v1983, %v5748
    %v5750 = vlaneseq
    %v5751 = vshrl.u32 %v5750, 7
    %v5752 = vsub.s32 1, %v5751
    %v5753 = vrot.slane %v1982, %v5752
    %v5754 = vlaneseq
    %v5755 = vshrl.u32 %v5754, 7
    %v5756 = vsub.s32 1, %v5755
    %v5757 = vrot.slane %v1984, %v5756
    %v5758 = vlaneseq
    %v5759 = vshrl.u32 %v5758, 7
    %v5760 = vsub.s32 1, %v5759
    %v5761 = vrot.slane %v1992, %v5760
    %v5762 = vlaneseq
    %v5763 = vshrl.u32 %v5762, 7
    %v5764 = vsub.s32 1, %v5763
    %v5765 = vrot.slane %v2000, %v5764
    %v5766 = vlaneseq
    %v5767 = vshrl.u32 %v5766, 7
    %v5768 = vsub.s32 1, %v5767
    %v5769 = vrot.slane %v1999, %v5768
    %v5770 = vlaneseq
    %v5771 = vshrl.u32 %v5770, 7
    %v5772 = vsub.s32 1, %v5771
    %v5773 = vrot.slane %v2001, %v5772
    %v5774 = vlaneseq
    %v5775 = vshrl.u32 %v5774, 7
    %v5776 = vsub.s32 1, %v5775
    %v5777 = vrot.slane %v2057, %v5776
    %v5778 = vlaneseq
    %v5779 = vshrl.u32 %v5778, 7
    %v5780 = vsub.s32 1, %v5779
    %v5781 = vrot.slane %v2065, %v5780
    %v5782 = vlaneseq
    %v5783 = vshrl.u32 %v5782, 7
    %v5784 = vsub.s32 1, %v5783
    %v5785 = vrot.slane %v2064, %v5784
    %v5786 = vlaneseq
    %v5787 = vshrl.u32 %v5786, 7
    %v5788 = vsub.s32 1, %v5787
    %v5789 = vrot.slane %v2066, %v5788
    %v5790 = vlaneseq
    %v5791 = vshrl.u32 %v5790, 7
    %v5792 = vsub.s32 1, %v5791
    %v5793 = vrot.slane %v2074, %v5792
    %v5794 = vlaneseq
    %v5795 = vshrl.u32 %v5794, 7
    %v5796 = vsub.s32 1, %v5795
    %v5797 = vrot.slane %v2082, %v5796
    %v5798 = vlaneseq
    %v5799 = vshrl.u32 %v5798, 7
    %v5800 = vsub.s32 1, %v5799
    %v5801 = vrot.slane %v2081, %v5800
    %v5802 = vlaneseq
    %v5803 = vshrl.u32 %v5802, 7
    %v5804 = vsub.s32 1, %v5803
    %v5805 = vrot.slane %v2083, %v5804
    %v5806 = vlaneseq
    %v5807 = vshrl.u32 %v5806, 7
    %v5808 = vsub.s32 1, %v5807
    %v5809 = vrot.slane %v2139, %v5808
    %v5810 = vlaneseq
    %v5811 = vshrl.u32 %v5810, 7
    %v5812 = vsub.s32 1, %v5811
    %v5813 = vrot.slane %v2147, %v5812
    %v5814 = vlaneseq
    %v5815 = vshrl.u32 %v5814, 7
    %v5816 = vsub.s32 1, %v5815
    %v5817 = vrot.slane %v2146, %v5816
    %v5818 = vlaneseq
    %v5819 = vshrl.u32 %v5818, 7
    %v5820 = vsub.s32 1, %v5819
    %v5821 = vrot.slane %v2148, %v5820
    %v5822 = vlaneseq
    %v5823 = vshrl.u32 %v5822, 7
    %v5824 = vsub.s32 1, %v5823
    %v5825 = vrot.slane %v2156, %v5824
    %v5826 = vlaneseq
    %v5827 = vshrl.u32 %v5826, 7
    %v5828 = vsub.s32 1, %v5827
    %v5829 = vrot.slane %v2164, %v5828
    %v5830 = vlaneseq
    %v5831 = vshrl.u32 %v5830, 7
    %v5832 = vsub.s32 1, %v5831
    %v5833 = vrot.slane %v2163, %v5832
    %v5834 = vlaneseq
    %v5835 = vshrl.u32 %v5834, 7
    %v5836 = vsub.s32 1, %v5835
    %v5837 = vrot.slane %v2165, %v5836
    %v5838 = vlaneseq
    %v5839 = vshrl.u32 %v5838, 7
    %v5840 = vsub.s32 1, %v5839
    %v5841 = vrot.slane %v2221, %v5840
    %v5842 = vlaneseq
    %v5843 = vshrl.u32 %v5842, 7
    %v5844 = vsub.s32 1, %v5843
    %v5845 = vrot.slane %v2229, %v5844
    %v5846 = vlaneseq
    %v5847 = vshrl.u32 %v5846, 7
    %v5848 = vsub.s32 1, %v5847
    %v5849 = vrot.slane %v2228, %v5848
    %v5850 = vlaneseq
    %v5851 = vshrl.u32 %v5850, 7
    %v5852 = vsub.s32 1, %v5851
    %v5853 = vrot.slane %v2230, %v5852
    %v5854 = vlaneseq
    %v5855 = vshrl.u32 %v5854, 7
    %v5856 = vsub.s32 1, %v5855
    %v5857 = vrot.slane %v2238, %v5856
    %v5858 = vlaneseq
    %v5859 = vshrl.u32 %v5858, 7
    %v5860 = vsub.s32 1, %v5859
    %v5861 = vrot.slane %v2246, %v5860
    %v5862 = vlaneseq
    %v5863 = vshrl.u32 %v5862, 7
    %v5864 = vsub.s32 1, %v5863
    %v5865 = vrot.slane %v2245, %v5864
    %v5866 = vlaneseq
    %v5867 = vshrl.u32 %v5866, 7
    %v5868 = vsub.s32 1, %v5867
    %v5869 = vrot.slane %v2247, %v5868
    %v5870 = vlaneseq
    %v5871 = vshrl.u32 %v5870, 7
    %v5872 = vsub.s32 1, %v5871
    %v5873 = vrot.slane %v2303, %v5872
    %v5874 = vlaneseq
    %v5875 = vshrl.u32 %v5874, 7
    %v5876 = vsub.s32 1, %v5875
    %v5877 = vrot.slane %v2311, %v5876
    %v5878 = vlaneseq
    %v5879 = vshrl.u32 %v5878, 7
    %v5880 = vsub.s32 1, %v5879
    %v5881 = vrot.slane %v2310, %v5880
    %v5882 = vlaneseq
    %v5883 = vshrl.u32 %v5882, 7
    %v5884 = vsub.s32 1, %v5883
    %v5885 = vrot.slane %v2312, %v5884
    %v5886 = vlaneseq
    %v5887 = vshrl.u32 %v5886, 7
    %v5888 = vsub.s32 1, %v5887
    %v5889 = vrot.slane %v2320, %v5888
    %v5890 = vlaneseq
    %v5891 = vshrl.u32 %v5890, 7
    %v5892 = vsub.s32 1, %v5891
    %v5893 = vrot.slane %v2328, %v5892
    %v5894 = vlaneseq
    %v5895 = vshrl.u32 %v5894, 7
    %v5896 = vsub.s32 1, %v5895
    %v5897 = vrot.slane %v2327, %v5896
    %v5898 = vlaneseq
    %v5899 = vshrl.u32 %v5898, 7
    %v5900 = vsub.s32 1, %v5899
    %v5901 = vrot.slane %v2329, %v5900
    %v5902 = vlaneseq
    %v5903 = vshrl.u32 %v5902, 7
    %v5904 = vsub.s32 1, %v5903
    %v5905 = vrot.slane %v2385, %v5904
    %v5906 = vlaneseq
    %v5907 = vshrl.u32 %v5906, 7
    %v5908 = vsub.s32 1, %v5907
    %v5909 = vrot.slane %v2393, %v5908
    %v5910 = vlaneseq
    %v5911 = vshrl.u32 %v5910, 7
    %v5912 = vsub.s32 1, %v5911
    %v5913 = vrot.slane %v2392, %v5912
    %v5914 = vlaneseq
    %v5915 = vshrl.u32 %v5914, 7
    %v5916 = vsub.s32 1, %v5915
    %v5917 = vrot.slane %v2394, %v5916
    %v5918 = vlaneseq
    %v5919 = vshrl.u32 %v5918, 7
    %v5920 = vsub.s32 1, %v5919
    %v5921 = vrot.slane %v2402, %v5920
    %v5922 = vlaneseq
    %v5923 = vshrl.u32 %v5922, 7
    %v5924 = vsub.s32 1, %v5923
    %v5925 = vrot.slane %v2410, %v5924
    %v5926 = vlaneseq
    %v5927 = vshrl.u32 %v5926, 7
    %v5928 = vsub.s32 1, %v5927
    %v5929 = vrot.slane %v2409, %v5928
    %v5930 = vlaneseq
    %v5931 = vshrl.u32 %v5930, 7
    %v5932 = vsub.s32 1, %v5931
    %v5933 = vrot.slane %v2411, %v5932
    %v5934 = vlaneseq
    %v5935 = vshrl.u32 %v5934, 7
    %v5936 = vsub.s32 1, %v5935
    %v5937 = vrot.slane %v2549, %v5936
    %v5938 = vlaneseq
    %v5939 = vshrl.u32 %v5938, 7
    %v5940 = vsub.s32 1, %v5939
    %v5941 = vrot.slane %v2557, %v5940
    %v5942 = vlaneseq
    %v5943 = vshrl.u32 %v5942, 7
    %v5944 = vsub.s32 1, %v5943
    %v5945 = vrot.slane %v2556, %v5944
    %v5946 = vlaneseq
    %v5947 = vshrl.u32 %v5946, 7
    %v5948 = vsub.s32 1, %v5947
    %v5949 = vrot.slane %v2558, %v5948
    %v5950 = vlaneseq
    %v5951 = vshrl.u32 %v5950, 7
    %v5952 = vsub.s32 1, %v5951
    %v5953 = vrot.slane %v2566, %v5952
    %v5954 = vlaneseq
    %v5955 = vshrl.u32 %v5954, 7
    %v5956 = vsub.s32 1, %v5955
    %v5957 = vrot.slane %v2574, %v5956
    %v5958 = vlaneseq
    %v5959 = vshrl.u32 %v5958, 7
    %v5960 = vsub.s32 1, %v5959
    %v5961 = vrot.slane %v2573, %v5960
    %v5962 = vlaneseq
    %v5963 = vshrl.u32 %v5962, 7
    %v5964 = vsub.s32 1, %v5963
    %v5965 = vrot.slane %v2575, %v5964
    %v5966 = vlaneseq
    %v5967 = vshrl.u32 %v5966, 7
    %v5968 = vsub.s32 1, %v5967
    %v5969 = vrot.slane %v2631, %v5968
    %v5970 = vlaneseq
    %v5971 = vshrl.u32 %v5970, 7
    %v5972 = vsub.s32 1, %v5971
    %v5973 = vrot.slane %v2639, %v5972
    %v5974 = vlaneseq
    %v5975 = vshrl.u32 %v5974, 7
    %v5976 = vsub.s32 1, %v5975
    %v5977 = vrot.slane %v2638, %v5976
    %v5978 = vlaneseq
    %v5979 = vshrl.u32 %v5978, 7
    %v5980 = vsub.s32 1, %v5979
    %v5981 = vrot.slane %v2640, %v5980
    %v5982 = vlaneseq
    %v5983 = vshrl.u32 %v5982, 7
    %v5984 = vsub.s32 1, %v5983
    %v5985 = vrot.slane %v2648, %v5984
    %v5986 = vlaneseq
    %v5987 = vshrl.u32 %v5986, 7
    %v5988 = vsub.s32 1, %v5987
    %v5989 = vrot.slane %v2656, %v5988
    %v5990 = vlaneseq
    %v5991 = vshrl.u32 %v5990, 7
    %v5992 = vsub.s32 1, %v5991
    %v5993 = vrot.slane %v2655, %v5992
    %v5994 = vlaneseq
    %v5995 = vshrl.u32 %v5994, 7
    %v5996 = vsub.s32 1, %v5995
    %v5997 = vrot.slane %v2657, %v5996
    %v5998 = vlaneseq
    %v5999 = vshrl.u32 %v5998, 7
    %v6000 = vsub.s32 1, %v5999
    %v6001 = vrot.slane %v2713, %v6000
    %v6002 = vlaneseq
    %v6003 = vshrl.u32 %v6002, 7
    %v6004 = vsub.s32 1, %v6003
    %v6005 = vrot.slane %v2721, %v6004
    %v6006 = vlaneseq
    %v6007 = vshrl.u32 %v6006, 7
    %v6008 = vsub.s32 1, %v6007
    %v6009 = vrot.slane %v2720, %v6008
    %v6010 = vlaneseq
    %v6011 = vshrl.u32 %v6010, 7
    %v6012 = vsub.s32 1, %v6011
    %v6013 = vrot.slane %v2722, %v6012
    %v6014 = vlaneseq
    %v6015 = vshrl.u32 %v6014, 7
    %v6016 = vsub.s32 1, %v6015
    %v6017 = vrot.slane %v2730, %v6016
    %v6018 = vlaneseq
    %v6019 = vshrl.u32 %v6018, 7
    %v6020 = vsub.s32 1, %v6019
    %v6021 = vrot.slane %v2738, %v6020
    %v6022 = vlaneseq
    %v6023 = vshrl.u32 %v6022, 7
    %v6024 = vsub.s32 1, %v6023
    %v6025 = vrot.slane %v2737, %v6024
    %v6026 = vlaneseq
    %v6027 = vshrl.u32 %v6026, 7
    %v6028 = vsub.s32 1, %v6027
    %v6029 = vrot.slane %v2739, %v6028
    %v6030 = vlaneseq
    %v6031 = vshrl.u32 %v6030, 7
    %v6032 = vsub.s32 1, %v6031
    %v6033 = vrot.slane %v2795, %v6032
    %v6034 = vlaneseq
    %v6035 = vshrl.u32 %v6034, 7
    %v6036 = vsub.s32 1, %v6035
    %v6037 = vrot.slane %v2803, %v6036
    %v6038 = vlaneseq
    %v6039 = vshrl.u32 %v6038, 7
    %v6040 = vsub.s32 1, %v6039
    %v6041 = vrot.slane %v2802, %v6040
    %v6042 = vlaneseq
    %v6043 = vshrl.u32 %v6042, 7
    %v6044 = vsub.s32 1, %v6043
    %v6045 = vrot.slane %v2804, %v6044
    %v6046 = vlaneseq
    %v6047 = vshrl.u32 %v6046, 7
    %v6048 = vsub.s32 1, %v6047
    %v6049 = vrot.slane %v2812, %v6048
    %v6050 = vlaneseq
    %v6051 = vshrl.u32 %v6050, 7
    %v6052 = vsub.s32 1, %v6051
    %v6053 = vrot.slane %v2820, %v6052
    %v6054 = vlaneseq
    %v6055 = vshrl.u32 %v6054, 7
    %v6056 = vsub.s32 1, %v6055
    %v6057 = vrot.slane %v2819, %v6056
    %v6058 = vlaneseq
    %v6059 = vshrl.u32 %v6058, 7
    %v6060 = vsub.s32 1, %v6059
    %v6061 = vrot.slane %v2821, %v6060
    %v6062 = vlaneseq
    %v6063 = vshrl.u32 %v6062, 7
    %v6064 = vsub.s32 1, %v6063
    %v6065 = vrot.slane %v2877, %v6064
    %v6066 = vlaneseq
    %v6067 = vshrl.u32 %v6066, 7
    %v6068 = vsub.s32 1, %v6067
    %v6069 = vrot.slane %v2885, %v6068
    %v6070 = vlaneseq
    %v6071 = vshrl.u32 %v6070, 7
    %v6072 = vsub.s32 1, %v6071
    %v6073 = vrot.slane %v2884, %v6072
    %v6074 = vlaneseq
    %v6075 = vshrl.u32 %v6074, 7
    %v6076 = vsub.s32 1, %v6075
    %v6077 = vrot.slane %v2886, %v6076
    %v6078 = vlaneseq
    %v6079 = vshrl.u32 %v6078, 7
    %v6080 = vsub.s32 1, %v6079
    %v6081 = vrot.slane %v2894, %v6080
    %v6082 = vlaneseq
    %v6083 = vshrl.u32 %v6082, 7
    %v6084 = vsub.s32 1, %v6083
    %v6085 = vrot.slane %v2902, %v6084
    %v6086 = vlaneseq
    %v6087 = vshrl.u32 %v6086, 7
    %v6088 = vsub.s32 1, %v6087
    %v6089 = vrot.slane %v2901, %v6088
    %v6090 = vlaneseq
    %v6091 = vshrl.u32 %v6090, 7
    %v6092 = vsub.s32 1, %v6091
    %v6093 = vrot.slane %v2903, %v6092
    %v6094 = vlaneseq
    %v6095 = vshrl.u32 %v6094, 7
    %v6096 = vsub.s32 1, %v6095
    %v6097 = vrot.slane %v2959, %v6096
    %v6098 = vlaneseq
    %v6099 = vshrl.u32 %v6098, 7
    %v6100 = vsub.s32 1, %v6099
    %v6101 = vrot.slane %v2967, %v6100
    %v6102 = vlaneseq
    %v6103 = vshrl.u32 %v6102, 7
    %v6104 = vsub.s32 1, %v6103
    %v6105 = vrot.slane %v2966, %v6104
    %v6106 = vlaneseq
    %v6107 = vshrl.u32 %v6106, 7
    %v6108 = vsub.s32 1, %v6107
    %v6109 = vrot.slane %v2968, %v6108
    %v6110 = vlaneseq
    %v6111 = vshrl.u32 %v6110, 7
    %v6112 = vsub.s32 1, %v6111
    %v6113 = vrot.slane %v2976, %v6112
    %v6114 = vlaneseq
    %v6115 = vshrl.u32 %v6114, 7
    %v6116 = vsub.s32 1, %v6115
    %v6117 = vrot.slane %v2984, %v6116
    %v6118 = vlaneseq
    %v6119 = vshrl.u32 %v6118, 7
    %v6120 = vsub.s32 1, %v6119
    %v6121 = vrot.slane %v2983, %v6120
    %v6122 = vlaneseq
    %v6123 = vshrl.u32 %v6122, 7
    %v6124 = vsub.s32 1, %v6123
    %v6125 = vrot.slane %v2985, %v6124
    %v6126 = vlaneseq
    %v6127 = vshrl.u32 %v6126, 7
    %v6128 = vsub.s32 1, %v6127
    %v6129 = vrot.slane %v3041, %v6128
    %v6130 = vlaneseq
    %v6131 = vshrl.u32 %v6130, 7
    %v6132 = vsub.s32 1, %v6131
    %v6133 = vrot.slane %v3049, %v6132
    %v6134 = vlaneseq
    %v6135 = vshrl.u32 %v6134, 7
    %v6136 = vsub.s32 1, %v6135
    %v6137 = vrot.slane %v3048, %v6136
    %v6138 = vlaneseq
    %v6139 = vshrl.u32 %v6138, 7
    %v6140 = vsub.s32 1, %v6139
    %v6141 = vrot.slane %v3050, %v6140
    %v6142 = vlaneseq
    %v6143 = vshrl.u32 %v6142, 7
    %v6144 = vsub.s32 1, %v6143
    %v6145 = vrot.slane %v3058, %v6144
    %v6146 = vlaneseq
    %v6147 = vshrl.u32 %v6146, 7
    %v6148 = vsub.s32 1, %v6147
    %v6149 = vrot.slane %v3066, %v6148
    %v6150 = vlaneseq
    %v6151 = vshrl.u32 %v6150, 7
    %v6152 = vsub.s32 1, %v6151
    %v6153 = vrot.slane %v3065, %v6152
    %v6154 = vlaneseq
    %v6155 = vshrl.u32 %v6154, 7
    %v6156 = vsub.s32 1, %v6155
    %v6157 = vrot.slane %v3067, %v6156
    %v6158 = vlaneseq
    %v6159 = vshrl.u32 %v6158, 7
    %v6160 = vsub.s32 1, %v6159
    %v6161 = vrot.slane %v3123, %v6160
    %v6162 = vlaneseq
    %v6163 = vshrl.u32 %v6162, 7
    %v6164 = vsub.s32 1, %v6163
    %v6165 = vrot.slane %v3131, %v6164
    %v6166 = vlaneseq
    %v6167 = vshrl.u32 %v6166, 7
    %v6168 = vsub.s32 1, %v6167
    %v6169 = vrot.slane %v3130, %v6168
    %v6170 = vlaneseq
    %v6171 = vshrl.u32 %v6170, 7
    %v6172 = vsub.s32 1, %v6171
    %v6173 = vrot.slane %v3132, %v6172
    %v6174 = vlaneseq
    %v6175 = vshrl.u32 %v6174, 7
    %v6176 = vsub.s32 1, %v6175
    %v6177 = vrot.slane %v3140, %v6176
    %v6178 = vlaneseq
    %v6179 = vshrl.u32 %v6178, 7
    %v6180 = vsub.s32 1, %v6179
    %v6181 = vrot.slane %v3148, %v6180
    %v6182 = vlaneseq
    %v6183 = vshrl.u32 %v6182, 7
    %v6184 = vsub.s32 1, %v6183
    %v6185 = vrot.slane %v3147, %v6184
    %v6186 = vlaneseq
    %v6187 = vshrl.u32 %v6186, 7
    %v6188 = vsub.s32 1, %v6187
    %v6189 = vrot.slane %v3149, %v6188
    %v6190 = vsel %vm3751, %v5685, %v5681
    %v6191 = vsel %vm3753, %v5689, %v6190
    %v6192 = vsel %vm3755, %v5693, %v6191
    %v6193 = vsel %vm3757, %v5697, %v6192
    %v6194 = vsel %vm3759, %v5701, %v6193
    %v6195 = vsel %vm3761, %v5705, %v6194
    %v6196 = vsel %vm3763, %v5709, %v6195
    %v6197 = vsel %vm3751, %v5717, %v5713
    %v6198 = vsel %vm3753, %v5721, %v6197
    %v6199 = vsel %vm3755, %v5725, %v6198
    %v6200 = vsel %vm3757, %v5729, %v6199
    %v6201 = vsel %vm3759, %v5733, %v6200
    %v6202 = vsel %vm3761, %v5737, %v6201
    %v6203 = vsel %vm3763, %v5741, %v6202
    %v6204 = vsel %vm3751, %v5749, %v5745
    %v6205 = vsel %vm3753, %v5753, %v6204
    %v6206 = vsel %vm3755, %v5757, %v6205
    %v6207 = vsel %vm3757, %v5761, %v6206
    %v6208 = vsel %vm3759, %v5765, %v6207
    %v6209 = vsel %vm3761, %v5769, %v6208
    %v6210 = vsel %vm3763, %v5773, %v6209
    %v6211 = vsel %vm3751, %v5781, %v5777
    %v6212 = vsel %vm3753, %v5785, %v6211
    %v6213 = vsel %vm3755, %v5789, %v6212
    %v6214 = vsel %vm3757, %v5793, %v6213
    %v6215 = vsel %vm3759, %v5797, %v6214
    %v6216 = vsel %vm3761, %v5801, %v6215
    %v6217 = vsel %vm3763, %v5805, %v6216
    %v6218 = vsel %vm3751, %v5813, %v5809
    %v6219 = vsel %vm3753, %v5817, %v6218
    %v6220 = vsel %vm3755, %v5821, %v6219
    %v6221 = vsel %vm3757, %v5825, %v6220
    %v6222 = vsel %vm3759, %v5829, %v6221
    %v6223 = vsel %vm3761, %v5833, %v6222
    %v6224 = vsel %vm3763, %v5837, %v6223
    %v6225 = vsel %vm3751, %v5845, %v5841
    %v6226 = vsel %vm3753, %v5849, %v6225
    %v6227 = vsel %vm3755, %v5853, %v6226
    %v6228 = vsel %vm3757, %v5857, %v6227
    %v6229 = vsel %vm3759, %v5861, %v6228
    %v6230 = vsel %vm3761, %v5865, %v6229
    %v6231 = vsel %vm3763, %v5869, %v6230
    %v6232 = vsel %vm3751, %v5877, %v5873
    %v6233 = vsel %vm3753, %v5881, %v6232
    %v6234 = vsel %vm3755, %v5885, %v6233
    %v6235 = vsel %vm3757, %v5889, %v6234
    %v6236 = vsel %vm3759, %v5893, %v6235
    %v6237 = vsel %vm3761, %v5897, %v6236
    %v6238 = vsel %vm3763, %v5901, %v6237
    %v6239 = vsel %vm3751, %v5909, %v5905
    %v6240 = vsel %vm3753, %v5913, %v6239
    %v6241 = vsel %vm3755, %v5917, %v6240
    %v6242 = vsel %vm3757, %v5921, %v6241
    %v6243 = vsel %vm3759, %v5925, %v6242
    %v6244 = vsel %vm3761, %v5929, %v6243
    %v6245 = vsel %vm3763, %v5933, %v6244
    %v6246 = vsel %vm3751, %v5941, %v5937
    %v6247 = vsel %vm3753, %v5945, %v6246
    %v6248 = vsel %vm3755, %v5949, %v6247
    %v6249 = vsel %vm3757, %v5953, %v6248
    %v6250 = vsel %vm3759, %v5957, %v6249
    %v6251 = vsel %vm3761, %v5961, %v6250
    %v6252 = vsel %vm3763, %v5965, %v6251
    %v6253 = vsel %vm3751, %v5973, %v5969
    %v6254 = vsel %vm3753, %v5977, %v6253
    %v6255 = vsel %vm3755, %v5981, %v6254
    %v6256 = vsel %vm3757, %v5985, %v6255
    %v6257 = vsel %vm3759, %v5989, %v6256
    %v6258 = vsel %vm3761, %v5993, %v6257
    %v6259 = vsel %vm3763, %v5997, %v6258
    %v6260 = vsel %vm3751, %v6005, %v6001
    %v6261 = vsel %vm3753, %v6009, %v6260
    %v6262 = vsel %vm3755, %v6013, %v6261
    %v6263 = vsel %vm3757, %v6017, %v6262
    %v6264 = vsel %vm3759, %v6021, %v6263
    %v6265 = vsel %vm3761, %v6025, %v6264
    %v6266 = vsel %vm3763, %v6029, %v6265
    %v6267 = vsel %vm3751, %v6037, %v6033
    %v6268 = vsel %vm3753, %v6041, %v6267
    %v6269 = vsel %vm3755, %v6045, %v6268
    %v6270 = vsel %vm3757, %v6049, %v6269
    %v6271 = vsel %vm3759, %v6053, %v6270
    %v6272 = vsel %vm3761, %v6057, %v6271
    %v6273 = vsel %vm3763, %v6061, %v6272
    %v6274 = vsel %vm3751, %v6069, %v6065
    %v6275 = vsel %vm3753, %v6073, %v6274
    %v6276 = vsel %vm3755, %v6077, %v6275
    %v6277 = vsel %vm3757, %v6081, %v6276
    %v6278 = vsel %vm3759, %v6085, %v6277
    %v6279 = vsel %vm3761, %v6089, %v6278
    %v6280 = vsel %vm3763, %v6093, %v6279
    %v6281 = vsel %vm3751, %v6101, %v6097
    %v6282 = vsel %vm3753, %v6105, %v6281
    %v6283 = vsel %vm3755, %v6109, %v6282
    %v6284 = vsel %vm3757, %v6113, %v6283
    %v6285 = vsel %vm3759, %v6117, %v6284
    %v6286 = vsel %vm3761, %v6121, %v6285
    %v6287 = vsel %vm3763, %v6125, %v6286
    %v6288 = vsel %vm3751, %v6133, %v6129
    %v6289 = vsel %vm3753, %v6137, %v6288
    %v6290 = vsel %vm3755, %v6141, %v6289
    %v6291 = vsel %vm3757, %v6145, %v6290
    %v6292 = vsel %vm3759, %v6149, %v6291
    %v6293 = vsel %vm3761, %v6153, %v6292
    %v6294 = vsel %vm3763, %v6157, %v6293
    %v6295 = vsel %vm3751, %v6165, %v6161
    %v6296 = vsel %vm3753, %v6169, %v6295
    %v6297 = vsel %vm3755, %v6173, %v6296
    %v6298 = vsel %vm3757, %v6177, %v6297
    %v6299 = vsel %vm3759, %v6181, %v6298
    %v6300 = vsel %vm3761, %v6185, %v6299
    %v6301 = vsel %vm3763, %v6189, %v6300
    %6302 = vrot.lane.b32.xlu0 %v6196, 80
    %v6303 = vpop.permute.xlu0 %6302
    %6304 = vrot.lane.b32.xlu0 %v6203, 80
    %v6305 = vpop.permute.xlu0 %6304
    %6306 = vrot.lane.b32.xlu0 %v6210, 80
    %v6307 = vpop.permute.xlu0 %6306
    %6308 = vrot.lane.b32.xlu0 %v6217, 80
    %v6309 = vpop.permute.xlu0 %6308
    %6310 = vrot.lane.b32.xlu0 %v6224, 80
    %v6311 = vpop.permute.xlu0 %6310
    %6312 = vrot.lane.b32.xlu0 %v6231, 80
    %v6313 = vpop.permute.xlu0 %6312
    %6314 = vrot.lane.b32.xlu0 %v6238, 80
    %v6315 = vpop.permute.xlu0 %6314
    %6316 = vrot.lane.b32.xlu0 %v6245, 80
    %v6317 = vpop.permute.xlu0 %6316
    %6318 = vrot.lane.b32.xlu0 %v6252, 80
    %v6319 = vpop.permute.xlu0 %6318
    %6320 = vrot.lane.b32.xlu0 %v6259, 80
    %v6321 = vpop.permute.xlu0 %6320
    %6322 = vrot.lane.b32.xlu0 %v6266, 80
    %v6323 = vpop.permute.xlu0 %6322
    %6324 = vrot.lane.b32.xlu0 %v6273, 80
    %v6325 = vpop.permute.xlu0 %6324
    %6326 = vrot.lane.b32.xlu0 %v6280, 80
    %v6327 = vpop.permute.xlu0 %6326
    %6328 = vrot.lane.b32.xlu0 %v6287, 80
    %v6329 = vpop.permute.xlu0 %6328
    %6330 = vrot.lane.b32.xlu0 %v6294, 80
    %v6331 = vpop.permute.xlu0 %6330
    %6332 = vrot.lane.b32.xlu0 %v6301, 80
    %v6333 = vpop.permute.xlu0 %6332
    %v6350 = vlaneseq
    %v6351 = vshrl.u32 %v6350, 7
    %v6352 = vsub.s32 0, %v6351
    %v6353 = vrot.slane %v1844, %v6352
    %v6354 = vlaneseq
    %v6355 = vshrl.u32 %v6354, 7
    %v6356 = vsub.s32 0, %v6355
    %v6357 = vrot.slane %v1926, %v6356
    %v6358 = vlaneseq
    %v6359 = vshrl.u32 %v6358, 7
    %v6360 = vsub.s32 0, %v6359
    %v6361 = vrot.slane %v2008, %v6360
    %v6362 = vlaneseq
    %v6363 = vshrl.u32 %v6362, 7
    %v6364 = vsub.s32 0, %v6363
    %v6365 = vrot.slane %v2090, %v6364
    %v6366 = vlaneseq
    %v6367 = vshrl.u32 %v6366, 7
    %v6368 = vsub.s32 0, %v6367
    %v6369 = vrot.slane %v2172, %v6368
    %v6370 = vlaneseq
    %v6371 = vshrl.u32 %v6370, 7
    %v6372 = vsub.s32 0, %v6371
    %v6373 = vrot.slane %v2254, %v6372
    %v6374 = vlaneseq
    %v6375 = vshrl.u32 %v6374, 7
    %v6376 = vsub.s32 0, %v6375
    %v6377 = vrot.slane %v2336, %v6376
    %v6378 = vlaneseq
    %v6379 = vshrl.u32 %v6378, 7
    %v6380 = vsub.s32 0, %v6379
    %v6381 = vrot.slane %v2418, %v6380
    %v6382 = vlaneseq
    %v6383 = vshrl.u32 %v6382, 7
    %v6384 = vsub.s32 0, %v6383
    %v6385 = vrot.slane %v2582, %v6384
    %v6386 = vlaneseq
    %v6387 = vshrl.u32 %v6386, 7
    %v6388 = vsub.s32 0, %v6387
    %v6389 = vrot.slane %v2664, %v6388
    %v6390 = vlaneseq
    %v6391 = vshrl.u32 %v6390, 7
    %v6392 = vsub.s32 0, %v6391
    %v6393 = vrot.slane %v2746, %v6392
    %v6394 = vlaneseq
    %v6395 = vshrl.u32 %v6394, 7
    %v6396 = vsub.s32 0, %v6395
    %v6397 = vrot.slane %v2828, %v6396
    %v6398 = vlaneseq
    %v6399 = vshrl.u32 %v6398, 7
    %v6400 = vsub.s32 0, %v6399
    %v6401 = vrot.slane %v2910, %v6400
    %v6402 = vlaneseq
    %v6403 = vshrl.u32 %v6402, 7
    %v6404 = vsub.s32 0, %v6403
    %v6405 = vrot.slane %v2992, %v6404
    %v6406 = vlaneseq
    %v6407 = vshrl.u32 %v6406, 7
    %v6408 = vsub.s32 0, %v6407
    %v6409 = vrot.slane %v3074, %v6408
    %v6410 = vlaneseq
    %v6411 = vshrl.u32 %v6410, 7
    %v6412 = vsub.s32 0, %v6411
    %v6413 = vrot.slane %v3156, %v6412
    %v6414 = vsel %vm3751, %v5017, %v5013
    %v6415 = vsel %vm3753, %v5021, %v6414
    %v6416 = vsel %vm3755, %v5025, %v6415
    %v6417 = vsel %vm3757, %v5029, %v6416
    %v6418 = vsel %vm3759, %v5033, %v6417
    %v6419 = vsel %vm3761, %v5037, %v6418
    %v6420 = vsel %vm3763, %v6353, %v6419
    %v6421 = vsel %vm3751, %v5049, %v5045
    %v6422 = vsel %vm3753, %v5053, %v6421
    %v6423 = vsel %vm3755, %v5057, %v6422
    %v6424 = vsel %vm3757, %v5061, %v6423
    %v6425 = vsel %vm3759, %v5065, %v6424
    %v6426 = vsel %vm3761, %v5069, %v6425
    %v6427 = vsel %vm3763, %v6357, %v6426
    %v6428 = vsel %vm3751, %v5081, %v5077
    %v6429 = vsel %vm3753, %v5085, %v6428
    %v6430 = vsel %vm3755, %v5089, %v6429
    %v6431 = vsel %vm3757, %v5093, %v6430
    %v6432 = vsel %vm3759, %v5097, %v6431
    %v6433 = vsel %vm3761, %v5101, %v6432
    %v6434 = vsel %vm3763, %v6361, %v6433
    %v6435 = vsel %vm3751, %v5113, %v5109
    %v6436 = vsel %vm3753, %v5117, %v6435
    %v6437 = vsel %vm3755, %v5121, %v6436
    %v6438 = vsel %vm3757, %v5125, %v6437
    %v6439 = vsel %vm3759, %v5129, %v6438
    %v6440 = vsel %vm3761, %v5133, %v6439
    %v6441 = vsel %vm3763, %v6365, %v6440
    %v6442 = vsel %vm3751, %v5145, %v5141
    %v6443 = vsel %vm3753, %v5149, %v6442
    %v6444 = vsel %vm3755, %v5153, %v6443
    %v6445 = vsel %vm3757, %v5157, %v6444
    %v6446 = vsel %vm3759, %v5161, %v6445
    %v6447 = vsel %vm3761, %v5165, %v6446
    %v6448 = vsel %vm3763, %v6369, %v6447
    %v6449 = vsel %vm3751, %v5177, %v5173
    %v6450 = vsel %vm3753, %v5181, %v6449
    %v6451 = vsel %vm3755, %v5185, %v6450
    %v6452 = vsel %vm3757, %v5189, %v6451
    %v6453 = vsel %vm3759, %v5193, %v6452
    %v6454 = vsel %vm3761, %v5197, %v6453
    %v6455 = vsel %vm3763, %v6373, %v6454
    %v6456 = vsel %vm3751, %v5209, %v5205
    %v6457 = vsel %vm3753, %v5213, %v6456
    %v6458 = vsel %vm3755, %v5217, %v6457
    %v6459 = vsel %vm3757, %v5221, %v6458
    %v6460 = vsel %vm3759, %v5225, %v6459
    %v6461 = vsel %vm3761, %v5229, %v6460
    %v6462 = vsel %vm3763, %v6377, %v6461
    %v6463 = vsel %vm3751, %v5241, %v5237
    %v6464 = vsel %vm3753, %v5245, %v6463
    %v6465 = vsel %vm3755, %v5249, %v6464
    %v6466 = vsel %vm3757, %v5253, %v6465
    %v6467 = vsel %vm3759, %v5257, %v6466
    %v6468 = vsel %vm3761, %v5261, %v6467
    %v6469 = vsel %vm3763, %v6381, %v6468
    %v6470 = vsel %vm3751, %v5273, %v5269
    %v6471 = vsel %vm3753, %v5277, %v6470
    %v6472 = vsel %vm3755, %v5281, %v6471
    %v6473 = vsel %vm3757, %v5285, %v6472
    %v6474 = vsel %vm3759, %v5289, %v6473
    %v6475 = vsel %vm3761, %v5293, %v6474
    %v6476 = vsel %vm3763, %v6385, %v6475
    %v6477 = vsel %vm3751, %v5305, %v5301
    %v6478 = vsel %vm3753, %v5309, %v6477
    %v6479 = vsel %vm3755, %v5313, %v6478
    %v6480 = vsel %vm3757, %v5317, %v6479
    %v6481 = vsel %vm3759, %v5321, %v6480
    %v6482 = vsel %vm3761, %v5325, %v6481
    %v6483 = vsel %vm3763, %v6389, %v6482
    %v6484 = vsel %vm3751, %v5337, %v5333
    %v6485 = vsel %vm3753, %v5341, %v6484
    %v6486 = vsel %vm3755, %v5345, %v6485
    %v6487 = vsel %vm3757, %v5349, %v6486
    %v6488 = vsel %vm3759, %v5353, %v6487
    %v6489 = vsel %vm3761, %v5357, %v6488
    %v6490 = vsel %vm3763, %v6393, %v6489
    %v6491 = vsel %vm3751, %v5369, %v5365
    %v6492 = vsel %vm3753, %v5373, %v6491
    %v6493 = vsel %vm3755, %v5377, %v6492
    %v6494 = vsel %vm3757, %v5381, %v6493
    %v6495 = vsel %vm3759, %v5385, %v6494
    %v6496 = vsel %vm3761, %v5389, %v6495
    %v6497 = vsel %vm3763, %v6397, %v6496
    %v6498 = vsel %vm3751, %v5401, %v5397
    %v6499 = vsel %vm3753, %v5405, %v6498
    %v6500 = vsel %vm3755, %v5409, %v6499
    %v6501 = vsel %vm3757, %v5413, %v6500
    %v6502 = vsel %vm3759, %v5417, %v6501
    %v6503 = vsel %vm3761, %v5421, %v6502
    %v6504 = vsel %vm3763, %v6401, %v6503
    %v6505 = vsel %vm3751, %v5433, %v5429
    %v6506 = vsel %vm3753, %v5437, %v6505
    %v6507 = vsel %vm3755, %v5441, %v6506
    %v6508 = vsel %vm3757, %v5445, %v6507
    %v6509 = vsel %vm3759, %v5449, %v6508
    %v6510 = vsel %vm3761, %v5453, %v6509
    %v6511 = vsel %vm3763, %v6405, %v6510
    %v6512 = vsel %vm3751, %v5465, %v5461
    %v6513 = vsel %vm3753, %v5469, %v6512
    %v6514 = vsel %vm3755, %v5473, %v6513
    %v6515 = vsel %vm3757, %v5477, %v6514
    %v6516 = vsel %vm3759, %v5481, %v6515
    %v6517 = vsel %vm3761, %v5485, %v6516
    %v6518 = vsel %vm3763, %v6409, %v6517
    %v6519 = vsel %vm3751, %v5497, %v5493
    %v6520 = vsel %vm3753, %v5501, %v6519
    %v6521 = vsel %vm3755, %v5505, %v6520
    %v6522 = vsel %vm3757, %v5509, %v6521
    %v6523 = vsel %vm3759, %v5513, %v6522
    %v6524 = vsel %vm3761, %v5517, %v6523
    %v6525 = vsel %vm3763, %v6413, %v6524
    %6526 = vrot.lane.b32.xlu0 %v6420, 96
    %v6527 = vpop.permute.xlu0 %6526
    %6528 = vrot.lane.b32.xlu0 %v6427, 96
    %v6529 = vpop.permute.xlu0 %6528
    %6530 = vrot.lane.b32.xlu0 %v6434, 96
    %v6531 = vpop.permute.xlu0 %6530
    %6532 = vrot.lane.b32.xlu0 %v6441, 96
    %v6533 = vpop.permute.xlu0 %6532
    %6534 = vrot.lane.b32.xlu0 %v6448, 96
    %v6535 = vpop.permute.xlu0 %6534
    %6536 = vrot.lane.b32.xlu0 %v6455, 96
    %v6537 = vpop.permute.xlu0 %6536
    %6538 = vrot.lane.b32.xlu0 %v6462, 96
    %v6539 = vpop.permute.xlu0 %6538
    %6540 = vrot.lane.b32.xlu0 %v6469, 96
    %v6541 = vpop.permute.xlu0 %6540
    %6542 = vrot.lane.b32.xlu0 %v6476, 96
    %v6543 = vpop.permute.xlu0 %6542
    %6544 = vrot.lane.b32.xlu0 %v6483, 96
    %v6545 = vpop.permute.xlu0 %6544
    %6546 = vrot.lane.b32.xlu0 %v6490, 96
    %v6547 = vpop.permute.xlu0 %6546
    %6548 = vrot.lane.b32.xlu0 %v6497, 96
    %v6549 = vpop.permute.xlu0 %6548
    %6550 = vrot.lane.b32.xlu0 %v6504, 96
    %v6551 = vpop.permute.xlu0 %6550
    %6552 = vrot.lane.b32.xlu0 %v6511, 96
    %v6553 = vpop.permute.xlu0 %6552
    %6554 = vrot.lane.b32.xlu0 %v6518, 96
    %v6555 = vpop.permute.xlu0 %6554
    %6556 = vrot.lane.b32.xlu0 %v6525, 96
    %v6557 = vpop.permute.xlu0 %6556
    %v6574 = vlaneseq
    %v6575 = vshrl.u32 %v6574, 7
    %v6576 = vsub.s32 1, %v6575
    %v6577 = vrot.slane %v1844, %v6576
    %v6578 = vlaneseq
    %v6579 = vshrl.u32 %v6578, 7
    %v6580 = vsub.s32 1, %v6579
    %v6581 = vrot.slane %v1926, %v6580
    %v6582 = vlaneseq
    %v6583 = vshrl.u32 %v6582, 7
    %v6584 = vsub.s32 1, %v6583
    %v6585 = vrot.slane %v2008, %v6584
    %v6586 = vlaneseq
    %v6587 = vshrl.u32 %v6586, 7
    %v6588 = vsub.s32 1, %v6587
    %v6589 = vrot.slane %v2090, %v6588
    %v6590 = vlaneseq
    %v6591 = vshrl.u32 %v6590, 7
    %v6592 = vsub.s32 1, %v6591
    %v6593 = vrot.slane %v2172, %v6592
    %v6594 = vlaneseq
    %v6595 = vshrl.u32 %v6594, 7
    %v6596 = vsub.s32 1, %v6595
    %v6597 = vrot.slane %v2254, %v6596
    %v6598 = vlaneseq
    %v6599 = vshrl.u32 %v6598, 7
    %v6600 = vsub.s32 1, %v6599
    %v6601 = vrot.slane %v2336, %v6600
    %v6602 = vlaneseq
    %v6603 = vshrl.u32 %v6602, 7
    %v6604 = vsub.s32 1, %v6603
    %v6605 = vrot.slane %v2418, %v6604
    %v6606 = vlaneseq
    %v6607 = vshrl.u32 %v6606, 7
    %v6608 = vsub.s32 1, %v6607
    %v6609 = vrot.slane %v2582, %v6608
    %v6610 = vlaneseq
    %v6611 = vshrl.u32 %v6610, 7
    %v6612 = vsub.s32 1, %v6611
    %v6613 = vrot.slane %v2664, %v6612
    %v6614 = vlaneseq
    %v6615 = vshrl.u32 %v6614, 7
    %v6616 = vsub.s32 1, %v6615
    %v6617 = vrot.slane %v2746, %v6616
    %v6618 = vlaneseq
    %v6619 = vshrl.u32 %v6618, 7
    %v6620 = vsub.s32 1, %v6619
    %v6621 = vrot.slane %v2828, %v6620
    %v6622 = vlaneseq
    %v6623 = vshrl.u32 %v6622, 7
    %v6624 = vsub.s32 1, %v6623
    %v6625 = vrot.slane %v2910, %v6624
    %v6626 = vlaneseq
    %v6627 = vshrl.u32 %v6626, 7
    %v6628 = vsub.s32 1, %v6627
    %v6629 = vrot.slane %v2992, %v6628
    %v6630 = vlaneseq
    %v6631 = vshrl.u32 %v6630, 7
    %v6632 = vsub.s32 1, %v6631
    %v6633 = vrot.slane %v3074, %v6632
    %v6634 = vlaneseq
    %v6635 = vshrl.u32 %v6634, 7
    %v6636 = vsub.s32 1, %v6635
    %v6637 = vrot.slane %v3156, %v6636
    %v6638 = vsel %vm3751, %v5689, %v5685
    %v6639 = vsel %vm3753, %v5693, %v6638
    %v6640 = vsel %vm3755, %v5697, %v6639
    %v6641 = vsel %vm3757, %v5701, %v6640
    %v6642 = vsel %vm3759, %v5705, %v6641
    %v6643 = vsel %vm3761, %v5709, %v6642
    %v6644 = vsel %vm3763, %v6577, %v6643
    %v6645 = vsel %vm3751, %v5721, %v5717
    %v6646 = vsel %vm3753, %v5725, %v6645
    %v6647 = vsel %vm3755, %v5729, %v6646
    %v6648 = vsel %vm3757, %v5733, %v6647
    %v6649 = vsel %vm3759, %v5737, %v6648
    %v6650 = vsel %vm3761, %v5741, %v6649
    %v6651 = vsel %vm3763, %v6581, %v6650
    %v6652 = vsel %vm3751, %v5753, %v5749
    %v6653 = vsel %vm3753, %v5757, %v6652
    %v6654 = vsel %vm3755, %v5761, %v6653
    %v6655 = vsel %vm3757, %v5765, %v6654
    %v6656 = vsel %vm3759, %v5769, %v6655
    %v6657 = vsel %vm3761, %v5773, %v6656
    %v6658 = vsel %vm3763, %v6585, %v6657
    %v6659 = vsel %vm3751, %v5785, %v5781
    %v6660 = vsel %vm3753, %v5789, %v6659
    %v6661 = vsel %vm3755, %v5793, %v6660
    %v6662 = vsel %vm3757, %v5797, %v6661
    %v6663 = vsel %vm3759, %v5801, %v6662
    %v6664 = vsel %vm3761, %v5805, %v6663
    %v6665 = vsel %vm3763, %v6589, %v6664
    %v6666 = vsel %vm3751, %v5817, %v5813
    %v6667 = vsel %vm3753, %v5821, %v6666
    %v6668 = vsel %vm3755, %v5825, %v6667
    %v6669 = vsel %vm3757, %v5829, %v6668
    %v6670 = vsel %vm3759, %v5833, %v6669
    %v6671 = vsel %vm3761, %v5837, %v6670
    %v6672 = vsel %vm3763, %v6593, %v6671
    %v6673 = vsel %vm3751, %v5849, %v5845
    %v6674 = vsel %vm3753, %v5853, %v6673
    %v6675 = vsel %vm3755, %v5857, %v6674
    %v6676 = vsel %vm3757, %v5861, %v6675
    %v6677 = vsel %vm3759, %v5865, %v6676
    %v6678 = vsel %vm3761, %v5869, %v6677
    %v6679 = vsel %vm3763, %v6597, %v6678
    %v6680 = vsel %vm3751, %v5881, %v5877
    %v6681 = vsel %vm3753, %v5885, %v6680
    %v6682 = vsel %vm3755, %v5889, %v6681
    %v6683 = vsel %vm3757, %v5893, %v6682
    %v6684 = vsel %vm3759, %v5897, %v6683
    %v6685 = vsel %vm3761, %v5901, %v6684
    %v6686 = vsel %vm3763, %v6601, %v6685
    %v6687 = vsel %vm3751, %v5913, %v5909
    %v6688 = vsel %vm3753, %v5917, %v6687
    %v6689 = vsel %vm3755, %v5921, %v6688
    %v6690 = vsel %vm3757, %v5925, %v6689
    %v6691 = vsel %vm3759, %v5929, %v6690
    %v6692 = vsel %vm3761, %v5933, %v6691
    %v6693 = vsel %vm3763, %v6605, %v6692
    %v6694 = vsel %vm3751, %v5945, %v5941
    %v6695 = vsel %vm3753, %v5949, %v6694
    %v6696 = vsel %vm3755, %v5953, %v6695
    %v6697 = vsel %vm3757, %v5957, %v6696
    %v6698 = vsel %vm3759, %v5961, %v6697
    %v6699 = vsel %vm3761, %v5965, %v6698
    %v6700 = vsel %vm3763, %v6609, %v6699
    %v6701 = vsel %vm3751, %v5977, %v5973
    %v6702 = vsel %vm3753, %v5981, %v6701
    %v6703 = vsel %vm3755, %v5985, %v6702
    %v6704 = vsel %vm3757, %v5989, %v6703
    %v6705 = vsel %vm3759, %v5993, %v6704
    %v6706 = vsel %vm3761, %v5997, %v6705
    %v6707 = vsel %vm3763, %v6613, %v6706
    %v6708 = vsel %vm3751, %v6009, %v6005
    %v6709 = vsel %vm3753, %v6013, %v6708
    %v6710 = vsel %vm3755, %v6017, %v6709
    %v6711 = vsel %vm3757, %v6021, %v6710
    %v6712 = vsel %vm3759, %v6025, %v6711
    %v6713 = vsel %vm3761, %v6029, %v6712
    %v6714 = vsel %vm3763, %v6617, %v6713
    %v6715 = vsel %vm3751, %v6041, %v6037
    %v6716 = vsel %vm3753, %v6045, %v6715
    %v6717 = vsel %vm3755, %v6049, %v6716
    %v6718 = vsel %vm3757, %v6053, %v6717
    %v6719 = vsel %vm3759, %v6057, %v6718
    %v6720 = vsel %vm3761, %v6061, %v6719
    %v6721 = vsel %vm3763, %v6621, %v6720
    %v6722 = vsel %vm3751, %v6073, %v6069
    %v6723 = vsel %vm3753, %v6077, %v6722
    %v6724 = vsel %vm3755, %v6081, %v6723
    %v6725 = vsel %vm3757, %v6085, %v6724
    %v6726 = vsel %vm3759, %v6089, %v6725
    %v6727 = vsel %vm3761, %v6093, %v6726
    %v6728 = vsel %vm3763, %v6625, %v6727
    %v6729 = vsel %vm3751, %v6105, %v6101
    %v6730 = vsel %vm3753, %v6109, %v6729
    %v6731 = vsel %vm3755, %v6113, %v6730
    %v6732 = vsel %vm3757, %v6117, %v6731
    %v6733 = vsel %vm3759, %v6121, %v6732
    %v6734 = vsel %vm3761, %v6125, %v6733
    %v6735 = vsel %vm3763, %v6629, %v6734
    %v6736 = vsel %vm3751, %v6137, %v6133
    %v6737 = vsel %vm3753, %v6141, %v6736
    %v6738 = vsel %vm3755, %v6145, %v6737
    %v6739 = vsel %vm3757, %v6149, %v6738
    %v6740 = vsel %vm3759, %v6153, %v6739
    %v6741 = vsel %vm3761, %v6157, %v6740
    %v6742 = vsel %vm3763, %v6633, %v6741
    %v6743 = vsel %vm3751, %v6169, %v6165
    %v6744 = vsel %vm3753, %v6173, %v6743
    %v6745 = vsel %vm3755, %v6177, %v6744
    %v6746 = vsel %vm3757, %v6181, %v6745
    %v6747 = vsel %vm3759, %v6185, %v6746
    %v6748 = vsel %vm3761, %v6189, %v6747
    %v6749 = vsel %vm3763, %v6637, %v6748
    %6750 = vrot.lane.b32.xlu0 %v6644, 112
    %v6751 = vpop.permute.xlu0 %6750
    %6752 = vrot.lane.b32.xlu0 %v6651, 112
    %v6753 = vpop.permute.xlu0 %6752
    %6754 = vrot.lane.b32.xlu0 %v6658, 112
    %v6755 = vpop.permute.xlu0 %6754
    %6756 = vrot.lane.b32.xlu0 %v6665, 112
    %v6757 = vpop.permute.xlu0 %6756
    %6758 = vrot.lane.b32.xlu0 %v6672, 112
    %v6759 = vpop.permute.xlu0 %6758
    %6760 = vrot.lane.b32.xlu0 %v6679, 112
    %v6761 = vpop.permute.xlu0 %6760
    %6762 = vrot.lane.b32.xlu0 %v6686, 112
    %v6763 = vpop.permute.xlu0 %6762
    %6764 = vrot.lane.b32.xlu0 %v6693, 112
    %v6765 = vpop.permute.xlu0 %6764
    %6766 = vrot.lane.b32.xlu0 %v6700, 112
    %v6767 = vpop.permute.xlu0 %6766
    %6768 = vrot.lane.b32.xlu0 %v6707, 112
    %v6769 = vpop.permute.xlu0 %6768
    %6770 = vrot.lane.b32.xlu0 %v6714, 112
    %v6771 = vpop.permute.xlu0 %6770
    %6772 = vrot.lane.b32.xlu0 %v6721, 112
    %v6773 = vpop.permute.xlu0 %6772
    %6774 = vrot.lane.b32.xlu0 %v6728, 112
    %v6775 = vpop.permute.xlu0 %6774
    %6776 = vrot.lane.b32.xlu0 %v6735, 112
    %v6777 = vpop.permute.xlu0 %6776
    %6778 = vrot.lane.b32.xlu0 %v6742, 112
    %v6779 = vpop.permute.xlu0 %6778
    %6780 = vrot.lane.b32.xlu0 %v6749, 112
    %v6781 = vpop.permute.xlu0 %6780
    %v6798 = vlaneseq
    %v6799 = vshrl.u32 %v6798, 7
    %v6800 = vsub.s32 0, %v6799
    %v6801 = vrot.slane %v2426, %v6800
    %v6802 = vlaneseq
    %v6803 = vshrl.u32 %v6802, 7
    %v6804 = vsub.s32 0, %v6803
    %v6805 = vrot.slane %v2434, %v6804
    %v6806 = vlaneseq
    %v6807 = vshrl.u32 %v6806, 7
    %v6808 = vsub.s32 0, %v6807
    %v6809 = vrot.slane %v2433, %v6808
    %v6810 = vlaneseq
    %v6811 = vshrl.u32 %v6810, 7
    %v6812 = vsub.s32 0, %v6811
    %v6813 = vrot.slane %v2435, %v6812
    %v6814 = vlaneseq
    %v6815 = vshrl.u32 %v6814, 7
    %v6816 = vsub.s32 0, %v6815
    %v6817 = vrot.slane %v2443, %v6816
    %v6818 = vlaneseq
    %v6819 = vshrl.u32 %v6818, 7
    %v6820 = vsub.s32 0, %v6819
    %v6821 = vrot.slane %v2451, %v6820
    %v6822 = vlaneseq
    %v6823 = vshrl.u32 %v6822, 7
    %v6824 = vsub.s32 0, %v6823
    %v6825 = vrot.slane %v2450, %v6824
    %v6826 = vlaneseq
    %v6827 = vshrl.u32 %v6826, 7
    %v6828 = vsub.s32 0, %v6827
    %v6829 = vrot.slane %v2452, %v6828
    %v6830 = vlaneseq
    %v6831 = vshrl.u32 %v6830, 7
    %v6832 = vsub.s32 0, %v6831
    %v6833 = vrot.slane %v3164, %v6832
    %v6834 = vlaneseq
    %v6835 = vshrl.u32 %v6834, 7
    %v6836 = vsub.s32 0, %v6835
    %v6837 = vrot.slane %v3172, %v6836
    %v6838 = vlaneseq
    %v6839 = vshrl.u32 %v6838, 7
    %v6840 = vsub.s32 0, %v6839
    %v6841 = vrot.slane %v3171, %v6840
    %v6842 = vlaneseq
    %v6843 = vshrl.u32 %v6842, 7
    %v6844 = vsub.s32 0, %v6843
    %v6845 = vrot.slane %v3173, %v6844
    %v6846 = vlaneseq
    %v6847 = vshrl.u32 %v6846, 7
    %v6848 = vsub.s32 0, %v6847
    %v6849 = vrot.slane %v3181, %v6848
    %v6850 = vlaneseq
    %v6851 = vshrl.u32 %v6850, 7
    %v6852 = vsub.s32 0, %v6851
    %v6853 = vrot.slane %v3189, %v6852
    %v6854 = vlaneseq
    %v6855 = vshrl.u32 %v6854, 7
    %v6856 = vsub.s32 0, %v6855
    %v6857 = vrot.slane %v3188, %v6856
    %v6858 = vlaneseq
    %v6859 = vshrl.u32 %v6858, 7
    %v6860 = vsub.s32 0, %v6859
    %v6861 = vrot.slane %v3190, %v6860
    %v6862 = vsel %vm3751, %v6805, %v6801
    %v6863 = vsel %vm3753, %v6809, %v6862
    %v6864 = vsel %vm3755, %v6813, %v6863
    %v6865 = vsel %vm3757, %v6817, %v6864
    %v6866 = vsel %vm3759, %v6821, %v6865
    %v6867 = vsel %vm3761, %v6825, %v6866
    %v6868 = vsel %vm3763, %v6829, %v6867
    %v6869 = vsel %vm3751, %v6837, %v6833
    %v6870 = vsel %vm3753, %v6841, %v6869
    %v6871 = vsel %vm3755, %v6845, %v6870
    %v6872 = vsel %vm3757, %v6849, %v6871
    %v6873 = vsel %vm3759, %v6853, %v6872
    %v6874 = vsel %vm3761, %v6857, %v6873
    %v6875 = vsel %vm3763, %v6861, %v6874
    %v6878 = vlaneseq
    %v6879 = vshrl.u32 %v6878, 7
    %v6880 = vsub.s32 1, %v6879
    %v6881 = vrot.slane %v2426, %v6880
    %v6882 = vlaneseq
    %v6883 = vshrl.u32 %v6882, 7
    %v6884 = vsub.s32 1, %v6883
    %v6885 = vrot.slane %v2434, %v6884
    %v6886 = vlaneseq
    %v6887 = vshrl.u32 %v6886, 7
    %v6888 = vsub.s32 1, %v6887
    %v6889 = vrot.slane %v2433, %v6888
    %v6890 = vlaneseq
    %v6891 = vshrl.u32 %v6890, 7
    %v6892 = vsub.s32 1, %v6891
    %v6893 = vrot.slane %v2435, %v6892
    %v6894 = vlaneseq
    %v6895 = vshrl.u32 %v6894, 7
    %v6896 = vsub.s32 1, %v6895
    %v6897 = vrot.slane %v2443, %v6896
    %v6898 = vlaneseq
    %v6899 = vshrl.u32 %v6898, 7
    %v6900 = vsub.s32 1, %v6899
    %v6901 = vrot.slane %v2451, %v6900
    %v6902 = vlaneseq
    %v6903 = vshrl.u32 %v6902, 7
    %v6904 = vsub.s32 1, %v6903
    %v6905 = vrot.slane %v2450, %v6904
    %v6906 = vlaneseq
    %v6907 = vshrl.u32 %v6906, 7
    %v6908 = vsub.s32 1, %v6907
    %v6909 = vrot.slane %v2452, %v6908
    %v6910 = vlaneseq
    %v6911 = vshrl.u32 %v6910, 7
    %v6912 = vsub.s32 1, %v6911
    %v6913 = vrot.slane %v3164, %v6912
    %v6914 = vlaneseq
    %v6915 = vshrl.u32 %v6914, 7
    %v6916 = vsub.s32 1, %v6915
    %v6917 = vrot.slane %v3172, %v6916
    %v6918 = vlaneseq
    %v6919 = vshrl.u32 %v6918, 7
    %v6920 = vsub.s32 1, %v6919
    %v6921 = vrot.slane %v3171, %v6920
    %v6922 = vlaneseq
    %v6923 = vshrl.u32 %v6922, 7
    %v6924 = vsub.s32 1, %v6923
    %v6925 = vrot.slane %v3173, %v6924
    %v6926 = vlaneseq
    %v6927 = vshrl.u32 %v6926, 7
    %v6928 = vsub.s32 1, %v6927
    %v6929 = vrot.slane %v3181, %v6928
    %v6930 = vlaneseq
    %v6931 = vshrl.u32 %v6930, 7
    %v6932 = vsub.s32 1, %v6931
    %v6933 = vrot.slane %v3189, %v6932
    %v6934 = vlaneseq
    %v6935 = vshrl.u32 %v6934, 7
    %v6936 = vsub.s32 1, %v6935
    %v6937 = vrot.slane %v3188, %v6936
    %v6938 = vlaneseq
    %v6939 = vshrl.u32 %v6938, 7
    %v6940 = vsub.s32 1, %v6939
    %v6941 = vrot.slane %v3190, %v6940
    %v6942 = vsel %vm3751, %v6885, %v6881
    %v6943 = vsel %vm3753, %v6889, %v6942
    %v6944 = vsel %vm3755, %v6893, %v6943
    %v6945 = vsel %vm3757, %v6897, %v6944
    %v6946 = vsel %vm3759, %v6901, %v6945
    %v6947 = vsel %vm3761, %v6905, %v6946
    %v6948 = vsel %vm3763, %v6909, %v6947
    %v6949 = vsel %vm3751, %v6917, %v6913
    %v6950 = vsel %vm3753, %v6921, %v6949
    %v6951 = vsel %vm3755, %v6925, %v6950
    %v6952 = vsel %vm3757, %v6929, %v6951
    %v6953 = vsel %vm3759, %v6933, %v6952
    %v6954 = vsel %vm3761, %v6937, %v6953
    %v6955 = vsel %vm3763, %v6941, %v6954
    %6956 = vrot.lane.b32.xlu0 %v6948, 16
    %v6957 = vpop.permute.xlu0 %6956
    %6958 = vrot.lane.b32.xlu0 %v6955, 16
    %v6959 = vpop.permute.xlu0 %6958
    %v6962 = vlaneseq
    %v6963 = vshrl.u32 %v6962, 7
    %v6964 = vsub.s32 0, %v6963
    %v6965 = vrot.slane %v2459, %v6964
    %v6966 = vlaneseq
    %v6967 = vshrl.u32 %v6966, 7
    %v6968 = vsub.s32 0, %v6967
    %v6969 = vrot.slane %v3197, %v6968
    %v6970 = vsel %vm3751, %v6809, %v6805
    %v6971 = vsel %vm3753, %v6813, %v6970
    %v6972 = vsel %vm3755, %v6817, %v6971
    %v6973 = vsel %vm3757, %v6821, %v6972
    %v6974 = vsel %vm3759, %v6825, %v6973
    %v6975 = vsel %vm3761, %v6829, %v6974
    %v6976 = vsel %vm3763, %v6965, %v6975
    %v6977 = vsel %vm3751, %v6841, %v6837
    %v6978 = vsel %vm3753, %v6845, %v6977
    %v6979 = vsel %vm3755, %v6849, %v6978
    %v6980 = vsel %vm3757, %v6853, %v6979
    %v6981 = vsel %vm3759, %v6857, %v6980
    %v6982 = vsel %vm3761, %v6861, %v6981
    %v6983 = vsel %vm3763, %v6969, %v6982
    %6984 = vrot.lane.b32.xlu0 %v6976, 32
    %v6985 = vpop.permute.xlu0 %6984
    %6986 = vrot.lane.b32.xlu0 %v6983, 32
    %v6987 = vpop.permute.xlu0 %6986
    %v6990 = vlaneseq
    %v6991 = vshrl.u32 %v6990, 7
    %v6992 = vsub.s32 1, %v6991
    %v6993 = vrot.slane %v2459, %v6992
    %v6994 = vlaneseq
    %v6995 = vshrl.u32 %v6994, 7
    %v6996 = vsub.s32 1, %v6995
    %v6997 = vrot.slane %v3197, %v6996
    %v6998 = vsel %vm3751, %v6889, %v6885
    %v6999 = vsel %vm3753, %v6893, %v6998
    %v7000 = vsel %vm3755, %v6897, %v6999
    %v7001 = vsel %vm3757, %v6901, %v7000
    %v7002 = vsel %vm3759, %v6905, %v7001
    %v7003 = vsel %vm3761, %v6909, %v7002
    %v7004 = vsel %vm3763, %v6993, %v7003
    %v7005 = vsel %vm3751, %v6921, %v6917
    %v7006 = vsel %vm3753, %v6925, %v7005
    %v7007 = vsel %vm3755, %v6929, %v7006
    %v7008 = vsel %vm3757, %v6933, %v7007
    %v7009 = vsel %vm3759, %v6937, %v7008
    %v7010 = vsel %vm3761, %v6941, %v7009
    %v7011 = vsel %vm3763, %v6997, %v7010
    %7012 = vrot.lane.b32.xlu0 %v7004, 48
    %v7013 = vpop.permute.xlu0 %7012
    %7014 = vrot.lane.b32.xlu0 %v7011, 48
    %v7015 = vpop.permute.xlu0 %7014
    %v7018 = vlaneseq
    %v7019 = vshrl.u32 %v7018, 7
    %v7020 = vsub.s32 0, %v7019
    %v7021 = vrot.slane %v2467, %v7020
    %v7022 = vlaneseq
    %v7023 = vshrl.u32 %v7022, 7
    %v7024 = vsub.s32 0, %v7023
    %v7025 = vrot.slane %v2475, %v7024
    %v7026 = vlaneseq
    %v7027 = vshrl.u32 %v7026, 7
    %v7028 = vsub.s32 0, %v7027
    %v7029 = vrot.slane %v2474, %v7028
    %v7030 = vlaneseq
    %v7031 = vshrl.u32 %v7030, 7
    %v7032 = vsub.s32 0, %v7031
    %v7033 = vrot.slane %v2476, %v7032
    %v7034 = vlaneseq
    %v7035 = vshrl.u32 %v7034, 7
    %v7036 = vsub.s32 0, %v7035
    %v7037 = vrot.slane %v2484, %v7036
    %v7038 = vlaneseq
    %v7039 = vshrl.u32 %v7038, 7
    %v7040 = vsub.s32 0, %v7039
    %v7041 = vrot.slane %v2492, %v7040
    %v7042 = vlaneseq
    %v7043 = vshrl.u32 %v7042, 7
    %v7044 = vsub.s32 0, %v7043
    %v7045 = vrot.slane %v2491, %v7044
    %v7046 = vlaneseq
    %v7047 = vshrl.u32 %v7046, 7
    %v7048 = vsub.s32 0, %v7047
    %v7049 = vrot.slane %v2493, %v7048
    %v7050 = vlaneseq
    %v7051 = vshrl.u32 %v7050, 7
    %v7052 = vsub.s32 0, %v7051
    %v7053 = vrot.slane %v3205, %v7052
    %v7054 = vlaneseq
    %v7055 = vshrl.u32 %v7054, 7
    %v7056 = vsub.s32 0, %v7055
    %v7057 = vrot.slane %v3213, %v7056
    %v7058 = vlaneseq
    %v7059 = vshrl.u32 %v7058, 7
    %v7060 = vsub.s32 0, %v7059
    %v7061 = vrot.slane %v3212, %v7060
    %v7062 = vlaneseq
    %v7063 = vshrl.u32 %v7062, 7
    %v7064 = vsub.s32 0, %v7063
    %v7065 = vrot.slane %v3214, %v7064
    %v7066 = vlaneseq
    %v7067 = vshrl.u32 %v7066, 7
    %v7068 = vsub.s32 0, %v7067
    %v7069 = vrot.slane %v3222, %v7068
    %v7070 = vlaneseq
    %v7071 = vshrl.u32 %v7070, 7
    %v7072 = vsub.s32 0, %v7071
    %v7073 = vrot.slane %v3230, %v7072
    %v7074 = vlaneseq
    %v7075 = vshrl.u32 %v7074, 7
    %v7076 = vsub.s32 0, %v7075
    %v7077 = vrot.slane %v3229, %v7076
    %v7078 = vlaneseq
    %v7079 = vshrl.u32 %v7078, 7
    %v7080 = vsub.s32 0, %v7079
    %v7081 = vrot.slane %v3231, %v7080
    %v7082 = vsel %vm3751, %v7025, %v7021
    %v7083 = vsel %vm3753, %v7029, %v7082
    %v7084 = vsel %vm3755, %v7033, %v7083
    %v7085 = vsel %vm3757, %v7037, %v7084
    %v7086 = vsel %vm3759, %v7041, %v7085
    %v7087 = vsel %vm3761, %v7045, %v7086
    %v7088 = vsel %vm3763, %v7049, %v7087
    %v7089 = vsel %vm3751, %v7057, %v7053
    %v7090 = vsel %vm3753, %v7061, %v7089
    %v7091 = vsel %vm3755, %v7065, %v7090
    %v7092 = vsel %vm3757, %v7069, %v7091
    %v7093 = vsel %vm3759, %v7073, %v7092
    %v7094 = vsel %vm3761, %v7077, %v7093
    %v7095 = vsel %vm3763, %v7081, %v7094
    %7096 = vrot.lane.b32.xlu0 %v7088, 64
    %v7097 = vpop.permute.xlu0 %7096
    %7098 = vrot.lane.b32.xlu0 %v7095, 64
    %v7099 = vpop.permute.xlu0 %7098
    %v7102 = vlaneseq
    %v7103 = vshrl.u32 %v7102, 7
    %v7104 = vsub.s32 1, %v7103
    %v7105 = vrot.slane %v2467, %v7104
    %v7106 = vlaneseq
    %v7107 = vshrl.u32 %v7106, 7
    %v7108 = vsub.s32 1, %v7107
    %v7109 = vrot.slane %v2475, %v7108
    %v7110 = vlaneseq
    %v7111 = vshrl.u32 %v7110, 7
    %v7112 = vsub.s32 1, %v7111
    %v7113 = vrot.slane %v2474, %v7112
    %v7114 = vlaneseq
    %v7115 = vshrl.u32 %v7114, 7
    %v7116 = vsub.s32 1, %v7115
    %v7117 = vrot.slane %v2476, %v7116
    %v7118 = vlaneseq
    %v7119 = vshrl.u32 %v7118, 7
    %v7120 = vsub.s32 1, %v7119
    %v7121 = vrot.slane %v2484, %v7120
    %v7122 = vlaneseq
    %v7123 = vshrl.u32 %v7122, 7
    %v7124 = vsub.s32 1, %v7123
    %v7125 = vrot.slane %v2492, %v7124
    %v7126 = vlaneseq
    %v7127 = vshrl.u32 %v7126, 7
    %v7128 = vsub.s32 1, %v7127
    %v7129 = vrot.slane %v2491, %v7128
    %v7130 = vlaneseq
    %v7131 = vshrl.u32 %v7130, 7
    %v7132 = vsub.s32 1, %v7131
    %v7133 = vrot.slane %v2493, %v7132
    %v7134 = vlaneseq
    %v7135 = vshrl.u32 %v7134, 7
    %v7136 = vsub.s32 1, %v7135
    %v7137 = vrot.slane %v3205, %v7136
    %v7138 = vlaneseq
    %v7139 = vshrl.u32 %v7138, 7
    %v7140 = vsub.s32 1, %v7139
    %v7141 = vrot.slane %v3213, %v7140
    %v7142 = vlaneseq
    %v7143 = vshrl.u32 %v7142, 7
    %v7144 = vsub.s32 1, %v7143
    %v7145 = vrot.slane %v3212, %v7144
    %v7146 = vlaneseq
    %v7147 = vshrl.u32 %v7146, 7
    %v7148 = vsub.s32 1, %v7147
    %v7149 = vrot.slane %v3214, %v7148
    %v7150 = vlaneseq
    %v7151 = vshrl.u32 %v7150, 7
    %v7152 = vsub.s32 1, %v7151
    %v7153 = vrot.slane %v3222, %v7152
    %v7154 = vlaneseq
    %v7155 = vshrl.u32 %v7154, 7
    %v7156 = vsub.s32 1, %v7155
    %v7157 = vrot.slane %v3230, %v7156
    %v7158 = vlaneseq
    %v7159 = vshrl.u32 %v7158, 7
    %v7160 = vsub.s32 1, %v7159
    %v7161 = vrot.slane %v3229, %v7160
    %v7162 = vlaneseq
    %v7163 = vshrl.u32 %v7162, 7
    %v7164 = vsub.s32 1, %v7163
    %v7165 = vrot.slane %v3231, %v7164
    %v7166 = vsel %vm3751, %v7109, %v7105
    %v7167 = vsel %vm3753, %v7113, %v7166
    %v7168 = vsel %vm3755, %v7117, %v7167
    %v7169 = vsel %vm3757, %v7121, %v7168
    %v7170 = vsel %vm3759, %v7125, %v7169
    %v7171 = vsel %vm3761, %v7129, %v7170
    %v7172 = vsel %vm3763, %v7133, %v7171
    %v7173 = vsel %vm3751, %v7141, %v7137
    %v7174 = vsel %vm3753, %v7145, %v7173
    %v7175 = vsel %vm3755, %v7149, %v7174
    %v7176 = vsel %vm3757, %v7153, %v7175
    %v7177 = vsel %vm3759, %v7157, %v7176
    %v7178 = vsel %vm3761, %v7161, %v7177
    %v7179 = vsel %vm3763, %v7165, %v7178
    %7180 = vrot.lane.b32.xlu0 %v7172, 80
    %v7181 = vpop.permute.xlu0 %7180
    %7182 = vrot.lane.b32.xlu0 %v7179, 80
    %v7183 = vpop.permute.xlu0 %7182
    %v7186 = vlaneseq
    %v7187 = vshrl.u32 %v7186, 7
    %v7188 = vsub.s32 0, %v7187
    %v7189 = vrot.slane %v2500, %v7188
    %v7190 = vlaneseq
    %v7191 = vshrl.u32 %v7190, 7
    %v7192 = vsub.s32 0, %v7191
    %v7193 = vrot.slane %v3238, %v7192
    %v7194 = vsel %vm3751, %v7029, %v7025
    %v7195 = vsel %vm3753, %v7033, %v7194
    %v7196 = vsel %vm3755, %v7037, %v7195
    %v7197 = vsel %vm3757, %v7041, %v7196
    %v7198 = vsel %vm3759, %v7045, %v7197
    %v7199 = vsel %vm3761, %v7049, %v7198
    %v7200 = vsel %vm3763, %v7189, %v7199
    %v7201 = vsel %vm3751, %v7061, %v7057
    %v7202 = vsel %vm3753, %v7065, %v7201
    %v7203 = vsel %vm3755, %v7069, %v7202
    %v7204 = vsel %vm3757, %v7073, %v7203
    %v7205 = vsel %vm3759, %v7077, %v7204
    %v7206 = vsel %vm3761, %v7081, %v7205
    %v7207 = vsel %vm3763, %v7193, %v7206
    %7208 = vrot.lane.b32.xlu0 %v7200, 96
    %v7209 = vpop.permute.xlu0 %7208
    %7210 = vrot.lane.b32.xlu0 %v7207, 96
    %v7211 = vpop.permute.xlu0 %7210
    %v7214 = vlaneseq
    %v7215 = vshrl.u32 %v7214, 7
    %v7216 = vsub.s32 1, %v7215
    %v7217 = vrot.slane %v2500, %v7216
    %v7218 = vlaneseq
    %v7219 = vshrl.u32 %v7218, 7
    %v7220 = vsub.s32 1, %v7219
    %v7221 = vrot.slane %v3238, %v7220
    %v7222 = vsel %vm3751, %v7113, %v7109
    %v7223 = vsel %vm3753, %v7117, %v7222
    %v7224 = vsel %vm3755, %v7121, %v7223
    %v7225 = vsel %vm3757, %v7125, %v7224
    %v7226 = vsel %vm3759, %v7129, %v7225
    %v7227 = vsel %vm3761, %v7133, %v7226
    %v7228 = vsel %vm3763, %v7217, %v7227
    %v7229 = vsel %vm3751, %v7145, %v7141
    %v7230 = vsel %vm3753, %v7149, %v7229
    %v7231 = vsel %vm3755, %v7153, %v7230
    %v7232 = vsel %vm3757, %v7157, %v7231
    %v7233 = vsel %vm3759, %v7161, %v7232
    %v7234 = vsel %vm3761, %v7165, %v7233
    %v7235 = vsel %vm3763, %v7221, %v7234
    %7236 = vrot.lane.b32.xlu0 %v7228, 112
    %v7237 = vpop.permute.xlu0 %7236
    %7238 = vrot.lane.b32.xlu0 %v7235, 112
    %v7239 = vpop.permute.xlu0 %7238
    %v7242 = vsel %vm704, %v3764, %v4511
    %v7243 = vsel %vm704, %v3771, %v4513
    %v7244 = vsel %vm704, %v3778, %v4515
    %v7245 = vsel %vm704, %v3785, %v4517
    %v7246 = vsel %vm704, %v3792, %v4519
    %v7247 = vsel %vm704, %v3799, %v4521
    %v7248 = vsel %vm704, %v3806, %v4523
    %v7249 = vsel %vm704, %v3813, %v4525
    %v7250 = vsel %vm704, %v3820, %v4527
    %v7251 = vsel %vm704, %v3827, %v4529
    %v7252 = vsel %vm704, %v3834, %v4531
    %v7253 = vsel %vm704, %v3841, %v4533
    %v7254 = vsel %vm704, %v3848, %v4535
    %v7255 = vsel %vm704, %v3855, %v4537
    %v7256 = vsel %vm704, %v3862, %v4539
    %v7257 = vsel %vm704, %v3869, %v4541
    %vm7258 = vcmask 261120
    %v7259 = vsel %vm7258, %v7242, %v4735
    %v7260 = vsel %vm7258, %v7243, %v4737
    %v7261 = vsel %vm7258, %v7244, %v4739
    %v7262 = vsel %vm7258, %v7245, %v4741
    %v7263 = vsel %vm7258, %v7246, %v4743
    %v7264 = vsel %vm7258, %v7247, %v4745
    %v7265 = vsel %vm7258, %v7248, %v4747
    %v7266 = vsel %vm7258, %v7249, %v4749
    %v7267 = vsel %vm7258, %v7250, %v4751
    %v7268 = vsel %vm7258, %v7251, %v4753
    %v7269 = vsel %vm7258, %v7252, %v4755
    %v7270 = vsel %vm7258, %v7253, %v4757
    %v7271 = vsel %vm7258, %v7254, %v4759
    %v7272 = vsel %vm7258, %v7255, %v4761
    %v7273 = vsel %vm7258, %v7256, %v4763
    %v7274 = vsel %vm7258, %v7257, %v4765
    %v7275 = vsel %vm124, %v7259, %v4959
    %v7276 = vsel %vm124, %v7260, %v4961
    %v7277 = vsel %vm124, %v7261, %v4963
    %v7278 = vsel %vm124, %v7262, %v4965
    %v7279 = vsel %vm124, %v7263, %v4967
    %v7280 = vsel %vm124, %v7264, %v4969
    %v7281 = vsel %vm124, %v7265, %v4971
    %v7282 = vsel %vm124, %v7266, %v4973
    %v7283 = vsel %vm124, %v7267, %v4975
    %v7284 = vsel %vm124, %v7268, %v4977
    %v7285 = vsel %vm124, %v7269, %v4979
    %v7286 = vsel %vm124, %v7270, %v4981
    %v7287 = vsel %vm124, %v7271, %v4983
    %v7288 = vsel %vm124, %v7272, %v4985
    %v7289 = vsel %vm124, %v7273, %v4987
    %v7290 = vsel %vm124, %v7274, %v4989
    %vm7291 = vcmask 523264
    %v7292 = vsel %vm7291, %v7275, %v5631
    %v7293 = vsel %vm7291, %v7276, %v5633
    %v7294 = vsel %vm7291, %v7277, %v5635
    %v7295 = vsel %vm7291, %v7278, %v5637
    %v7296 = vsel %vm7291, %v7279, %v5639
    %v7297 = vsel %vm7291, %v7280, %v5641
    %v7298 = vsel %vm7291, %v7281, %v5643
    %v7299 = vsel %vm7291, %v7282, %v5645
    %v7300 = vsel %vm7291, %v7283, %v5647
    %v7301 = vsel %vm7291, %v7284, %v5649
    %v7302 = vsel %vm7291, %v7285, %v5651
    %v7303 = vsel %vm7291, %v7286, %v5653
    %v7304 = vsel %vm7291, %v7287, %v5655
    %v7305 = vsel %vm7291, %v7288, %v5657
    %v7306 = vsel %vm7291, %v7289, %v5659
    %v7307 = vsel %vm7291, %v7290, %v5661
    %vm7308 = vcmask 654336
    %v7309 = vsel %vm7308, %v7292, %v6303
    %v7310 = vsel %vm7308, %v7293, %v6305
    %v7311 = vsel %vm7308, %v7294, %v6307
    %v7312 = vsel %vm7308, %v7295, %v6309
    %v7313 = vsel %vm7308, %v7296, %v6311
    %v7314 = vsel %vm7308, %v7297, %v6313
    %v7315 = vsel %vm7308, %v7298, %v6315
    %v7316 = vsel %vm7308, %v7299, %v6317
    %v7317 = vsel %vm7308, %v7300, %v6319
    %v7318 = vsel %vm7308, %v7301, %v6321
    %v7319 = vsel %vm7308, %v7302, %v6323
    %v7320 = vsel %vm7308, %v7303, %v6325
    %v7321 = vsel %vm7308, %v7304, %v6327
    %v7322 = vsel %vm7308, %v7305, %v6329
    %v7323 = vsel %vm7308, %v7306, %v6331
    %v7324 = vsel %vm7308, %v7307, %v6333
    %vm7325 = vcmask 785408
    %v7326 = vsel %vm7325, %v7309, %v6527
    %v7327 = vsel %vm7325, %v7310, %v6529
    %v7328 = vsel %vm7325, %v7311, %v6531
    %v7329 = vsel %vm7325, %v7312, %v6533
    %v7330 = vsel %vm7325, %v7313, %v6535
    %v7331 = vsel %vm7325, %v7314, %v6537
    %v7332 = vsel %vm7325, %v7315, %v6539
    %v7333 = vsel %vm7325, %v7316, %v6541
    %v7334 = vsel %vm7325, %v7317, %v6543
    %v7335 = vsel %vm7325, %v7318, %v6545
    %v7336 = vsel %vm7325, %v7319, %v6547
    %v7337 = vsel %vm7325, %v7320, %v6549
    %v7338 = vsel %vm7325, %v7321, %v6551
    %v7339 = vsel %vm7325, %v7322, %v6553
    %v7340 = vsel %vm7325, %v7323, %v6555
    %v7341 = vsel %vm7325, %v7324, %v6557
    %vm7342 = vcmask 916480
    %v7343 = vsel %vm7342, %v7326, %v6751
    %v7344 = vsel %vm7342, %v7327, %v6753
    %v7345 = vsel %vm7342, %v7328, %v6755
    %v7346 = vsel %vm7342, %v7329, %v6757
    %v7347 = vsel %vm7342, %v7330, %v6759
    %v7348 = vsel %vm7342, %v7331, %v6761
    %v7349 = vsel %vm7342, %v7332, %v6763
    %v7350 = vsel %vm7342, %v7333, %v6765
    %v7351 = vsel %vm7342, %v7334, %v6767
    %v7352 = vsel %vm7342, %v7335, %v6769
    %v7353 = vsel %vm7342, %v7336, %v6771
    %v7354 = vsel %vm7342, %v7337, %v6773
    %v7355 = vsel %vm7342, %v7338, %v6775
    %v7356 = vsel %vm7342, %v7339, %v6777
    %v7357 = vsel %vm7342, %v7340, %v6779
    %v7358 = vsel %vm7342, %v7341, %v6781
    %v7359 = vsel %vm704, %v6868, %v6957
    %v7360 = vsel %vm704, %v6875, %v6959
    %v7361 = vsel %vm7258, %v7359, %v6985
    %v7362 = vsel %vm7258, %v7360, %v6987
    %v7363 = vsel %vm124, %v7361, %v7013
    %v7364 = vsel %vm124, %v7362, %v7015
    %v7365 = vsel %vm7291, %v7363, %v7097
    %v7366 = vsel %vm7291, %v7364, %v7099
    %v7367 = vsel %vm7308, %v7365, %v7181
    %v7368 = vsel %vm7308, %v7366, %v7183
    %v7369 = vsel %vm7325, %v7367, %v7209
    %v7370 = vsel %vm7325, %v7368, %v7211
    %v7371 = vsel %vm7342, %v7369, %v7237
    %v7372 = vsel %vm7342, %v7370, %v7239
    %v7373 = vld [vmem:[%s4] sm:$0xff]
    %v7374 = vld [vmem:[%s4 + $0x8] sm:$0xff]
    %v7375 = vld [vmem:[%s4 + $0x10] sm:$0xff]
    %v7376 = vld [vmem:[%s4 + $0x18] sm:$0xff]
    %v7377 = vld [vmem:[%s4 + $0x20] sm:$0xff]
    %v7378 = vld [vmem:[%s4 + $0x28] sm:$0xff]
    %v7379 = vld [vmem:[%s4 + $0x30] sm:$0xff]
    %v7380 = vld [vmem:[%s4 + $0x38] sm:$0xff]
    %v7381 = vld [vmem:[%s4 + $0x40] sm:$0xff]
    %v7382 = vld [vmem:[%s4 + $0x48] sm:$0xff]
    %v7383 = vld [vmem:[%s4 + $0x50] sm:$0xff]
    %v7384 = vld [vmem:[%s4 + $0x58] sm:$0xff]
    %v7385 = vld [vmem:[%s4 + $0x60] sm:$0xff]
    %v7386 = vld [vmem:[%s4 + $0x68] sm:$0xff]
    %v7387 = vld [vmem:[%s4 + $0x70] sm:$0xff]
    %v7388 = vld [vmem:[%s4 + $0x78] sm:$0xff]
    %v7389 = vld [vmem:[%s4 + $0x80] sm:$0xff]
    %v7390 = vld [vmem:[%s4 + $0x88] sm:$0xff]
    %v7391 = vld [vmem:[%s4 + $0x90] sm:$0xff]
    %v7392 = vld [vmem:[%s4 + $0x98] sm:$0xff]
    %v7393 = vld [vmem:[%s4 + $0xa0] sm:$0xff]
    %v7394 = vld [vmem:[%s4 + $0xa8] sm:$0xff]
    %v7395 = vld [vmem:[%s4 + $0xb0] sm:$0xff]
    %v7396 = vld [vmem:[%s4 + $0xb8] sm:$0xff]
    %v7397 = vld [vmem:[%s4 + $0xc0] sm:$0xff]
    %v7398 = vld [vmem:[%s4 + $0xc8] sm:$0xff]
    %v7399 = vld [vmem:[%s4 + $0xd0] sm:$0xff]
    %v7400 = vld [vmem:[%s4 + $0xd8] sm:$0xff]
    %v7401 = vld [vmem:[%s4 + $0xe0] sm:$0xff]
    %v7402 = vld [vmem:[%s4 + $0xe8] sm:$0xff]
    %v7403 = vld [vmem:[%s4 + $0xf0] sm:$0xff]
    %v7404 = vld [vmem:[%s4 + $0xf8] sm:$0xff]
    %7405 = vmatprep.subr.mxu0 0.0
    %7406 = vmatpush1.msra.mxu0 %v7373
    %7407 = vmatprep.subr.mxu0 0.0
    %7408 = vmatpush1.msra.mxu0 %v7374
    %7409 = vmatprep.subr.mxu0 0.0
    %7410 = vmatpush1.msra.mxu0 %v7375
    %7411 = vmatprep.subr.mxu0 0.0
    %7412 = vmatpush1.msra.mxu0 %v7376
    %7413 = vmatprep.subr.mxu0 0.0
    %7414 = vmatpush1.msra.mxu0 %v7377
    %7415 = vmatprep.subr.mxu0 0.0
    %7416 = vmatpush1.msra.mxu0 %v7378
    %7417 = vmatprep.subr.mxu0 0.0
    %7418 = vmatpush1.msra.mxu0 %v7379
    %7419 = vmatprep.subr.mxu0 0.0
    %7420 = vmatpush1.msra.mxu0 %v7380
    %7421 = vmatprep.subr.mxu0 0.0
    %7422 = vmatpush1.msra.mxu0 %v7381
    %7423 = vmatprep.subr.mxu0 0.0
    %7424 = vmatpush1.msra.mxu0 %v7382
    %7425 = vmatprep.subr.mxu0 0.0
    %7426 = vmatpush1.msra.mxu0 %v7383
    %7427 = vmatprep.subr.mxu0 0.0
    %7428 = vmatpush1.msra.mxu0 %v7384
    %7429 = vmatprep.subr.mxu0 0.0
    %7430 = vmatpush1.msra.mxu0 %v7385
    %7431 = vmatprep.subr.mxu0 0.0
    %7432 = vmatpush1.msra.mxu0 %v7386
    %7433 = vmatprep.subr.mxu0 0.0
    %7434 = vmatpush1.msra.mxu0 %v7387
    %7435 = vmatprep.subr.mxu0 0.0
    %7436 = vmatpush1.msra.mxu0 %v7388
    %7437 = vmatprep.subr.mxu0 0.0
    %7438 = vmatpush1.msra.mxu0 %v7389
    %7439 = vmatprep.subr.mxu0 0.0
    %7440 = vmatpush1.msra.mxu0 %v7390
    %7441 = vmatprep.subr.mxu0 0.0
    %7442 = vmatpush1.msra.mxu0 %v7391
    %7443 = vmatprep.subr.mxu0 0.0
    %7444 = vmatpush1.msra.mxu0 %v7392
    %7445 = vmatprep.subr.mxu0 0.0
    %7446 = vmatpush1.msra.mxu0 %v7393
    %7447 = vmatprep.subr.mxu0 0.0
    %7448 = vmatpush1.msra.mxu0 %v7394
    %7449 = vmatprep.subr.mxu0 0.0
    %7450 = vmatpush1.msra.mxu0 %v7395
    %7451 = vmatprep.subr.mxu0 0.0
    %7452 = vmatpush1.msra.mxu0 %v7396
    %7453 = vmatprep.subr.mxu0 0.0
    %7454 = vmatpush1.msra.mxu0 %v7397
    %7455 = vmatprep.subr.mxu0 0.0
    %7456 = vmatpush1.msra.mxu0 %v7398
    %7457 = vmatprep.subr.mxu0 0.0
    %7458 = vmatpush1.msra.mxu0 %v7399
    %7459 = vmatprep.subr.mxu0 0.0
    %7460 = vmatpush1.msra.mxu0 %v7400
    %7461 = vmatprep.subr.mxu0 0.0
    %7462 = vmatpush1.msra.mxu0 %v7401
    %7463 = vmatprep.subr.mxu0 0.0
    %7464 = vmatpush1.msra.mxu0 %v7402
    %7465 = vmatprep.subr.mxu0 0.0
    %7466 = vmatpush1.msra.mxu0 %v7403
    %7467 = vmatprep.subr.mxu0 0.0
    %7468 = vmatpush1.msra.mxu0 %v7404
    %7469 = vmatprep.mubr.f32.mxu0 %v7344
    %7470 = vmatmul.mubr.f32.gmra.mrb[0].mxu0 %v7343
    %v7471 = vpop.f32.mrb[0].mxu0
    %v7472 = vadd.f32 0.0, %v7471
    %v7473 = vpop.f32.mrb[0].mxu0
    %7474 = vmatprep.mubr.f32.mxu0 %v7345
    %7475 = vmatmul.mubr.f32.gmra.mrb[0].mxu0 %v7344
    %v7476 = vpop.f32.mrb[0].mxu0
    %v7477 = vadd.f32 0.0, %v7476
    %v7478 = vpop.f32.mrb[0].mxu0
    %7479 = vmatprep.mubr.f32.mxu0 %v7346
    %7480 = vmatmul.mubr.f32.gmra.mrb[0].mxu0 %v7345
    %v7481 = vpop.f32.mrb[0].mxu0
    %v7482 = vadd.f32 0.0, %v7481
    %v7483 = vpop.f32.mrb[0].mxu0
    %7484 = vmatprep.mubr.f32.mxu0 %v7347
    %7485 = vmatmul.mubr.f32.gmra.mrb[0].mxu0 %v7346
    %v7486 = vpop.f32.mrb[0].mxu0
    %v7487 = vadd.f32 0.0, %v7486
    %v7488 = vpop.f32.mrb[0].mxu0
    %7489 = vmatprep.mubr.f32.mxu0 %v7348
    %7490 = vmatmul.mubr.f32.gmra.mrb[0].mxu0 %v7347
    %v7491 = vpop.f32.mrb[0].mxu0
    %v7492 = vadd.f32 0.0, %v7491
    %v7493 = vpop.f32.mrb[0].mxu0
    %7494 = vmatprep.mubr.f32.mxu0 %v7349
    %7495 = vmatmul.mubr.f32.gmra.mrb[0].mxu0 %v7348
    %v7496 = vpop.f32.mrb[0].mxu0
    %v7497 = vadd.f32 0.0, %v7496
    %v7498 = vpop.f32.mrb[0].mxu0
    %7499 = vmatprep.mubr.f32.mxu0 %v7350
    %7500 = vmatmul.mubr.f32.gmra.mrb[0].mxu0 %v7349
    %v7501 = vpop.f32.mrb[0].mxu0
    %v7502 = vadd.f32 0.0, %v7501
    %v7503 = vpop.f32.mrb[0].mxu0
    %7504 = vmatprep.mubr.f32.mxu0 %v7371
    %7505 = vmatmul.mubr.f32.gmra.mrb[0].mxu0 %v7350
    %v7506 = vpop.f32.mrb[0].mxu0
    %v7507 = vadd.f32 0.0, %v7506
    %v7508 = vpop.f32.mrb[0].mxu0
    %7509 = vmatprep.mubr.f32.mxu0 %v7352
    %7510 = vmatmul.mubr.f32.gmra.mrb[0].mxu0 %v7351
    %v7511 = vpop.f32.mrb[0].mxu0
    %v7512 = vadd.f32 0.0, %v7511
    %v7513 = vpop.f32.mrb[0].mxu0
    %7514 = vmatprep.mubr.f32.mxu0 %v7353
    %7515 = vmatmul.mubr.f32.gmra.mrb[0].mxu0 %v7352
    %v7516 = vpop.f32.mrb[0].mxu0
    %v7517 = vadd.f32 0.0, %v7516
    %v7518 = vpop.f32.mrb[0].mxu0
    %7519 = vmatprep.mubr.f32.mxu0 %v7354
    %7520 = vmatmul.mubr.f32.gmra.mrb[0].mxu0 %v7353
    %v7521 = vpop.f32.mrb[0].mxu0
    %v7522 = vadd.f32 0.0, %v7521
    %v7523 = vpop.f32.mrb[0].mxu0
    %7524 = vmatprep.mubr.f32.mxu0 %v7355
    %7525 = vmatmul.mubr.f32.gmra.mrb[0].mxu0 %v7354
    %v7526 = vpop.f32.mrb[0].mxu0
    %v7527 = vadd.f32 0.0, %v7526
    %v7528 = vpop.f32.mrb[0].mxu0
    %7529 = vmatprep.mubr.f32.mxu0 %v7356
    %7530 = vmatmul.mubr.f32.gmra.mrb[0].mxu0 %v7355
    %v7531 = vpop.f32.mrb[0].mxu0
    %v7532 = vadd.f32 0.0, %v7531
    %v7533 = vpop.f32.mrb[0].mxu0
    %7534 = vmatprep.mubr.f32.mxu0 %v7357
    %7535 = vmatmul.mubr.f32.gmra.mrb[0].mxu0 %v7356
    %v7536 = vpop.f32.mrb[0].mxu0
    %v7537 = vadd.f32 0.0, %v7536
    %v7538 = vpop.f32.mrb[0].mxu0
    %7539 = vmatprep.mubr.f32.mxu0 %v7358
    %7540 = vmatmul.mubr.f32.gmra.mrb[0].mxu0 %v7357
    %v7541 = vpop.f32.mrb[0].mxu0
    %v7542 = vadd.f32 0.0, %v7541
    %v7543 = vpop.f32.mrb[0].mxu0
    %7544 = vmatprep.mubr.f32.mxu0 %v7372
    %7545 = vmatmul.mubr.f32.gmra.mrb[0].mxu0 %v7358
    %v7546 = vpop.f32.mrb[0].mxu0
    %v7547 = vadd.f32 0.0, %v7546
    %v7548 = vpop.f32.mrb[0].mxu0
    %7549 = vdwg.mxu0
    %v7550 = vld [vmem:[%s5] sm:$0x1]
    %v7551 = vld [vmem:[%s6] sm:$0x1]
    %v7552 = vsel %vm7258, %v7472, 0.0
    %v7553 = vsel %vm7258, %v7477, 0.0
    %v7554 = vadd.f32 %v7552, %v7553
    %v7555 = vsel %vm7258, %v7482, 0.0
    %v7556 = vadd.f32 %v7554, %v7555
    %v7557 = vsel %vm7258, %v7487, 0.0
    %v7558 = vadd.f32 %v7556, %v7557
    %v7559 = vsel %vm7258, %v7492, 0.0
    %v7560 = vadd.f32 %v7558, %v7559
    %v7561 = vsel %vm7258, %v7497, 0.0
    %v7562 = vadd.f32 %v7560, %v7561
    %v7563 = vsel %vm7258, %v7502, 0.0
    %v7564 = vadd.f32 %v7562, %v7563
    %v7565 = vsel %vm7258, %v7507, 0.0
    %v7566 = vadd.f32 %v7564, %v7565
    %v7567 = vsel %vm7258, %v7512, 0.0
    %v7568 = vadd.f32 %v7566, %v7567
    %v7569 = vsel %vm7258, %v7517, 0.0
    %v7570 = vadd.f32 %v7568, %v7569
    %v7571 = vsel %vm7258, %v7522, 0.0
    %v7572 = vadd.f32 %v7570, %v7571
    %v7573 = vsel %vm7258, %v7527, 0.0
    %v7574 = vadd.f32 %v7572, %v7573
    %v7575 = vsel %vm7258, %v7532, 0.0
    %v7576 = vadd.f32 %v7574, %v7575
    %v7577 = vsel %vm7258, %v7537, 0.0
    %v7578 = vadd.f32 %v7576, %v7577
    %v7579 = vsel %vm7258, %v7542, 0.0
    %v7580 = vadd.f32 %v7578, %v7579
    %v7581 = vsel %vm7258, %v7547, 0.0
    %v7582 = vadd.f32 %v7580, %v7581
    %v7583 = vrot.slane %v7582, 4
    %v7584 = vadd.f32 %v7582, %v7583
    %v7585 = vrot.slane %v7584, 2
    %v7586 = vadd.f32 %v7584, %v7585
    %v7587 = vrot.slane %v7586, 1
    %v7588 = vadd.f32 %v7586, %v7587
    %v7589 = vmul.f32 %v7472, %v7472
    %v7590 = vmul.f32 %v7477, %v7477
    %v7591 = vmul.f32 %v7482, %v7482
    %v7592 = vmul.f32 %v7487, %v7487
    %v7593 = vmul.f32 %v7492, %v7492
    %v7594 = vmul.f32 %v7497, %v7497
    %v7595 = vmul.f32 %v7502, %v7502
    %v7596 = vmul.f32 %v7507, %v7507
    %v7597 = vmul.f32 %v7512, %v7512
    %v7598 = vmul.f32 %v7517, %v7517
    %v7599 = vmul.f32 %v7522, %v7522
    %v7600 = vmul.f32 %v7527, %v7527
    %v7601 = vmul.f32 %v7532, %v7532
    %v7602 = vmul.f32 %v7537, %v7537
    %v7603 = vmul.f32 %v7542, %v7542
    %v7604 = vmul.f32 %v7547, %v7547
    %v7605 = vsel %vm7258, %v7589, 0.0
    %v7606 = vsel %vm7258, %v7590, 0.0
    %v7607 = vadd.f32 %v7605, %v7606
    %v7608 = vsel %vm7258, %v7591, 0.0
    %v7609 = vadd.f32 %v7607, %v7608
    %v7610 = vsel %vm7258, %v7592, 0.0
    %v7611 = vadd.f32 %v7609, %v7610
    %v7612 = vsel %vm7258, %v7593, 0.0
    %v7613 = vadd.f32 %v7611, %v7612
    %v7614 = vsel %vm7258, %v7594, 0.0
    %v7615 = vadd.f32 %v7613, %v7614
    %v7616 = vsel %vm7258, %v7595, 0.0
    %v7617 = vadd.f32 %v7615, %v7616
    %v7618 = vsel %vm7258, %v7596, 0.0
    %v7619 = vadd.f32 %v7617, %v7618
    %v7620 = vsel %vm7258, %v7597, 0.0
    %v7621 = vadd.f32 %v7619, %v7620
    %v7622 = vsel %vm7258, %v7598, 0.0
    %v7623 = vadd.f32 %v7621, %v7622
    %v7624 = vsel %vm7258, %v7599, 0.0
    %v7625 = vadd.f32 %v7623, %v7624
    %v7626 = vsel %vm7258, %v7600, 0.0
    %v7627 = vadd.f32 %v7625, %v7626
    %v7628 = vsel %vm7258, %v7601, 0.0
    %v7629 = vadd.f32 %v7627, %v7628
    %v7630 = vsel %vm7258, %v7602, 0.0
    %v7631 = vadd.f32 %v7629, %v7630
    %v7632 = vsel %vm7258, %v7603, 0.0
    %v7633 = vadd.f32 %v7631, %v7632
    %v7634 = vsel %vm7258, %v7604, 0.0
    %v7635 = vadd.f32 %v7633, %v7634
    %v7636 = vrot.slane %v7635, 4
    %v7637 = vadd.f32 %v7635, %v7636
    %v7638 = vrot.slane %v7637, 2
    %v7639 = vadd.f32 %v7637, %v7638
    %v7640 = vrot.slane %v7639, 1
    %v7641 = vadd.f32 %v7639, %v7640
    %v7642 = vmul.f32 %v7588, 0.0078125
    %v7643 = vmul.f32 %v7641, 0.0078125
    %v7644 = vmul.f32 %v7642, %v7642
    %v7645 = vsub.f32 %v7643, %v7644
    %v7646 = vsub.f32 %v7472, %v7642
    %v7647 = vsub.f32 %v7477, %v7642
    %v7648 = vsub.f32 %v7482, %v7642
    %v7649 = vsub.f32 %v7487, %v7642
    %v7650 = vsub.f32 %v7492, %v7642
    %v7651 = vsub.f32 %v7497, %v7642
    %v7652 = vsub.f32 %v7502, %v7642
    %v7653 = vsub.f32 %v7507, %v7642
    %v7654 = vsub.f32 %v7512, %v7642
    %v7655 = vsub.f32 %v7517, %v7642
    %v7656 = vsub.f32 %v7522, %v7642
    %v7657 = vsub.f32 %v7527, %v7642
    %v7658 = vsub.f32 %v7532, %v7642
    %v7659 = vsub.f32 %v7537, %v7642
    %v7660 = vsub.f32 %v7542, %v7642
    %v7661 = vsub.f32 %v7547, %v7642
    %v7662 = vadd.f32 %v7645, 1e-05
    %v7663 = vrsqrt.pop %v7662
    %v7664 = vmul.f32 %v7646, %v7663
    %v7665 = vmul.f32 %v7647, %v7663
    %v7666 = vmul.f32 %v7648, %v7663
    %v7667 = vmul.f32 %v7649, %v7663
    %v7668 = vmul.f32 %v7650, %v7663
    %v7669 = vmul.f32 %v7651, %v7663
    %v7670 = vmul.f32 %v7652, %v7663
    %v7671 = vmul.f32 %v7653, %v7663
    %v7672 = vmul.f32 %v7654, %v7663
    %v7673 = vmul.f32 %v7655, %v7663
    %v7674 = vmul.f32 %v7656, %v7663
    %v7675 = vmul.f32 %v7657, %v7663
    %v7676 = vmul.f32 %v7658, %v7663
    %v7677 = vmul.f32 %v7659, %v7663
    %v7678 = vmul.f32 %v7660, %v7663
    %v7679 = vmul.f32 %v7661, %v7663
    %v7681 = vlaneseq
    %v7682 = vshrl.u32 %v7681, 7
    %v7683 = vsub.s32 0, %v7682
    %v7684 = vrot.slane %v7550, %v7683
    %v7686 = vmul.f32 %v7664, %v7684
    %v7687 = vmul.f32 %v7665, %v7684
    %v7688 = vmul.f32 %v7666, %v7684
    %v7689 = vmul.f32 %v7667, %v7684
    %v7690 = vmul.f32 %v7668, %v7684
    %v7691 = vmul.f32 %v7669, %v7684
    %v7692 = vmul.f32 %v7670, %v7684
    %v7693 = vmul.f32 %v7671, %v7684
    %v7694 = vmul.f32 %v7672, %v7684
    %v7695 = vmul.f32 %v7673, %v7684
    %v7696 = vmul.f32 %v7674, %v7684
    %v7697 = vmul.f32 %v7675, %v7684
    %v7698 = vmul.f32 %v7676, %v7684
    %v7699 = vmul.f32 %v7677, %v7684
    %v7700 = vmul.f32 %v7678, %v7684
    %v7701 = vmul.f32 %v7679, %v7684
    %v7703 = vlaneseq
    %v7704 = vshrl.u32 %v7703, 7
    %v7705 = vsub.s32 0, %v7704
    %v7706 = vrot.slane %v7551, %v7705
    %v7708 = vadd.f32 %v7686, %v7706
    %v7709 = vadd.f32 %v7687, %v7706
    %v7710 = vadd.f32 %v7688, %v7706
    %v7711 = vadd.f32 %v7689, %v7706
    %v7712 = vadd.f32 %v7690, %v7706
    %v7713 = vadd.f32 %v7691, %v7706
    %v7714 = vadd.f32 %v7692, %v7706
    %v7715 = vadd.f32 %v7693, %v7706
    %v7716 = vadd.f32 %v7694, %v7706
    %v7717 = vadd.f32 %v7695, %v7706
    %v7718 = vadd.f32 %v7696, %v7706
    %v7719 = vadd.f32 %v7697, %v7706
    %v7720 = vadd.f32 %v7698, %v7706
    %v7721 = vadd.f32 %v7699, %v7706
    %v7722 = vadd.f32 %v7700, %v7706
    %v7723 = vadd.f32 %v7701, %v7706
    %v7724 = vmax.f32 %v7708, 0.0
    %v7725 = vmax.f32 %v7709, 0.0
    %v7726 = vmax.f32 %v7710, 0.0
    %v7727 = vmax.f32 %v7711, 0.0
    %v7728 = vmax.f32 %v7712, 0.0
    %v7729 = vmax.f32 %v7713, 0.0
    %v7730 = vmax.f32 %v7714, 0.0
    %v7731 = vmax.f32 %v7715, 0.0
    %v7732 = vmax.f32 %v7716, 0.0
    %v7733 = vmax.f32 %v7717, 0.0
    %v7734 = vmax.f32 %v7718, 0.0
    %v7735 = vmax.f32 %v7719, 0.0
    %v7736 = vmax.f32 %v7720, 0.0
    %v7737 = vmax.f32 %v7721, 0.0
    %v7738 = vmax.f32 %v7722, 0.0
    %v7739 = vmax.f32 %v7723, 0.0
    %7740 = vst.msk [vmem:[#allocation3] sm:$0xff] %vm7258, 0.0
    %vm7741 = vcmask 254976
    %7742 = vst.msk [vmem:[#allocation3 + $0x8] sm:$0x3] %vm7741, 0.0
    %7743 = vst.msk [vmem:[#allocation3 + $0x10] sm:$0xff] %vm7258, 0.0
    %7744 = vst.msk [vmem:[#allocation3 + $0x18] sm:$0x3] %vm7741, 0.0
    %7745 = vst.msk [vmem:[#allocation3 + $0x20] sm:$0xff] %vm7258, 0.0
    %7746 = vst.msk [vmem:[#allocation3 + $0x28] sm:$0x3] %vm7741, 0.0
    %7747 = vst.msk [vmem:[#allocation3 + $0x30] sm:$0xff] %vm7258, 0.0
    %7748 = vst.msk [vmem:[#allocation3 + $0x38] sm:$0x3] %vm7741, 0.0
    %7749 = vst.msk [vmem:[#allocation3 + $0x40] sm:$0xff] %vm7258, 0.0
    %7750 = vst.msk [vmem:[#allocation3 + $0x48] sm:$0x3] %vm7741, 0.0
    %7751 = vst.msk [vmem:[#allocation3 + $0x50] sm:$0xff] %vm7258, 0.0
    %7752 = vst.msk [vmem:[#allocation3 + $0x58] sm:$0x3] %vm7741, 0.0
    %7753 = vst.msk [vmem:[#allocation3 + $0x60] sm:$0xff] %vm7258, 0.0
    %7754 = vst.msk [vmem:[#allocation3 + $0x68] sm:$0x3] %vm7741, 0.0
    %7755 = vst.msk [vmem:[#allocation3 + $0x70] sm:$0xff] %vm7258, 0.0
    %7756 = vst.msk [vmem:[#allocation3 + $0x78] sm:$0x3] %vm7741, 0.0
    %7757 = vst.msk [vmem:[#allocation3 + $0x80] sm:$0xff] %vm7258, 0.0
    %7758 = vst.msk [vmem:[#allocation3 + $0x88] sm:$0x3] %vm7741, 0.0
    %7759 = vst.msk [vmem:[#allocation3 + $0x90] sm:$0xff] %vm7258, 0.0
    %7760 = vst.msk [vmem:[#allocation3 + $0x98] sm:$0x3] %vm7741, 0.0
    %7761 = vst.msk [vmem:[#allocation3 + $0xa0] sm:$0xff] %vm7258, 0.0
    %7762 = vst.msk [vmem:[#allocation3 + $0xa8] sm:$0x3] %vm7741, 0.0
    %7763 = vst.msk [vmem:[#allocation3 + $0xb0] sm:$0xff] %vm7258, 0.0
    %7764 = vst.msk [vmem:[#allocation3 + $0xb8] sm:$0x3] %vm7741, 0.0
    %7765 = vst.msk [vmem:[#allocation3 + $0xc0] sm:$0xff] %vm7258, 0.0
    %7766 = vst.msk [vmem:[#allocation3 + $0xc8] sm:$0x3] %vm7741, 0.0
    %7767 = vst.msk [vmem:[#allocation3 + $0xd0] sm:$0xff] %vm7258, 0.0
    %7768 = vst.msk [vmem:[#allocation3 + $0xd8] sm:$0x3] %vm7741, 0.0
    %7769 = vst.msk [vmem:[#allocation3 + $0xe0] sm:$0xff] %vm7258, 0.0
    %7770 = vst.msk [vmem:[#allocation3 + $0xe8] sm:$0x3] %vm7741, 0.0
    %7771 = vst.msk [vmem:[#allocation3 + $0xf0] sm:$0xff] %vm7258, 0.0
    %7772 = vst.msk [vmem:[#allocation3 + $0xf8] sm:$0x3] %vm7741, 0.0
    %7773 = vst.msk [vmem:[#allocation3 + $0x100] sm:$0xff] %vm7258, 0.0
    %7774 = vst.msk [vmem:[#allocation3 + $0x108] sm:$0x3] %vm7741, 0.0
    %7775 = vst.msk [vmem:[#allocation3 + $0x110] sm:$0xff] %vm7258, 0.0
    %7776 = vst.msk [vmem:[#allocation3 + $0x118] sm:$0x3] %vm7741, 0.0
    %7777 = vst.msk [vmem:[#allocation3 + $0x120] sm:$0xff] %vm7258, 0.0
    %7778 = vst.msk [vmem:[#allocation3 + $0x128] sm:$0x3] %vm7741, 0.0
    %7779 = vst.msk [vmem:[#allocation3 + $0x130] sm:$0xff] %vm7258, 0.0
    %7780 = vst.msk [vmem:[#allocation3 + $0x138] sm:$0x3] %vm7741, 0.0
    %s7781 = scalar_lea.vmem [#allocation3], 16
    %7782 = vst.msk [vmem:[%s7781 + $0x1] sm:$0xff] %vm7258, %v7724
    %7783 = vst.msk [vmem:[%s7781 + $0x11] sm:$0xff] %vm7258, %v7725
    %7784 = vst.msk [vmem:[%s7781 + $0x21] sm:$0xff] %vm7258, %v7726
    %7785 = vst.msk [vmem:[%s7781 + $0x31] sm:$0xff] %vm7258, %v7727
    %7786 = vst.msk [vmem:[%s7781 + $0x41] sm:$0xff] %vm7258, %v7728
    %7787 = vst.msk [vmem:[%s7781 + $0x51] sm:$0xff] %vm7258, %v7729
    %7788 = vst.msk [vmem:[%s7781 + $0x61] sm:$0xff] %vm7258, %v7730
    %7789 = vst.msk [vmem:[%s7781 + $0x71] sm:$0xff] %vm7258, %v7731
    %7790 = vst.msk [vmem:[%s7781 + $0xa1] sm:$0xff] %vm7258, %v7732
    %7791 = vst.msk [vmem:[%s7781 + $0xb1] sm:$0xff] %vm7258, %v7733
    %7792 = vst.msk [vmem:[%s7781 + $0xc1] sm:$0xff] %vm7258, %v7734
    %7793 = vst.msk [vmem:[%s7781 + $0xd1] sm:$0xff] %vm7258, %v7735
    %7794 = vst.msk [vmem:[%s7781 + $0xe1] sm:$0xff] %vm7258, %v7736
    %7795 = vst.msk [vmem:[%s7781 + $0xf1] sm:$0xff] %vm7258, %v7737
    %7796 = vst.msk [vmem:[%s7781 + $0x101] sm:$0xff] %vm7258, %v7738
    %7797 = vst.msk [vmem:[%s7781 + $0x111] sm:$0xff] %vm7258, %v7739
    %v7798 = vld [vmem:[#allocation3] sm:$0xff]
    %v7799 = vld [vmem:[#allocation3 + $0x8] sm:$0x3]
    %v7800 = vld [vmem:[#allocation3 + $0x10] sm:$0xff]
    %v7801 = vld [vmem:[#allocation3 + $0x18] sm:$0x3]
    %v7802 = vld [vmem:[#allocation3 + $0x20] sm:$0xff]
    %v7803 = vld [vmem:[#allocation3 + $0x28] sm:$0x3]
    %v7804 = vld [vmem:[#allocation3 + $0x30] sm:$0xff]
    %v7805 = vld [vmem:[#allocation3 + $0x38] sm:$0x3]
    %v7806 = vld [vmem:[#allocation3 + $0x40] sm:$0xff]
    %v7807 = vld [vmem:[#allocation3 + $0x48] sm:$0x3]
    %v7808 = vld [vmem:[#allocation3 + $0x50] sm:$0xff]
    %v7809 = vld [vmem:[#allocation3 + $0x58] sm:$0x3]
    %v7810 = vld [vmem:[#allocation3 + $0x60] sm:$0xff]
    %v7811 = vld [vmem:[#allocation3 + $0x68] sm:$0x3]
    %v7812 = vld [vmem:[#allocation3 + $0x70] sm:$0xff]
    %v7813 = vld [vmem:[#allocation3 + $0x78] sm:$0x3]
    %v7814 = vld [vmem:[#allocation3 + $0x80] sm:$0xff]
    %v7815 = vld [vmem:[#allocation3 + $0x88] sm:$0x3]
    %v7816 = vld [vmem:[#allocation3 + $0x90] sm:$0xff]
    %v7817 = vld [vmem:[#allocation3 + $0x98] sm:$0x3]
    %v7818 = vld [vmem:[#allocation3 + $0xa0] sm:$0xff]
    %v7819 = vld [vmem:[#allocation3 + $0xa8] sm:$0x3]
    %v7820 = vld [vmem:[#allocation3 + $0xb0] sm:$0xff]
    %v7821 = vld [vmem:[#allocation3 + $0xb8] sm:$0x3]
    %v7822 = vld [vmem:[#allocation3 + $0xc0] sm:$0xff]
    %v7823 = vld [vmem:[#allocation3 + $0xc8] sm:$0x3]
    %v7824 = vld [vmem:[#allocation3 + $0xd0] sm:$0xff]
    %v7825 = vld [vmem:[#allocation3 + $0xd8] sm:$0x3]
    %v7826 = vld [vmem:[#allocation3 + $0xe0] sm:$0xff]
    %v7827 = vld [vmem:[#allocation3 + $0xe8] sm:$0x3]
    %v7828 = vld [vmem:[#allocation3 + $0xf0] sm:$0xff]
    %v7829 = vld [vmem:[#allocation3 + $0xf8] sm:$0x3]
    %v7830 = vld [vmem:[#allocation3 + $0x100] sm:$0xff]
    %v7831 = vld [vmem:[#allocation3 + $0x108] sm:$0x3]
    %v7832 = vld [vmem:[#allocation3 + $0x110] sm:$0xff]
    %v7833 = vld [vmem:[#allocation3 + $0x118] sm:$0x3]
    %v7834 = vld [vmem:[#allocation3 + $0x120] sm:$0xff]
    %v7835 = vld [vmem:[#allocation3 + $0x128] sm:$0x3]
    %v7836 = vld [vmem:[#allocation3 + $0x130] sm:$0xff]
    %v7837 = vld [vmem:[#allocation3 + $0x138] sm:$0x3]
    %v7878 = vcombine.high %v7798, %v7798
    %v7880 = vunpack.c.l.s4 1983009808
    %v7881 = vunpack.c.0.s8 %v7880
    %v7882 = vlaneseq
    %v7883 = vshrl.u32 %v7882, 7
    %v7884 = vsub.s32 %v7881, %v7883
    %v7885 = vrot.slane %v7798, %v7884
    %v7887 = vunpack.c.l.s4 1983009808
    %v7888 = vunpack.c.0.s8 %v7887
    %v7889 = vlaneseq
    %v7890 = vshrl.u32 %v7889, 7
    %v7891 = vsub.s32 %v7888, %v7890
    %v7892 = vrot.slane %v7878, %v7891
    %v7893 = vcombine.high %v7885, %v7885
    %v7894 = vcombine.high %v7892, %v7892
    %v7896 = vunpack.c.l.s4 1983009808
    %v7897 = vunpack.c.0.s8 %v7896
    %v7898 = vlaneseq
    %v7899 = vshrl.u32 %v7898, 7
    %v7900 = vsub.s32 %v7897, %v7899
    %v7901 = vrot.slane %v7799, %v7900
    %v7902 = vcombine.high %v7800, %v7800
    %v7904 = vunpack.c.l.s4 1983009808
    %v7905 = vunpack.c.0.s8 %v7904
    %v7906 = vlaneseq
    %v7907 = vshrl.u32 %v7906, 7
    %v7908 = vsub.s32 %v7905, %v7907
    %v7909 = vrot.slane %v7800, %v7908
    %v7911 = vunpack.c.l.s4 1983009808
    %v7912 = vunpack.c.0.s8 %v7911
    %v7913 = vlaneseq
    %v7914 = vshrl.u32 %v7913, 7
    %v7915 = vsub.s32 %v7912, %v7914
    %v7916 = vrot.slane %v7902, %v7915
    %v7917 = vcombine.high %v7909, %v7909
    %v7918 = vcombine.high %v7916, %v7916
    %v7920 = vunpack.c.l.s4 1983009808
    %v7921 = vunpack.c.0.s8 %v7920
    %v7922 = vlaneseq
    %v7923 = vshrl.u32 %v7922, 7
    %v7924 = vsub.s32 %v7921, %v7923
    %v7925 = vrot.slane %v7801, %v7924
    %v7926 = vcombine.high %v7802, %v7802
    %v7928 = vunpack.c.l.s4 1983009808
    %v7929 = vunpack.c.0.s8 %v7928
    %v7930 = vlaneseq
    %v7931 = vshrl.u32 %v7930, 7
    %v7932 = vsub.s32 %v7929, %v7931
    %v7933 = vrot.slane %v7802, %v7932
    %v7935 = vunpack.c.l.s4 1983009808
    %v7936 = vunpack.c.0.s8 %v7935
    %v7937 = vlaneseq
    %v7938 = vshrl.u32 %v7937, 7
    %v7939 = vsub.s32 %v7936, %v7938
    %v7940 = vrot.slane %v7926, %v7939
    %v7941 = vcombine.high %v7933, %v7933
    %v7942 = vcombine.high %v7940, %v7940
    %v7944 = vunpack.c.l.s4 1983009808
    %v7945 = vunpack.c.0.s8 %v7944
    %v7946 = vlaneseq
    %v7947 = vshrl.u32 %v7946, 7
    %v7948 = vsub.s32 %v7945, %v7947
    %v7949 = vrot.slane %v7803, %v7948
    %v7950 = vcombine.high %v7804, %v7804
    %v7952 = vunpack.c.l.s4 1983009808
    %v7953 = vunpack.c.0.s8 %v7952
    %v7954 = vlaneseq
    %v7955 = vshrl.u32 %v7954, 7
    %v7956 = vsub.s32 %v7953, %v7955
    %v7957 = vrot.slane %v7804, %v7956
    %v7959 = vunpack.c.l.s4 1983009808
    %v7960 = vunpack.c.0.s8 %v7959
    %v7961 = vlaneseq
    %v7962 = vshrl.u32 %v7961, 7
    %v7963 = vsub.s32 %v7960, %v7962
    %v7964 = vrot.slane %v7950, %v7963
    %v7965 = vcombine.high %v7957, %v7957
    %v7966 = vcombine.high %v7964, %v7964
    %v7968 = vunpack.c.l.s4 1983009808
    %v7969 = vunpack.c.0.s8 %v7968
    %v7970 = vlaneseq
    %v7971 = vshrl.u32 %v7970, 7
    %v7972 = vsub.s32 %v7969, %v7971
    %v7973 = vrot.slane %v7805, %v7972
    %v7974 = vcombine.high %v7806, %v7806
    %v7976 = vunpack.c.l.s4 1983009808
    %v7977 = vunpack.c.0.s8 %v7976
    %v7978 = vlaneseq
    %v7979 = vshrl.u32 %v7978, 7
    %v7980 = vsub.s32 %v7977, %v7979
    %v7981 = vrot.slane %v7806, %v7980
    %v7983 = vunpack.c.l.s4 1983009808
    %v7984 = vunpack.c.0.s8 %v7983
    %v7985 = vlaneseq
    %v7986 = vshrl.u32 %v7985, 7
    %v7987 = vsub.s32 %v7984, %v7986
    %v7988 = vrot.slane %v7974, %v7987
    %v7989 = vcombine.high %v7981, %v7981
    %v7990 = vcombine.high %v7988, %v7988
    %v7992 = vunpack.c.l.s4 1983009808
    %v7993 = vunpack.c.0.s8 %v7992
    %v7994 = vlaneseq
    %v7995 = vshrl.u32 %v7994, 7
    %v7996 = vsub.s32 %v7993, %v7995
    %v7997 = vrot.slane %v7807, %v7996
    %v7998 = vcombine.high %v7808, %v7808
    %v8000 = vunpack.c.l.s4 1983009808
    %v8001 = vunpack.c.0.s8 %v8000
    %v8002 = vlaneseq
    %v8003 = vshrl.u32 %v8002, 7
    %v8004 = vsub.s32 %v8001, %v8003
    %v8005 = vrot.slane %v7808, %v8004
    %v8007 = vunpack.c.l.s4 1983009808
    %v8008 = vunpack.c.0.s8 %v8007
    %v8009 = vlaneseq
    %v8010 = vshrl.u32 %v8009, 7
    %v8011 = vsub.s32 %v8008, %v8010
    %v8012 = vrot.slane %v7998, %v8011
    %v8013 = vcombine.high %v8005, %v8005
    %v8014 = vcombine.high %v8012, %v8012
    %v8016 = vunpack.c.l.s4 1983009808
    %v8017 = vunpack.c.0.s8 %v8016
    %v8018 = vlaneseq
    %v8019 = vshrl.u32 %v8018, 7
    %v8020 = vsub.s32 %v8017, %v8019
    %v8021 = vrot.slane %v7809, %v8020
    %v8022 = vcombine.high %v7810, %v7810
    %v8024 = vunpack.c.l.s4 1983009808
    %v8025 = vunpack.c.0.s8 %v8024
    %v8026 = vlaneseq
    %v8027 = vshrl.u32 %v8026, 7
    %v8028 = vsub.s32 %v8025, %v8027
    %v8029 = vrot.slane %v7810, %v8028
    %v8031 = vunpack.c.l.s4 1983009808
    %v8032 = vunpack.c.0.s8 %v8031
    %v8033 = vlaneseq
    %v8034 = vshrl.u32 %v8033, 7
    %v8035 = vsub.s32 %v8032, %v8034
    %v8036 = vrot.slane %v8022, %v8035
    %v8037 = vcombine.high %v8029, %v8029
    %v8038 = vcombine.high %v8036, %v8036
    %v8040 = vunpack.c.l.s4 1983009808
    %v8041 = vunpack.c.0.s8 %v8040
    %v8042 = vlaneseq
    %v8043 = vshrl.u32 %v8042, 7
    %v8044 = vsub.s32 %v8041, %v8043
    %v8045 = vrot.slane %v7811, %v8044
    %v8046 = vcombine.high %v7812, %v7812
    %v8048 = vunpack.c.l.s4 1983009808
    %v8049 = vunpack.c.0.s8 %v8048
    %v8050 = vlaneseq
    %v8051 = vshrl.u32 %v8050, 7
    %v8052 = vsub.s32 %v8049, %v8051
    %v8053 = vrot.slane %v7812, %v8052
    %v8055 = vunpack.c.l.s4 1983009808
    %v8056 = vunpack.c.0.s8 %v8055
    %v8057 = vlaneseq
    %v8058 = vshrl.u32 %v8057, 7
    %v8059 = vsub.s32 %v8056, %v8058
    %v8060 = vrot.slane %v8046, %v8059
    %v8061 = vcombine.high %v8053, %v8053
    %v8062 = vcombine.high %v8060, %v8060
    %v8064 = vunpack.c.l.s4 1983009808
    %v8065 = vunpack.c.0.s8 %v8064
    %v8066 = vlaneseq
    %v8067 = vshrl.u32 %v8066, 7
    %v8068 = vsub.s32 %v8065, %v8067
    %v8069 = vrot.slane %v7813, %v8068
    %v8070 = vcombine.high %v7814, %v7814
    %v8072 = vunpack.c.l.s4 1983009808
    %v8073 = vunpack.c.0.s8 %v8072
    %v8074 = vlaneseq
    %v8075 = vshrl.u32 %v8074, 7
    %v8076 = vsub.s32 %v8073, %v8075
    %v8077 = vrot.slane %v7814, %v8076
    %v8079 = vunpack.c.l.s4 1983009808
    %v8080 = vunpack.c.0.s8 %v8079
    %v8081 = vlaneseq
    %v8082 = vshrl.u32 %v8081, 7
    %v8083 = vsub.s32 %v8080, %v8082
    %v8084 = vrot.slane %v8070, %v8083
    %v8085 = vcombine.high %v8077, %v8077
    %v8086 = vcombine.high %v8084, %v8084
    %v8088 = vunpack.c.l.s4 1983009808
    %v8089 = vunpack.c.0.s8 %v8088
    %v8090 = vlaneseq
    %v8091 = vshrl.u32 %v8090, 7
    %v8092 = vsub.s32 %v8089, %v8091
    %v8093 = vrot.slane %v7815, %v8092
    %v8094 = vcombine.high %v7816, %v7816
    %v8096 = vunpack.c.l.s4 1983009808
    %v8097 = vunpack.c.0.s8 %v8096
    %v8098 = vlaneseq
    %v8099 = vshrl.u32 %v8098, 7
    %v8100 = vsub.s32 %v8097, %v8099
    %v8101 = vrot.slane %v7816, %v8100
    %v8103 = vunpack.c.l.s4 1983009808
    %v8104 = vunpack.c.0.s8 %v8103
    %v8105 = vlaneseq
    %v8106 = vshrl.u32 %v8105, 7
    %v8107 = vsub.s32 %v8104, %v8106
    %v8108 = vrot.slane %v8094, %v8107
    %v8109 = vcombine.high %v8101, %v8101
    %v8110 = vcombine.high %v8108, %v8108
    %v8112 = vunpack.c.l.s4 1983009808
    %v8113 = vunpack.c.0.s8 %v8112
    %v8114 = vlaneseq
    %v8115 = vshrl.u32 %v8114, 7
    %v8116 = vsub.s32 %v8113, %v8115
    %v8117 = vrot.slane %v7817, %v8116
    %v8118 = vcombine.high %v7818, %v7818
    %v8120 = vunpack.c.l.s4 1983009808
    %v8121 = vunpack.c.0.s8 %v8120
    %v8122 = vlaneseq
    %v8123 = vshrl.u32 %v8122, 7
    %v8124 = vsub.s32 %v8121, %v8123
    %v8125 = vrot.slane %v7818, %v8124
    %v8127 = vunpack.c.l.s4 1983009808
    %v8128 = vunpack.c.0.s8 %v8127
    %v8129 = vlaneseq
    %v8130 = vshrl.u32 %v8129, 7
    %v8131 = vsub.s32 %v8128, %v8130
    %v8132 = vrot.slane %v8118, %v8131
    %v8133 = vcombine.high %v8125, %v8125
    %v8134 = vcombine.high %v8132, %v8132
    %v8136 = vunpack.c.l.s4 1983009808
    %v8137 = vunpack.c.0.s8 %v8136
    %v8138 = vlaneseq
    %v8139 = vshrl.u32 %v8138, 7
    %v8140 = vsub.s32 %v8137, %v8139
    %v8141 = vrot.slane %v7819, %v8140
    %v8142 = vcombine.high %v7820, %v7820
    %v8144 = vunpack.c.l.s4 1983009808
    %v8145 = vunpack.c.0.s8 %v8144
    %v8146 = vlaneseq
    %v8147 = vshrl.u32 %v8146, 7
    %v8148 = vsub.s32 %v8145, %v8147
    %v8149 = vrot.slane %v7820, %v8148
    %v8151 = vunpack.c.l.s4 1983009808
    %v8152 = vunpack.c.0.s8 %v8151
    %v8153 = vlaneseq
    %v8154 = vshrl.u32 %v8153, 7
    %v8155 = vsub.s32 %v8152, %v8154
    %v8156 = vrot.slane %v8142, %v8155
    %v8157 = vcombine.high %v8149, %v8149
    %v8158 = vcombine.high %v8156, %v8156
    %v8160 = vunpack.c.l.s4 1983009808
    %v8161 = vunpack.c.0.s8 %v8160
    %v8162 = vlaneseq
    %v8163 = vshrl.u32 %v8162, 7
    %v8164 = vsub.s32 %v8161, %v8163
    %v8165 = vrot.slane %v7821, %v8164
    %v8166 = vcombine.high %v7822, %v7822
    %v8168 = vunpack.c.l.s4 1983009808
    %v8169 = vunpack.c.0.s8 %v8168
    %v8170 = vlaneseq
    %v8171 = vshrl.u32 %v8170, 7
    %v8172 = vsub.s32 %v8169, %v8171
    %v8173 = vrot.slane %v7822, %v8172
    %v8175 = vunpack.c.l.s4 1983009808
    %v8176 = vunpack.c.0.s8 %v8175
    %v8177 = vlaneseq
    %v8178 = vshrl.u32 %v8177, 7
    %v8179 = vsub.s32 %v8176, %v8178
    %v8180 = vrot.slane %v8166, %v8179
    %v8181 = vcombine.high %v8173, %v8173
    %v8182 = vcombine.high %v8180, %v8180
    %v8184 = vunpack.c.l.s4 1983009808
    %v8185 = vunpack.c.0.s8 %v8184
    %v8186 = vlaneseq
    %v8187 = vshrl.u32 %v8186, 7
    %v8188 = vsub.s32 %v8185, %v8187
    %v8189 = vrot.slane %v7823, %v8188
    %v8190 = vcombine.high %v7824, %v7824
    %v8192 = vunpack.c.l.s4 1983009808
    %v8193 = vunpack.c.0.s8 %v8192
    %v8194 = vlaneseq
    %v8195 = vshrl.u32 %v8194, 7
    %v8196 = vsub.s32 %v8193, %v8195
    %v8197 = vrot.slane %v7824, %v8196
    %v8199 = vunpack.c.l.s4 1983009808
    %v8200 = vunpack.c.0.s8 %v8199
    %v8201 = vlaneseq
    %v8202 = vshrl.u32 %v8201, 7
    %v8203 = vsub.s32 %v8200, %v8202
    %v8204 = vrot.slane %v8190, %v8203
    %v8205 = vcombine.high %v8197, %v8197
    %v8206 = vcombine.high %v8204, %v8204
    %v8208 = vunpack.c.l.s4 1983009808
    %v8209 = vunpack.c.0.s8 %v8208
    %v8210 = vlaneseq
    %v8211 = vshrl.u32 %v8210, 7
    %v8212 = vsub.s32 %v8209, %v8211
    %v8213 = vrot.slane %v7825, %v8212
    %v8214 = vcombine.high %v7826, %v7826
    %v8216 = vunpack.c.l.s4 1983009808
    %v8217 = vunpack.c.0.s8 %v8216
    %v8218 = vlaneseq
    %v8219 = vshrl.u32 %v8218, 7
    %v8220 = vsub.s32 %v8217, %v8219
    %v8221 = vrot.slane %v7826, %v8220
    %v8223 = vunpack.c.l.s4 1983009808
    %v8224 = vunpack.c.0.s8 %v8223
    %v8225 = vlaneseq
    %v8226 = vshrl.u32 %v8225, 7
    %v8227 = vsub.s32 %v8224, %v8226
    %v8228 = vrot.slane %v8214, %v8227
    %v8229 = vcombine.high %v8221, %v8221
    %v8230 = vcombine.high %v8228, %v8228
    %v8232 = vunpack.c.l.s4 1983009808
    %v8233 = vunpack.c.0.s8 %v8232
    %v8234 = vlaneseq
    %v8235 = vshrl.u32 %v8234, 7
    %v8236 = vsub.s32 %v8233, %v8235
    %v8237 = vrot.slane %v7827, %v8236
    %v8238 = vcombine.high %v7828, %v7828
    %v8240 = vunpack.c.l.s4 1983009808
    %v8241 = vunpack.c.0.s8 %v8240
    %v8242 = vlaneseq
    %v8243 = vshrl.u32 %v8242, 7
    %v8244 = vsub.s32 %v8241, %v8243
    %v8245 = vrot.slane %v7828, %v8244
    %v8247 = vunpack.c.l.s4 1983009808
    %v8248 = vunpack.c.0.s8 %v8247
    %v8249 = vlaneseq
    %v8250 = vshrl.u32 %v8249, 7
    %v8251 = vsub.s32 %v8248, %v8250
    %v8252 = vrot.slane %v8238, %v8251
    %v8253 = vcombine.high %v8245, %v8245
    %v8254 = vcombine.high %v8252, %v8252
    %v8256 = vunpack.c.l.s4 1983009808
    %v8257 = vunpack.c.0.s8 %v8256
    %v8258 = vlaneseq
    %v8259 = vshrl.u32 %v8258, 7
    %v8260 = vsub.s32 %v8257, %v8259
    %v8261 = vrot.slane %v7829, %v8260
    %v8262 = vcombine.high %v7830, %v7830
    %v8264 = vunpack.c.l.s4 1983009808
    %v8265 = vunpack.c.0.s8 %v8264
    %v8266 = vlaneseq
    %v8267 = vshrl.u32 %v8266, 7
    %v8268 = vsub.s32 %v8265, %v8267
    %v8269 = vrot.slane %v7830, %v8268
    %v8271 = vunpack.c.l.s4 1983009808
    %v8272 = vunpack.c.0.s8 %v8271
    %v8273 = vlaneseq
    %v8274 = vshrl.u32 %v8273, 7
    %v8275 = vsub.s32 %v8272, %v8274
    %v8276 = vrot.slane %v8262, %v8275
    %v8277 = vcombine.high %v8269, %v8269
    %v8278 = vcombine.high %v8276, %v8276
    %v8280 = vunpack.c.l.s4 1983009808
    %v8281 = vunpack.c.0.s8 %v8280
    %v8282 = vlaneseq
    %v8283 = vshrl.u32 %v8282, 7
    %v8284 = vsub.s32 %v8281, %v8283
    %v8285 = vrot.slane %v7831, %v8284
    %v8286 = vcombine.high %v7832, %v7832
    %v8288 = vunpack.c.l.s4 1983009808
    %v8289 = vunpack.c.0.s8 %v8288
    %v8290 = vlaneseq
    %v8291 = vshrl.u32 %v8290, 7
    %v8292 = vsub.s32 %v8289, %v8291
    %v8293 = vrot.slane %v7832, %v8292
    %v8295 = vunpack.c.l.s4 1983009808
    %v8296 = vunpack.c.0.s8 %v8295
    %v8297 = vlaneseq
    %v8298 = vshrl.u32 %v8297, 7
    %v8299 = vsub.s32 %v8296, %v8298
    %v8300 = vrot.slane %v8286, %v8299
    %v8301 = vcombine.high %v8293, %v8293
    %v8302 = vcombine.high %v8300, %v8300
    %v8304 = vunpack.c.l.s4 1983009808
    %v8305 = vunpack.c.0.s8 %v8304
    %v8306 = vlaneseq
    %v8307 = vshrl.u32 %v8306, 7
    %v8308 = vsub.s32 %v8305, %v8307
    %v8309 = vrot.slane %v7833, %v8308
    %v8310 = vcombine.high %v7834, %v7834
    %v8312 = vunpack.c.l.s4 1983009808
    %v8313 = vunpack.c.0.s8 %v8312
    %v8314 = vlaneseq
    %v8315 = vshrl.u32 %v8314, 7
    %v8316 = vsub.s32 %v8313, %v8315
    %v8317 = vrot.slane %v7834, %v8316
    %v8319 = vunpack.c.l.s4 1983009808
    %v8320 = vunpack.c.0.s8 %v8319
    %v8321 = vlaneseq
    %v8322 = vshrl.u32 %v8321, 7
    %v8323 = vsub.s32 %v8320, %v8322
    %v8324 = vrot.slane %v8310, %v8323
    %v8325 = vcombine.high %v8317, %v8317
    %v8326 = vcombine.high %v8324, %v8324
    %v8328 = vunpack.c.l.s4 1983009808
    %v8329 = vunpack.c.0.s8 %v8328
    %v8330 = vlaneseq
    %v8331 = vshrl.u32 %v8330, 7
    %v8332 = vsub.s32 %v8329, %v8331
    %v8333 = vrot.slane %v7835, %v8332
    %v8334 = vcombine.high %v7836, %v7836
    %v8336 = vunpack.c.l.s4 1983009808
    %v8337 = vunpack.c.0.s8 %v8336
    %v8338 = vlaneseq
    %v8339 = vshrl.u32 %v8338, 7
    %v8340 = vsub.s32 %v8337, %v8339
    %v8341 = vrot.slane %v7836, %v8340
    %v8343 = vunpack.c.l.s4 1983009808
    %v8344 = vunpack.c.0.s8 %v8343
    %v8345 = vlaneseq
    %v8346 = vshrl.u32 %v8345, 7
    %v8347 = vsub.s32 %v8344, %v8346
    %v8348 = vrot.slane %v8334, %v8347
    %v8349 = vcombine.high %v8341, %v8341
    %v8350 = vcombine.high %v8348, %v8348
    %v8352 = vunpack.c.l.s4 1983009808
    %v8353 = vunpack.c.0.s8 %v8352
    %v8354 = vlaneseq
    %v8355 = vshrl.u32 %v8354, 7
    %v8356 = vsub.s32 %v8353, %v8355
    %v8357 = vrot.slane %v7837, %v8356
    %v8358 = vlaneseq
    %v8359 = vshrl.u32 %v8358, 7
    %v8360 = vsub.s32 0, %v8359
    %v8361 = vrot.slane %v7885, %v8360
    %v8362 = vlaneseq
    %v8363 = vshrl.u32 %v8362, 7
    %v8364 = vsub.s32 0, %v8363
    %v8365 = vrot.slane %v7893, %v8364
    %v8366 = vlaneseq
    %v8367 = vshrl.u32 %v8366, 7
    %v8368 = vsub.s32 0, %v8367
    %v8369 = vrot.slane %v7892, %v8368
    %v8370 = vlaneseq
    %v8371 = vshrl.u32 %v8370, 7
    %v8372 = vsub.s32 0, %v8371
    %v8373 = vrot.slane %v7894, %v8372
    %v8374 = vlaneseq
    %v8375 = vshrl.u32 %v8374, 7
    %v8376 = vsub.s32 0, %v8375
    %v8377 = vrot.slane %v7933, %v8376
    %v8378 = vlaneseq
    %v8379 = vshrl.u32 %v8378, 7
    %v8380 = vsub.s32 0, %v8379
    %v8381 = vrot.slane %v7941, %v8380
    %v8382 = vlaneseq
    %v8383 = vshrl.u32 %v8382, 7
    %v8384 = vsub.s32 0, %v8383
    %v8385 = vrot.slane %v7940, %v8384
    %v8386 = vlaneseq
    %v8387 = vshrl.u32 %v8386, 7
    %v8388 = vsub.s32 0, %v8387
    %v8389 = vrot.slane %v7942, %v8388
    %v8390 = vlaneseq
    %v8391 = vshrl.u32 %v8390, 7
    %v8392 = vsub.s32 0, %v8391
    %v8393 = vrot.slane %v7981, %v8392
    %v8394 = vlaneseq
    %v8395 = vshrl.u32 %v8394, 7
    %v8396 = vsub.s32 0, %v8395
    %v8397 = vrot.slane %v7989, %v8396
    %v8398 = vlaneseq
    %v8399 = vshrl.u32 %v8398, 7
    %v8400 = vsub.s32 0, %v8399
    %v8401 = vrot.slane %v7988, %v8400
    %v8402 = vlaneseq
    %v8403 = vshrl.u32 %v8402, 7
    %v8404 = vsub.s32 0, %v8403
    %v8405 = vrot.slane %v7990, %v8404
    %v8406 = vlaneseq
    %v8407 = vshrl.u32 %v8406, 7
    %v8408 = vsub.s32 0, %v8407
    %v8409 = vrot.slane %v8029, %v8408
    %v8410 = vlaneseq
    %v8411 = vshrl.u32 %v8410, 7
    %v8412 = vsub.s32 0, %v8411
    %v8413 = vrot.slane %v8037, %v8412
    %v8414 = vlaneseq
    %v8415 = vshrl.u32 %v8414, 7
    %v8416 = vsub.s32 0, %v8415
    %v8417 = vrot.slane %v8036, %v8416
    %v8418 = vlaneseq
    %v8419 = vshrl.u32 %v8418, 7
    %v8420 = vsub.s32 0, %v8419
    %v8421 = vrot.slane %v8038, %v8420
    %v8422 = vlaneseq
    %v8423 = vshrl.u32 %v8422, 7
    %v8424 = vsub.s32 0, %v8423
    %v8425 = vrot.slane %v8125, %v8424
    %v8426 = vlaneseq
    %v8427 = vshrl.u32 %v8426, 7
    %v8428 = vsub.s32 0, %v8427
    %v8429 = vrot.slane %v8133, %v8428
    %v8430 = vlaneseq
    %v8431 = vshrl.u32 %v8430, 7
    %v8432 = vsub.s32 0, %v8431
    %v8433 = vrot.slane %v8132, %v8432
    %v8434 = vlaneseq
    %v8435 = vshrl.u32 %v8434, 7
    %v8436 = vsub.s32 0, %v8435
    %v8437 = vrot.slane %v8134, %v8436
    %v8438 = vlaneseq
    %v8439 = vshrl.u32 %v8438, 7
    %v8440 = vsub.s32 0, %v8439
    %v8441 = vrot.slane %v8173, %v8440
    %v8442 = vlaneseq
    %v8443 = vshrl.u32 %v8442, 7
    %v8444 = vsub.s32 0, %v8443
    %v8445 = vrot.slane %v8181, %v8444
    %v8446 = vlaneseq
    %v8447 = vshrl.u32 %v8446, 7
    %v8448 = vsub.s32 0, %v8447
    %v8449 = vrot.slane %v8180, %v8448
    %v8450 = vlaneseq
    %v8451 = vshrl.u32 %v8450, 7
    %v8452 = vsub.s32 0, %v8451
    %v8453 = vrot.slane %v8182, %v8452
    %v8454 = vlaneseq
    %v8455 = vshrl.u32 %v8454, 7
    %v8456 = vsub.s32 0, %v8455
    %v8457 = vrot.slane %v8221, %v8456
    %v8458 = vlaneseq
    %v8459 = vshrl.u32 %v8458, 7
    %v8460 = vsub.s32 0, %v8459
    %v8461 = vrot.slane %v8229, %v8460
    %v8462 = vlaneseq
    %v8463 = vshrl.u32 %v8462, 7
    %v8464 = vsub.s32 0, %v8463
    %v8465 = vrot.slane %v8228, %v8464
    %v8466 = vlaneseq
    %v8467 = vshrl.u32 %v8466, 7
    %v8468 = vsub.s32 0, %v8467
    %v8469 = vrot.slane %v8230, %v8468
    %v8470 = vlaneseq
    %v8471 = vshrl.u32 %v8470, 7
    %v8472 = vsub.s32 0, %v8471
    %v8473 = vrot.slane %v8269, %v8472
    %v8474 = vlaneseq
    %v8475 = vshrl.u32 %v8474, 7
    %v8476 = vsub.s32 0, %v8475
    %v8477 = vrot.slane %v8277, %v8476
    %v8478 = vlaneseq
    %v8479 = vshrl.u32 %v8478, 7
    %v8480 = vsub.s32 0, %v8479
    %v8481 = vrot.slane %v8276, %v8480
    %v8482 = vlaneseq
    %v8483 = vshrl.u32 %v8482, 7
    %v8484 = vsub.s32 0, %v8483
    %v8485 = vrot.slane %v8278, %v8484
    %v8486 = vsel %vm3751, %v8365, %v8361
    %v8487 = vsel %vm3753, %v8369, %v8486
    %v8488 = vsel %vm3755, %v8373, %v8487
    %v8489 = vsel %vm3751, %v8381, %v8377
    %v8490 = vsel %vm3753, %v8385, %v8489
    %v8491 = vsel %vm3755, %v8389, %v8490
    %v8492 = vsel %vm3751, %v8397, %v8393
    %v8493 = vsel %vm3753, %v8401, %v8492
    %v8494 = vsel %vm3755, %v8405, %v8493
    %v8495 = vsel %vm3751, %v8413, %v8409
    %v8496 = vsel %vm3753, %v8417, %v8495
    %v8497 = vsel %vm3755, %v8421, %v8496
    %v8498 = vsel %vm3751, %v8429, %v8425
    %v8499 = vsel %vm3753, %v8433, %v8498
    %v8500 = vsel %vm3755, %v8437, %v8499
    %v8501 = vsel %vm3751, %v8445, %v8441
    %v8502 = vsel %vm3753, %v8449, %v8501
    %v8503 = vsel %vm3755, %v8453, %v8502
    %v8504 = vsel %vm3751, %v8461, %v8457
    %v8505 = vsel %vm3753, %v8465, %v8504
    %v8506 = vsel %vm3755, %v8469, %v8505
    %v8507 = vsel %vm3751, %v8477, %v8473
    %v8508 = vsel %vm3753, %v8481, %v8507
    %v8509 = vsel %vm3755, %v8485, %v8508
    %v8518 = vlaneseq
    %v8519 = vshrl.u32 %v8518, 7
    %v8520 = vsub.s32 1, %v8519
    %v8521 = vrot.slane %v7885, %v8520
    %v8522 = vlaneseq
    %v8523 = vshrl.u32 %v8522, 7
    %v8524 = vsub.s32 1, %v8523
    %v8525 = vrot.slane %v7893, %v8524
    %v8526 = vlaneseq
    %v8527 = vshrl.u32 %v8526, 7
    %v8528 = vsub.s32 1, %v8527
    %v8529 = vrot.slane %v7892, %v8528
    %v8530 = vlaneseq
    %v8531 = vshrl.u32 %v8530, 7
    %v8532 = vsub.s32 1, %v8531
    %v8533 = vrot.slane %v7894, %v8532
    %v8534 = vlaneseq
    %v8535 = vshrl.u32 %v8534, 7
    %v8536 = vsub.s32 1, %v8535
    %v8537 = vrot.slane %v7933, %v8536
    %v8538 = vlaneseq
    %v8539 = vshrl.u32 %v8538, 7
    %v8540 = vsub.s32 1, %v8539
    %v8541 = vrot.slane %v7941, %v8540
    %v8542 = vlaneseq
    %v8543 = vshrl.u32 %v8542, 7
    %v8544 = vsub.s32 1, %v8543
    %v8545 = vrot.slane %v7940, %v8544
    %v8546 = vlaneseq
    %v8547 = vshrl.u32 %v8546, 7
    %v8548 = vsub.s32 1, %v8547
    %v8549 = vrot.slane %v7942, %v8548
    %v8550 = vlaneseq
    %v8551 = vshrl.u32 %v8550, 7
    %v8552 = vsub.s32 1, %v8551
    %v8553 = vrot.slane %v7981, %v8552
    %v8554 = vlaneseq
    %v8555 = vshrl.u32 %v8554, 7
    %v8556 = vsub.s32 1, %v8555
    %v8557 = vrot.slane %v7989, %v8556
    %v8558 = vlaneseq
    %v8559 = vshrl.u32 %v8558, 7
    %v8560 = vsub.s32 1, %v8559
    %v8561 = vrot.slane %v7988, %v8560
    %v8562 = vlaneseq
    %v8563 = vshrl.u32 %v8562, 7
    %v8564 = vsub.s32 1, %v8563
    %v8565 = vrot.slane %v7990, %v8564
    %v8566 = vlaneseq
    %v8567 = vshrl.u32 %v8566, 7
    %v8568 = vsub.s32 1, %v8567
    %v8569 = vrot.slane %v8029, %v8568
    %v8570 = vlaneseq
    %v8571 = vshrl.u32 %v8570, 7
    %v8572 = vsub.s32 1, %v8571
    %v8573 = vrot.slane %v8037, %v8572
    %v8574 = vlaneseq
    %v8575 = vshrl.u32 %v8574, 7
    %v8576 = vsub.s32 1, %v8575
    %v8577 = vrot.slane %v8036, %v8576
    %v8578 = vlaneseq
    %v8579 = vshrl.u32 %v8578, 7
    %v8580 = vsub.s32 1, %v8579
    %v8581 = vrot.slane %v8038, %v8580
    %v8582 = vlaneseq
    %v8583 = vshrl.u32 %v8582, 7
    %v8584 = vsub.s32 1, %v8583
    %v8585 = vrot.slane %v8125, %v8584
    %v8586 = vlaneseq
    %v8587 = vshrl.u32 %v8586, 7
    %v8588 = vsub.s32 1, %v8587
    %v8589 = vrot.slane %v8133, %v8588
    %v8590 = vlaneseq
    %v8591 = vshrl.u32 %v8590, 7
    %v8592 = vsub.s32 1, %v8591
    %v8593 = vrot.slane %v8132, %v8592
    %v8594 = vlaneseq
    %v8595 = vshrl.u32 %v8594, 7
    %v8596 = vsub.s32 1, %v8595
    %v8597 = vrot.slane %v8134, %v8596
    %v8598 = vlaneseq
    %v8599 = vshrl.u32 %v8598, 7
    %v8600 = vsub.s32 1, %v8599
    %v8601 = vrot.slane %v8173, %v8600
    %v8602 = vlaneseq
    %v8603 = vshrl.u32 %v8602, 7
    %v8604 = vsub.s32 1, %v8603
    %v8605 = vrot.slane %v8181, %v8604
    %v8606 = vlaneseq
    %v8607 = vshrl.u32 %v8606, 7
    %v8608 = vsub.s32 1, %v8607
    %v8609 = vrot.slane %v8180, %v8608
    %v8610 = vlaneseq
    %v8611 = vshrl.u32 %v8610, 7
    %v8612 = vsub.s32 1, %v8611
    %v8613 = vrot.slane %v8182, %v8612
    %v8614 = vlaneseq
    %v8615 = vshrl.u32 %v8614, 7
    %v8616 = vsub.s32 1, %v8615
    %v8617 = vrot.slane %v8221, %v8616
    %v8618 = vlaneseq
    %v8619 = vshrl.u32 %v8618, 7
    %v8620 = vsub.s32 1, %v8619
    %v8621 = vrot.slane %v8229, %v8620
    %v8622 = vlaneseq
    %v8623 = vshrl.u32 %v8622, 7
    %v8624 = vsub.s32 1, %v8623
    %v8625 = vrot.slane %v8228, %v8624
    %v8626 = vlaneseq
    %v8627 = vshrl.u32 %v8626, 7
    %v8628 = vsub.s32 1, %v8627
    %v8629 = vrot.slane %v8230, %v8628
    %v8630 = vlaneseq
    %v8631 = vshrl.u32 %v8630, 7
    %v8632 = vsub.s32 1, %v8631
    %v8633 = vrot.slane %v8269, %v8632
    %v8634 = vlaneseq
    %v8635 = vshrl.u32 %v8634, 7
    %v8636 = vsub.s32 1, %v8635
    %v8637 = vrot.slane %v8277, %v8636
    %v8638 = vlaneseq
    %v8639 = vshrl.u32 %v8638, 7
    %v8640 = vsub.s32 1, %v8639
    %v8641 = vrot.slane %v8276, %v8640
    %v8642 = vlaneseq
    %v8643 = vshrl.u32 %v8642, 7
    %v8644 = vsub.s32 1, %v8643
    %v8645 = vrot.slane %v8278, %v8644
    %v8646 = vsel %vm3751, %v8525, %v8521
    %v8647 = vsel %vm3753, %v8529, %v8646
    %v8648 = vsel %vm3755, %v8533, %v8647
    %v8649 = vsel %vm3751, %v8541, %v8537
    %v8650 = vsel %vm3753, %v8545, %v8649
    %v8651 = vsel %vm3755, %v8549, %v8650
    %v8652 = vsel %vm3751, %v8557, %v8553
    %v8653 = vsel %vm3753, %v8561, %v8652
    %v8654 = vsel %vm3755, %v8565, %v8653
    %v8655 = vsel %vm3751, %v8573, %v8569
    %v8656 = vsel %vm3753, %v8577, %v8655
    %v8657 = vsel %vm3755, %v8581, %v8656
    %v8658 = vsel %vm3751, %v8589, %v8585
    %v8659 = vsel %vm3753, %v8593, %v8658
    %v8660 = vsel %vm3755, %v8597, %v8659
    %v8661 = vsel %vm3751, %v8605, %v8601
    %v8662 = vsel %vm3753, %v8609, %v8661
    %v8663 = vsel %vm3755, %v8613, %v8662
    %v8664 = vsel %vm3751, %v8621, %v8617
    %v8665 = vsel %vm3753, %v8625, %v8664
    %v8666 = vsel %vm3755, %v8629, %v8665
    %v8667 = vsel %vm3751, %v8637, %v8633
    %v8668 = vsel %vm3753, %v8641, %v8667
    %v8669 = vsel %vm3755, %v8645, %v8668
    %8670 = vrot.lane.b32.xlu0 %v8648, 32
    %v8671 = vpop.permute.xlu0 %8670
    %8672 = vrot.lane.b32.xlu0 %v8651, 32
    %v8673 = vpop.permute.xlu0 %8672
    %8674 = vrot.lane.b32.xlu0 %v8654, 32
    %v8675 = vpop.permute.xlu0 %8674
    %8676 = vrot.lane.b32.xlu0 %v8657, 32
    %v8677 = vpop.permute.xlu0 %8676
    %8678 = vrot.lane.b32.xlu0 %v8660, 32
    %v8679 = vpop.permute.xlu0 %8678
    %8680 = vrot.lane.b32.xlu0 %v8663, 32
    %v8681 = vpop.permute.xlu0 %8680
    %8682 = vrot.lane.b32.xlu0 %v8666, 32
    %v8683 = vpop.permute.xlu0 %8682
    %8684 = vrot.lane.b32.xlu0 %v8669, 32
    %v8685 = vpop.permute.xlu0 %8684
    %v8694 = vlaneseq
    %v8695 = vshrl.u32 %v8694, 7
    %v8696 = vsub.s32 0, %v8695
    %v8697 = vrot.slane %v7901, %v8696
    %v8698 = vlaneseq
    %v8699 = vshrl.u32 %v8698, 7
    %v8700 = vsub.s32 0, %v8699
    %v8701 = vrot.slane %v7949, %v8700
    %v8702 = vlaneseq
    %v8703 = vshrl.u32 %v8702, 7
    %v8704 = vsub.s32 0, %v8703
    %v8705 = vrot.slane %v7997, %v8704
    %v8706 = vlaneseq
    %v8707 = vshrl.u32 %v8706, 7
    %v8708 = vsub.s32 0, %v8707
    %v8709 = vrot.slane %v8045, %v8708
    %v8710 = vlaneseq
    %v8711 = vshrl.u32 %v8710, 7
    %v8712 = vsub.s32 0, %v8711
    %v8713 = vrot.slane %v8141, %v8712
    %v8714 = vlaneseq
    %v8715 = vshrl.u32 %v8714, 7
    %v8716 = vsub.s32 0, %v8715
    %v8717 = vrot.slane %v8189, %v8716
    %v8718 = vlaneseq
    %v8719 = vshrl.u32 %v8718, 7
    %v8720 = vsub.s32 0, %v8719
    %v8721 = vrot.slane %v8237, %v8720
    %v8722 = vlaneseq
    %v8723 = vshrl.u32 %v8722, 7
    %v8724 = vsub.s32 0, %v8723
    %v8725 = vrot.slane %v8285, %v8724
    %v8726 = vsel %vm3751, %v8369, %v8365
    %v8727 = vsel %vm3753, %v8373, %v8726
    %v8728 = vsel %vm3755, %v8697, %v8727
    %v8729 = vsel %vm3751, %v8385, %v8381
    %v8730 = vsel %vm3753, %v8389, %v8729
    %v8731 = vsel %vm3755, %v8701, %v8730
    %v8732 = vsel %vm3751, %v8401, %v8397
    %v8733 = vsel %vm3753, %v8405, %v8732
    %v8734 = vsel %vm3755, %v8705, %v8733
    %v8735 = vsel %vm3751, %v8417, %v8413
    %v8736 = vsel %vm3753, %v8421, %v8735
    %v8737 = vsel %vm3755, %v8709, %v8736
    %v8738 = vsel %vm3751, %v8433, %v8429
    %v8739 = vsel %vm3753, %v8437, %v8738
    %v8740 = vsel %vm3755, %v8713, %v8739
    %v8741 = vsel %vm3751, %v8449, %v8445
    %v8742 = vsel %vm3753, %v8453, %v8741
    %v8743 = vsel %vm3755, %v8717, %v8742
    %v8744 = vsel %vm3751, %v8465, %v8461
    %v8745 = vsel %vm3753, %v8469, %v8744
    %v8746 = vsel %vm3755, %v8721, %v8745
    %v8747 = vsel %vm3751, %v8481, %v8477
    %v8748 = vsel %vm3753, %v8485, %v8747
    %v8749 = vsel %vm3755, %v8725, %v8748
    %8750 = vrot.lane.b32.xlu0 %v8728, 64
    %v8751 = vpop.permute.xlu0 %8750
    %8752 = vrot.lane.b32.xlu0 %v8731, 64
    %v8753 = vpop.permute.xlu0 %8752
    %8754 = vrot.lane.b32.xlu0 %v8734, 64
    %v8755 = vpop.permute.xlu0 %8754
    %8756 = vrot.lane.b32.xlu0 %v8737, 64
    %v8757 = vpop.permute.xlu0 %8756
    %8758 = vrot.lane.b32.xlu0 %v8740, 64
    %v8759 = vpop.permute.xlu0 %8758
    %8760 = vrot.lane.b32.xlu0 %v8743, 64
    %v8761 = vpop.permute.xlu0 %8760
    %8762 = vrot.lane.b32.xlu0 %v8746, 64
    %v8763 = vpop.permute.xlu0 %8762
    %8764 = vrot.lane.b32.xlu0 %v8749, 64
    %v8765 = vpop.permute.xlu0 %8764
    %v8774 = vlaneseq
    %v8775 = vshrl.u32 %v8774, 7
    %v8776 = vsub.s32 1, %v8775
    %v8777 = vrot.slane %v7901, %v8776
    %v8778 = vlaneseq
    %v8779 = vshrl.u32 %v8778, 7
    %v8780 = vsub.s32 1, %v8779
    %v8781 = vrot.slane %v7949, %v8780
    %v8782 = vlaneseq
    %v8783 = vshrl.u32 %v8782, 7
    %v8784 = vsub.s32 1, %v8783
    %v8785 = vrot.slane %v7997, %v8784
    %v8786 = vlaneseq
    %v8787 = vshrl.u32 %v8786, 7
    %v8788 = vsub.s32 1, %v8787
    %v8789 = vrot.slane %v8045, %v8788
    %v8790 = vlaneseq
    %v8791 = vshrl.u32 %v8790, 7
    %v8792 = vsub.s32 1, %v8791
    %v8793 = vrot.slane %v8141, %v8792
    %v8794 = vlaneseq
    %v8795 = vshrl.u32 %v8794, 7
    %v8796 = vsub.s32 1, %v8795
    %v8797 = vrot.slane %v8189, %v8796
    %v8798 = vlaneseq
    %v8799 = vshrl.u32 %v8798, 7
    %v8800 = vsub.s32 1, %v8799
    %v8801 = vrot.slane %v8237, %v8800
    %v8802 = vlaneseq
    %v8803 = vshrl.u32 %v8802, 7
    %v8804 = vsub.s32 1, %v8803
    %v8805 = vrot.slane %v8285, %v8804
    %v8806 = vsel %vm3751, %v8529, %v8525
    %v8807 = vsel %vm3753, %v8533, %v8806
    %v8808 = vsel %vm3755, %v8777, %v8807
    %v8809 = vsel %vm3751, %v8545, %v8541
    %v8810 = vsel %vm3753, %v8549, %v8809
    %v8811 = vsel %vm3755, %v8781, %v8810
    %v8812 = vsel %vm3751, %v8561, %v8557
    %v8813 = vsel %vm3753, %v8565, %v8812
    %v8814 = vsel %vm3755, %v8785, %v8813
    %v8815 = vsel %vm3751, %v8577, %v8573
    %v8816 = vsel %vm3753, %v8581, %v8815
    %v8817 = vsel %vm3755, %v8789, %v8816
    %v8818 = vsel %vm3751, %v8593, %v8589
    %v8819 = vsel %vm3753, %v8597, %v8818
    %v8820 = vsel %vm3755, %v8793, %v8819
    %v8821 = vsel %vm3751, %v8609, %v8605
    %v8822 = vsel %vm3753, %v8613, %v8821
    %v8823 = vsel %vm3755, %v8797, %v8822
    %v8824 = vsel %vm3751, %v8625, %v8621
    %v8825 = vsel %vm3753, %v8629, %v8824
    %v8826 = vsel %vm3755, %v8801, %v8825
    %v8827 = vsel %vm3751, %v8641, %v8637
    %v8828 = vsel %vm3753, %v8645, %v8827
    %v8829 = vsel %vm3755, %v8805, %v8828
    %8830 = vrot.lane.b32.xlu0 %v8808, 96
    %v8831 = vpop.permute.xlu0 %8830
    %8832 = vrot.lane.b32.xlu0 %v8811, 96
    %v8833 = vpop.permute.xlu0 %8832
    %8834 = vrot.lane.b32.xlu0 %v8814, 96
    %v8835 = vpop.permute.xlu0 %8834
    %8836 = vrot.lane.b32.xlu0 %v8817, 96
    %v8837 = vpop.permute.xlu0 %8836
    %8838 = vrot.lane.b32.xlu0 %v8820, 96
    %v8839 = vpop.permute.xlu0 %8838
    %8840 = vrot.lane.b32.xlu0 %v8823, 96
    %v8841 = vpop.permute.xlu0 %8840
    %8842 = vrot.lane.b32.xlu0 %v8826, 96
    %v8843 = vpop.permute.xlu0 %8842
    %8844 = vrot.lane.b32.xlu0 %v8829, 96
    %v8845 = vpop.permute.xlu0 %8844
    %v8854 = vlaneseq
    %v8855 = vshrl.u32 %v8854, 7
    %v8856 = vsub.s32 0, %v8855
    %v8857 = vrot.slane %v7909, %v8856
    %v8858 = vlaneseq
    %v8859 = vshrl.u32 %v8858, 7
    %v8860 = vsub.s32 0, %v8859
    %v8861 = vrot.slane %v7917, %v8860
    %v8862 = vlaneseq
    %v8863 = vshrl.u32 %v8862, 7
    %v8864 = vsub.s32 0, %v8863
    %v8865 = vrot.slane %v7916, %v8864
    %v8866 = vlaneseq
    %v8867 = vshrl.u32 %v8866, 7
    %v8868 = vsub.s32 0, %v8867
    %v8869 = vrot.slane %v7918, %v8868
    %v8870 = vlaneseq
    %v8871 = vshrl.u32 %v8870, 7
    %v8872 = vsub.s32 0, %v8871
    %v8873 = vrot.slane %v7957, %v8872
    %v8874 = vlaneseq
    %v8875 = vshrl.u32 %v8874, 7
    %v8876 = vsub.s32 0, %v8875
    %v8877 = vrot.slane %v7965, %v8876
    %v8878 = vlaneseq
    %v8879 = vshrl.u32 %v8878, 7
    %v8880 = vsub.s32 0, %v8879
    %v8881 = vrot.slane %v7964, %v8880
    %v8882 = vlaneseq
    %v8883 = vshrl.u32 %v8882, 7
    %v8884 = vsub.s32 0, %v8883
    %v8885 = vrot.slane %v7966, %v8884
    %v8886 = vlaneseq
    %v8887 = vshrl.u32 %v8886, 7
    %v8888 = vsub.s32 0, %v8887
    %v8889 = vrot.slane %v8005, %v8888
    %v8890 = vlaneseq
    %v8891 = vshrl.u32 %v8890, 7
    %v8892 = vsub.s32 0, %v8891
    %v8893 = vrot.slane %v8013, %v8892
    %v8894 = vlaneseq
    %v8895 = vshrl.u32 %v8894, 7
    %v8896 = vsub.s32 0, %v8895
    %v8897 = vrot.slane %v8012, %v8896
    %v8898 = vlaneseq
    %v8899 = vshrl.u32 %v8898, 7
    %v8900 = vsub.s32 0, %v8899
    %v8901 = vrot.slane %v8014, %v8900
    %v8902 = vlaneseq
    %v8903 = vshrl.u32 %v8902, 7
    %v8904 = vsub.s32 0, %v8903
    %v8905 = vrot.slane %v8053, %v8904
    %v8906 = vlaneseq
    %v8907 = vshrl.u32 %v8906, 7
    %v8908 = vsub.s32 0, %v8907
    %v8909 = vrot.slane %v8061, %v8908
    %v8910 = vlaneseq
    %v8911 = vshrl.u32 %v8910, 7
    %v8912 = vsub.s32 0, %v8911
    %v8913 = vrot.slane %v8060, %v8912
    %v8914 = vlaneseq
    %v8915 = vshrl.u32 %v8914, 7
    %v8916 = vsub.s32 0, %v8915
    %v8917 = vrot.slane %v8062, %v8916
    %v8918 = vlaneseq
    %v8919 = vshrl.u32 %v8918, 7
    %v8920 = vsub.s32 0, %v8919
    %v8921 = vrot.slane %v8149, %v8920
    %v8922 = vlaneseq
    %v8923 = vshrl.u32 %v8922, 7
    %v8924 = vsub.s32 0, %v8923
    %v8925 = vrot.slane %v8157, %v8924
    %v8926 = vlaneseq
    %v8927 = vshrl.u32 %v8926, 7
    %v8928 = vsub.s32 0, %v8927
    %v8929 = vrot.slane %v8156, %v8928
    %v8930 = vlaneseq
    %v8931 = vshrl.u32 %v8930, 7
    %v8932 = vsub.s32 0, %v8931
    %v8933 = vrot.slane %v8158, %v8932
    %v8934 = vlaneseq
    %v8935 = vshrl.u32 %v8934, 7
    %v8936 = vsub.s32 0, %v8935
    %v8937 = vrot.slane %v8197, %v8936
    %v8938 = vlaneseq
    %v8939 = vshrl.u32 %v8938, 7
    %v8940 = vsub.s32 0, %v8939
    %v8941 = vrot.slane %v8205, %v8940
    %v8942 = vlaneseq
    %v8943 = vshrl.u32 %v8942, 7
    %v8944 = vsub.s32 0, %v8943
    %v8945 = vrot.slane %v8204, %v8944
    %v8946 = vlaneseq
    %v8947 = vshrl.u32 %v8946, 7
    %v8948 = vsub.s32 0, %v8947
    %v8949 = vrot.slane %v8206, %v8948
    %v8950 = vlaneseq
    %v8951 = vshrl.u32 %v8950, 7
    %v8952 = vsub.s32 0, %v8951
    %v8953 = vrot.slane %v8245, %v8952
    %v8954 = vlaneseq
    %v8955 = vshrl.u32 %v8954, 7
    %v8956 = vsub.s32 0, %v8955
    %v8957 = vrot.slane %v8253, %v8956
    %v8958 = vlaneseq
    %v8959 = vshrl.u32 %v8958, 7
    %v8960 = vsub.s32 0, %v8959
    %v8961 = vrot.slane %v8252, %v8960
    %v8962 = vlaneseq
    %v8963 = vshrl.u32 %v8962, 7
    %v8964 = vsub.s32 0, %v8963
    %v8965 = vrot.slane %v8254, %v8964
    %v8966 = vlaneseq
    %v8967 = vshrl.u32 %v8966, 7
    %v8968 = vsub.s32 0, %v8967
    %v8969 = vrot.slane %v8293, %v8968
    %v8970 = vlaneseq
    %v8971 = vshrl.u32 %v8970, 7
    %v8972 = vsub.s32 0, %v8971
    %v8973 = vrot.slane %v8301, %v8972
    %v8974 = vlaneseq
    %v8975 = vshrl.u32 %v8974, 7
    %v8976 = vsub.s32 0, %v8975
    %v8977 = vrot.slane %v8300, %v8976
    %v8978 = vlaneseq
    %v8979 = vshrl.u32 %v8978, 7
    %v8980 = vsub.s32 0, %v8979
    %v8981 = vrot.slane %v8302, %v8980
    %v8982 = vsel %vm3751, %v8861, %v8857
    %v8983 = vsel %vm3753, %v8865, %v8982
    %v8984 = vsel %vm3755, %v8869, %v8983
    %v8985 = vsel %vm3751, %v8877, %v8873
    %v8986 = vsel %vm3753, %v8881, %v8985
    %v8987 = vsel %vm3755, %v8885, %v8986
    %v8988 = vsel %vm3751, %v8893, %v8889
    %v8989 = vsel %vm3753, %v8897, %v8988
    %v8990 = vsel %vm3755, %v8901, %v8989
    %v8991 = vsel %vm3751, %v8909, %v8905
    %v8992 = vsel %vm3753, %v8913, %v8991
    %v8993 = vsel %vm3755, %v8917, %v8992
    %v8994 = vsel %vm3751, %v8925, %v8921
    %v8995 = vsel %vm3753, %v8929, %v8994
    %v8996 = vsel %vm3755, %v8933, %v8995
    %v8997 = vsel %vm3751, %v8941, %v8937
    %v8998 = vsel %vm3753, %v8945, %v8997
    %v8999 = vsel %vm3755, %v8949, %v8998
    %v9000 = vsel %vm3751, %v8957, %v8953
    %v9001 = vsel %vm3753, %v8961, %v9000
    %v9002 = vsel %vm3755, %v8965, %v9001
    %v9003 = vsel %vm3751, %v8973, %v8969
    %v9004 = vsel %vm3753, %v8977, %v9003
    %v9005 = vsel %vm3755, %v8981, %v9004
    %v9014 = vlaneseq
    %v9015 = vshrl.u32 %v9014, 7
    %v9016 = vsub.s32 1, %v9015
    %v9017 = vrot.slane %v7909, %v9016
    %v9018 = vlaneseq
    %v9019 = vshrl.u32 %v9018, 7
    %v9020 = vsub.s32 1, %v9019
    %v9021 = vrot.slane %v7917, %v9020
    %v9022 = vlaneseq
    %v9023 = vshrl.u32 %v9022, 7
    %v9024 = vsub.s32 1, %v9023
    %v9025 = vrot.slane %v7916, %v9024
    %v9026 = vlaneseq
    %v9027 = vshrl.u32 %v9026, 7
    %v9028 = vsub.s32 1, %v9027
    %v9029 = vrot.slane %v7918, %v9028
    %v9030 = vlaneseq
    %v9031 = vshrl.u32 %v9030, 7
    %v9032 = vsub.s32 1, %v9031
    %v9033 = vrot.slane %v7957, %v9032
    %v9034 = vlaneseq
    %v9035 = vshrl.u32 %v9034, 7
    %v9036 = vsub.s32 1, %v9035
    %v9037 = vrot.slane %v7965, %v9036
    %v9038 = vlaneseq
    %v9039 = vshrl.u32 %v9038, 7
    %v9040 = vsub.s32 1, %v9039
    %v9041 = vrot.slane %v7964, %v9040
    %v9042 = vlaneseq
    %v9043 = vshrl.u32 %v9042, 7
    %v9044 = vsub.s32 1, %v9043
    %v9045 = vrot.slane %v7966, %v9044
    %v9046 = vlaneseq
    %v9047 = vshrl.u32 %v9046, 7
    %v9048 = vsub.s32 1, %v9047
    %v9049 = vrot.slane %v8005, %v9048
    %v9050 = vlaneseq
    %v9051 = vshrl.u32 %v9050, 7
    %v9052 = vsub.s32 1, %v9051
    %v9053 = vrot.slane %v8013, %v9052
    %v9054 = vlaneseq
    %v9055 = vshrl.u32 %v9054, 7
    %v9056 = vsub.s32 1, %v9055
    %v9057 = vrot.slane %v8012, %v9056
    %v9058 = vlaneseq
    %v9059 = vshrl.u32 %v9058, 7
    %v9060 = vsub.s32 1, %v9059
    %v9061 = vrot.slane %v8014, %v9060
    %v9062 = vlaneseq
    %v9063 = vshrl.u32 %v9062, 7
    %v9064 = vsub.s32 1, %v9063
    %v9065 = vrot.slane %v8053, %v9064
    %v9066 = vlaneseq
    %v9067 = vshrl.u32 %v9066, 7
    %v9068 = vsub.s32 1, %v9067
    %v9069 = vrot.slane %v8061, %v9068
    %v9070 = vlaneseq
    %v9071 = vshrl.u32 %v9070, 7
    %v9072 = vsub.s32 1, %v9071
    %v9073 = vrot.slane %v8060, %v9072
    %v9074 = vlaneseq
    %v9075 = vshrl.u32 %v9074, 7
    %v9076 = vsub.s32 1, %v9075
    %v9077 = vrot.slane %v8062, %v9076
    %v9078 = vlaneseq
    %v9079 = vshrl.u32 %v9078, 7
    %v9080 = vsub.s32 1, %v9079
    %v9081 = vrot.slane %v8149, %v9080
    %v9082 = vlaneseq
    %v9083 = vshrl.u32 %v9082, 7
    %v9084 = vsub.s32 1, %v9083
    %v9085 = vrot.slane %v8157, %v9084
    %v9086 = vlaneseq
    %v9087 = vshrl.u32 %v9086, 7
    %v9088 = vsub.s32 1, %v9087
    %v9089 = vrot.slane %v8156, %v9088
    %v9090 = vlaneseq
    %v9091 = vshrl.u32 %v9090, 7
    %v9092 = vsub.s32 1, %v9091
    %v9093 = vrot.slane %v8158, %v9092
    %v9094 = vlaneseq
    %v9095 = vshrl.u32 %v9094, 7
    %v9096 = vsub.s32 1, %v9095
    %v9097 = vrot.slane %v8197, %v9096
    %v9098 = vlaneseq
    %v9099 = vshrl.u32 %v9098, 7
    %v9100 = vsub.s32 1, %v9099
    %v9101 = vrot.slane %v8205, %v9100
    %v9102 = vlaneseq
    %v9103 = vshrl.u32 %v9102, 7
    %v9104 = vsub.s32 1, %v9103
    %v9105 = vrot.slane %v8204, %v9104
    %v9106 = vlaneseq
    %v9107 = vshrl.u32 %v9106, 7
    %v9108 = vsub.s32 1, %v9107
    %v9109 = vrot.slane %v8206, %v9108
    %v9110 = vlaneseq
    %v9111 = vshrl.u32 %v9110, 7
    %v9112 = vsub.s32 1, %v9111
    %v9113 = vrot.slane %v8245, %v9112
    %v9114 = vlaneseq
    %v9115 = vshrl.u32 %v9114, 7
    %v9116 = vsub.s32 1, %v9115
    %v9117 = vrot.slane %v8253, %v9116
    %v9118 = vlaneseq
    %v9119 = vshrl.u32 %v9118, 7
    %v9120 = vsub.s32 1, %v9119
    %v9121 = vrot.slane %v8252, %v9120
    %v9122 = vlaneseq
    %v9123 = vshrl.u32 %v9122, 7
    %v9124 = vsub.s32 1, %v9123
    %v9125 = vrot.slane %v8254, %v9124
    %v9126 = vlaneseq
    %v9127 = vshrl.u32 %v9126, 7
    %v9128 = vsub.s32 1, %v9127
    %v9129 = vrot.slane %v8293, %v9128
    %v9130 = vlaneseq
    %v9131 = vshrl.u32 %v9130, 7
    %v9132 = vsub.s32 1, %v9131
    %v9133 = vrot.slane %v8301, %v9132
    %v9134 = vlaneseq
    %v9135 = vshrl.u32 %v9134, 7
    %v9136 = vsub.s32 1, %v9135
    %v9137 = vrot.slane %v8300, %v9136
    %v9138 = vlaneseq
    %v9139 = vshrl.u32 %v9138, 7
    %v9140 = vsub.s32 1, %v9139
    %v9141 = vrot.slane %v8302, %v9140
    %v9142 = vsel %vm3751, %v9021, %v9017
    %v9143 = vsel %vm3753, %v9025, %v9142
    %v9144 = vsel %vm3755, %v9029, %v9143
    %v9145 = vsel %vm3751, %v9037, %v9033
    %v9146 = vsel %vm3753, %v9041, %v9145
    %v9147 = vsel %vm3755, %v9045, %v9146
    %v9148 = vsel %vm3751, %v9053, %v9049
    %v9149 = vsel %vm3753, %v9057, %v9148
    %v9150 = vsel %vm3755, %v9061, %v9149
    %v9151 = vsel %vm3751, %v9069, %v9065
    %v9152 = vsel %vm3753, %v9073, %v9151
    %v9153 = vsel %vm3755, %v9077, %v9152
    %v9154 = vsel %vm3751, %v9085, %v9081
    %v9155 = vsel %vm3753, %v9089, %v9154
    %v9156 = vsel %vm3755, %v9093, %v9155
    %v9157 = vsel %vm3751, %v9101, %v9097
    %v9158 = vsel %vm3753, %v9105, %v9157
    %v9159 = vsel %vm3755, %v9109, %v9158
    %v9160 = vsel %vm3751, %v9117, %v9113
    %v9161 = vsel %vm3753, %v9121, %v9160
    %v9162 = vsel %vm3755, %v9125, %v9161
    %v9163 = vsel %vm3751, %v9133, %v9129
    %v9164 = vsel %vm3753, %v9137, %v9163
    %v9165 = vsel %vm3755, %v9141, %v9164
    %9166 = vrot.lane.b32.xlu0 %v9144, 32
    %v9167 = vpop.permute.xlu0 %9166
    %9168 = vrot.lane.b32.xlu0 %v9147, 32
    %v9169 = vpop.permute.xlu0 %9168
    %9170 = vrot.lane.b32.xlu0 %v9150, 32
    %v9171 = vpop.permute.xlu0 %9170
    %9172 = vrot.lane.b32.xlu0 %v9153, 32
    %v9173 = vpop.permute.xlu0 %9172
    %9174 = vrot.lane.b32.xlu0 %v9156, 32
    %v9175 = vpop.permute.xlu0 %9174
    %9176 = vrot.lane.b32.xlu0 %v9159, 32
    %v9177 = vpop.permute.xlu0 %9176
    %9178 = vrot.lane.b32.xlu0 %v9162, 32
    %v9179 = vpop.permute.xlu0 %9178
    %9180 = vrot.lane.b32.xlu0 %v9165, 32
    %v9181 = vpop.permute.xlu0 %9180
    %v9190 = vlaneseq
    %v9191 = vshrl.u32 %v9190, 7
    %v9192 = vsub.s32 0, %v9191
    %v9193 = vrot.slane %v7925, %v9192
    %v9194 = vlaneseq
    %v9195 = vshrl.u32 %v9194, 7
    %v9196 = vsub.s32 0, %v9195
    %v9197 = vrot.slane %v7973, %v9196
    %v9198 = vlaneseq
    %v9199 = vshrl.u32 %v9198, 7
    %v9200 = vsub.s32 0, %v9199
    %v9201 = vrot.slane %v8021, %v9200
    %v9202 = vlaneseq
    %v9203 = vshrl.u32 %v9202, 7
    %v9204 = vsub.s32 0, %v9203
    %v9205 = vrot.slane %v8069, %v9204
    %v9206 = vlaneseq
    %v9207 = vshrl.u32 %v9206, 7
    %v9208 = vsub.s32 0, %v9207
    %v9209 = vrot.slane %v8165, %v9208
    %v9210 = vlaneseq
    %v9211 = vshrl.u32 %v9210, 7
    %v9212 = vsub.s32 0, %v9211
    %v9213 = vrot.slane %v8213, %v9212
    %v9214 = vlaneseq
    %v9215 = vshrl.u32 %v9214, 7
    %v9216 = vsub.s32 0, %v9215
    %v9217 = vrot.slane %v8261, %v9216
    %v9218 = vlaneseq
    %v9219 = vshrl.u32 %v9218, 7
    %v9220 = vsub.s32 0, %v9219
    %v9221 = vrot.slane %v8309, %v9220
    %v9222 = vsel %vm3751, %v8865, %v8861
    %v9223 = vsel %vm3753, %v8869, %v9222
    %v9224 = vsel %vm3755, %v9193, %v9223
    %v9225 = vsel %vm3751, %v8881, %v8877
    %v9226 = vsel %vm3753, %v8885, %v9225
    %v9227 = vsel %vm3755, %v9197, %v9226
    %v9228 = vsel %vm3751, %v8897, %v8893
    %v9229 = vsel %vm3753, %v8901, %v9228
    %v9230 = vsel %vm3755, %v9201, %v9229
    %v9231 = vsel %vm3751, %v8913, %v8909
    %v9232 = vsel %vm3753, %v8917, %v9231
    %v9233 = vsel %vm3755, %v9205, %v9232
    %v9234 = vsel %vm3751, %v8929, %v8925
    %v9235 = vsel %vm3753, %v8933, %v9234
    %v9236 = vsel %vm3755, %v9209, %v9235
    %v9237 = vsel %vm3751, %v8945, %v8941
    %v9238 = vsel %vm3753, %v8949, %v9237
    %v9239 = vsel %vm3755, %v9213, %v9238
    %v9240 = vsel %vm3751, %v8961, %v8957
    %v9241 = vsel %vm3753, %v8965, %v9240
    %v9242 = vsel %vm3755, %v9217, %v9241
    %v9243 = vsel %vm3751, %v8977, %v8973
    %v9244 = vsel %vm3753, %v8981, %v9243
    %v9245 = vsel %vm3755, %v9221, %v9244
    %9246 = vrot.lane.b32.xlu0 %v9224, 64
    %v9247 = vpop.permute.xlu0 %9246
    %9248 = vrot.lane.b32.xlu0 %v9227, 64
    %v9249 = vpop.permute.xlu0 %9248
    %9250 = vrot.lane.b32.xlu0 %v9230, 64
    %v9251 = vpop.permute.xlu0 %9250
    %9252 = vrot.lane.b32.xlu0 %v9233, 64
    %v9253 = vpop.permute.xlu0 %9252
    %9254 = vrot.lane.b32.xlu0 %v9236, 64
    %v9255 = vpop.permute.xlu0 %9254
    %9256 = vrot.lane.b32.xlu0 %v9239, 64
    %v9257 = vpop.permute.xlu0 %9256
    %9258 = vrot.lane.b32.xlu0 %v9242, 64
    %v9259 = vpop.permute.xlu0 %9258
    %9260 = vrot.lane.b32.xlu0 %v9245, 64
    %v9261 = vpop.permute.xlu0 %9260
    %v9270 = vlaneseq
    %v9271 = vshrl.u32 %v9270, 7
    %v9272 = vsub.s32 1, %v9271
    %v9273 = vrot.slane %v7925, %v9272
    %v9274 = vlaneseq
    %v9275 = vshrl.u32 %v9274, 7
    %v9276 = vsub.s32 1, %v9275
    %v9277 = vrot.slane %v7973, %v9276
    %v9278 = vlaneseq
    %v9279 = vshrl.u32 %v9278, 7
    %v9280 = vsub.s32 1, %v9279
    %v9281 = vrot.slane %v8021, %v9280
    %v9282 = vlaneseq
    %v9283 = vshrl.u32 %v9282, 7
    %v9284 = vsub.s32 1, %v9283
    %v9285 = vrot.slane %v8069, %v9284
    %v9286 = vlaneseq
    %v9287 = vshrl.u32 %v9286, 7
    %v9288 = vsub.s32 1, %v9287
    %v9289 = vrot.slane %v8165, %v9288
    %v9290 = vlaneseq
    %v9291 = vshrl.u32 %v9290, 7
    %v9292 = vsub.s32 1, %v9291
    %v9293 = vrot.slane %v8213, %v9292
    %v9294 = vlaneseq
    %v9295 = vshrl.u32 %v9294, 7
    %v9296 = vsub.s32 1, %v9295
    %v9297 = vrot.slane %v8261, %v9296
    %v9298 = vlaneseq
    %v9299 = vshrl.u32 %v9298, 7
    %v9300 = vsub.s32 1, %v9299
    %v9301 = vrot.slane %v8309, %v9300
    %v9302 = vsel %vm3751, %v9025, %v9021
    %v9303 = vsel %vm3753, %v9029, %v9302
    %v9304 = vsel %vm3755, %v9273, %v9303
    %v9305 = vsel %vm3751, %v9041, %v9037
    %v9306 = vsel %vm3753, %v9045, %v9305
    %v9307 = vsel %vm3755, %v9277, %v9306
    %v9308 = vsel %vm3751, %v9057, %v9053
    %v9309 = vsel %vm3753, %v9061, %v9308
    %v9310 = vsel %vm3755, %v9281, %v9309
    %v9311 = vsel %vm3751, %v9073, %v9069
    %v9312 = vsel %vm3753, %v9077, %v9311
    %v9313 = vsel %vm3755, %v9285, %v9312
    %v9314 = vsel %vm3751, %v9089, %v9085
    %v9315 = vsel %vm3753, %v9093, %v9314
    %v9316 = vsel %vm3755, %v9289, %v9315
    %v9317 = vsel %vm3751, %v9105, %v9101
    %v9318 = vsel %vm3753, %v9109, %v9317
    %v9319 = vsel %vm3755, %v9293, %v9318
    %v9320 = vsel %vm3751, %v9121, %v9117
    %v9321 = vsel %vm3753, %v9125, %v9320
    %v9322 = vsel %vm3755, %v9297, %v9321
    %v9323 = vsel %vm3751, %v9137, %v9133
    %v9324 = vsel %vm3753, %v9141, %v9323
    %v9325 = vsel %vm3755, %v9301, %v9324
    %9326 = vrot.lane.b32.xlu0 %v9304, 96
    %v9327 = vpop.permute.xlu0 %9326
    %9328 = vrot.lane.b32.xlu0 %v9307, 96
    %v9329 = vpop.permute.xlu0 %9328
    %9330 = vrot.lane.b32.xlu0 %v9310, 96
    %v9331 = vpop.permute.xlu0 %9330
    %9332 = vrot.lane.b32.xlu0 %v9313, 96
    %v9333 = vpop.permute.xlu0 %9332
    %9334 = vrot.lane.b32.xlu0 %v9316, 96
    %v9335 = vpop.permute.xlu0 %9334
    %9336 = vrot.lane.b32.xlu0 %v9319, 96
    %v9337 = vpop.permute.xlu0 %9336
    %9338 = vrot.lane.b32.xlu0 %v9322, 96
    %v9339 = vpop.permute.xlu0 %9338
    %9340 = vrot.lane.b32.xlu0 %v9325, 96
    %v9341 = vpop.permute.xlu0 %9340
    %v9350 = vlaneseq
    %v9351 = vshrl.u32 %v9350, 7
    %v9352 = vsub.s32 0, %v9351
    %v9353 = vrot.slane %v8077, %v9352
    %v9354 = vlaneseq
    %v9355 = vshrl.u32 %v9354, 7
    %v9356 = vsub.s32 0, %v9355
    %v9357 = vrot.slane %v8085, %v9356
    %v9358 = vlaneseq
    %v9359 = vshrl.u32 %v9358, 7
    %v9360 = vsub.s32 0, %v9359
    %v9361 = vrot.slane %v8084, %v9360
    %v9362 = vlaneseq
    %v9363 = vshrl.u32 %v9362, 7
    %v9364 = vsub.s32 0, %v9363
    %v9365 = vrot.slane %v8086, %v9364
    %v9366 = vlaneseq
    %v9367 = vshrl.u32 %v9366, 7
    %v9368 = vsub.s32 0, %v9367
    %v9369 = vrot.slane %v8317, %v9368
    %v9370 = vlaneseq
    %v9371 = vshrl.u32 %v9370, 7
    %v9372 = vsub.s32 0, %v9371
    %v9373 = vrot.slane %v8325, %v9372
    %v9374 = vlaneseq
    %v9375 = vshrl.u32 %v9374, 7
    %v9376 = vsub.s32 0, %v9375
    %v9377 = vrot.slane %v8324, %v9376
    %v9378 = vlaneseq
    %v9379 = vshrl.u32 %v9378, 7
    %v9380 = vsub.s32 0, %v9379
    %v9381 = vrot.slane %v8326, %v9380
    %v9382 = vsel %vm3751, %v9357, %v9353
    %v9383 = vsel %vm3753, %v9361, %v9382
    %v9384 = vsel %vm3755, %v9365, %v9383
    %v9385 = vsel %vm3751, %v9373, %v9369
    %v9386 = vsel %vm3753, %v9377, %v9385
    %v9387 = vsel %vm3755, %v9381, %v9386
    %v9390 = vlaneseq
    %v9391 = vshrl.u32 %v9390, 7
    %v9392 = vsub.s32 1, %v9391
    %v9393 = vrot.slane %v8077, %v9392
    %v9394 = vlaneseq
    %v9395 = vshrl.u32 %v9394, 7
    %v9396 = vsub.s32 1, %v9395
    %v9397 = vrot.slane %v8085, %v9396
    %v9398 = vlaneseq
    %v9399 = vshrl.u32 %v9398, 7
    %v9400 = vsub.s32 1, %v9399
    %v9401 = vrot.slane %v8084, %v9400
    %v9402 = vlaneseq
    %v9403 = vshrl.u32 %v9402, 7
    %v9404 = vsub.s32 1, %v9403
    %v9405 = vrot.slane %v8086, %v9404
    %v9406 = vlaneseq
    %v9407 = vshrl.u32 %v9406, 7
    %v9408 = vsub.s32 1, %v9407
    %v9409 = vrot.slane %v8317, %v9408
    %v9410 = vlaneseq
    %v9411 = vshrl.u32 %v9410, 7
    %v9412 = vsub.s32 1, %v9411
    %v9413 = vrot.slane %v8325, %v9412
    %v9414 = vlaneseq
    %v9415 = vshrl.u32 %v9414, 7
    %v9416 = vsub.s32 1, %v9415
    %v9417 = vrot.slane %v8324, %v9416
    %v9418 = vlaneseq
    %v9419 = vshrl.u32 %v9418, 7
    %v9420 = vsub.s32 1, %v9419
    %v9421 = vrot.slane %v8326, %v9420
    %v9422 = vsel %vm3751, %v9397, %v9393
    %v9423 = vsel %vm3753, %v9401, %v9422
    %v9424 = vsel %vm3755, %v9405, %v9423
    %v9425 = vsel %vm3751, %v9413, %v9409
    %v9426 = vsel %vm3753, %v9417, %v9425
    %v9427 = vsel %vm3755, %v9421, %v9426
    %9428 = vrot.lane.b32.xlu0 %v9424, 32
    %v9429 = vpop.permute.xlu0 %9428
    %9430 = vrot.lane.b32.xlu0 %v9427, 32
    %v9431 = vpop.permute.xlu0 %9430
    %v9434 = vlaneseq
    %v9435 = vshrl.u32 %v9434, 7
    %v9436 = vsub.s32 0, %v9435
    %v9437 = vrot.slane %v8093, %v9436
    %v9438 = vlaneseq
    %v9439 = vshrl.u32 %v9438, 7
    %v9440 = vsub.s32 0, %v9439
    %v9441 = vrot.slane %v8333, %v9440
    %v9442 = vsel %vm3751, %v9361, %v9357
    %v9443 = vsel %vm3753, %v9365, %v9442
    %v9444 = vsel %vm3755, %v9437, %v9443
    %v9445 = vsel %vm3751, %v9377, %v9373
    %v9446 = vsel %vm3753, %v9381, %v9445
    %v9447 = vsel %vm3755, %v9441, %v9446
    %9448 = vrot.lane.b32.xlu0 %v9444, 64
    %v9449 = vpop.permute.xlu0 %9448
    %9450 = vrot.lane.b32.xlu0 %v9447, 64
    %v9451 = vpop.permute.xlu0 %9450
    %v9454 = vlaneseq
    %v9455 = vshrl.u32 %v9454, 7
    %v9456 = vsub.s32 1, %v9455
    %v9457 = vrot.slane %v8093, %v9456
    %v9458 = vlaneseq
    %v9459 = vshrl.u32 %v9458, 7
    %v9460 = vsub.s32 1, %v9459
    %v9461 = vrot.slane %v8333, %v9460
    %v9462 = vsel %vm3751, %v9401, %v9397
    %v9463 = vsel %vm3753, %v9405, %v9462
    %v9464 = vsel %vm3755, %v9457, %v9463
    %v9465 = vsel %vm3751, %v9417, %v9413
    %v9466 = vsel %vm3753, %v9421, %v9465
    %v9467 = vsel %vm3755, %v9461, %v9466
    %9468 = vrot.lane.b32.xlu0 %v9464, 96
    %v9469 = vpop.permute.xlu0 %9468
    %9470 = vrot.lane.b32.xlu0 %v9467, 96
    %v9471 = vpop.permute.xlu0 %9470
    %v9474 = vlaneseq
    %v9475 = vshrl.u32 %v9474, 7
    %v9476 = vsub.s32 0, %v9475
    %v9477 = vrot.slane %v8101, %v9476
    %v9478 = vlaneseq
    %v9479 = vshrl.u32 %v9478, 7
    %v9480 = vsub.s32 0, %v9479
    %v9481 = vrot.slane %v8109, %v9480
    %v9482 = vlaneseq
    %v9483 = vshrl.u32 %v9482, 7
    %v9484 = vsub.s32 0, %v9483
    %v9485 = vrot.slane %v8108, %v9484
    %v9486 = vlaneseq
    %v9487 = vshrl.u32 %v9486, 7
    %v9488 = vsub.s32 0, %v9487
    %v9489 = vrot.slane %v8110, %v9488
    %v9490 = vlaneseq
    %v9491 = vshrl.u32 %v9490, 7
    %v9492 = vsub.s32 0, %v9491
    %v9493 = vrot.slane %v8341, %v9492
    %v9494 = vlaneseq
    %v9495 = vshrl.u32 %v9494, 7
    %v9496 = vsub.s32 0, %v9495
    %v9497 = vrot.slane %v8349, %v9496
    %v9498 = vlaneseq
    %v9499 = vshrl.u32 %v9498, 7
    %v9500 = vsub.s32 0, %v9499
    %v9501 = vrot.slane %v8348, %v9500
    %v9502 = vlaneseq
    %v9503 = vshrl.u32 %v9502, 7
    %v9504 = vsub.s32 0, %v9503
    %v9505 = vrot.slane %v8350, %v9504
    %v9506 = vsel %vm3751, %v9481, %v9477
    %v9507 = vsel %vm3753, %v9485, %v9506
    %v9508 = vsel %vm3755, %v9489, %v9507
    %v9509 = vsel %vm3751, %v9497, %v9493
    %v9510 = vsel %vm3753, %v9501, %v9509
    %v9511 = vsel %vm3755, %v9505, %v9510
    %v9514 = vlaneseq
    %v9515 = vshrl.u32 %v9514, 7
    %v9516 = vsub.s32 1, %v9515
    %v9517 = vrot.slane %v8101, %v9516
    %v9518 = vlaneseq
    %v9519 = vshrl.u32 %v9518, 7
    %v9520 = vsub.s32 1, %v9519
    %v9521 = vrot.slane %v8109, %v9520
    %v9522 = vlaneseq
    %v9523 = vshrl.u32 %v9522, 7
    %v9524 = vsub.s32 1, %v9523
    %v9525 = vrot.slane %v8108, %v9524
    %v9526 = vlaneseq
    %v9527 = vshrl.u32 %v9526, 7
    %v9528 = vsub.s32 1, %v9527
    %v9529 = vrot.slane %v8110, %v9528
    %v9530 = vlaneseq
    %v9531 = vshrl.u32 %v9530, 7
    %v9532 = vsub.s32 1, %v9531
    %v9533 = vrot.slane %v8341, %v9532
    %v9534 = vlaneseq
    %v9535 = vshrl.u32 %v9534, 7
    %v9536 = vsub.s32 1, %v9535
    %v9537 = vrot.slane %v8349, %v9536
    %v9538 = vlaneseq
    %v9539 = vshrl.u32 %v9538, 7
    %v9540 = vsub.s32 1, %v9539
    %v9541 = vrot.slane %v8348, %v9540
    %v9542 = vlaneseq
    %v9543 = vshrl.u32 %v9542, 7
    %v9544 = vsub.s32 1, %v9543
    %v9545 = vrot.slane %v8350, %v9544
    %v9546 = vsel %vm3751, %v9521, %v9517
    %v9547 = vsel %vm3753, %v9525, %v9546
    %v9548 = vsel %vm3755, %v9529, %v9547
    %v9549 = vsel %vm3751, %v9537, %v9533
    %v9550 = vsel %vm3753, %v9541, %v9549
    %v9551 = vsel %vm3755, %v9545, %v9550
    %9552 = vrot.lane.b32.xlu0 %v9548, 32
    %v9553 = vpop.permute.xlu0 %9552
    %9554 = vrot.lane.b32.xlu0 %v9551, 32
    %v9555 = vpop.permute.xlu0 %9554
    %v9558 = vlaneseq
    %v9559 = vshrl.u32 %v9558, 7
    %v9560 = vsub.s32 0, %v9559
    %v9561 = vrot.slane %v8117, %v9560
    %v9562 = vlaneseq
    %v9563 = vshrl.u32 %v9562, 7
    %v9564 = vsub.s32 0, %v9563
    %v9565 = vrot.slane %v8357, %v9564
    %v9566 = vsel %vm3751, %v9485, %v9481
    %v9567 = vsel %vm3753, %v9489, %v9566
    %v9568 = vsel %vm3755, %v9561, %v9567
    %v9569 = vsel %vm3751, %v9501, %v9497
    %v9570 = vsel %vm3753, %v9505, %v9569
    %v9571 = vsel %vm3755, %v9565, %v9570
    %9572 = vrot.lane.b32.xlu0 %v9568, 64
    %v9573 = vpop.permute.xlu0 %9572
    %9574 = vrot.lane.b32.xlu0 %v9571, 64
    %v9575 = vpop.permute.xlu0 %9574
    %v9578 = vlaneseq
    %v9579 = vshrl.u32 %v9578, 7
    %v9580 = vsub.s32 1, %v9579
    %v9581 = vrot.slane %v8117, %v9580
    %v9582 = vlaneseq
    %v9583 = vshrl.u32 %v9582, 7
    %v9584 = vsub.s32 1, %v9583
    %v9585 = vrot.slane %v8357, %v9584
    %v9586 = vsel %vm3751, %v9525, %v9521
    %v9587 = vsel %vm3753, %v9529, %v9586
    %v9588 = vsel %vm3755, %v9581, %v9587
    %v9589 = vsel %vm3751, %v9541, %v9537
    %v9590 = vsel %vm3753, %v9545, %v9589
    %v9591 = vsel %vm3755, %v9585, %v9590
    %9592 = vrot.lane.b32.xlu0 %v9588, 96
    %v9593 = vpop.permute.xlu0 %9592
    %9594 = vrot.lane.b32.xlu0 %v9591, 96
    %v9595 = vpop.permute.xlu0 %9594
    %v9598 = vsel %vm7258, %v8488, %v8671
    %v9599 = vsel %vm7258, %v8491, %v8673
    %v9600 = vsel %vm7258, %v8494, %v8675
    %v9601 = vsel %vm7258, %v8497, %v8677
    %v9602 = vsel %vm7258, %v8500, %v8679
    %v9603 = vsel %vm7258, %v8503, %v8681
    %v9604 = vsel %vm7258, %v8506, %v8683
    %v9605 = vsel %vm7258, %v8509, %v8685
    %v9606 = vsel %vm7291, %v9598, %v8751
    %v9607 = vsel %vm7291, %v9599, %v8753
    %v9608 = vsel %vm7291, %v9600, %v8755
    %v9609 = vsel %vm7291, %v9601, %v8757
    %v9610 = vsel %vm7291, %v9602, %v8759
    %v9611 = vsel %vm7291, %v9603, %v8761
    %v9612 = vsel %vm7291, %v9604, %v8763
    %v9613 = vsel %vm7291, %v9605, %v8765
    %v9614 = vsel %vm7325, %v9606, %v8831
    %v9615 = vsel %vm7325, %v9607, %v8833
    %v9616 = vsel %vm7325, %v9608, %v8835
    %v9617 = vsel %vm7325, %v9609, %v8837
    %v9618 = vsel %vm7325, %v9610, %v8839
    %v9619 = vsel %vm7325, %v9611, %v8841
    %v9620 = vsel %vm7325, %v9612, %v8843
    %v9621 = vsel %vm7325, %v9613, %v8845
    %v9622 = vsel %vm7258, %v8984, %v9167
    %v9623 = vsel %vm7258, %v8987, %v9169
    %v9624 = vsel %vm7258, %v8990, %v9171
    %v9625 = vsel %vm7258, %v8993, %v9173
    %v9626 = vsel %vm7258, %v8996, %v9175
    %v9627 = vsel %vm7258, %v8999, %v9177
    %v9628 = vsel %vm7258, %v9002, %v9179
    %v9629 = vsel %vm7258, %v9005, %v9181
    %v9630 = vsel %vm7291, %v9622, %v9247
    %v9631 = vsel %vm7291, %v9623, %v9249
    %v9632 = vsel %vm7291, %v9624, %v9251
    %v9633 = vsel %vm7291, %v9625, %v9253
    %v9634 = vsel %vm7291, %v9626, %v9255
    %v9635 = vsel %vm7291, %v9627, %v9257
    %v9636 = vsel %vm7291, %v9628, %v9259
    %v9637 = vsel %vm7291, %v9629, %v9261
    %v9638 = vsel %vm7325, %v9630, %v9327
    %v9639 = vsel %vm7325, %v9631, %v9329
    %v9640 = vsel %vm7325, %v9632, %v9331
    %v9641 = vsel %vm7325, %v9633, %v9333
    %v9642 = vsel %vm7325, %v9634, %v9335
    %v9643 = vsel %vm7325, %v9635, %v9337
    %v9644 = vsel %vm7325, %v9636, %v9339
    %v9645 = vsel %vm7325, %v9637, %v9341
    %v9646 = vsel %vm7258, %v9384, %v9429
    %v9647 = vsel %vm7258, %v9387, %v9431
    %v9648 = vsel %vm7291, %v9646, %v9449
    %v9649 = vsel %vm7291, %v9647, %v9451
    %v9650 = vsel %vm7325, %v9648, %v9469
    %v9651 = vsel %vm7325, %v9649, %v9471
    %v9652 = vsel %vm7258, %v9508, %v9553
    %v9653 = vsel %vm7258, %v9511, %v9555
    %v9654 = vsel %vm7291, %v9652, %v9573
    %v9655 = vsel %vm7291, %v9653, %v9575
    %v9656 = vsel %vm7325, %v9654, %v9593
    %v9657 = vsel %vm7325, %v9655, %v9595
    %v9678 = vcombine.low %v9614, %v9638
    %v9679 = vcombine.low %v9615, %v9639
    %v9680 = vcombine.low %v9616, %v9640
    %v9681 = vcombine.low %v9617, %v9641
    %v9682 = vcombine.low %v9650, %v9656
    %v9683 = vcombine.low %v9618, %v9642
    %v9684 = vcombine.low %v9619, %v9643
    %v9685 = vcombine.low %v9620, %v9644
    %v9686 = vcombine.low %v9621, %v9645
    %v9687 = vcombine.low %v9651, %v9657
    %v9688 = vld [vmem:[%s7] sm:$0xff]
    %v9689 = vld [vmem:[%s7 + $0x8] sm:$0xff]
    %v9690 = vld [vmem:[%s7 + $0x10] sm:$0xff]
    %v9691 = vld [vmem:[%s7 + $0x18] sm:$0xff]
    %v9692 = vld [vmem:[%s7 + $0x20] sm:$0xff]
    %v9693 = vld [vmem:[%s7 + $0x28] sm:$0xff]
    %v9694 = vld [vmem:[%s7 + $0x30] sm:$0xff]
    %v9695 = vld [vmem:[%s7 + $0x38] sm:$0xff]
    %v9696 = vld [vmem:[%s7 + $0x40] sm:$0xff]
    %v9697 = vld [vmem:[%s7 + $0x48] sm:$0xff]
    %v9698 = vld [vmem:[%s7 + $0x50] sm:$0xff]
    %v9699 = vld [vmem:[%s7 + $0x58] sm:$0xff]
    %v9700 = vld [vmem:[%s7 + $0x60] sm:$0xff]
    %v9701 = vld [vmem:[%s7 + $0x68] sm:$0xff]
    %v9702 = vld [vmem:[%s7 + $0x70] sm:$0xff]
    %v9703 = vld [vmem:[%s7 + $0x78] sm:$0xff]
    %v9704 = vld [vmem:[%s7 + $0x80] sm:$0xff]
    %v9705 = vld [vmem:[%s7 + $0x88] sm:$0xff]
    %v9706 = vld [vmem:[%s7 + $0x90] sm:$0xff]
    %v9707 = vld [vmem:[%s7 + $0x98] sm:$0xff]
    %v9708 = vld [vmem:[%s7 + $0xa0] sm:$0xff]
    %v9709 = vld [vmem:[%s7 + $0xa8] sm:$0xff]
    %v9710 = vld [vmem:[%s7 + $0xb0] sm:$0xff]
    %v9711 = vld [vmem:[%s7 + $0xb8] sm:$0xff]
    %v9712 = vld [vmem:[%s7 + $0xc0] sm:$0xff]
    %v9713 = vld [vmem:[%s7 + $0xc8] sm:$0xff]
    %v9714 = vld [vmem:[%s7 + $0xd0] sm:$0xff]
    %v9715 = vld [vmem:[%s7 + $0xd8] sm:$0xff]
    %v9716 = vld [vmem:[%s7 + $0xe0] sm:$0xff]
    %v9717 = vld [vmem:[%s7 + $0xe8] sm:$0xff]
    %v9718 = vld [vmem:[%s7 + $0xf0] sm:$0xff]
    %v9719 = vld [vmem:[%s7 + $0xf8] sm:$0xff]
    %v9720 = vld [vmem:[%s7 + $0x100] sm:$0xff]
    %v9721 = vld [vmem:[%s7 + $0x108] sm:$0xff]
    %v9722 = vld [vmem:[%s7 + $0x110] sm:$0xff]
    %v9723 = vld [vmem:[%s7 + $0x118] sm:$0xff]
    %v9724 = vld [vmem:[%s7 + $0x120] sm:$0xff]
    %v9725 = vld [vmem:[%s7 + $0x128] sm:$0xff]
    %v9726 = vld [vmem:[%s7 + $0x130] sm:$0xff]
    %v9727 = vld [vmem:[%s7 + $0x138] sm:$0xff]
    %v9728 = vld [vmem:[%s7 + $0x140] sm:$0xff]
    %v9729 = vld [vmem:[%s7 + $0x148] sm:$0xff]
    %v9730 = vld [vmem:[%s7 + $0x150] sm:$0xff]
    %v9731 = vld [vmem:[%s7 + $0x158] sm:$0xff]
    %v9732 = vld [vmem:[%s7 + $0x160] sm:$0xff]
    %v9733 = vld [vmem:[%s7 + $0x168] sm:$0xff]
    %v9734 = vld [vmem:[%s7 + $0x170] sm:$0xff]
    %v9735 = vld [vmem:[%s7 + $0x178] sm:$0xff]
    %v9736 = vld [vmem:[%s7 + $0x180] sm:$0xff]
    %v9737 = vld [vmem:[%s7 + $0x188] sm:$0xff]
    %v9738 = vld [vmem:[%s7 + $0x190] sm:$0xff]
    %v9739 = vld [vmem:[%s7 + $0x198] sm:$0xff]
    %v9740 = vld [vmem:[%s7 + $0x1a0] sm:$0xff]
    %v9741 = vld [vmem:[%s7 + $0x1a8] sm:$0xff]
    %v9742 = vld [vmem:[%s7 + $0x1b0] sm:$0xff]
    %v9743 = vld [vmem:[%s7 + $0x1b8] sm:$0xff]
    %v9744 = vld [vmem:[%s7 + $0x1c0] sm:$0xff]
    %v9745 = vld [vmem:[%s7 + $0x1c8] sm:$0xff]
    %v9746 = vld [vmem:[%s7 + $0x1d0] sm:$0xff]
    %v9747 = vld [vmem:[%s7 + $0x1d8] sm:$0xff]
    %v9748 = vld [vmem:[%s7 + $0x1e0] sm:$0xff]
    %v9749 = vld [vmem:[%s7 + $0x1e8] sm:$0xff]
    %v9750 = vld [vmem:[%s7 + $0x1f0] sm:$0xff]
    %v9751 = vld [vmem:[%s7 + $0x1f8] sm:$0xff]
    %v9752 = vcombine.low %v9678, %v9679
    %v9753 = vcombine.high %v9678, %v9679
    %v9754 = vcombine.low %v9679, %v9680
    %v9755 = vcombine.high %v9679, %v9680
    %v9756 = vcombine.low %v9680, %v9681
    %v9757 = vcombine.high %v9680, %v9681
    %v9758 = vcombine.low %v9681, %v9682
    %v9759 = vcombine.high %v9681, %v9682
    %v9760 = vcombine.low %v9683, %v9684
    %v9761 = vcombine.high %v9683, %v9684
    %v9762 = vcombine.low %v9684, %v9685
    %v9763 = vcombine.high %v9684, %v9685
    %v9764 = vcombine.low %v9685, %v9686
    %v9765 = vcombine.high %v9685, %v9686
    %v9766 = vcombine.low %v9686, %v9687
    %v9767 = vcombine.high %v9686, %v9687
    %9784 = vmatprep.subr.mxu0 0.0
    %9785 = vmatpush1.msra.mxu0 %v9688
    %9786 = vmatprep.subr.mxu0 0.0
    %9787 = vmatpush1.msra.mxu0 %v9689
    %9788 = vmatprep.subr.mxu0 0.0
    %9789 = vmatpush1.msra.mxu0 %v9690
    %9790 = vmatprep.subr.mxu0 0.0
    %9791 = vmatpush1.msra.mxu0 %v9691
    %9792 = vmatprep.subr.mxu0 0.0
    %9793 = vmatpush1.msra.mxu0 %v9692
    %9794 = vmatprep.subr.mxu0 0.0
    %9795 = vmatpush1.msra.mxu0 %v9693
    %9796 = vmatprep.subr.mxu0 0.0
    %9797 = vmatpush1.msra.mxu0 %v9694
    %9798 = vmatprep.subr.mxu0 0.0
    %9799 = vmatpush1.msra.mxu0 %v9695
    %9800 = vmatprep.subr.mxu0 0.0
    %9801 = vmatpush1.msra.mxu0 %v9696
    %9802 = vmatprep.subr.mxu0 0.0
    %9803 = vmatpush1.msra.mxu0 %v9697
    %9804 = vmatprep.subr.mxu0 0.0
    %9805 = vmatpush1.msra.mxu0 %v9698
    %9806 = vmatprep.subr.mxu0 0.0
    %9807 = vmatpush1.msra.mxu0 %v9699
    %9808 = vmatprep.subr.mxu0 0.0
    %9809 = vmatpush1.msra.mxu0 %v9700
    %9810 = vmatprep.subr.mxu0 0.0
    %9811 = vmatpush1.msra.mxu0 %v9701
    %9812 = vmatprep.subr.mxu0 0.0
    %9813 = vmatpush1.msra.mxu0 %v9702
    %9814 = vmatprep.subr.mxu0 0.0
    %9815 = vmatpush1.msra.mxu0 %v9703
    %9816 = vmatprep.subr.mxu0 0.0
    %9817 = vmatpush1.msra.mxu0 %v9704
    %9818 = vmatprep.subr.mxu0 0.0
    %9819 = vmatpush1.msra.mxu0 %v9705
    %9820 = vmatprep.subr.mxu0 0.0
    %9821 = vmatpush1.msra.mxu0 %v9706
    %9822 = vmatprep.subr.mxu0 0.0
    %9823 = vmatpush1.msra.mxu0 %v9707
    %9824 = vmatprep.subr.mxu0 0.0
    %9825 = vmatpush1.msra.mxu0 %v9708
    %9826 = vmatprep.subr.mxu0 0.0
    %9827 = vmatpush1.msra.mxu0 %v9709
    %9828 = vmatprep.subr.mxu0 0.0
    %9829 = vmatpush1.msra.mxu0 %v9710
    %9830 = vmatprep.subr.mxu0 0.0
    %9831 = vmatpush1.msra.mxu0 %v9711
    %9832 = vmatprep.subr.mxu0 0.0
    %9833 = vmatpush1.msra.mxu0 %v9712
    %9834 = vmatprep.subr.mxu0 0.0
    %9835 = vmatpush1.msra.mxu0 %v9713
    %9836 = vmatprep.subr.mxu0 0.0
    %9837 = vmatpush1.msra.mxu0 %v9714
    %9838 = vmatprep.subr.mxu0 0.0
    %9839 = vmatpush1.msra.mxu0 %v9715
    %9840 = vmatprep.subr.mxu0 0.0
    %9841 = vmatpush1.msra.mxu0 %v9716
    %9842 = vmatprep.subr.mxu0 0.0
    %9843 = vmatpush1.msra.mxu0 %v9717
    %9844 = vmatprep.subr.mxu0 0.0
    %9845 = vmatpush1.msra.mxu0 %v9718
    %9846 = vmatprep.subr.mxu0 0.0
    %9847 = vmatpush1.msra.mxu0 %v9719
    %9848 = vmatprep.mubr.f32.mxu0 %v9753
    %9849 = vmatmul.mubr.f32.gmra.mrb[0].mxu0 %v9752
    %v9850 = vpop.f32.mrb[0].mxu0
    %v9851 = vadd.f32 0.0, %v9850
    %v9852 = vpop.f32.mrb[0].mxu0
    %9853 = vmatprep.mubr.f32.mxu0 %v9757
    %9854 = vmatmul.mubr.f32.gmra.mrb[0].mxu0 %v9756
    %v9855 = vpop.f32.mrb[0].mxu0
    %v9856 = vadd.f32 0.0, %v9855
    %v9857 = vpop.f32.mrb[0].mxu0
    %9858 = vmatprep.mubr.f32.mxu0 %v9761
    %9859 = vmatmul.mubr.f32.gmra.mrb[0].mxu0 %v9760
    %v9860 = vpop.f32.mrb[0].mxu0
    %v9861 = vadd.f32 0.0, %v9860
    %v9862 = vpop.f32.mrb[0].mxu0
    %9863 = vmatprep.mubr.f32.mxu0 %v9765
    %9864 = vmatmul.mubr.f32.gmra.mrb[0].mxu0 %v9764
    %v9865 = vpop.f32.mrb[0].mxu0
    %v9866 = vadd.f32 0.0, %v9865
    %v9867 = vpop.f32.mrb[0].mxu0
    %9868 = vdwg.mxu0
    %9869 = vmatprep.subr.mxu0 0.0
    %9870 = vmatpush1.msra.mxu0 %v9720
    %9871 = vmatprep.subr.mxu0 0.0
    %9872 = vmatpush1.msra.mxu0 %v9721
    %9873 = vmatprep.subr.mxu0 0.0
    %9874 = vmatpush1.msra.mxu0 %v9722
    %9875 = vmatprep.subr.mxu0 0.0
    %9876 = vmatpush1.msra.mxu0 %v9723
    %9877 = vmatprep.subr.mxu0 0.0
    %9878 = vmatpush1.msra.mxu0 %v9724
    %9879 = vmatprep.subr.mxu0 0.0
    %9880 = vmatpush1.msra.mxu0 %v9725
    %9881 = vmatprep.subr.mxu0 0.0
    %9882 = vmatpush1.msra.mxu0 %v9726
    %9883 = vmatprep.subr.mxu0 0.0
    %9884 = vmatpush1.msra.mxu0 %v9727
    %9885 = vmatprep.subr.mxu0 0.0
    %9886 = vmatpush1.msra.mxu0 %v9728
    %9887 = vmatprep.subr.mxu0 0.0
    %9888 = vmatpush1.msra.mxu0 %v9729
    %9889 = vmatprep.subr.mxu0 0.0
    %9890 = vmatpush1.msra.mxu0 %v9730
    %9891 = vmatprep.subr.mxu0 0.0
    %9892 = vmatpush1.msra.mxu0 %v9731
    %9893 = vmatprep.subr.mxu0 0.0
    %9894 = vmatpush1.msra.mxu0 %v9732
    %9895 = vmatprep.subr.mxu0 0.0
    %9896 = vmatpush1.msra.mxu0 %v9733
    %9897 = vmatprep.subr.mxu0 0.0
    %9898 = vmatpush1.msra.mxu0 %v9734
    %9899 = vmatprep.subr.mxu0 0.0
    %9900 = vmatpush1.msra.mxu0 %v9735
    %9901 = vmatprep.subr.mxu0 0.0
    %9902 = vmatpush1.msra.mxu0 %v9736
    %9903 = vmatprep.subr.mxu0 0.0
    %9904 = vmatpush1.msra.mxu0 %v9737
    %9905 = vmatprep.subr.mxu0 0.0
    %9906 = vmatpush1.msra.mxu0 %v9738
    %9907 = vmatprep.subr.mxu0 0.0
    %9908 = vmatpush1.msra.mxu0 %v9739
    %9909 = vmatprep.subr.mxu0 0.0
    %9910 = vmatpush1.msra.mxu0 %v9740
    %9911 = vmatprep.subr.mxu0 0.0
    %9912 = vmatpush1.msra.mxu0 %v9741
    %9913 = vmatprep.subr.mxu0 0.0
    %9914 = vmatpush1.msra.mxu0 %v9742
    %9915 = vmatprep.subr.mxu0 0.0
    %9916 = vmatpush1.msra.mxu0 %v9743
    %9917 = vmatprep.subr.mxu0 0.0
    %9918 = vmatpush1.msra.mxu0 %v9744
    %9919 = vmatprep.subr.mxu0 0.0
    %9920 = vmatpush1.msra.mxu0 %v9745
    %9921 = vmatprep.subr.mxu0 0.0
    %9922 = vmatpush1.msra.mxu0 %v9746
    %9923 = vmatprep.subr.mxu0 0.0
    %9924 = vmatpush1.msra.mxu0 %v9747
    %9925 = vmatprep.subr.mxu0 0.0
    %9926 = vmatpush1.msra.mxu0 %v9748
    %9927 = vmatprep.subr.mxu0 0.0
    %9928 = vmatpush1.msra.mxu0 %v9749
    %9929 = vmatprep.subr.mxu0 0.0
    %9930 = vmatpush1.msra.mxu0 %v9750
    %9931 = vmatprep.subr.mxu0 0.0
    %9932 = vmatpush1.msra.mxu0 %v9751
    %9933 = vmatprep.mubr.f32.mxu0 %v9755
    %9934 = vmatmul.mubr.f32.gmra.mrb[0].mxu0 %v9754
    %v9935 = vpop.f32.mrb[0].mxu0
    %v9936 = vadd.f32 %v9851, %v9935
    %v9937 = vpop.f32.mrb[0].mxu0
    %9938 = vmatprep.mubr.f32.mxu0 %v9759
    %9939 = vmatmul.mubr.f32.gmra.mrb[0].mxu0 %v9758
    %v9940 = vpop.f32.mrb[0].mxu0
    %v9941 = vadd.f32 %v9856, %v9940
    %v9942 = vpop.f32.mrb[0].mxu0
    %9943 = vmatprep.mubr.f32.mxu0 %v9763
    %9944 = vmatmul.mubr.f32.gmra.mrb[0].mxu0 %v9762
    %v9945 = vpop.f32.mrb[0].mxu0
    %v9946 = vadd.f32 %v9861, %v9945
    %v9947 = vpop.f32.mrb[0].mxu0
    %9948 = vmatprep.mubr.f32.mxu0 %v9767
    %9949 = vmatmul.mubr.f32.gmra.mrb[0].mxu0 %v9766
    %v9950 = vpop.f32.mrb[0].mxu0
    %v9951 = vadd.f32 %v9866, %v9950
    %v9952 = vpop.f32.mrb[0].mxu0
    %9953 = vdwg.mxu0
    %v9954 = vld [vmem:[%s8] sm:$0x1]
    %v9955 = vld [vmem:[%s9] sm:$0x1]
    %v9956 = vsel %vm7291, %v9936, 0.0
    %v9957 = vsel %vm7291, %v9941, 0.0
    %v9958 = vadd.f32 %v9956, %v9957
    %v9959 = vsel %vm7291, %v9946, 0.0
    %v9960 = vadd.f32 %v9958, %v9959
    %v9961 = vsel %vm7291, %v9951, 0.0
    %v9962 = vadd.f32 %v9960, %v9961
    %v9963 = vrot.slane %v9962, 4
    %v9964 = vadd.f32 %v9962, %v9963
    %v9965 = vrot.slane %v9964, 2
    %v9966 = vadd.f32 %v9964, %v9965
    %v9967 = vrot.slane %v9966, 1
    %v9968 = vadd.f32 %v9966, %v9967
    %v9969 = vmul.f32 %v9936, %v9936
    %v9970 = vmul.f32 %v9941, %v9941
    %v9971 = vmul.f32 %v9946, %v9946
    %v9972 = vmul.f32 %v9951, %v9951
    %v9973 = vsel %vm7291, %v9969, 0.0
    %v9974 = vsel %vm7291, %v9970, 0.0
    %v9975 = vadd.f32 %v9973, %v9974
    %v9976 = vsel %vm7291, %v9971, 0.0
    %v9977 = vadd.f32 %v9975, %v9976
    %v9978 = vsel %vm7291, %v9972, 0.0
    %v9979 = vadd.f32 %v9977, %v9978
    %v9980 = vrot.slane %v9979, 4
    %v9981 = vadd.f32 %v9979, %v9980
    %v9982 = vrot.slane %v9981, 2
    %v9983 = vadd.f32 %v9981, %v9982
    %v9984 = vrot.slane %v9983, 1
    %v9985 = vadd.f32 %v9983, %v9984
    %v9986 = vmul.f32 %v9968, 0.03125
    %v9987 = vmul.f32 %v9985, 0.03125
    %v9988 = vmul.f32 %v9986, %v9986
    %v9989 = vsub.f32 %v9987, %v9988
    %v9990 = vsub.f32 %v9936, %v9986
    %v9991 = vsub.f32 %v9941, %v9986
    %v9992 = vsub.f32 %v9946, %v9986
    %v9993 = vsub.f32 %v9951, %v9986
    %v9994 = vadd.f32 %v9989, 1e-05
    %v9995 = vrsqrt.pop %v9994
    %v9996 = vmul.f32 %v9990, %v9995
    %v9997 = vmul.f32 %v9991, %v9995
    %v9998 = vmul.f32 %v9992, %v9995
    %v9999 = vmul.f32 %v9993, %v9995
    %v10001 = vlaneseq
    %v10002 = vshrl.u32 %v10001, 7
    %v10003 = vsub.s32 0, %v10002
    %v10004 = vrot.slane %v9954, %v10003
    %v10006 = vmul.f32 %v9996, %v10004
    %v10007 = vmul.f32 %v9997, %v10004
    %v10008 = vmul.f32 %v9998, %v10004
    %v10009 = vmul.f32 %v9999, %v10004
    %v10011 = vlaneseq
    %v10012 = vshrl.u32 %v10011, 7
    %v10013 = vsub.s32 0, %v10012
    %v10014 = vrot.slane %v9955, %v10013
    %v10016 = vadd.f32 %v10006, %v10014
    %v10017 = vadd.f32 %v10007, %v10014
    %v10018 = vadd.f32 %v10008, %v10014
    %v10019 = vadd.f32 %v10009, %v10014
    %v10020 = vmax.f32 %v10016, 0.0
    %v10021 = vmax.f32 %v10017, 0.0
    %v10022 = vmax.f32 %v10018, 0.0
    %v10023 = vmax.f32 %v10019, 0.0
    %v10024 = vsel %vm7291, %v10020, 0.0
    %v10025 = vsel %vm7291, %v10021, 0.0
    %v10026 = vadd.f32 %v10024, %v10025
    %v10027 = vrot.slane %v10026, 4
    %v10028 = vadd.f32 %v10026, %v10027
    %v10029 = vrot.slane %v10028, 2
    %v10030 = vadd.f32 %v10028, %v10029
    %v10031 = vrot.slane %v10030, 1
    %v10032 = vadd.f32 %v10030, %v10031
    %v10033 = vsel %vm7291, %v10022, 0.0
    %v10034 = vsel %vm7291, %v10023, 0.0
    %v10035 = vadd.f32 %v10033, %v10034
    %v10036 = vrot.slane %v10035, 4
    %v10037 = vadd.f32 %v10035, %v10036
    %v10038 = vrot.slane %v10037, 2
    %v10039 = vadd.f32 %v10037, %v10038
    %v10040 = vrot.slane %v10039, 1
    %v10041 = vadd.f32 %v10039, %v10040
    %v10042 = vld [vmem:[%s10] sm:$0xff]
    %v10043 = vld [vmem:[%s10 + $0x8] sm:$0xff]
    %v10044 = vld [vmem:[%s10 + $0x10] sm:$0xff]
    %v10045 = vld [vmem:[%s10 + $0x18] sm:$0xff]
    %v10046 = vld [vmem:[%s10 + $0x20] sm:$0xff]
    %v10047 = vld [vmem:[%s10 + $0x28] sm:$0xff]
    %v10048 = vld [vmem:[%s10 + $0x30] sm:$0xff]
    %v10049 = vld [vmem:[%s10 + $0x38] sm:$0xff]
    %v10052 = vsel %vm3751, %v10041, %v10032
    %v10053 = vsel %vm7291, %v10052, 0
    %10055 = vmatprep.subr.mxu0 0.0
    %10056 = vmatpush1.msra.mxu0 %v10042
    %10057 = vmatprep.subr.mxu0 0.0
    %10058 = vmatpush1.msra.mxu0 %v10043
    %10059 = vmatprep.subr.mxu0 0.0
    %10060 = vmatpush1.msra.mxu0 %v10044
    %10061 = vmatprep.subr.mxu0 0.0
    %10062 = vmatpush1.msra.mxu0 %v10045
    %10063 = vmatprep.subr.mxu0 0.0
    %10064 = vmatpush1.msra.mxu0 %v10046
    %10065 = vmatprep.subr.mxu0 0.0
    %10066 = vmatpush1.msra.mxu0 %v10047
    %10067 = vmatprep.subr.mxu0 0.0
    %10068 = vmatpush1.msra.mxu0 %v10048
    %10069 = vmatprep.subr.mxu0 0.0
    %10070 = vmatpush1.msra.mxu0 %v10049
    %10071 = vmatprep.subr.mxu0 0.0
    %10072 = vmatpush1.msra.mxu0 0.0
    %10073 = vmatprep.subr.mxu0 0.0
    %10074 = vmatpush1.msra.mxu0 0.0
    %10075 = vmatprep.subr.mxu0 0.0
    %10076 = vmatpush1.msra.mxu0 0.0
    %10077 = vmatprep.subr.mxu0 0.0
    %10078 = vmatpush1.msra.mxu0 0.0
    %10079 = vmatprep.subr.mxu0 0.0
    %10080 = vmatpush1.msra.mxu0 0.0
    %10081 = vmatprep.subr.mxu0 0.0
    %10082 = vmatpush1.msra.mxu0 0.0
    %10083 = vmatprep.subr.mxu0 0.0
    %10084 = vmatpush1.msra.mxu0 0.0
    %10085 = vmatprep.subr.mxu0 0.0
    %10086 = vmatpush1.msra.mxu0 0.0
    %10087 = vmatprep.subr.mxu0 0.0
    %10088 = vmatpush1.msra.mxu0 0.0
    %10089 = vmatprep.subr.mxu0 0.0
    %10090 = vmatpush1.msra.mxu0 0.0
    %10091 = vmatprep.subr.mxu0 0.0
    %10092 = vmatpush1.msra.mxu0 0.0
    %10093 = vmatprep.subr.mxu0 0.0
    %10094 = vmatpush1.msra.mxu0 0.0
    %10095 = vmatprep.subr.mxu0 0.0
    %10096 = vmatpush1.msra.mxu0 0.0
    %10097 = vmatprep.subr.mxu0 0.0
    %10098 = vmatpush1.msra.mxu0 0.0
    %10099 = vmatprep.subr.mxu0 0.0
    %10100 = vmatpush1.msra.mxu0 0.0
    %10101 = vmatprep.subr.mxu0 0.0
    %10102 = vmatpush1.msra.mxu0 0.0
    %10103 = vmatprep.subr.mxu0 0.0
    %10104 = vmatpush1.msra.mxu0 0.0
    %10105 = vmatprep.subr.mxu0 0.0
    %10106 = vmatpush1.msra.mxu0 0.0
    %10107 = vmatprep.subr.mxu0 0.0
    %10108 = vmatpush1.msra.mxu0 0.0
    %10109 = vmatprep.subr.mxu0 0.0
    %10110 = vmatpush1.msra.mxu0 0.0
    %10111 = vmatprep.subr.mxu0 0.0
    %10112 = vmatpush1.msra.mxu0 0.0
    %10113 = vmatprep.subr.mxu0 0.0
    %10114 = vmatpush1.msra.mxu0 0.0
    %10115 = vmatprep.subr.mxu0 0.0
    %10116 = vmatpush1.msra.mxu0 0.0
    %10117 = vmatprep.subr.mxu0 0.0
    %10118 = vmatpush1.msra.mxu0 0.0
    %10119 = vmatprep.mubr.f32.mxu0 0.0
    %10120 = vmatmul.mubr.f32.gmra.mrb[0].mxu0 %v10053
    %v10121 = vpop.f32.mrb[0].mxu0
    %v10122 = vadd.f32 0.0, %v10121
    %v10123 = vpop.f32.mrb[0].mxu0
    %10124 = vdwg.mxu0
    %v10125 = vld [vmem:[%s11] sm:$0x1]
    %v10126 = vld [vmem:[%s12] sm:$0x1]
    %vm10127 = vcmask 517120
    %v10128 = vsel %vm10127, %v10122, 0.0
    %v10129 = vrot.slane %v10128, 4
    %v10130 = vadd.f32 %v10128, %v10129
    %v10131 = vrot.slane %v10130, 2
    %v10132 = vadd.f32 %v10130, %v10131
    %v10133 = vrot.slane %v10132, 1
    %v10134 = vadd.f32 %v10132, %v10133
    %v10135 = vmul.f32 %v10122, %v10122
    %v10136 = vsel %vm10127, %v10135, 0.0
    %v10137 = vrot.slane %v10136, 4
    %v10138 = vadd.f32 %v10136, %v10137
    %v10139 = vrot.slane %v10138, 2
    %v10140 = vadd.f32 %v10138, %v10139
    %v10141 = vrot.slane %v10140, 1
    %v10142 = vadd.f32 %v10140, %v10141
    %v10143 = vmul.f32 %v10134, 0.5
    %v10144 = vmul.f32 %v10142, 0.5
    %v10145 = vmul.f32 %v10143, %v10143
    %v10146 = vsub.f32 %v10144, %v10145
    %v10147 = vsub.f32 %v10122, %v10143
    %v10148 = vadd.f32 %v10146, 1e-05
    %v10149 = vrsqrt.pop %v10148
    %v10150 = vmul.f32 %v10147, %v10149
    %v10152 = vlaneseq
    %v10153 = vshrl.u32 %v10152, 7
    %v10154 = vsub.s32 0, %v10153
    %v10155 = vrot.slane %v10125, %v10154
    %v10157 = vmul.f32 %v10150, %v10155
    %v10159 = vlaneseq
    %v10160 = vshrl.u32 %v10159, 7
    %v10161 = vsub.s32 0, %v10160
    %v10162 = vrot.slane %v10126, %v10161
    %v10164 = vadd.f32 %v10157, %v10162
    %v10165 = vmax.f32 %v10164, 0.0
    %v10166 = vld [vmem:[%s13] sm:$0xff]
    %v10167 = vld [vmem:[%s13 + $0x8] sm:$0xff]
    %v10168 = vld [vmem:[%s13 + $0x10] sm:$0xff]
    %v10169 = vld [vmem:[%s13 + $0x18] sm:$0xff]
    %v10170 = vld [vmem:[%s13 + $0x20] sm:$0xff]
    %v10171 = vld [vmem:[%s13 + $0x28] sm:$0xff]
    %v10172 = vld [vmem:[%s13 + $0x30] sm:$0xff]
    %v10173 = vld [vmem:[%s13 + $0x38] sm:$0xff]
    %v10174 = vld [vmem:[%s14] sm:$0x1]
    %v10176 = vlaneseq
    %v10177 = vshrl.u32 %v10176, 7
    %v10178 = vsub.s32 0, %v10177
    %v10179 = vrot.slane %v10174, %v10178
    %v10182 = vsel %vm7291, %v10165, 0
    %10184 = vmatprep.subr.mxu0 0.0
    %10185 = vmatpush1.msra.mxu0 %v10166
    %10186 = vmatprep.subr.mxu0 0.0
    %10187 = vmatpush1.msra.mxu0 %v10167
    %10188 = vmatprep.subr.mxu0 0.0
    %10189 = vmatpush1.msra.mxu0 %v10168
    %10190 = vmatprep.subr.mxu0 0.0
    %10191 = vmatpush1.msra.mxu0 %v10169
    %10192 = vmatprep.subr.mxu0 0.0
    %10193 = vmatpush1.msra.mxu0 %v10170
    %10194 = vmatprep.subr.mxu0 0.0
    %10195 = vmatpush1.msra.mxu0 %v10171
    %10196 = vmatprep.subr.mxu0 0.0
    %10197 = vmatpush1.msra.mxu0 %v10172
    %10198 = vmatprep.subr.mxu0 0.0
    %10199 = vmatpush1.msra.mxu0 %v10173
    %10200 = vmatprep.subr.mxu0 0.0
    %10201 = vmatpush1.msra.mxu0 0.0
    %10202 = vmatprep.subr.mxu0 0.0
    %10203 = vmatpush1.msra.mxu0 0.0
    %10204 = vmatprep.subr.mxu0 0.0
    %10205 = vmatpush1.msra.mxu0 0.0
    %10206 = vmatprep.subr.mxu0 0.0
    %10207 = vmatpush1.msra.mxu0 0.0
    %10208 = vmatprep.subr.mxu0 0.0
    %10209 = vmatpush1.msra.mxu0 0.0
    %10210 = vmatprep.subr.mxu0 0.0
    %10211 = vmatpush1.msra.mxu0 0.0
    %10212 = vmatprep.subr.mxu0 0.0
    %10213 = vmatpush1.msra.mxu0 0.0
    %10214 = vmatprep.subr.mxu0 0.0
    %10215 = vmatpush1.msra.mxu0 0.0
    %10216 = vmatprep.subr.mxu0 0.0
    %10217 = vmatpush1.msra.mxu0 0.0
    %10218 = vmatprep.subr.mxu0 0.0
    %10219 = vmatpush1.msra.mxu0 0.0
    %10220 = vmatprep.subr.mxu0 0.0
    %10221 = vmatpush1.msra.mxu0 0.0
    %10222 = vmatprep.subr.mxu0 0.0
    %10223 = vmatpush1.msra.mxu0 0.0
    %10224 = vmatprep.subr.mxu0 0.0
    %10225 = vmatpush1.msra.mxu0 0.0
    %10226 = vmatprep.subr.mxu0 0.0
    %10227 = vmatpush1.msra.mxu0 0.0
    %10228 = vmatprep.subr.mxu0 0.0
    %10229 = vmatpush1.msra.mxu0 0.0
    %10230 = vmatprep.subr.mxu0 0.0
    %10231 = vmatpush1.msra.mxu0 0.0
    %10232 = vmatprep.subr.mxu0 0.0
    %10233 = vmatpush1.msra.mxu0 0.0
    %10234 = vmatprep.subr.mxu0 0.0
    %10235 = vmatpush1.msra.mxu0 0.0
    %10236 = vmatprep.subr.mxu0 0.0
    %10237 = vmatpush1.msra.mxu0 0.0
    %10238 = vmatprep.subr.mxu0 0.0
    %10239 = vmatpush1.msra.mxu0 0.0
    %10240 = vmatprep.subr.mxu0 0.0
    %10241 = vmatpush1.msra.mxu0 0.0
    %10242 = vmatprep.subr.mxu0 0.0
    %10243 = vmatpush1.msra.mxu0 0.0
    %10244 = vmatprep.subr.mxu0 0.0
    %10245 = vmatpush1.msra.mxu0 0.0
    %10246 = vmatprep.subr.mxu0 0.0
    %10247 = vmatpush1.msra.mxu0 0.0
    %10248 = vmatprep.mubr.f32.mxu0 0.0
    %10249 = vmatmul.mubr.f32.gmra.mrb[0].mxu0 %v10182
    %v10250 = vpop.f32.mrb[0].mxu0
    %v10251 = vadd.f32 %v10179, %v10250
    %v10252 = vpop.f32.mrb[0].mxu0
    %10253 = vdwg.mxu0
    %v10254 = vld [vmem:[%s15] sm:$0x3]
    %v10255 = vmul.f32 %v10251, 0.5
    %v10256 = vmul.f32 %v10255, 1.442695
    %v10257 = vpow.pop %v10256
    %10259 = vrot.lane.b32.xlu0 %v10257, 112
    %v10260 = vpop.permute.xlu0 %10259
    %v10262 = vmul.f32 %v10254, %v10260
    %v10263 = vadd.f32 %v10251, %v10262
    %10264 = vst.msk [vmem:[#allocation4] sm:$0x3] %vm1375, %v10263
    // Predicated region
    $region66: #{encoder_forward.1} parent=1 // pred_check
      _
    $region67: #{encoder_forward.1} parent=1 // pred_check_branch
      %10266 = sbr.rel (0) target = $region69
    $region68: #{encoder_forward.1} parent=1 // pred_region
      %s10268 = ssub.s32 32, 32
      %10269 = vsyncadd [#allocation5], %s10268
      %s10271 = sshll.u32 [#allocation4], 4
      %s10272 = int_to_ptr.vmem [resolvable:$true] %s10271
      %10274 = dma.vmem_to_hbm [thread:$0]  %s10272, 32, %s16, [#allocation5]
    $region69: #{encoder_forward.1} parent=1 // pred_fallthru
      _
    // Predicated region
    $region70: #{encoder_forward.1} parent=1 // pred_check
      _
    $region71: #{encoder_forward.1} parent=1 // pred_check_branch
      %10276 = sbr.rel (0) target = $region73
    $region72: #{encoder_forward.1} parent=1 // pred_region
      %10277 = dma.done [#allocation5], 32
    $region73: #{encoder_forward.1} parent=1 // pred_fallthru
      _
    %10278 = vsyncpa [#allocation5], 1

</llo_original>
